<compile_context>
chip_gen: v5e
topology: v5e:2x2
jax: 0.10.0
libtpu: 0.0.40
codegen_flags: <defaults>
</compile_context>

<pallas_src>
import jax
import jax.numpy as jnp
from jax.experimental import pallas as pl
from jax.experimental.pallas import tpu as pltpu


# ---------------------------------------------------------------------------
# Tile-size helper (VMEM-budgeted, conservative enough for v7x's 64 MiB VMEM)
# ---------------------------------------------------------------------------
def _pick_tm(m, bytes_per_row, cap=256, vmem_budget=8 << 20):
    """Largest power-of-two M-tile (<= cap) dividing m whose double-buffered
    footprint stays within a conservative VMEM budget."""
    cap = max(8, min(cap, vmem_budget // max(1, 2 * bytes_per_row)))
    best = m
    t = 8
    while t <= min(cap, m):
        if m % t == 0:
            best = t
        t *= 2
    return best


# ---------------------------------------------------------------------------
# Kernel 1: fused 3x3 conv (im2col) + folded BN + ReLU + 2x2 max-pool
# ---------------------------------------------------------------------------
def _conv_pool_kernel(x_ref, w_ref, b_ref, o_ref):
    # x_ref: (4, TM, 9*Cin) bf16 -- the four 2x2-pool taps of im2col patches.
    # y_t = x_t @ W_folded (BN scale folded into W, f32 accumulation on MXU);
    # pool = max over taps (bias is per-channel so it commutes with the max);
    # then bias + ReLU, single lane-wise store of the pooled tile.
    w = w_ref[...]
    acc = jnp.dot(x_ref[0], w, preferred_element_type=jnp.float32)
    for t in range(1, 4):
        acc = jnp.maximum(acc, jnp.dot(x_ref[t], w,
                                       preferred_element_type=jnp.float32))
    o_ref[...] = jnp.maximum(acc + b_ref[...], 0.0)


def conv_bn_relu_pool(x, w_folded, bias):
    """Fused 3x3 conv (padding=1) + inference BatchNorm + ReLU + MaxPool2d(2,2).

    x:        (B, H, W, Cin) float32, H and W even.
    w_folded: (9*Cin, Cout)  bfloat16, BN scale already folded in.
    bias:     (1, Cout)      float32, BN-folded bias.
    returns   (B, H//2, W//2, Cout) float32.
    """
    B, H, W, C = x.shape
    assert H % 2 == 0 and W % 2 == 0
    Ho, Wo = H // 2, W // 2
    K = 9 * C
    Cout = w_folded.shape[1]

    # im2col with the four 2x2-pool taps hoisted to a leading axis so the
    # kernel can pool in its epilogue (pooled output only is written to HBM).
    xp = jnp.pad(x, ((0, 0), (1, 1), (1, 1), (0, 0)))
    cols = [xp[:, i:i + H, j:j + W, :] for i in range(3) for j in range(3)]
    patches = jnp.stack(cols, axis=3).reshape(B, H, W, K)
    patches = patches.reshape(B, Ho, 2, Wo, 2, K)
    patches = jnp.transpose(patches, (2, 4, 0, 1, 3, 5)).reshape(
        4, B * Ho * Wo, K)
    patches = patches.astype(jnp.bfloat16)

    M = B * Ho * Wo
    tm = _pick_tm(M, bytes_per_row=4 * K * 2 + Cout * 4)

    out = pl.pallas_call(
        _conv_pool_kernel,
        out_shape=jax.ShapeDtypeStruct((M, Cout), jnp.float32),
        grid=(M // tm,),
        in_specs=[
            pl.BlockSpec((4, tm, K), lambda i: (0, i, 0)),
            pl.BlockSpec((K, Cout), lambda i: (0, 0)),
            pl.BlockSpec((1, Cout), lambda i: (0, 0)),
        ],
        out_specs=pl.BlockSpec((tm, Cout), lambda i: (i, 0)),
        compiler_params=pltpu.CompilerParams(
            dimension_semantics=("parallel",)),
    )(patches, w_folded, bias)
    return out.reshape(B, Ho, Wo, Cout)


# ---------------------------------------------------------------------------
# Kernel 2: fused MLP head (fc1 + ReLU + [dropout=id] + fc2 + ReLU + fc3)
# ---------------------------------------------------------------------------
def _mlp_kernel(x_ref, w1_ref, b1_ref, w2_ref, b2_ref, w3_ref, b3_ref, o_ref):
    h = jnp.dot(x_ref[...], w1_ref[...], preferred_element_type=jnp.float32)
    h = jnp.maximum(h + b1_ref[...], 0.0).astype(jnp.bfloat16)
    # Dropout(0.5) is identity in eval/inference mode.
    h = jnp.dot(h, w2_ref[...], preferred_element_type=jnp.float32)
    h = jnp.maximum(h + b2_ref[...], 0.0).astype(jnp.bfloat16)
    y = jnp.dot(h, w3_ref[...], preferred_element_type=jnp.float32)
    o_ref[...] = y + b3_ref[...]


def mlp_head(x, w1, b1, w2, b2, w3, b3):
    """Fused fc1+ReLU+fc2+ReLU+fc3 in a single pallas_call.  fc3 is zero-padded
    to 128 output lanes (lane-dense store); the caller takes column 0."""
    M, K = x.shape
    H1, H2, N3 = w1.shape[1], w2.shape[1], w3.shape[1]
    weight_bytes = (K * H1 + H1 * H2 + H2 * N3) * 2
    tm = _pick_tm(M, bytes_per_row=K * 2 + N3 * 4,
                  vmem_budget=(16 << 20) - 2 * weight_bytes)

    out = pl.pallas_call(
        _mlp_kernel,
        out_shape=jax.ShapeDtypeStruct((M, N3), jnp.float32),
        grid=(M // tm,),
        in_specs=[
            pl.BlockSpec((tm, K), lambda i: (i, 0)),
            pl.BlockSpec((K, H1), lambda i: (0, 0)),
            pl.BlockSpec((1, H1), lambda i: (0, 0)),
            pl.BlockSpec((H1, H2), lambda i: (0, 0)),
            pl.BlockSpec((1, H2), lambda i: (0, 0)),
            pl.BlockSpec((H2, N3), lambda i: (0, 0)),
            pl.BlockSpec((1, N3), lambda i: (0, 0)),
        ],
        out_specs=pl.BlockSpec((tm, N3), lambda i: (i, 0)),
        compiler_params=pltpu.CompilerParams(
            dimension_semantics=("parallel",)),
    )(x.astype(jnp.bfloat16), w1, b1, w2, b2, w3, b3)
    return out[:, 0]


# ---------------------------------------------------------------------------
# Parameters (PyTorch-layout synthetic init) and one-time preparation
# ---------------------------------------------------------------------------
def init_params(key):
    ks = jax.random.split(key, 18)

    def nrm(k, shape, scale=0.05):
        return scale * jax.random.normal(k, shape, dtype=jnp.float32)

    return {
        "conv1_w": nrm(ks[0], (32, 1, 3, 3)),
        "conv1_b": nrm(ks[1], (32,)),
        "bn1_gamma": 1.0 + 0.1 * jax.random.normal(ks[2], (32,), jnp.float32),
        "bn1_beta": nrm(ks[3], (32,)),
        "bn1_mean": nrm(ks[4], (32,)),
        "bn1_var": 1.0 + 0.1 * jnp.abs(jax.random.normal(ks[5], (32,), jnp.float32)),
        "conv2_w": nrm(ks[6], (64, 32, 3, 3)),
        "conv2_b": nrm(ks[7], (64,)),
        "bn2_gamma": 1.0 + 0.1 * jax.random.normal(ks[8], (64,), jnp.float32),
        "bn2_beta": nrm(ks[9], (64,)),
        "bn2_mean": nrm(ks[10], (64,)),
        "bn2_var": 1.0 + 0.1 * jnp.abs(jax.random.normal(ks[11], (64,), jnp.float32)),
        "fc1_w": nrm(ks[12], (256, 64 * 8 * 8), 0.02),
        "fc1_b": nrm(ks[13], (256,)),
        "fc2_w": nrm(ks[14], (128, 256), 0.02),
        "fc2_b": nrm(ks[15], (128,)),
        "fc3_w": nrm(ks[16], (1, 128), 0.02),
        "fc3_b": nrm(ks[17], (1,)),
    }


def prepare_params(p, eps=1e-5):
    """Fold inference BatchNorm into conv weights, permute fc1's input axis to
    the NHWC flatten order, pad fc3 to 128 lanes, cast matmul operands to bf16
    (biases stay f32 and are applied to the f32 accumulator)."""

    def fold_conv(w, b, gamma, beta, mean, var):
        s = gamma / jnp.sqrt(var + eps)                             # (Cout,)
        cout, cin = w.shape[0], w.shape[1]
        w_im2col = jnp.transpose(w, (2, 3, 1, 0)).reshape(9 * cin, cout)
        w_folded = (w_im2col * s[None, :]).astype(jnp.bfloat16)
        b_folded = ((b - mean) * s + beta).reshape(1, cout).astype(jnp.float32)
        return w_folded, b_folded

    c1w, c1b = fold_conv(p["conv1_w"], p["conv1_b"], p["bn1_gamma"],
                         p["bn1_beta"], p["bn1_mean"], p["bn1_var"])
    c2w, c2b = fold_conv(p["conv2_w"], p["conv2_b"], p["bn2_gamma"],
                         p["bn2_beta"], p["bn2_mean"], p["bn2_var"])

    # fc1: PyTorch flattens (C, H, W); we feed NHWC, so permute the weight's
    # input axis once here instead of transposing the activation at runtime.
    w1 = p["fc1_w"].reshape(256, 64, 8, 8)
    w1 = jnp.transpose(w1, (0, 2, 3, 1)).reshape(256, 64 * 8 * 8)
    w1 = jnp.transpose(w1, (1, 0)).astype(jnp.bfloat16)             # (4096, 256)
    b1 = p["fc1_b"].reshape(1, 256).astype(jnp.float32)

    w2 = jnp.transpose(p["fc2_w"], (1, 0)).astype(jnp.bfloat16)     # (256, 128)
    b2 = p["fc2_b"].reshape(1, 128).astype(jnp.float32)

    # fc3: pad N=1 -> 128 so the fused MLP kernel's final store is lane-dense.
    w3 = jnp.transpose(p["fc3_w"], (1, 0))                          # (128, 1)
    w3 = jnp.pad(w3, ((0, 0), (0, 127))).astype(jnp.bfloat16)       # (128, 128)
    b3 = jnp.pad(p["fc3_b"], (0, 127)).reshape(1, 128).astype(jnp.float32)

    return {"c1_w": c1w, "c1_b": c1b, "c2_w": c2w, "c2_b": c2b,
            "fc1_w": w1, "fc1_b": b1, "fc2_w": w2, "fc2_b": b2,
            "fc3_w": w3, "fc3_b": b3}


# ---------------------------------------------------------------------------
# Forward pass
# ---------------------------------------------------------------------------
def cnn_forward(x_nchw, pp):
    B = x_nchw.shape[0]
    x = jnp.transpose(x_nchw, (0, 2, 3, 1)).astype(jnp.float32)     # NCHW->NHWC

    y = conv_bn_relu_pool(x, pp["c1_w"], pp["c1_b"])                # (B,H/2,W/2,32)
    y = conv_bn_relu_pool(y, pp["c2_w"], pp["c2_b"])                # (B,H/4,W/4,64)

    if y.shape[1:3] != (8, 8):
        # TODO(synk): implement AdaptiveAvgPool2d((8,8)) for inputs != 32x32;
        # with 32x32 inputs the adaptive pool is exactly the identity.
        raise NotImplementedError("expected an 8x8 feature map (32x32 input)")

    # NHWC flatten; fc1's weight rows were pre-permuted to match this order.
    y = y.reshape(B, 8 * 8 * 64)
    return mlp_head(y, pp["fc1_w"], pp["fc1_b"], pp["fc2_w"], pp["fc2_b"],
                    pp["fc3_w"], pp["fc3_b"])                       # (B,)


if __name__ == "__main__":
    key = jax.random.PRNGKey(0)
    pkey, xkey = jax.random.split(key)
    params = prepare_params(init_params(pkey))
    # 32x32 input: after two 2x2 pools the adaptive (8,8) pool is the identity,
    # matching the PyTorch graph.
    x = jax.random.normal(xkey, (2, 1, 32, 32), dtype=jnp.float32)  # NCHW

    out = jax.jit(cnn_forward)(x, params)
    out = jax.block_until_ready(out)
    assert out.shape == (2,), out.shape
    assert out.dtype == jnp.float32
    print("KERNEL_OK")
</pallas_src>

<mosaic_0001>
module attributes {stable_mosaic.version = 11 : i64} {
  func.func @_conv_pool_kernel(%arg0: i32, %arg1: memref<4x256x9xbf16, #tpu.memory_space<vmem>>, %arg2: memref<9x32xbf16, #tpu.memory_space<vmem>>, %arg3: memref<1x32xf32, #tpu.memory_space<vmem>>, %arg4: memref<256x32xf32, #tpu.memory_space<vmem>>) attributes {dimension_semantics = [#tpu.dimension_semantics<parallel>], iteration_bounds = array<i64: 2>, scalar_prefetch = 0 : i64, scratch_operands = 0 : i64, tpu.core_type = #tpu.core_type<tc>, window_params = [{transform_indices = @transform_0, window_bounds = array<i64: 4, 256, 9>}, {pipeline_mode = #tpu.pipeline_mode<synchronous>, transform_indices = @transform_1, window_bounds = array<i64: 9, 32>}, {pipeline_mode = #tpu.pipeline_mode<synchronous>, transform_indices = @transform_2, window_bounds = array<i64: 1, 32>}, {transform_indices = @transform_3, window_bounds = array<i64: 256, 32>}]} {
    %c0 = arith.constant 0 : index
    %c0_0 = arith.constant 0 : index
    %0 = vector.load %arg2[%c0, %c0_0] : memref<9x32xbf16, #tpu.memory_space<vmem>>, vector<9x32xbf16>
    %c0_1 = arith.constant 0 : index
    %c0_2 = arith.constant 0 : index
    %c0_3 = arith.constant 0 : index
    %1 = vector.load %arg1[%c0_1, %c0_2, %c0_3] : memref<4x256x9xbf16, #tpu.memory_space<vmem>>, vector<1x256x9xbf16>
    %2 = vector.shape_cast %1 : vector<1x256x9xbf16> to vector<256x9xbf16>
    %cst = arith.constant dense<0.000000e+00> : vector<256x32xf32>
    %3 = tpu.matmul %2, %0, %cst {dimension_numbers = #tpu.dot_dimension_numbers<[1], [0], [0], [1], [0, 0, 1, 1], [], []>} : vector<256x9xbf16>, vector<9x32xbf16>, vector<256x32xf32> -> vector<256x32xf32>
    %c1 = arith.constant 1 : index
    %c0_4 = arith.constant 0 : index
    %c0_5 = arith.constant 0 : index
    %4 = vector.load %arg1[%c1, %c0_4, %c0_5] : memref<4x256x9xbf16, #tpu.memory_space<vmem>>, vector<1x256x9xbf16>
    %5 = vector.shape_cast %4 : vector<1x256x9xbf16> to vector<256x9xbf16>
    %cst_6 = arith.constant dense<0.000000e+00> : vector<256x32xf32>
    %6 = tpu.matmul %5, %0, %cst_6 {dimension_numbers = #tpu.dot_dimension_numbers<[1], [0], [0], [1], [0, 0, 1, 1], [], []>} : vector<256x9xbf16>, vector<9x32xbf16>, vector<256x32xf32> -> vector<256x32xf32>
    %7 = arith.maximumf %3, %6 : vector<256x32xf32>
    %c2 = arith.constant 2 : index
    %c0_7 = arith.constant 0 : index
    %c0_8 = arith.constant 0 : index
    %8 = vector.load %arg1[%c2, %c0_7, %c0_8] : memref<4x256x9xbf16, #tpu.memory_space<vmem>>, vector<1x256x9xbf16>
    %9 = vector.shape_cast %8 : vector<1x256x9xbf16> to vector<256x9xbf16>
    %cst_9 = arith.constant dense<0.000000e+00> : vector<256x32xf32>
    %10 = tpu.matmul %9, %0, %cst_9 {dimension_numbers = #tpu.dot_dimension_numbers<[1], [0], [0], [1], [0, 0, 1, 1], [], []>} : vector<256x9xbf16>, vector<9x32xbf16>, vector<256x32xf32> -> vector<256x32xf32>
    %11 = arith.maximumf %7, %10 : vector<256x32xf32>
    %c3 = arith.constant 3 : index
    %c0_10 = arith.constant 0 : index
    %c0_11 = arith.constant 0 : index
    %12 = vector.load %arg1[%c3, %c0_10, %c0_11] : memref<4x256x9xbf16, #tpu.memory_space<vmem>>, vector<1x256x9xbf16>
    %13 = vector.shape_cast %12 : vector<1x256x9xbf16> to vector<256x9xbf16>
    %cst_12 = arith.constant dense<0.000000e+00> : vector<256x32xf32>
    %14 = tpu.matmul %13, %0, %cst_12 {dimension_numbers = #tpu.dot_dimension_numbers<[1], [0], [0], [1], [0, 0, 1, 1], [], []>} : vector<256x9xbf16>, vector<9x32xbf16>, vector<256x32xf32> -> vector<256x32xf32>
    %15 = arith.maximumf %11, %14 : vector<256x32xf32>
    %c0_13 = arith.constant 0 : index
    %c0_14 = arith.constant 0 : index
    %16 = vector.load %arg3[%c0_13, %c0_14] : memref<1x32xf32, #tpu.memory_space<vmem>>, vector<1x32xf32>
    %17 = vector.broadcast %16 : vector<1x32xf32> to vector<256x32xf32>
    %18 = arith.addf %15, %17 : vector<256x32xf32>
    %cst_15 = arith.constant 0.000000e+00 : f32
    %19 = vector.broadcast %cst_15 : f32 to vector<256x32xf32>
    %20 = arith.maximumf %18, %19 : vector<256x32xf32>
    %c0_16 = arith.constant 0 : index
    %c0_17 = arith.constant 0 : index
    %21 = vector.load %arg4[%c0_16, %c0_17] : memref<256x32xf32, #tpu.memory_space<vmem>>, vector<256x32xf32>
    tpu.vector_store %arg4[%c0_16, %c0_17], %20 {strides = array<i32>} : memref<256x32xf32, #tpu.memory_space<vmem>>, vector<256x32xf32>,
    return
  }
  func.func @transform_0(%arg0: i32) -> (i32, i32, i32) {
    %c0_i32 = arith.constant 0 : i32
    %c0_i32_0 = arith.constant 0 : i32
    %c0_i32_1 = arith.constant 0 : i32
    return %c0_i32, %arg0, %c0_i32_0 : i32, i32, i32
  }
  func.func @transform_1(%arg0: i32) -> (i32, i32) {
    %c0_i32 = arith.constant 0 : i32
    %c0_i32_0 = arith.constant 0 : i32
    %c0_i32_1 = arith.constant 0 : i32
    return %c0_i32, %c0_i32_0 : i32, i32
  }
  func.func @transform_2(%arg0: i32) -> (i32, i32) {
    %c0_i32 = arith.constant 0 : i32
    %c0_i32_0 = arith.constant 0 : i32
    %c0_i32_1 = arith.constant 0 : i32
    return %c0_i32, %c0_i32_0 : i32, i32
  }
  func.func @transform_3(%arg0: i32) -> (i32, i32) {
    %c0_i32 = arith.constant 0 : i32
    %c0_i32_0 = arith.constant 0 : i32
    return %arg0, %c0_i32 : i32, i32
  }
}

module attributes {stable_mosaic.version = 11 : i64} {
  func.func @_conv_pool_kernel(%arg0: i32, %arg1: memref<4x128x288xbf16, #tpu.memory_space<vmem>>, %arg2: memref<288x64xbf16, #tpu.memory_space<vmem>>, %arg3: memref<1x64xf32, #tpu.memory_space<vmem>>, %arg4: memref<128x64xf32, #tpu.memory_space<vmem>>) attributes {dimension_semantics = [#tpu.dimension_semantics<parallel>], iteration_bounds = array<i64: 1>, scalar_prefetch = 0 : i64, scratch_operands = 0 : i64, tpu.core_type = #tpu.core_type<tc>, window_params = [{transform_indices = @transform_0, window_bounds = array<i64: 4, 128, 288>}, {pipeline_mode = #tpu.pipeline_mode<synchronous>, transform_indices = @transform_1, window_bounds = array<i64: 288, 64>}, {pipeline_mode = #tpu.pipeline_mode<synchronous>, transform_indices = @transform_2, window_bounds = array<i64: 1, 64>}, {transform_indices = @transform_3, window_bounds = array<i64: 128, 64>}]} {
    %c0 = arith.constant 0 : index
    %c0_0 = arith.constant 0 : index
    %0 = vector.load %arg2[%c0, %c0_0] : memref<288x64xbf16, #tpu.memory_space<vmem>>, vector<288x64xbf16>
    %c0_1 = arith.constant 0 : index
    %c0_2 = arith.constant 0 : index
    %c0_3 = arith.constant 0 : index
    %1 = vector.load %arg1[%c0_1, %c0_2, %c0_3] : memref<4x128x288xbf16, #tpu.memory_space<vmem>>, vector<1x128x288xbf16>
    %2 = vector.shape_cast %1 : vector<1x128x288xbf16> to vector<128x288xbf16>
    %cst = arith.constant dense<0.000000e+00> : vector<128x64xf32>
    %3 = tpu.matmul %2, %0, %cst {dimension_numbers = #tpu.dot_dimension_numbers<[1], [0], [0], [1], [0, 0, 1, 1], [], []>} : vector<128x288xbf16>, vector<288x64xbf16>, vector<128x64xf32> -> vector<128x64xf32>
    %c1 = arith.constant 1 : index
    %c0_4 = arith.constant 0 : index
    %c0_5 = arith.constant 0 : index
    %4 = vector.load %arg1[%c1, %c0_4, %c0_5] : memref<4x128x288xbf16, #tpu.memory_space<vmem>>, vector<1x128x288xbf16>
    %5 = vector.shape_cast %4 : vector<1x128x288xbf16> to vector<128x288xbf16>
    %cst_6 = arith.constant dense<0.000000e+00> : vector<128x64xf32>
    %6 = tpu.matmul %5, %0, %cst_6 {dimension_numbers = #tpu.dot_dimension_numbers<[1], [0], [0], [1], [0, 0, 1, 1], [], []>} : vector<128x288xbf16>, vector<288x64xbf16>, vector<128x64xf32> -> vector<128x64xf32>
    %7 = arith.maximumf %3, %6 : vector<128x64xf32>
    %c2 = arith.constant 2 : index
    %c0_7 = arith.constant 0 : index
    %c0_8 = arith.constant 0 : index
    %8 = vector.load %arg1[%c2, %c0_7, %c0_8] : memref<4x128x288xbf16, #tpu.memory_space<vmem>>, vector<1x128x288xbf16>
    %9 = vector.shape_cast %8 : vector<1x128x288xbf16> to vector<128x288xbf16>
    %cst_9 = arith.constant dense<0.000000e+00> : vector<128x64xf32>
    %10 = tpu.matmul %9, %0, %cst_9 {dimension_numbers = #tpu.dot_dimension_numbers<[1], [0], [0], [1], [0, 0, 1, 1], [], []>} : vector<128x288xbf16>, vector<288x64xbf16>, vector<128x64xf32> -> vector<128x64xf32>
    %11 = arith.maximumf %7, %10 : vector<128x64xf32>
    %c3 = arith.constant 3 : index
    %c0_10 = arith.constant 0 : index
    %c0_11 = arith.constant 0 : index
    %12 = vector.load %arg1[%c3, %c0_10, %c0_11] : memref<4x128x288xbf16, #tpu.memory_space<vmem>>, vector<1x128x288xbf16>
    %13 = vector.shape_cast %12 : vector<1x128x288xbf16> to vector<128x288xbf16>
    %cst_12 = arith.constant dense<0.000000e+00> : vector<128x64xf32>
    %14 = tpu.matmul %13, %0, %cst_12 {dimension_numbers = #tpu.dot_dimension_numbers<[1], [0], [0], [1], [0, 0, 1, 1], [], []>} : vector<128x288xbf16>, vector<288x64xbf16>, vector<128x64xf32> -> vector<128x64xf32>
    %15 = arith.maximumf %11, %14 : vector<128x64xf32>
    %c0_13 = arith.constant 0 : index
    %c0_14 = arith.constant 0 : index
    %16 = vector.load %arg3[%c0_13, %c0_14] : memref<1x64xf32, #tpu.memory_space<vmem>>, vector<1x64xf32>
    %17 = vector.broadcast %16 : vector<1x64xf32> to vector<128x64xf32>
    %18 = arith.addf %15, %17 : vector<128x64xf32>
    %cst_15 = arith.constant 0.000000e+00 : f32
    %19 = vector.broadcast %cst_15 : f32 to vector<128x64xf32>
    %20 = arith.maximumf %18, %19 : vector<128x64xf32>
    %c0_16 = arith.constant 0 : index
    %c0_17 = arith.constant 0 : index
    %21 = vector.load %arg4[%c0_16, %c0_17] : memref<128x64xf32, #tpu.memory_space<vmem>>, vector<128x64xf32>
    tpu.vector_store %arg4[%c0_16, %c0_17], %20 {strides = array<i32>} : memref<128x64xf32, #tpu.memory_space<vmem>>, vector<128x64xf32>,
    return
  }
  func.func @transform_0(%arg0: i32) -> (i32, i32, i32) {
    %c0_i32 = arith.constant 0 : i32
    %c0_i32_0 = arith.constant 0 : i32
    %c0_i32_1 = arith.constant 0 : i32
    return %c0_i32, %arg0, %c0_i32_0 : i32, i32, i32
  }
  func.func @transform_1(%arg0: i32) -> (i32, i32) {
    %c0_i32 = arith.constant 0 : i32
    %c0_i32_0 = arith.constant 0 : i32
    %c0_i32_1 = arith.constant 0 : i32
    return %c0_i32, %c0_i32_0 : i32, i32
  }
  func.func @transform_2(%arg0: i32) -> (i32, i32) {
    %c0_i32 = arith.constant 0 : i32
    %c0_i32_0 = arith.constant 0 : i32
    %c0_i32_1 = arith.constant 0 : i32
    return %c0_i32, %c0_i32_0 : i32, i32
  }
  func.func @transform_3(%arg0: i32) -> (i32, i32) {
    %c0_i32 = arith.constant 0 : i32
    %c0_i32_0 = arith.constant 0 : i32
    return %arg0, %c0_i32 : i32, i32
  }
}

module attributes {stable_mosaic.version = 11 : i64} {
  func.func @_mlp_kernel(%arg0: i32, %arg1: memref<2x4096xbf16, #tpu.memory_space<vmem>>, %arg2: memref<4096x256xbf16, #tpu.memory_space<vmem>>, %arg3: memref<1x256xf32, #tpu.memory_space<vmem>>, %arg4: memref<256x128xbf16, #tpu.memory_space<vmem>>, %arg5: memref<1x128xf32, #tpu.memory_space<vmem>>, %arg6: memref<128x128xbf16, #tpu.memory_space<vmem>>, %arg7: memref<1x128xf32, #tpu.memory_space<vmem>>, %arg8: memref<2x128xf32, #tpu.memory_space<vmem>>) attributes {dimension_semantics = [#tpu.dimension_semantics<parallel>], iteration_bounds = array<i64: 1>, scalar_prefetch = 0 : i64, scratch_operands = 0 : i64, tpu.core_type = #tpu.core_type<tc>, window_params = [{transform_indices = @transform_0, window_bounds = array<i64: 2, 4096>}, {pipeline_mode = #tpu.pipeline_mode<synchronous>, transform_indices = @transform_1, window_bounds = array<i64: 4096, 256>}, {pipeline_mode = #tpu.pipeline_mode<synchronous>, transform_indices = @transform_2, window_bounds = array<i64: 1, 256>}, {pipeline_mode = #tpu.pipeline_mode<synchronous>, transform_indices = @transform_3, window_bounds = array<i64: 256, 128>}, {pipeline_mode = #tpu.pipeline_mode<synchronous>, transform_indices = @transform_4, window_bounds = array<i64: 1, 128>}, {pipeline_mode = #tpu.pipeline_mode<synchronous>, transform_indices = @transform_5, window_bounds = array<i64: 128, 128>}, {pipeline_mode = #tpu.pipeline_mode<synchronous>, transform_indices = @transform_6, window_bounds = array<i64: 1, 128>}, {transform_indices = @transform_7, window_bounds = array<i64: 2, 128>}]} {
    %c0 = arith.constant 0 : index
    %c0_0 = arith.constant 0 : index
    %0 = vector.load %arg1[%c0, %c0_0] : memref<2x4096xbf16, #tpu.memory_space<vmem>>, vector<2x4096xbf16>
    %c0_1 = arith.constant 0 : index
    %c0_2 = arith.constant 0 : index
    %1 = vector.load %arg2[%c0_1, %c0_2] : memref<4096x256xbf16, #tpu.memory_space<vmem>>, vector<4096x256xbf16>
    %cst = arith.constant dense<0.000000e+00> : vector<2x256xf32>
    %2 = tpu.matmul %0, %1, %cst {dimension_numbers = #tpu.dot_dimension_numbers<[1], [0], [0], [1], [0, 0, 1, 1], [], []>} : vector<2x4096xbf16>, vector<4096x256xbf16>, vector<2x256xf32> -> vector<2x256xf32>
    %c0_3 = arith.constant 0 : index
    %c0_4 = arith.constant 0 : index
    %3 = vector.load %arg3[%c0_3, %c0_4] : memref<1x256xf32, #tpu.memory_space<vmem>>, vector<1x256xf32>
    %4 = vector.broadcast %3 : vector<1x256xf32> to vector<2x256xf32>
    %5 = arith.addf %2, %4 : vector<2x256xf32>
    %cst_5 = arith.constant 0.000000e+00 : f32
    %6 = vector.broadcast %cst_5 : f32 to vector<2x256xf32>
    %7 = arith.maximumf %5, %6 : vector<2x256xf32>
    %8 = arith.truncf %7 : vector<2x256xf32> to vector<2x256xbf16>
    %c0_6 = arith.constant 0 : index
    %c0_7 = arith.constant 0 : index
    %9 = vector.load %arg4[%c0_6, %c0_7] : memref<256x128xbf16, #tpu.memory_space<vmem>>, vector<256x128xbf16>
    %cst_8 = arith.constant dense<0.000000e+00> : vector<2x128xf32>
    %10 = tpu.matmul %8, %9, %cst_8 {dimension_numbers = #tpu.dot_dimension_numbers<[1], [0], [0], [1], [0, 0, 1, 1], [], []>} : vector<2x256xbf16>, vector<256x128xbf16>, vector<2x128xf32> -> vector<2x128xf32>
    %c0_9 = arith.constant 0 : index
    %c0_10 = arith.constant 0 : index
    %11 = vector.load %arg5[%c0_9, %c0_10] : memref<1x128xf32, #tpu.memory_space<vmem>>, vector<1x128xf32>
    %12 = vector.broadcast %11 : vector<1x128xf32> to vector<2x128xf32>
    %13 = arith.addf %10, %12 : vector<2x128xf32>
    %cst_11 = arith.constant 0.000000e+00 : f32
    %14 = vector.broadcast %cst_11 : f32 to vector<2x128xf32>
    %15 = arith.maximumf %13, %14 : vector<2x128xf32>
    %16 = arith.truncf %15 : vector<2x128xf32> to vector<2x128xbf16>
    %c0_12 = arith.constant 0 : index
    %c0_13 = arith.constant 0 : index
    %17 = vector.load %arg6[%c0_12, %c0_13] : memref<128x128xbf16, #tpu.memory_space<vmem>>, vector<128x128xbf16>
    %cst_14 = arith.constant dense<0.000000e+00> : vector<2x128xf32>
    %18 = tpu.matmul %16, %17, %cst_14 {dimension_numbers = #tpu.dot_dimension_numbers<[1], [0], [0], [1], [0, 0, 1, 1], [], []>} : vector<2x128xbf16>, vector<128x128xbf16>, vector<2x128xf32> -> vector<2x128xf32>
    %c0_15 = arith.constant 0 : index
    %c0_16 = arith.constant 0 : index
    %19 = vector.load %arg7[%c0_15, %c0_16] : memref<1x128xf32, #tpu.memory_space<vmem>>, vector<1x128xf32>
    %20 = vector.broadcast %19 : vector<1x128xf32> to vector<2x128xf32>
    %21 = arith.addf %18, %20 : vector<2x128xf32>
    %c0_17 = arith.constant 0 : index
    %c0_18 = arith.constant 0 : index
    %22 = vector.load %arg8[%c0_17, %c0_18] : memref<2x128xf32, #tpu.memory_space<vmem>>, vector<2x128xf32>
    tpu.vector_store %arg8[%c0_17, %c0_18], %21 {strides = array<i32>} : memref<2x128xf32, #tpu.memory_space<vmem>>, vector<2x128xf32>,
    return
  }
  func.func @transform_0(%arg0: i32) -> (i32, i32) {
    %c0_i32 = arith.constant 0 : i32
    %c0_i32_0 = arith.constant 0 : i32
    return %arg0, %c0_i32 : i32, i32
  }
  func.func @transform_1(%arg0: i32) -> (i32, i32) {
    %c0_i32 = arith.constant 0 : i32
    %c0_i32_0 = arith.constant 0 : i32
    %c0_i32_1 = arith.constant 0 : i32
    return %c0_i32, %c0_i32_0 : i32, i32
  }
  func.func @transform_2(%arg0: i32) -> (i32, i32) {
    %c0_i32 = arith.constant 0 : i32
    %c0_i32_0 = arith.constant 0 : i32
    %c0_i32_1 = arith.constant 0 : i32
    return %c0_i32, %c0_i32_0 : i32, i32
  }
  func.func @transform_3(%arg0: i32) -> (i32, i32) {
    %c0_i32 = arith.constant 0 : i32
    %c0_i32_0 = arith.constant 0 : i32
    %c0_i32_1 = arith.constant 0 : i32
    return %c0_i32, %c0_i32_0 : i32, i32
  }
  func.func @transform_4(%arg0: i32) -> (i32, i32) {
    %c0_i32 = arith.constant 0 : i32
    %c0_i32_0 = arith.constant 0 : i32
    %c0_i32_1 = arith.constant 0 : i32
    return %c0_i32, %c0_i32_0 : i32, i32
  }
  func.func @transform_5(%arg0: i32) -> (i32, i32) {
    %c0_i32 = arith.constant 0 : i32
    %c0_i32_0 = arith.constant 0 : i32
    %c0_i32_1 = arith.constant 0 : i32
    return %c0_i32, %c0_i32_0 : i32, i32
  }
  func.func @transform_6(%arg0: i32) -> (i32, i32) {
    %c0_i32 = arith.constant 0 : i32
    %c0_i32_0 = arith.constant 0 : i32
    %c0_i32_1 = arith.constant 0 : i32
    return %c0_i32, %c0_i32_0 : i32, i32
  }
  func.func @transform_7(%arg0: i32) -> (i32, i32) {
    %c0_i32 = arith.constant 0 : i32
    %c0_i32_0 = arith.constant 0 : i32
    return %arg0, %c0_i32 : i32, i32
  }
}

</mosaic_0001>

<llo_original>
// kernel: cnn_forward.3
$region0: #{cnn_forward.3}
  #allocation0 [shape = 'u32[]', space=smem, size = 0x4, offset = 0x4, fixed_abs, tag = 'smem constant byte address 0x4 - core index']
  #allocation1 [shape = 'u32[72,128]{1,0:T(1,128)}', space=vmem, size = 0x9000, scoped, tag = 'internal scratch']
  %s0 = inlined_call_operand.vmem [shape: bf16[4,512,9], index: 0, kind: input, shape index: {}]
  %s1 = inlined_call_operand.vmem [shape: bf16[9,32], index: 1, kind: input, shape index: {}]
  %s2 = inlined_call_operand.vmem [shape: f32[1,32], index: 2, kind: input, shape index: {}]
  %s3 = inlined_call_operand.vmem [shape: f32[512,32], index: 3, kind: output, shape index: {}]
  %s4 = sld [smem:[#allocation0]]
  $region86: #{cnn_forward.3} parent=0
    _
  %s6 = ssub.s32 1, %s4
  %s7 = scalar_select 0, %s6, %s4
  $region1: #{cnn_forward.3} parent=0
    #allocation2 [shape = 'u8[524288]{0}', space=vmem, size = 0x80000, scoped, tag = 'input window, operand 0']
    loop: start=0, step=1, limit=4
    $region2: #{cnn_forward.3} parent=1 // loop_pre_header
      _
    $region3: #{cnn_forward.3} parent=1 // loop_header
      %s9 = sphi 0, %s13
      %p10 = scmp.ge.s32.totalorder %s9, 4
      %s19 = sphi 0, %s21
      %s22 = sphi 0, %s19
      %s23 = sphi 0, %s22
      %s39 = sphi 0, %s23
      %s43 = sphi 0, %s43
      %s45 = sphi 0, %s43
      %s46 = sphi 0, %s45
      %s60 = sphi 0, %s46
      %s64 = sphi 0, %s64
      %s66 = sphi 0, %s64
      %s67 = sphi 0, %s66
      %s81 = sphi 0, %s67
      %s87 = sphi 0, %s89
      %s90 = sphi 0, %s87
      %s91 = sphi 0, %s90
      %s107 = sphi 0, %s91
    $region4: #{cnn_forward.3} parent=1 // loop_header_branch
      %12 = sbr.rel (%p10) target = $region8
    $region5: #{cnn_forward.3} parent=1 // loop_body
      %s14 = ssub.s32 %s9, 1
      %s15 = ssub.s32 %s9, 2
      %s16 = sadd.s32 %s9, 1
      %s17 = ssub.s32 %s9, %s16
      %p18 = scmp.eq.s32.totalorder %s17, 0
      %s20 = sadd.s32 %s19, 1
      %s21 = scalar_select %p18, %s19, %s20
      %p24 = pneg %p18
      %p25 = scmp.eq.s32.totalorder %s9, 1
      %p26 = por %p24, %p25
      %p27 = scmp.ne.s32.totalorder %s19, %s22
      %p28 = scmp.eq.s32.totalorder %s9, 0
      %p29 = por %p27, %p28
      %p30 = scmp.ne.s32.totalorder %s19, %s22
      %p31 = scmp.eq.s32.totalorder %s14, 1
      %p32 = por %p30, %p31
      %p33 = scmp.ne.s32.totalorder %s22, %s23
      %p34 = scmp.eq.s32.totalorder %s14, 0
      %p35 = por %p33, %p34
      %p36 = scmp.ne.s32.totalorder %s22, %s23
      %p37 = scmp.eq.s32.totalorder %s15, 1
      %p38 = por %p36, %p37
      %p40 = scmp.ne.s32.totalorder %s23, %s39
      %p41 = scmp.eq.s32.totalorder %s15, 0
      %p42 = por %p40, %p41
      %s44 = sadd.s32 %s43, 1
      %p47 = scmp.eq.s32.totalorder %s9, 1
      %p48 = scmp.ne.s32.totalorder %s43, %s45
      %p49 = scmp.eq.s32.totalorder %s9, 0
      %p50 = por %p48, %p49
      %p51 = scmp.ne.s32.totalorder %s43, %s45
      %p52 = scmp.eq.s32.totalorder %s14, 1
      %p53 = por %p51, %p52
      %p54 = scmp.ne.s32.totalorder %s45, %s46
      %p55 = scmp.eq.s32.totalorder %s14, 0
      %p56 = por %p54, %p55
      %p57 = scmp.ne.s32.totalorder %s45, %s46
      %p58 = scmp.eq.s32.totalorder %s15, 1
      %p59 = por %p57, %p58
      %p61 = scmp.ne.s32.totalorder %s46, %s60
      %p62 = scmp.eq.s32.totalorder %s15, 0
      %p63 = por %p61, %p62
      %s65 = sadd.s32 %s64, 1
      %p68 = scmp.eq.s32.totalorder %s9, 1
      %p69 = scmp.ne.s32.totalorder %s64, %s66
      %p70 = scmp.eq.s32.totalorder %s9, 0
      %p71 = por %p69, %p70
      %p72 = scmp.ne.s32.totalorder %s64, %s66
      %p73 = scmp.eq.s32.totalorder %s14, 1
      %p74 = por %p72, %p73
      %p75 = scmp.ne.s32.totalorder %s66, %s67
      %p76 = scmp.eq.s32.totalorder %s14, 0
      %p77 = por %p75, %p76
      %p78 = scmp.ne.s32.totalorder %s66, %s67
      %p79 = scmp.eq.s32.totalorder %s15, 1
      %p80 = por %p78, %p79
      %p82 = scmp.ne.s32.totalorder %s67, %s81
      %p83 = scmp.eq.s32.totalorder %s15, 0
      %p84 = por %p82, %p83
      %s85 = ssub.s32 %s9, %s16
      %p86 = scmp.eq.s32.totalorder %s85, 0
      %s88 = sadd.s32 %s87, 1
      %s89 = scalar_select %p86, %s87, %s88
      %p92 = pneg %p86
      %p93 = scmp.eq.s32.totalorder %s9, 1
      %p94 = por %p92, %p93
      %p95 = scmp.ne.s32.totalorder %s87, %s90
      %p96 = scmp.eq.s32.totalorder %s9, 0
      %p97 = por %p95, %p96
      %p98 = scmp.ne.s32.totalorder %s87, %s90
      %p99 = scmp.eq.s32.totalorder %s14, 1
      %p100 = por %p98, %p99
      %p101 = scmp.ne.s32.totalorder %s90, %s91
      %p102 = scmp.eq.s32.totalorder %s14, 0
      %p103 = por %p101, %p102
      %p104 = scmp.ne.s32.totalorder %s90, %s91
      %p105 = scmp.eq.s32.totalorder %s15, 1
      %p106 = por %p104, %p105
      %p108 = scmp.ne.s32.totalorder %s91, %s107
      %p109 = scmp.eq.s32.totalorder %s15, 0
      %p110 = por %p108, %p109
      %p111 = scmp.le.s32.totalorder 1, %s9
      %p112 = scmp.lt.s32.totalorder %s9, 3
      %p113 = pnand %p111, %p112
      %p114 = pneg %p113
      // Predicated region
      $region9: #{cnn_forward.3} parent=5 // pred_check
        _
      $region10: #{cnn_forward.3} parent=5 // pred_check_branch
        %116 = sbr.rel (%p113) target = $region12
      $region11: #{cnn_forward.3} parent=5 // pred_region
        %s117 = ssub.s32 %s9, 1
        // Predicated region
        $region13: #{cnn_forward.3} parent=11 // pred_check
          %p118 = pneg %p56
        $region14: #{cnn_forward.3} parent=11 // pred_check_branch
          %120 = sbr.rel (%p118) target = $region16
        $region15: #{cnn_forward.3} parent=11 // pred_region
          _
        $region16: #{cnn_forward.3} parent=11 // pred_fallthru
          _
        // Predicated region
        $region17: #{cnn_forward.3} parent=11 // pred_check
          %p121 = pneg %p77
        $region18: #{cnn_forward.3} parent=11 // pred_check_branch
          %123 = sbr.rel (%p121) target = $region20
        $region19: #{cnn_forward.3} parent=11 // pred_region
          _
        $region20: #{cnn_forward.3} parent=11 // pred_fallthru
          _
      $region12: #{cnn_forward.3} parent=5 // pred_fallthru
        _
      %p124 = scmp.lt.s32.totalorder %s9, 2
      // Predicated region
      $region21: #{cnn_forward.3} parent=5 // pred_check
        %p125 = pneg %p124
      $region22: #{cnn_forward.3} parent=5 // pred_check_branch
        %127 = sbr.rel (%p125) target = $region24
      $region23: #{cnn_forward.3} parent=5 // pred_region
        // Predicated region
        $region25: #{cnn_forward.3} parent=23 // pred_check
          %p128 = pneg %p29
        $region26: #{cnn_forward.3} parent=23 // pred_check_branch
          %130 = sbr.rel (%p128) target = $region28
        $region27: #{cnn_forward.3} parent=23 // pred_region
          %s131 = sand.u32 %s19, 1
          %s132 = sand.u32 %s19, 1
          %s133 = smul.addr %s132, 512
          %s134 = scalar_lea.vmem [#allocation2], %s133
          %s135 = smul.u32 32, %s9
          %s136 = smul.addr %s135, 4
          %s137 = scalar_lea.vmem %s0, %s136
          // Predicated region
          $region29: #{cnn_forward.3} parent=27 // pred_check
            _
          $region30: #{cnn_forward.3} parent=27 // pred_check_branch
            %139 = sbr.rel (0) target = $region32
          $region31: #{cnn_forward.3} parent=27 // pred_region
            // Predicated region
            $region33: #{cnn_forward.3} parent=31 // pred_check
              _
            $region34: #{cnn_forward.3} parent=31 // pred_check_branch
              %141 = sbr.rel target = $region36
            $region35: #{cnn_forward.3} parent=31 // pred_region
              // Predicated region
              $region48: #{cnn_forward.3} parent=35 // pred_check
                _
              $region49: #{cnn_forward.3} parent=35 // pred_check_branch
                %411 = sbr.rel (0) target = $region51
              $region50: #{cnn_forward.3} parent=35 // pred_region
                loop: start=0, step=1, limit=1
                $region52: #{cnn_forward.3} parent=50 // loop_pre_header
                  _
                $region53: #{cnn_forward.3} parent=50 // loop_header
                  %s413 = sphi 0, %s417
                  %p414 = scmp.ge.s32.totalorder %s413, 1
                  %s418 = sphi %s137, %s137
                  %s419 = sphi %s134, %s134
                $region54: #{cnn_forward.3} parent=50 // loop_header_branch
                  %416 = sbr.rel (%p414) target = $region58
                $region55: #{cnn_forward.3} parent=50 // loop_body
                  _
                $region56: #{cnn_forward.3} parent=50 // loop_footer
                  %s417 = sadd.s32 1, %s413
                $region57: #{cnn_forward.3} parent=50 // loop_footer_branch
                  %412 = sbr.rel target = $region53
                $region58: #{cnn_forward.3} parent=50 // loop_exit
                  _
                %s421 = ssub.s32 16, 1
                loop: start=0, step=1, limit=1
                $region59: #{cnn_forward.3} parent=50 // loop_pre_header
                  _
                $region60: #{cnn_forward.3} parent=50 // loop_header
                  %s423 = sphi 0, %s427
                  %p424 = scmp.ge.s32.totalorder %s423, 1
                  %s428 = sphi %s137, %s137
                  %s429 = sphi %s134, %s134
                $region61: #{cnn_forward.3} parent=50 // loop_header_branch
                  %426 = sbr.rel (%p424) target = $region65
                $region62: #{cnn_forward.3} parent=50 // loop_body
                  %v430 = vld [vmem:[%s428] sm:%s421]
                  %431 = vst [vmem:[%s429] sm:%s421] %v430
                  %v432 = vld [vmem:[%s428 + $0x4] sm:%s421]
                  %433 = vst [vmem:[%s429 + $0x4] sm:%s421] %v432
                  %v434 = vld [vmem:[%s428 + $0x8] sm:%s421]
                  %435 = vst [vmem:[%s429 + $0x8] sm:%s421] %v434
                  %v436 = vld [vmem:[%s428 + $0xc] sm:%s421]
                  %437 = vst [vmem:[%s429 + $0xc] sm:%s421] %v436
                  %v438 = vld [vmem:[%s428 + $0x10] sm:%s421]
                  %439 = vst [vmem:[%s429 + $0x10] sm:%s421] %v438
                  %v440 = vld [vmem:[%s428 + $0x14] sm:%s421]
                  %441 = vst [vmem:[%s429 + $0x14] sm:%s421] %v440
                  %v442 = vld [vmem:[%s428 + $0x18] sm:%s421]
                  %443 = vst [vmem:[%s429 + $0x18] sm:%s421] %v442
                  %v444 = vld [vmem:[%s428 + $0x1c] sm:%s421]
                  %445 = vst [vmem:[%s429 + $0x1c] sm:%s421] %v444
                  %v446 = vld [vmem:[%s428 + $0x20] sm:%s421]
                  %447 = vst [vmem:[%s429 + $0x20] sm:%s421] %v446
                  %v448 = vld [vmem:[%s428 + $0x24] sm:%s421]
                  %449 = vst [vmem:[%s429 + $0x24] sm:%s421] %v448
                  %v450 = vld [vmem:[%s428 + $0x28] sm:%s421]
                  %451 = vst [vmem:[%s429 + $0x28] sm:%s421] %v450
                  %v452 = vld [vmem:[%s428 + $0x2c] sm:%s421]
                  %453 = vst [vmem:[%s429 + $0x2c] sm:%s421] %v452
                  %v454 = vld [vmem:[%s428 + $0x30] sm:%s421]
                  %455 = vst [vmem:[%s429 + $0x30] sm:%s421] %v454
                  %v456 = vld [vmem:[%s428 + $0x34] sm:%s421]
                  %457 = vst [vmem:[%s429 + $0x34] sm:%s421] %v456
                  %v458 = vld [vmem:[%s428 + $0x38] sm:%s421]
                  %459 = vst [vmem:[%s429 + $0x38] sm:%s421] %v458
                  %v460 = vld [vmem:[%s428 + $0x3c] sm:%s421]
                  %461 = vst [vmem:[%s429 + $0x3c] sm:%s421] %v460
                  %v462 = vld [vmem:[%s428 + $0x40] sm:%s421]
                  %463 = vst [vmem:[%s429 + $0x40] sm:%s421] %v462
                  %v464 = vld [vmem:[%s428 + $0x44] sm:%s421]
                  %465 = vst [vmem:[%s429 + $0x44] sm:%s421] %v464
                  %v466 = vld [vmem:[%s428 + $0x48] sm:%s421]
                  %467 = vst [vmem:[%s429 + $0x48] sm:%s421] %v466
                  %v468 = vld [vmem:[%s428 + $0x4c] sm:%s421]
                  %469 = vst [vmem:[%s429 + $0x4c] sm:%s421] %v468
                  %v470 = vld [vmem:[%s428 + $0x50] sm:%s421]
                  %471 = vst [vmem:[%s429 + $0x50] sm:%s421] %v470
                  %v472 = vld [vmem:[%s428 + $0x54] sm:%s421]
                  %473 = vst [vmem:[%s429 + $0x54] sm:%s421] %v472
                  %v474 = vld [vmem:[%s428 + $0x58] sm:%s421]
                  %475 = vst [vmem:[%s429 + $0x58] sm:%s421] %v474
                  %v476 = vld [vmem:[%s428 + $0x5c] sm:%s421]
                  %477 = vst [vmem:[%s429 + $0x5c] sm:%s421] %v476
                  %v478 = vld [vmem:[%s428 + $0x60] sm:%s421]
                  %479 = vst [vmem:[%s429 + $0x60] sm:%s421] %v478
                  %v480 = vld [vmem:[%s428 + $0x64] sm:%s421]
                  %481 = vst [vmem:[%s429 + $0x64] sm:%s421] %v480
                  %v482 = vld [vmem:[%s428 + $0x68] sm:%s421]
                  %483 = vst [vmem:[%s429 + $0x68] sm:%s421] %v482
                  %v484 = vld [vmem:[%s428 + $0x6c] sm:%s421]
                  %485 = vst [vmem:[%s429 + $0x6c] sm:%s421] %v484
                  %v486 = vld [vmem:[%s428 + $0x70] sm:%s421]
                  %487 = vst [vmem:[%s429 + $0x70] sm:%s421] %v486
                  %v488 = vld [vmem:[%s428 + $0x74] sm:%s421]
                  %489 = vst [vmem:[%s429 + $0x74] sm:%s421] %v488
                  %v490 = vld [vmem:[%s428 + $0x78] sm:%s421]
                  %491 = vst [vmem:[%s429 + $0x78] sm:%s421] %v490
                  %v492 = vld [vmem:[%s428 + $0x7c] sm:%s421]
                  %493 = vst [vmem:[%s429 + $0x7c] sm:%s421] %v492
                  %v494 = vld [vmem:[%s428 + $0x100] sm:%s421]
                  %495 = vst [vmem:[%s429 + $0x80] sm:%s421] %v494
                  %v496 = vld [vmem:[%s428 + $0x104] sm:%s421]
                  %497 = vst [vmem:[%s429 + $0x84] sm:%s421] %v496
                  %v498 = vld [vmem:[%s428 + $0x108] sm:%s421]
                  %499 = vst [vmem:[%s429 + $0x88] sm:%s421] %v498
                  %v500 = vld [vmem:[%s428 + $0x10c] sm:%s421]
                  %501 = vst [vmem:[%s429 + $0x8c] sm:%s421] %v500
                  %v502 = vld [vmem:[%s428 + $0x110] sm:%s421]
                  %503 = vst [vmem:[%s429 + $0x90] sm:%s421] %v502
                  %v504 = vld [vmem:[%s428 + $0x114] sm:%s421]
                  %505 = vst [vmem:[%s429 + $0x94] sm:%s421] %v504
                  %v506 = vld [vmem:[%s428 + $0x118] sm:%s421]
                  %507 = vst [vmem:[%s429 + $0x98] sm:%s421] %v506
                  %v508 = vld [vmem:[%s428 + $0x11c] sm:%s421]
                  %509 = vst [vmem:[%s429 + $0x9c] sm:%s421] %v508
                  %v510 = vld [vmem:[%s428 + $0x120] sm:%s421]
                  %511 = vst [vmem:[%s429 + $0xa0] sm:%s421] %v510
                  %v512 = vld [vmem:[%s428 + $0x124] sm:%s421]
                  %513 = vst [vmem:[%s429 + $0xa4] sm:%s421] %v512
                  %v514 = vld [vmem:[%s428 + $0x128] sm:%s421]
                  %515 = vst [vmem:[%s429 + $0xa8] sm:%s421] %v514
                  %v516 = vld [vmem:[%s428 + $0x12c] sm:%s421]
                  %517 = vst [vmem:[%s429 + $0xac] sm:%s421] %v516
                  %v518 = vld [vmem:[%s428 + $0x130] sm:%s421]
                  %519 = vst [vmem:[%s429 + $0xb0] sm:%s421] %v518
                  %v520 = vld [vmem:[%s428 + $0x134] sm:%s421]
                  %521 = vst [vmem:[%s429 + $0xb4] sm:%s421] %v520
                  %v522 = vld [vmem:[%s428 + $0x138] sm:%s421]
                  %523 = vst [vmem:[%s429 + $0xb8] sm:%s421] %v522
                  %v524 = vld [vmem:[%s428 + $0x13c] sm:%s421]
                  %525 = vst [vmem:[%s429 + $0xbc] sm:%s421] %v524
                  %v526 = vld [vmem:[%s428 + $0x140] sm:%s421]
                  %527 = vst [vmem:[%s429 + $0xc0] sm:%s421] %v526
                  %v528 = vld [vmem:[%s428 + $0x144] sm:%s421]
                  %529 = vst [vmem:[%s429 + $0xc4] sm:%s421] %v528
                  %v530 = vld [vmem:[%s428 + $0x148] sm:%s421]
                  %531 = vst [vmem:[%s429 + $0xc8] sm:%s421] %v530
                  %v532 = vld [vmem:[%s428 + $0x14c] sm:%s421]
                  %533 = vst [vmem:[%s429 + $0xcc] sm:%s421] %v532
                  %v534 = vld [vmem:[%s428 + $0x150] sm:%s421]
                  %535 = vst [vmem:[%s429 + $0xd0] sm:%s421] %v534
                  %v536 = vld [vmem:[%s428 + $0x154] sm:%s421]
                  %537 = vst [vmem:[%s429 + $0xd4] sm:%s421] %v536
                  %v538 = vld [vmem:[%s428 + $0x158] sm:%s421]
                  %539 = vst [vmem:[%s429 + $0xd8] sm:%s421] %v538
                  %v540 = vld [vmem:[%s428 + $0x15c] sm:%s421]
                  %541 = vst [vmem:[%s429 + $0xdc] sm:%s421] %v540
                  %v542 = vld [vmem:[%s428 + $0x160] sm:%s421]
                  %543 = vst [vmem:[%s429 + $0xe0] sm:%s421] %v542
                  %v544 = vld [vmem:[%s428 + $0x164] sm:%s421]
                  %545 = vst [vmem:[%s429 + $0xe4] sm:%s421] %v544
                  %v546 = vld [vmem:[%s428 + $0x168] sm:%s421]
                  %547 = vst [vmem:[%s429 + $0xe8] sm:%s421] %v546
                  %v548 = vld [vmem:[%s428 + $0x16c] sm:%s421]
                  %549 = vst [vmem:[%s429 + $0xec] sm:%s421] %v548
                  %v550 = vld [vmem:[%s428 + $0x170] sm:%s421]
                  %551 = vst [vmem:[%s429 + $0xf0] sm:%s421] %v550
                  %v552 = vld [vmem:[%s428 + $0x174] sm:%s421]
                  %553 = vst [vmem:[%s429 + $0xf4] sm:%s421] %v552
                  %v554 = vld [vmem:[%s428 + $0x178] sm:%s421]
                  %555 = vst [vmem:[%s429 + $0xf8] sm:%s421] %v554
                  %v556 = vld [vmem:[%s428 + $0x17c] sm:%s421]
                  %557 = vst [vmem:[%s429 + $0xfc] sm:%s421] %v556
                  %v558 = vld [vmem:[%s428 + $0x200] sm:%s421]
                  %559 = vst [vmem:[%s429 + $0x100] sm:%s421] %v558
                  %v560 = vld [vmem:[%s428 + $0x204] sm:%s421]
                  %561 = vst [vmem:[%s429 + $0x104] sm:%s421] %v560
                  %v562 = vld [vmem:[%s428 + $0x208] sm:%s421]
                  %563 = vst [vmem:[%s429 + $0x108] sm:%s421] %v562
                  %v564 = vld [vmem:[%s428 + $0x20c] sm:%s421]
                  %565 = vst [vmem:[%s429 + $0x10c] sm:%s421] %v564
                  %v566 = vld [vmem:[%s428 + $0x210] sm:%s421]
                  %567 = vst [vmem:[%s429 + $0x110] sm:%s421] %v566
                  %v568 = vld [vmem:[%s428 + $0x214] sm:%s421]
                  %569 = vst [vmem:[%s429 + $0x114] sm:%s421] %v568
                  %v570 = vld [vmem:[%s428 + $0x218] sm:%s421]
                  %571 = vst [vmem:[%s429 + $0x118] sm:%s421] %v570
                  %v572 = vld [vmem:[%s428 + $0x21c] sm:%s421]
                  %573 = vst [vmem:[%s429 + $0x11c] sm:%s421] %v572
                  %v574 = vld [vmem:[%s428 + $0x220] sm:%s421]
                  %575 = vst [vmem:[%s429 + $0x120] sm:%s421] %v574
                  %v576 = vld [vmem:[%s428 + $0x224] sm:%s421]
                  %577 = vst [vmem:[%s429 + $0x124] sm:%s421] %v576
                  %v578 = vld [vmem:[%s428 + $0x228] sm:%s421]
                  %579 = vst [vmem:[%s429 + $0x128] sm:%s421] %v578
                  %v580 = vld [vmem:[%s428 + $0x22c] sm:%s421]
                  %581 = vst [vmem:[%s429 + $0x12c] sm:%s421] %v580
                  %v582 = vld [vmem:[%s428 + $0x230] sm:%s421]
                  %583 = vst [vmem:[%s429 + $0x130] sm:%s421] %v582
                  %v584 = vld [vmem:[%s428 + $0x234] sm:%s421]
                  %585 = vst [vmem:[%s429 + $0x134] sm:%s421] %v584
                  %v586 = vld [vmem:[%s428 + $0x238] sm:%s421]
                  %587 = vst [vmem:[%s429 + $0x138] sm:%s421] %v586
                  %v588 = vld [vmem:[%s428 + $0x23c] sm:%s421]
                  %589 = vst [vmem:[%s429 + $0x13c] sm:%s421] %v588
                  %v590 = vld [vmem:[%s428 + $0x240] sm:%s421]
                  %591 = vst [vmem:[%s429 + $0x140] sm:%s421] %v590
                  %v592 = vld [vmem:[%s428 + $0x244] sm:%s421]
                  %593 = vst [vmem:[%s429 + $0x144] sm:%s421] %v592
                  %v594 = vld [vmem:[%s428 + $0x248] sm:%s421]
                  %595 = vst [vmem:[%s429 + $0x148] sm:%s421] %v594
                  %v596 = vld [vmem:[%s428 + $0x24c] sm:%s421]
                  %597 = vst [vmem:[%s429 + $0x14c] sm:%s421] %v596
                  %v598 = vld [vmem:[%s428 + $0x250] sm:%s421]
                  %599 = vst [vmem:[%s429 + $0x150] sm:%s421] %v598
                  %v600 = vld [vmem:[%s428 + $0x254] sm:%s421]
                  %601 = vst [vmem:[%s429 + $0x154] sm:%s421] %v600
                  %v602 = vld [vmem:[%s428 + $0x258] sm:%s421]
                  %603 = vst [vmem:[%s429 + $0x158] sm:%s421] %v602
                  %v604 = vld [vmem:[%s428 + $0x25c] sm:%s421]
                  %605 = vst [vmem:[%s429 + $0x15c] sm:%s421] %v604
                  %v606 = vld [vmem:[%s428 + $0x260] sm:%s421]
                  %607 = vst [vmem:[%s429 + $0x160] sm:%s421] %v606
                  %v608 = vld [vmem:[%s428 + $0x264] sm:%s421]
                  %609 = vst [vmem:[%s429 + $0x164] sm:%s421] %v608
                  %v610 = vld [vmem:[%s428 + $0x268] sm:%s421]
                  %611 = vst [vmem:[%s429 + $0x168] sm:%s421] %v610
                  %v612 = vld [vmem:[%s428 + $0x26c] sm:%s421]
                  %613 = vst [vmem:[%s429 + $0x16c] sm:%s421] %v612
                  %v614 = vld [vmem:[%s428 + $0x270] sm:%s421]
                  %615 = vst [vmem:[%s429 + $0x170] sm:%s421] %v614
                  %v616 = vld [vmem:[%s428 + $0x274] sm:%s421]
                  %617 = vst [vmem:[%s429 + $0x174] sm:%s421] %v616
                  %v618 = vld [vmem:[%s428 + $0x278] sm:%s421]
                  %619 = vst [vmem:[%s429 + $0x178] sm:%s421] %v618
                  %v620 = vld [vmem:[%s428 + $0x27c] sm:%s421]
                  %621 = vst [vmem:[%s429 + $0x17c] sm:%s421] %v620
                  %v622 = vld [vmem:[%s428 + $0x300] sm:%s421]
                  %623 = vst [vmem:[%s429 + $0x180] sm:%s421] %v622
                  %v624 = vld [vmem:[%s428 + $0x304] sm:%s421]
                  %625 = vst [vmem:[%s429 + $0x184] sm:%s421] %v624
                  %v626 = vld [vmem:[%s428 + $0x308] sm:%s421]
                  %627 = vst [vmem:[%s429 + $0x188] sm:%s421] %v626
                  %v628 = vld [vmem:[%s428 + $0x30c] sm:%s421]
                  %629 = vst [vmem:[%s429 + $0x18c] sm:%s421] %v628
                  %v630 = vld [vmem:[%s428 + $0x310] sm:%s421]
                  %631 = vst [vmem:[%s429 + $0x190] sm:%s421] %v630
                  %v632 = vld [vmem:[%s428 + $0x314] sm:%s421]
                  %633 = vst [vmem:[%s429 + $0x194] sm:%s421] %v632
                  %v634 = vld [vmem:[%s428 + $0x318] sm:%s421]
                  %635 = vst [vmem:[%s429 + $0x198] sm:%s421] %v634
                  %v636 = vld [vmem:[%s428 + $0x31c] sm:%s421]
                  %637 = vst [vmem:[%s429 + $0x19c] sm:%s421] %v636
                  %v638 = vld [vmem:[%s428 + $0x320] sm:%s421]
                  %639 = vst [vmem:[%s429 + $0x1a0] sm:%s421] %v638
                  %v640 = vld [vmem:[%s428 + $0x324] sm:%s421]
                  %641 = vst [vmem:[%s429 + $0x1a4] sm:%s421] %v640
                  %v642 = vld [vmem:[%s428 + $0x328] sm:%s421]
                  %643 = vst [vmem:[%s429 + $0x1a8] sm:%s421] %v642
                  %v644 = vld [vmem:[%s428 + $0x32c] sm:%s421]
                  %645 = vst [vmem:[%s429 + $0x1ac] sm:%s421] %v644
                  %v646 = vld [vmem:[%s428 + $0x330] sm:%s421]
                  %647 = vst [vmem:[%s429 + $0x1b0] sm:%s421] %v646
                  %v648 = vld [vmem:[%s428 + $0x334] sm:%s421]
                  %649 = vst [vmem:[%s429 + $0x1b4] sm:%s421] %v648
                  %v650 = vld [vmem:[%s428 + $0x338] sm:%s421]
                  %651 = vst [vmem:[%s429 + $0x1b8] sm:%s421] %v650
                  %v652 = vld [vmem:[%s428 + $0x33c] sm:%s421]
                  %653 = vst [vmem:[%s429 + $0x1bc] sm:%s421] %v652
                  %v654 = vld [vmem:[%s428 + $0x340] sm:%s421]
                  %655 = vst [vmem:[%s429 + $0x1c0] sm:%s421] %v654
                  %v656 = vld [vmem:[%s428 + $0x344] sm:%s421]
                  %657 = vst [vmem:[%s429 + $0x1c4] sm:%s421] %v656
                  %v658 = vld [vmem:[%s428 + $0x348] sm:%s421]
                  %659 = vst [vmem:[%s429 + $0x1c8] sm:%s421] %v658
                  %v660 = vld [vmem:[%s428 + $0x34c] sm:%s421]
                  %661 = vst [vmem:[%s429 + $0x1cc] sm:%s421] %v660
                  %v662 = vld [vmem:[%s428 + $0x350] sm:%s421]
                  %663 = vst [vmem:[%s429 + $0x1d0] sm:%s421] %v662
                  %v664 = vld [vmem:[%s428 + $0x354] sm:%s421]
                  %665 = vst [vmem:[%s429 + $0x1d4] sm:%s421] %v664
                  %v666 = vld [vmem:[%s428 + $0x358] sm:%s421]
                  %667 = vst [vmem:[%s429 + $0x1d8] sm:%s421] %v666
                  %v668 = vld [vmem:[%s428 + $0x35c] sm:%s421]
                  %669 = vst [vmem:[%s429 + $0x1dc] sm:%s421] %v668
                  %v670 = vld [vmem:[%s428 + $0x360] sm:%s421]
                  %671 = vst [vmem:[%s429 + $0x1e0] sm:%s421] %v670
                  %v672 = vld [vmem:[%s428 + $0x364] sm:%s421]
                  %673 = vst [vmem:[%s429 + $0x1e4] sm:%s421] %v672
                  %v674 = vld [vmem:[%s428 + $0x368] sm:%s421]
                  %675 = vst [vmem:[%s429 + $0x1e8] sm:%s421] %v674
                  %v676 = vld [vmem:[%s428 + $0x36c] sm:%s421]
                  %677 = vst [vmem:[%s429 + $0x1ec] sm:%s421] %v676
                  %v678 = vld [vmem:[%s428 + $0x370] sm:%s421]
                  %679 = vst [vmem:[%s429 + $0x1f0] sm:%s421] %v678
                  %v680 = vld [vmem:[%s428 + $0x374] sm:%s421]
                  %681 = vst [vmem:[%s429 + $0x1f4] sm:%s421] %v680
                  %v682 = vld [vmem:[%s428 + $0x378] sm:%s421]
                  %683 = vst [vmem:[%s429 + $0x1f8] sm:%s421] %v682
                  %v684 = vld [vmem:[%s428 + $0x37c] sm:%s421]
                  %685 = vst [vmem:[%s429 + $0x1fc] sm:%s421] %v684
                $region63: #{cnn_forward.3} parent=50 // loop_footer
                  %s427 = sadd.s32 1, %s423
                $region64: #{cnn_forward.3} parent=50 // loop_footer_branch
                  %422 = sbr.rel target = $region60
                $region65: #{cnn_forward.3} parent=50 // loop_exit
                  _
              $region51: #{cnn_forward.3} parent=35 // pred_fallthru
                _
            $region36: #{cnn_forward.3} parent=31 // pred_fallthru
              _
            // Predicated region
            $region37: #{cnn_forward.3} parent=31 // pred_check
              _
            $region38: #{cnn_forward.3} parent=31 // pred_check_branch
              %143 = sbr.rel (0) target = $region40
            $region39: #{cnn_forward.3} parent=31 // pred_region
              %s145 = ssub.s32 16, 1
              loop: start=0, step=1, limit=1
              $region41: #{cnn_forward.3} parent=39 // loop_pre_header
                _
              $region42: #{cnn_forward.3} parent=39 // loop_header
                %s147 = sphi 0, %s151
                %p148 = scmp.ge.s32.totalorder %s147, 1
                %s152 = sphi %s137, %s137
                %s153 = sphi %s134, %s134
              $region43: #{cnn_forward.3} parent=39 // loop_header_branch
                %150 = sbr.rel (%p148) target = $region47
              $region44: #{cnn_forward.3} parent=39 // loop_body
                %v154 = vld [vmem:[%s152] sm:%s145]
                %155 = vst [vmem:[%s153] sm:%s145] %v154
                %v156 = vld [vmem:[%s152 + $0x4] sm:%s145]
                %157 = vst [vmem:[%s153 + $0x4] sm:%s145] %v156
                %v158 = vld [vmem:[%s152 + $0x8] sm:%s145]
                %159 = vst [vmem:[%s153 + $0x8] sm:%s145] %v158
                %v160 = vld [vmem:[%s152 + $0xc] sm:%s145]
                %161 = vst [vmem:[%s153 + $0xc] sm:%s145] %v160
                %v162 = vld [vmem:[%s152 + $0x10] sm:%s145]
                %163 = vst [vmem:[%s153 + $0x10] sm:%s145] %v162
                %v164 = vld [vmem:[%s152 + $0x14] sm:%s145]
                %165 = vst [vmem:[%s153 + $0x14] sm:%s145] %v164
                %v166 = vld [vmem:[%s152 + $0x18] sm:%s145]
                %167 = vst [vmem:[%s153 + $0x18] sm:%s145] %v166
                %v168 = vld [vmem:[%s152 + $0x1c] sm:%s145]
                %169 = vst [vmem:[%s153 + $0x1c] sm:%s145] %v168
                %v170 = vld [vmem:[%s152 + $0x20] sm:%s145]
                %171 = vst [vmem:[%s153 + $0x20] sm:%s145] %v170
                %v172 = vld [vmem:[%s152 + $0x24] sm:%s145]
                %173 = vst [vmem:[%s153 + $0x24] sm:%s145] %v172
                %v174 = vld [vmem:[%s152 + $0x28] sm:%s145]
                %175 = vst [vmem:[%s153 + $0x28] sm:%s145] %v174
                %v176 = vld [vmem:[%s152 + $0x2c] sm:%s145]
                %177 = vst [vmem:[%s153 + $0x2c] sm:%s145] %v176
                %v178 = vld [vmem:[%s152 + $0x30] sm:%s145]
                %179 = vst [vmem:[%s153 + $0x30] sm:%s145] %v178
                %v180 = vld [vmem:[%s152 + $0x34] sm:%s145]
                %181 = vst [vmem:[%s153 + $0x34] sm:%s145] %v180
                %v182 = vld [vmem:[%s152 + $0x38] sm:%s145]
                %183 = vst [vmem:[%s153 + $0x38] sm:%s145] %v182
                %v184 = vld [vmem:[%s152 + $0x3c] sm:%s145]
                %185 = vst [vmem:[%s153 + $0x3c] sm:%s145] %v184
                %v186 = vld [vmem:[%s152 + $0x40] sm:%s145]
                %187 = vst [vmem:[%s153 + $0x40] sm:%s145] %v186
                %v188 = vld [vmem:[%s152 + $0x44] sm:%s145]
                %189 = vst [vmem:[%s153 + $0x44] sm:%s145] %v188
                %v190 = vld [vmem:[%s152 + $0x48] sm:%s145]
                %191 = vst [vmem:[%s153 + $0x48] sm:%s145] %v190
                %v192 = vld [vmem:[%s152 + $0x4c] sm:%s145]
                %193 = vst [vmem:[%s153 + $0x4c] sm:%s145] %v192
                %v194 = vld [vmem:[%s152 + $0x50] sm:%s145]
                %195 = vst [vmem:[%s153 + $0x50] sm:%s145] %v194
                %v196 = vld [vmem:[%s152 + $0x54] sm:%s145]
                %197 = vst [vmem:[%s153 + $0x54] sm:%s145] %v196
                %v198 = vld [vmem:[%s152 + $0x58] sm:%s145]
                %199 = vst [vmem:[%s153 + $0x58] sm:%s145] %v198
                %v200 = vld [vmem:[%s152 + $0x5c] sm:%s145]
                %201 = vst [vmem:[%s153 + $0x5c] sm:%s145] %v200
                %v202 = vld [vmem:[%s152 + $0x60] sm:%s145]
                %203 = vst [vmem:[%s153 + $0x60] sm:%s145] %v202
                %v204 = vld [vmem:[%s152 + $0x64] sm:%s145]
                %205 = vst [vmem:[%s153 + $0x64] sm:%s145] %v204
                %v206 = vld [vmem:[%s152 + $0x68] sm:%s145]
                %207 = vst [vmem:[%s153 + $0x68] sm:%s145] %v206
                %v208 = vld [vmem:[%s152 + $0x6c] sm:%s145]
                %209 = vst [vmem:[%s153 + $0x6c] sm:%s145] %v208
                %v210 = vld [vmem:[%s152 + $0x70] sm:%s145]
                %211 = vst [vmem:[%s153 + $0x70] sm:%s145] %v210
                %v212 = vld [vmem:[%s152 + $0x74] sm:%s145]
                %213 = vst [vmem:[%s153 + $0x74] sm:%s145] %v212
                %v214 = vld [vmem:[%s152 + $0x78] sm:%s145]
                %215 = vst [vmem:[%s153 + $0x78] sm:%s145] %v214
                %v216 = vld [vmem:[%s152 + $0x7c] sm:%s145]
                %217 = vst [vmem:[%s153 + $0x7c] sm:%s145] %v216
                %v218 = vld [vmem:[%s152 + $0x100] sm:%s145]
                %219 = vst [vmem:[%s153 + $0x80] sm:%s145] %v218
                %v220 = vld [vmem:[%s152 + $0x104] sm:%s145]
                %221 = vst [vmem:[%s153 + $0x84] sm:%s145] %v220
                %v222 = vld [vmem:[%s152 + $0x108] sm:%s145]
                %223 = vst [vmem:[%s153 + $0x88] sm:%s145] %v222
                %v224 = vld [vmem:[%s152 + $0x10c] sm:%s145]
                %225 = vst [vmem:[%s153 + $0x8c] sm:%s145] %v224
                %v226 = vld [vmem:[%s152 + $0x110] sm:%s145]
                %227 = vst [vmem:[%s153 + $0x90] sm:%s145] %v226
                %v228 = vld [vmem:[%s152 + $0x114] sm:%s145]
                %229 = vst [vmem:[%s153 + $0x94] sm:%s145] %v228
                %v230 = vld [vmem:[%s152 + $0x118] sm:%s145]
                %231 = vst [vmem:[%s153 + $0x98] sm:%s145] %v230
                %v232 = vld [vmem:[%s152 + $0x11c] sm:%s145]
                %233 = vst [vmem:[%s153 + $0x9c] sm:%s145] %v232
                %v234 = vld [vmem:[%s152 + $0x120] sm:%s145]
                %235 = vst [vmem:[%s153 + $0xa0] sm:%s145] %v234
                %v236 = vld [vmem:[%s152 + $0x124] sm:%s145]
                %237 = vst [vmem:[%s153 + $0xa4] sm:%s145] %v236
                %v238 = vld [vmem:[%s152 + $0x128] sm:%s145]
                %239 = vst [vmem:[%s153 + $0xa8] sm:%s145] %v238
                %v240 = vld [vmem:[%s152 + $0x12c] sm:%s145]
                %241 = vst [vmem:[%s153 + $0xac] sm:%s145] %v240
                %v242 = vld [vmem:[%s152 + $0x130] sm:%s145]
                %243 = vst [vmem:[%s153 + $0xb0] sm:%s145] %v242
                %v244 = vld [vmem:[%s152 + $0x134] sm:%s145]
                %245 = vst [vmem:[%s153 + $0xb4] sm:%s145] %v244
                %v246 = vld [vmem:[%s152 + $0x138] sm:%s145]
                %247 = vst [vmem:[%s153 + $0xb8] sm:%s145] %v246
                %v248 = vld [vmem:[%s152 + $0x13c] sm:%s145]
                %249 = vst [vmem:[%s153 + $0xbc] sm:%s145] %v248
                %v250 = vld [vmem:[%s152 + $0x140] sm:%s145]
                %251 = vst [vmem:[%s153 + $0xc0] sm:%s145] %v250
                %v252 = vld [vmem:[%s152 + $0x144] sm:%s145]
                %253 = vst [vmem:[%s153 + $0xc4] sm:%s145] %v252
                %v254 = vld [vmem:[%s152 + $0x148] sm:%s145]
                %255 = vst [vmem:[%s153 + $0xc8] sm:%s145] %v254
                %v256 = vld [vmem:[%s152 + $0x14c] sm:%s145]
                %257 = vst [vmem:[%s153 + $0xcc] sm:%s145] %v256
                %v258 = vld [vmem:[%s152 + $0x150] sm:%s145]
                %259 = vst [vmem:[%s153 + $0xd0] sm:%s145] %v258
                %v260 = vld [vmem:[%s152 + $0x154] sm:%s145]
                %261 = vst [vmem:[%s153 + $0xd4] sm:%s145] %v260
                %v262 = vld [vmem:[%s152 + $0x158] sm:%s145]
                %263 = vst [vmem:[%s153 + $0xd8] sm:%s145] %v262
                %v264 = vld [vmem:[%s152 + $0x15c] sm:%s145]
                %265 = vst [vmem:[%s153 + $0xdc] sm:%s145] %v264
                %v266 = vld [vmem:[%s152 + $0x160] sm:%s145]
                %267 = vst [vmem:[%s153 + $0xe0] sm:%s145] %v266
                %v268 = vld [vmem:[%s152 + $0x164] sm:%s145]
                %269 = vst [vmem:[%s153 + $0xe4] sm:%s145] %v268
                %v270 = vld [vmem:[%s152 + $0x168] sm:%s145]
                %271 = vst [vmem:[%s153 + $0xe8] sm:%s145] %v270
                %v272 = vld [vmem:[%s152 + $0x16c] sm:%s145]
                %273 = vst [vmem:[%s153 + $0xec] sm:%s145] %v272
                %v274 = vld [vmem:[%s152 + $0x170] sm:%s145]
                %275 = vst [vmem:[%s153 + $0xf0] sm:%s145] %v274
                %v276 = vld [vmem:[%s152 + $0x174] sm:%s145]
                %277 = vst [vmem:[%s153 + $0xf4] sm:%s145] %v276
                %v278 = vld [vmem:[%s152 + $0x178] sm:%s145]
                %279 = vst [vmem:[%s153 + $0xf8] sm:%s145] %v278
                %v280 = vld [vmem:[%s152 + $0x17c] sm:%s145]
                %281 = vst [vmem:[%s153 + $0xfc] sm:%s145] %v280
                %v282 = vld [vmem:[%s152 + $0x200] sm:%s145]
                %283 = vst [vmem:[%s153 + $0x100] sm:%s145] %v282
                %v284 = vld [vmem:[%s152 + $0x204] sm:%s145]
                %285 = vst [vmem:[%s153 + $0x104] sm:%s145] %v284
                %v286 = vld [vmem:[%s152 + $0x208] sm:%s145]
                %287 = vst [vmem:[%s153 + $0x108] sm:%s145] %v286
                %v288 = vld [vmem:[%s152 + $0x20c] sm:%s145]
                %289 = vst [vmem:[%s153 + $0x10c] sm:%s145] %v288
                %v290 = vld [vmem:[%s152 + $0x210] sm:%s145]
                %291 = vst [vmem:[%s153 + $0x110] sm:%s145] %v290
                %v292 = vld [vmem:[%s152 + $0x214] sm:%s145]
                %293 = vst [vmem:[%s153 + $0x114] sm:%s145] %v292
                %v294 = vld [vmem:[%s152 + $0x218] sm:%s145]
                %295 = vst [vmem:[%s153 + $0x118] sm:%s145] %v294
                %v296 = vld [vmem:[%s152 + $0x21c] sm:%s145]
                %297 = vst [vmem:[%s153 + $0x11c] sm:%s145] %v296
                %v298 = vld [vmem:[%s152 + $0x220] sm:%s145]
                %299 = vst [vmem:[%s153 + $0x120] sm:%s145] %v298
                %v300 = vld [vmem:[%s152 + $0x224] sm:%s145]
                %301 = vst [vmem:[%s153 + $0x124] sm:%s145] %v300
                %v302 = vld [vmem:[%s152 + $0x228] sm:%s145]
                %303 = vst [vmem:[%s153 + $0x128] sm:%s145] %v302
                %v304 = vld [vmem:[%s152 + $0x22c] sm:%s145]
                %305 = vst [vmem:[%s153 + $0x12c] sm:%s145] %v304
                %v306 = vld [vmem:[%s152 + $0x230] sm:%s145]
                %307 = vst [vmem:[%s153 + $0x130] sm:%s145] %v306
                %v308 = vld [vmem:[%s152 + $0x234] sm:%s145]
                %309 = vst [vmem:[%s153 + $0x134] sm:%s145] %v308
                %v310 = vld [vmem:[%s152 + $0x238] sm:%s145]
                %311 = vst [vmem:[%s153 + $0x138] sm:%s145] %v310
                %v312 = vld [vmem:[%s152 + $0x23c] sm:%s145]
                %313 = vst [vmem:[%s153 + $0x13c] sm:%s145] %v312
                %v314 = vld [vmem:[%s152 + $0x240] sm:%s145]
                %315 = vst [vmem:[%s153 + $0x140] sm:%s145] %v314
                %v316 = vld [vmem:[%s152 + $0x244] sm:%s145]
                %317 = vst [vmem:[%s153 + $0x144] sm:%s145] %v316
                %v318 = vld [vmem:[%s152 + $0x248] sm:%s145]
                %319 = vst [vmem:[%s153 + $0x148] sm:%s145] %v318
                %v320 = vld [vmem:[%s152 + $0x24c] sm:%s145]
                %321 = vst [vmem:[%s153 + $0x14c] sm:%s145] %v320
                %v322 = vld [vmem:[%s152 + $0x250] sm:%s145]
                %323 = vst [vmem:[%s153 + $0x150] sm:%s145] %v322
                %v324 = vld [vmem:[%s152 + $0x254] sm:%s145]
                %325 = vst [vmem:[%s153 + $0x154] sm:%s145] %v324
                %v326 = vld [vmem:[%s152 + $0x258] sm:%s145]
                %327 = vst [vmem:[%s153 + $0x158] sm:%s145] %v326
                %v328 = vld [vmem:[%s152 + $0x25c] sm:%s145]
                %329 = vst [vmem:[%s153 + $0x15c] sm:%s145] %v328
                %v330 = vld [vmem:[%s152 + $0x260] sm:%s145]
                %331 = vst [vmem:[%s153 + $0x160] sm:%s145] %v330
                %v332 = vld [vmem:[%s152 + $0x264] sm:%s145]
                %333 = vst [vmem:[%s153 + $0x164] sm:%s145] %v332
                %v334 = vld [vmem:[%s152 + $0x268] sm:%s145]
                %335 = vst [vmem:[%s153 + $0x168] sm:%s145] %v334
                %v336 = vld [vmem:[%s152 + $0x26c] sm:%s145]
                %337 = vst [vmem:[%s153 + $0x16c] sm:%s145] %v336
                %v338 = vld [vmem:[%s152 + $0x270] sm:%s145]
                %339 = vst [vmem:[%s153 + $0x170] sm:%s145] %v338
                %v340 = vld [vmem:[%s152 + $0x274] sm:%s145]
                %341 = vst [vmem:[%s153 + $0x174] sm:%s145] %v340
                %v342 = vld [vmem:[%s152 + $0x278] sm:%s145]
                %343 = vst [vmem:[%s153 + $0x178] sm:%s145] %v342
                %v344 = vld [vmem:[%s152 + $0x27c] sm:%s145]
                %345 = vst [vmem:[%s153 + $0x17c] sm:%s145] %v344
                %v346 = vld [vmem:[%s152 + $0x300] sm:%s145]
                %347 = vst [vmem:[%s153 + $0x180] sm:%s145] %v346
                %v348 = vld [vmem:[%s152 + $0x304] sm:%s145]
                %349 = vst [vmem:[%s153 + $0x184] sm:%s145] %v348
                %v350 = vld [vmem:[%s152 + $0x308] sm:%s145]
                %351 = vst [vmem:[%s153 + $0x188] sm:%s145] %v350
                %v352 = vld [vmem:[%s152 + $0x30c] sm:%s145]
                %353 = vst [vmem:[%s153 + $0x18c] sm:%s145] %v352
                %v354 = vld [vmem:[%s152 + $0x310] sm:%s145]
                %355 = vst [vmem:[%s153 + $0x190] sm:%s145] %v354
                %v356 = vld [vmem:[%s152 + $0x314] sm:%s145]
                %357 = vst [vmem:[%s153 + $0x194] sm:%s145] %v356
                %v358 = vld [vmem:[%s152 + $0x318] sm:%s145]
                %359 = vst [vmem:[%s153 + $0x198] sm:%s145] %v358
                %v360 = vld [vmem:[%s152 + $0x31c] sm:%s145]
                %361 = vst [vmem:[%s153 + $0x19c] sm:%s145] %v360
                %v362 = vld [vmem:[%s152 + $0x320] sm:%s145]
                %363 = vst [vmem:[%s153 + $0x1a0] sm:%s145] %v362
                %v364 = vld [vmem:[%s152 + $0x324] sm:%s145]
                %365 = vst [vmem:[%s153 + $0x1a4] sm:%s145] %v364
                %v366 = vld [vmem:[%s152 + $0x328] sm:%s145]
                %367 = vst [vmem:[%s153 + $0x1a8] sm:%s145] %v366
                %v368 = vld [vmem:[%s152 + $0x32c] sm:%s145]
                %369 = vst [vmem:[%s153 + $0x1ac] sm:%s145] %v368
                %v370 = vld [vmem:[%s152 + $0x330] sm:%s145]
                %371 = vst [vmem:[%s153 + $0x1b0] sm:%s145] %v370
                %v372 = vld [vmem:[%s152 + $0x334] sm:%s145]
                %373 = vst [vmem:[%s153 + $0x1b4] sm:%s145] %v372
                %v374 = vld [vmem:[%s152 + $0x338] sm:%s145]
                %375 = vst [vmem:[%s153 + $0x1b8] sm:%s145] %v374
                %v376 = vld [vmem:[%s152 + $0x33c] sm:%s145]
                %377 = vst [vmem:[%s153 + $0x1bc] sm:%s145] %v376
                %v378 = vld [vmem:[%s152 + $0x340] sm:%s145]
                %379 = vst [vmem:[%s153 + $0x1c0] sm:%s145] %v378
                %v380 = vld [vmem:[%s152 + $0x344] sm:%s145]
                %381 = vst [vmem:[%s153 + $0x1c4] sm:%s145] %v380
                %v382 = vld [vmem:[%s152 + $0x348] sm:%s145]
                %383 = vst [vmem:[%s153 + $0x1c8] sm:%s145] %v382
                %v384 = vld [vmem:[%s152 + $0x34c] sm:%s145]
                %385 = vst [vmem:[%s153 + $0x1cc] sm:%s145] %v384
                %v386 = vld [vmem:[%s152 + $0x350] sm:%s145]
                %387 = vst [vmem:[%s153 + $0x1d0] sm:%s145] %v386
                %v388 = vld [vmem:[%s152 + $0x354] sm:%s145]
                %389 = vst [vmem:[%s153 + $0x1d4] sm:%s145] %v388
                %v390 = vld [vmem:[%s152 + $0x358] sm:%s145]
                %391 = vst [vmem:[%s153 + $0x1d8] sm:%s145] %v390
                %v392 = vld [vmem:[%s152 + $0x35c] sm:%s145]
                %393 = vst [vmem:[%s153 + $0x1dc] sm:%s145] %v392
                %v394 = vld [vmem:[%s152 + $0x360] sm:%s145]
                %395 = vst [vmem:[%s153 + $0x1e0] sm:%s145] %v394
                %v396 = vld [vmem:[%s152 + $0x364] sm:%s145]
                %397 = vst [vmem:[%s153 + $0x1e4] sm:%s145] %v396
                %v398 = vld [vmem:[%s152 + $0x368] sm:%s145]
                %399 = vst [vmem:[%s153 + $0x1e8] sm:%s145] %v398
                %v400 = vld [vmem:[%s152 + $0x36c] sm:%s145]
                %401 = vst [vmem:[%s153 + $0x1ec] sm:%s145] %v400
                %v402 = vld [vmem:[%s152 + $0x370] sm:%s145]
                %403 = vst [vmem:[%s153 + $0x1f0] sm:%s145] %v402
                %v404 = vld [vmem:[%s152 + $0x374] sm:%s145]
                %405 = vst [vmem:[%s153 + $0x1f4] sm:%s145] %v404
                %v406 = vld [vmem:[%s152 + $0x378] sm:%s145]
                %407 = vst [vmem:[%s153 + $0x1f8] sm:%s145] %v406
                %v408 = vld [vmem:[%s152 + $0x37c] sm:%s145]
                %409 = vst [vmem:[%s153 + $0x1fc] sm:%s145] %v408
              $region45: #{cnn_forward.3} parent=39 // loop_footer
                %s151 = sadd.s32 1, %s147
              $region46: #{cnn_forward.3} parent=39 // loop_footer_branch
                %146 = sbr.rel target = $region42
              $region47: #{cnn_forward.3} parent=39 // loop_exit
                _
            $region40: #{cnn_forward.3} parent=31 // pred_fallthru
              _
          $region32: #{cnn_forward.3} parent=27 // pred_fallthru
            _
          %686 = vnop
        $region28: #{cnn_forward.3} parent=23 // pred_fallthru
          _
      $region24: #{cnn_forward.3} parent=5 // pred_fallthru
        _
      %p687 = scmp.le.s32.totalorder 1, %s9
      %p688 = scmp.lt.s32.totalorder %s9, 3
      %p689 = pnand %p687, %p688
      %p690 = pneg %p689
      // Predicated region
      $region66: #{cnn_forward.3} parent=5 // pred_check
        _
      $region67: #{cnn_forward.3} parent=5 // pred_check_branch
        %692 = sbr.rel (%p689) target = $region69
      $region68: #{cnn_forward.3} parent=5 // pred_region
        %s693 = ssub.s32 %s9, 1
        %s694 = sand.u32 %s22, 1
        %s695 = sand.u32 %s22, 1
        %s696 = smul.addr %s695, 512
        %s697 = scalar_lea.vmem [#allocation2], %s696
        // Predicated region
        $region70: #{cnn_forward.3} parent=68 // pred_check
          %p698 = pneg %p35
        $region71: #{cnn_forward.3} parent=68 // pred_check_branch
          %700 = sbr.rel (%p698) target = $region73
        $region72: #{cnn_forward.3} parent=68 // pred_region
          _
        $region73: #{cnn_forward.3} parent=68 // pred_fallthru
          _
        %s701 = sand.u32 %s22, 1
        %s702 = sand.u32 %s22, 1
        %s703 = smul.addr %s702, 512
        %s704 = scalar_lea.vmem [#allocation2], %s703
        %p705 = pneg %p35
        %p706 = pneg %p32
        %p707 = pneg %p56
        %p708 = pneg %p53
        %p709 = pneg %p77
        %p710 = pneg %p74
        %p711 = pneg %p103
        %p712 = pneg %p100
        %s713 = smul.u32 32, %s14
        %p714 = scmp.lt.s32.totalorder %s713, 63
        %s715 = scalar_select %p714, %s713, 63
        %s716 = smul.addr %s715, 8
        %s717 = scalar_lea.vmem %s3, %s716
        %s718 = smul.u32 32, %s14
        %s719 = smul.u32 32, %s14
        %p720 = scmp.lt.s32.totalorder %s719, 63
        %s721 = scalar_select %p720, %s719, 63
        %s722 = smul.addr %s721, 8
        %s723 = scalar_lea.vmem %s3, %s722
        %s724 = smul.u32 32, %s14
        %v726 = vld [vmem:[%s1] sm:$0xf]
        %v727 = vld [vmem:[%s1 + $0x4] sm:$0x1]
        %v728 = vld [vmem:[%s697] sm:$0xf]
        %v729 = vld [vmem:[%s697 + $0x4] sm:$0xf]
        %v730 = vld [vmem:[%s697 + $0x8] sm:$0xf]
        %v731 = vld [vmem:[%s697 + $0xc] sm:$0xf]
        %v732 = vld [vmem:[%s697 + $0x10] sm:$0xf]
        %v733 = vld [vmem:[%s697 + $0x14] sm:$0xf]
        %v734 = vld [vmem:[%s697 + $0x18] sm:$0xf]
        %v735 = vld [vmem:[%s697 + $0x1c] sm:$0xf]
        %v736 = vld [vmem:[%s697 + $0x20] sm:$0xf]
        %v737 = vld [vmem:[%s697 + $0x24] sm:$0xf]
        %v738 = vld [vmem:[%s697 + $0x28] sm:$0xf]
        %v739 = vld [vmem:[%s697 + $0x2c] sm:$0xf]
        %v740 = vld [vmem:[%s697 + $0x30] sm:$0xf]
        %v741 = vld [vmem:[%s697 + $0x34] sm:$0xf]
        %v742 = vld [vmem:[%s697 + $0x38] sm:$0xf]
        %v743 = vld [vmem:[%s697 + $0x3c] sm:$0xf]
        %v744 = vld [vmem:[%s697 + $0x40] sm:$0xf]
        %v745 = vld [vmem:[%s697 + $0x44] sm:$0xf]
        %v746 = vld [vmem:[%s697 + $0x48] sm:$0xf]
        %v747 = vld [vmem:[%s697 + $0x4c] sm:$0xf]
        %v748 = vld [vmem:[%s697 + $0x50] sm:$0xf]
        %v749 = vld [vmem:[%s697 + $0x54] sm:$0xf]
        %v750 = vld [vmem:[%s697 + $0x58] sm:$0xf]
        %v751 = vld [vmem:[%s697 + $0x5c] sm:$0xf]
        %v752 = vld [vmem:[%s697 + $0x60] sm:$0xf]
        %v753 = vld [vmem:[%s697 + $0x64] sm:$0xf]
        %v754 = vld [vmem:[%s697 + $0x68] sm:$0xf]
        %v755 = vld [vmem:[%s697 + $0x6c] sm:$0xf]
        %v756 = vld [vmem:[%s697 + $0x70] sm:$0xf]
        %v757 = vld [vmem:[%s697 + $0x74] sm:$0xf]
        %v758 = vld [vmem:[%s697 + $0x78] sm:$0xf]
        %v759 = vld [vmem:[%s697 + $0x7c] sm:$0xf]
        %v792 = vunpack.c.l.b16 %v728
        %v793 = vunpack.c.l.b16 %v729
        %v794 = vunpack.c.l.b16 %v730
        %v795 = vunpack.c.l.b16 %v731
        %v796 = vunpack.c.l.b16 %v732
        %v797 = vunpack.c.l.b16 %v733
        %v798 = vunpack.c.l.b16 %v734
        %v799 = vunpack.c.l.b16 %v735
        %v800 = vunpack.c.l.b16 %v736
        %v801 = vunpack.c.l.b16 %v737
        %v802 = vunpack.c.l.b16 %v738
        %v803 = vunpack.c.l.b16 %v739
        %v804 = vunpack.c.l.b16 %v740
        %v805 = vunpack.c.l.b16 %v741
        %v806 = vunpack.c.l.b16 %v742
        %v807 = vunpack.c.l.b16 %v743
        %v808 = vunpack.c.l.b16 %v744
        %v809 = vunpack.c.l.b16 %v745
        %v810 = vunpack.c.l.b16 %v746
        %v811 = vunpack.c.l.b16 %v747
        %v812 = vunpack.c.l.b16 %v748
        %v813 = vunpack.c.l.b16 %v749
        %v814 = vunpack.c.l.b16 %v750
        %v815 = vunpack.c.l.b16 %v751
        %v816 = vunpack.c.l.b16 %v752
        %v817 = vunpack.c.l.b16 %v753
        %v818 = vunpack.c.l.b16 %v754
        %v819 = vunpack.c.l.b16 %v755
        %v820 = vunpack.c.l.b16 %v756
        %v821 = vunpack.c.l.b16 %v757
        %v822 = vunpack.c.l.b16 %v758
        %v823 = vunpack.c.l.b16 %v759
        %v824 = vpack.c.b16 %v793, %v792
        %v825 = vpack.c.b16 %v795, %v794
        %v826 = vpack.c.b16 %v797, %v796
        %v827 = vpack.c.b16 %v799, %v798
        %v828 = vpack.c.b16 %v801, %v800
        %v829 = vpack.c.b16 %v803, %v802
        %v830 = vpack.c.b16 %v805, %v804
        %v831 = vpack.c.b16 %v807, %v806
        %v832 = vpack.c.b16 %v809, %v808
        %v833 = vpack.c.b16 %v811, %v810
        %v834 = vpack.c.b16 %v813, %v812
        %v835 = vpack.c.b16 %v815, %v814
        %v836 = vpack.c.b16 %v817, %v816
        %v837 = vpack.c.b16 %v819, %v818
        %v838 = vpack.c.b16 %v821, %v820
        %v839 = vpack.c.b16 %v823, %v822
        %v842 = vunpack.c.l.b16 %v726
        %v843 = vunpack.c.l.b16 %v727
        %v844 = vpack.c.b16 %v843, %v842
        %vm845 = vcmask 72704
        %v847 = vsel %vm845, %v824, 0
        %v850 = vsel %vm845, %v825, 0
        %v853 = vsel %vm845, %v826, 0
        %v856 = vsel %vm845, %v827, 0
        %v859 = vsel %vm845, %v828, 0
        %v862 = vsel %vm845, %v829, 0
        %v865 = vsel %vm845, %v830, 0
        %v868 = vsel %vm845, %v831, 0
        %v871 = vsel %vm845, %v832, 0
        %v874 = vsel %vm845, %v833, 0
        %v877 = vsel %vm845, %v834, 0
        %v880 = vsel %vm845, %v835, 0
        %v883 = vsel %vm845, %v836, 0
        %v886 = vsel %vm845, %v837, 0
        %v889 = vsel %vm845, %v838, 0
        %v892 = vsel %vm845, %v839, 0
        %vm894 = vcmask 1043456
        %vm895 = vcmask 1044480
        %v896 = vsel %vm894, 4294967295, 65535
        %v897 = vsel %vm895, %v896, 0
        %v899 = vand.u32 %v844, %v897
        %901 = vmatpush.bf16.msra.mxu0 0
        %902 = vmatpush.bf16.msra.mxu0 0
        %903 = vmatpush.bf16.msra.mxu0 0
        %904 = vmatpush.bf16.msra.mxu0 0
        %905 = vmatpush.bf16.msra.mxu0 0
        %906 = vmatpush.bf16.msra.mxu0 0
        %907 = vmatpush.bf16.msra.mxu0 0
        %908 = vmatpush.bf16.msra.mxu0 %v899
        %909 = vmatmul.bf16.gmra.mxu0 %v847
        %v910 = vpop.f32.mrf.mxu0
        %v911 = vadd.f32 0.0, %v910
        %v912 = vpop.f32.mrf.mxu0
        %v913 = vadd.f32 0.0, %v912
        %914 = vmatmul.bf16.gmra.mxu0 %v850
        %v915 = vpop.f32.mrf.mxu0
        %v916 = vadd.f32 0.0, %v915
        %v917 = vpop.f32.mrf.mxu0
        %v918 = vadd.f32 0.0, %v917
        %919 = vmatmul.bf16.gmra.mxu0 %v853
        %v920 = vpop.f32.mrf.mxu0
        %v921 = vadd.f32 0.0, %v920
        %v922 = vpop.f32.mrf.mxu0
        %v923 = vadd.f32 0.0, %v922
        %924 = vmatmul.bf16.gmra.mxu0 %v856
        %v925 = vpop.f32.mrf.mxu0
        %v926 = vadd.f32 0.0, %v925
        %v927 = vpop.f32.mrf.mxu0
        %v928 = vadd.f32 0.0, %v927
        %929 = vmatmul.bf16.gmra.mxu0 %v859
        %v930 = vpop.f32.mrf.mxu0
        %v931 = vadd.f32 0.0, %v930
        %v932 = vpop.f32.mrf.mxu0
        %v933 = vadd.f32 0.0, %v932
        %934 = vmatmul.bf16.gmra.mxu0 %v862
        %v935 = vpop.f32.mrf.mxu0
        %v936 = vadd.f32 0.0, %v935
        %v937 = vpop.f32.mrf.mxu0
        %v938 = vadd.f32 0.0, %v937
        %939 = vmatmul.bf16.gmra.mxu0 %v865
        %v940 = vpop.f32.mrf.mxu0
        %v941 = vadd.f32 0.0, %v940
        %v942 = vpop.f32.mrf.mxu0
        %v943 = vadd.f32 0.0, %v942
        %944 = vmatmul.bf16.gmra.mxu0 %v868
        %v945 = vpop.f32.mrf.mxu0
        %v946 = vadd.f32 0.0, %v945
        %v947 = vpop.f32.mrf.mxu0
        %v948 = vadd.f32 0.0, %v947
        %949 = vmatmul.bf16.gmra.mxu0 %v871
        %v950 = vpop.f32.mrf.mxu0
        %v951 = vadd.f32 0.0, %v950
        %v952 = vpop.f32.mrf.mxu0
        %v953 = vadd.f32 0.0, %v952
        %954 = vmatmul.bf16.gmra.mxu0 %v874
        %v955 = vpop.f32.mrf.mxu0
        %v956 = vadd.f32 0.0, %v955
        %v957 = vpop.f32.mrf.mxu0
        %v958 = vadd.f32 0.0, %v957
        %959 = vmatmul.bf16.gmra.mxu0 %v877
        %v960 = vpop.f32.mrf.mxu0
        %v961 = vadd.f32 0.0, %v960
        %v962 = vpop.f32.mrf.mxu0
        %v963 = vadd.f32 0.0, %v962
        %964 = vmatmul.bf16.gmra.mxu0 %v880
        %v965 = vpop.f32.mrf.mxu0
        %v966 = vadd.f32 0.0, %v965
        %v967 = vpop.f32.mrf.mxu0
        %v968 = vadd.f32 0.0, %v967
        %969 = vmatmul.bf16.gmra.mxu0 %v883
        %v970 = vpop.f32.mrf.mxu0
        %v971 = vadd.f32 0.0, %v970
        %v972 = vpop.f32.mrf.mxu0
        %v973 = vadd.f32 0.0, %v972
        %974 = vmatmul.bf16.gmra.mxu0 %v886
        %v975 = vpop.f32.mrf.mxu0
        %v976 = vadd.f32 0.0, %v975
        %v977 = vpop.f32.mrf.mxu0
        %v978 = vadd.f32 0.0, %v977
        %979 = vmatmul.bf16.gmra.mxu0 %v889
        %v980 = vpop.f32.mrf.mxu0
        %v981 = vadd.f32 0.0, %v980
        %v982 = vpop.f32.mrf.mxu0
        %v983 = vadd.f32 0.0, %v982
        %984 = vmatmul.bf16.gmra.mxu0 %v892
        %v985 = vpop.f32.mrf.mxu0
        %v986 = vadd.f32 0.0, %v985
        %v987 = vpop.f32.mrf.mxu0
        %v988 = vadd.f32 0.0, %v987
        %989 = vdwg.mxu0
        %s990 = scalar_lea.vmem %s697, 128 [#allocation2]
        %v991 = vld [vmem:[%s990] sm:$0xf]
        %v992 = vld [vmem:[%s990 + $0x4] sm:$0xf]
        %v993 = vld [vmem:[%s990 + $0x8] sm:$0xf]
        %v994 = vld [vmem:[%s990 + $0xc] sm:$0xf]
        %v995 = vld [vmem:[%s990 + $0x10] sm:$0xf]
        %v996 = vld [vmem:[%s990 + $0x14] sm:$0xf]
        %v997 = vld [vmem:[%s990 + $0x18] sm:$0xf]
        %v998 = vld [vmem:[%s990 + $0x1c] sm:$0xf]
        %v999 = vld [vmem:[%s990 + $0x20] sm:$0xf]
        %v1000 = vld [vmem:[%s990 + $0x24] sm:$0xf]
        %v1001 = vld [vmem:[%s990 + $0x28] sm:$0xf]
        %v1002 = vld [vmem:[%s990 + $0x2c] sm:$0xf]
        %v1003 = vld [vmem:[%s990 + $0x30] sm:$0xf]
        %v1004 = vld [vmem:[%s990 + $0x34] sm:$0xf]
        %v1005 = vld [vmem:[%s990 + $0x38] sm:$0xf]
        %v1006 = vld [vmem:[%s990 + $0x3c] sm:$0xf]
        %v1007 = vld [vmem:[%s990 + $0x40] sm:$0xf]
        %v1008 = vld [vmem:[%s990 + $0x44] sm:$0xf]
        %v1009 = vld [vmem:[%s990 + $0x48] sm:$0xf]
        %v1010 = vld [vmem:[%s990 + $0x4c] sm:$0xf]
        %v1011 = vld [vmem:[%s990 + $0x50] sm:$0xf]
        %v1012 = vld [vmem:[%s990 + $0x54] sm:$0xf]
        %v1013 = vld [vmem:[%s990 + $0x58] sm:$0xf]
        %v1014 = vld [vmem:[%s990 + $0x5c] sm:$0xf]
        %v1015 = vld [vmem:[%s990 + $0x60] sm:$0xf]
        %v1016 = vld [vmem:[%s990 + $0x64] sm:$0xf]
        %v1017 = vld [vmem:[%s990 + $0x68] sm:$0xf]
        %v1018 = vld [vmem:[%s990 + $0x6c] sm:$0xf]
        %v1019 = vld [vmem:[%s990 + $0x70] sm:$0xf]
        %v1020 = vld [vmem:[%s990 + $0x74] sm:$0xf]
        %v1021 = vld [vmem:[%s990 + $0x78] sm:$0xf]
        %v1022 = vld [vmem:[%s990 + $0x7c] sm:$0xf]
        %v1055 = vunpack.c.l.b16 %v991
        %v1056 = vunpack.c.l.b16 %v992
        %v1057 = vunpack.c.l.b16 %v993
        %v1058 = vunpack.c.l.b16 %v994
        %v1059 = vunpack.c.l.b16 %v995
        %v1060 = vunpack.c.l.b16 %v996
        %v1061 = vunpack.c.l.b16 %v997
        %v1062 = vunpack.c.l.b16 %v998
        %v1063 = vunpack.c.l.b16 %v999
        %v1064 = vunpack.c.l.b16 %v1000
        %v1065 = vunpack.c.l.b16 %v1001
        %v1066 = vunpack.c.l.b16 %v1002
        %v1067 = vunpack.c.l.b16 %v1003
        %v1068 = vunpack.c.l.b16 %v1004
        %v1069 = vunpack.c.l.b16 %v1005
        %v1070 = vunpack.c.l.b16 %v1006
        %v1071 = vunpack.c.l.b16 %v1007
        %v1072 = vunpack.c.l.b16 %v1008
        %v1073 = vunpack.c.l.b16 %v1009
        %v1074 = vunpack.c.l.b16 %v1010
        %v1075 = vunpack.c.l.b16 %v1011
        %v1076 = vunpack.c.l.b16 %v1012
        %v1077 = vunpack.c.l.b16 %v1013
        %v1078 = vunpack.c.l.b16 %v1014
        %v1079 = vunpack.c.l.b16 %v1015
        %v1080 = vunpack.c.l.b16 %v1016
        %v1081 = vunpack.c.l.b16 %v1017
        %v1082 = vunpack.c.l.b16 %v1018
        %v1083 = vunpack.c.l.b16 %v1019
        %v1084 = vunpack.c.l.b16 %v1020
        %v1085 = vunpack.c.l.b16 %v1021
        %v1086 = vunpack.c.l.b16 %v1022
        %v1087 = vpack.c.b16 %v1056, %v1055
        %v1088 = vpack.c.b16 %v1058, %v1057
        %v1089 = vpack.c.b16 %v1060, %v1059
        %v1090 = vpack.c.b16 %v1062, %v1061
        %v1091 = vpack.c.b16 %v1064, %v1063
        %v1092 = vpack.c.b16 %v1066, %v1065
        %v1093 = vpack.c.b16 %v1068, %v1067
        %v1094 = vpack.c.b16 %v1070, %v1069
        %v1095 = vpack.c.b16 %v1072, %v1071
        %v1096 = vpack.c.b16 %v1074, %v1073
        %v1097 = vpack.c.b16 %v1076, %v1075
        %v1098 = vpack.c.b16 %v1078, %v1077
        %v1099 = vpack.c.b16 %v1080, %v1079
        %v1100 = vpack.c.b16 %v1082, %v1081
        %v1101 = vpack.c.b16 %v1084, %v1083
        %v1102 = vpack.c.b16 %v1086, %v1085
        %v1104 = vsel %vm845, %v1087, 0
        %v1107 = vsel %vm845, %v1088, 0
        %v1110 = vsel %vm845, %v1089, 0
        %v1113 = vsel %vm845, %v1090, 0
        %v1116 = vsel %vm845, %v1091, 0
        %v1119 = vsel %vm845, %v1092, 0
        %v1122 = vsel %vm845, %v1093, 0
        %v1125 = vsel %vm845, %v1094, 0
        %v1128 = vsel %vm845, %v1095, 0
        %v1131 = vsel %vm845, %v1096, 0
        %v1134 = vsel %vm845, %v1097, 0
        %v1137 = vsel %vm845, %v1098, 0
        %v1140 = vsel %vm845, %v1099, 0
        %v1143 = vsel %vm845, %v1100, 0
        %v1146 = vsel %vm845, %v1101, 0
        %v1149 = vsel %vm845, %v1102, 0
        %1151 = vmatpush.bf16.msra.mxu0 0
        %1152 = vmatpush.bf16.msra.mxu0 0
        %1153 = vmatpush.bf16.msra.mxu0 0
        %1154 = vmatpush.bf16.msra.mxu0 0
        %1155 = vmatpush.bf16.msra.mxu0 0
        %1156 = vmatpush.bf16.msra.mxu0 0
        %1157 = vmatpush.bf16.msra.mxu0 0
        %1158 = vmatpush.bf16.msra.mxu0 %v899
        %1159 = vmatmul.bf16.gmra.mxu0 %v1104
        %v1160 = vpop.f32.mrf.mxu0
        %v1161 = vadd.f32 0.0, %v1160
        %v1162 = vpop.f32.mrf.mxu0
        %v1163 = vadd.f32 0.0, %v1162
        %1164 = vmatmul.bf16.gmra.mxu0 %v1107
        %v1165 = vpop.f32.mrf.mxu0
        %v1166 = vadd.f32 0.0, %v1165
        %v1167 = vpop.f32.mrf.mxu0
        %v1168 = vadd.f32 0.0, %v1167
        %1169 = vmatmul.bf16.gmra.mxu0 %v1110
        %v1170 = vpop.f32.mrf.mxu0
        %v1171 = vadd.f32 0.0, %v1170
        %v1172 = vpop.f32.mrf.mxu0
        %v1173 = vadd.f32 0.0, %v1172
        %1174 = vmatmul.bf16.gmra.mxu0 %v1113
        %v1175 = vpop.f32.mrf.mxu0
        %v1176 = vadd.f32 0.0, %v1175
        %v1177 = vpop.f32.mrf.mxu0
        %v1178 = vadd.f32 0.0, %v1177
        %1179 = vmatmul.bf16.gmra.mxu0 %v1116
        %v1180 = vpop.f32.mrf.mxu0
        %v1181 = vadd.f32 0.0, %v1180
        %v1182 = vpop.f32.mrf.mxu0
        %v1183 = vadd.f32 0.0, %v1182
        %1184 = vmatmul.bf16.gmra.mxu0 %v1119
        %v1185 = vpop.f32.mrf.mxu0
        %v1186 = vadd.f32 0.0, %v1185
        %v1187 = vpop.f32.mrf.mxu0
        %v1188 = vadd.f32 0.0, %v1187
        %1189 = vmatmul.bf16.gmra.mxu0 %v1122
        %v1190 = vpop.f32.mrf.mxu0
        %v1191 = vadd.f32 0.0, %v1190
        %v1192 = vpop.f32.mrf.mxu0
        %v1193 = vadd.f32 0.0, %v1192
        %1194 = vmatmul.bf16.gmra.mxu0 %v1125
        %v1195 = vpop.f32.mrf.mxu0
        %v1196 = vadd.f32 0.0, %v1195
        %v1197 = vpop.f32.mrf.mxu0
        %v1198 = vadd.f32 0.0, %v1197
        %1199 = vmatmul.bf16.gmra.mxu0 %v1128
        %v1200 = vpop.f32.mrf.mxu0
        %v1201 = vadd.f32 0.0, %v1200
        %v1202 = vpop.f32.mrf.mxu0
        %v1203 = vadd.f32 0.0, %v1202
        %1204 = vmatmul.bf16.gmra.mxu0 %v1131
        %v1205 = vpop.f32.mrf.mxu0
        %v1206 = vadd.f32 0.0, %v1205
        %v1207 = vpop.f32.mrf.mxu0
        %v1208 = vadd.f32 0.0, %v1207
        %1209 = vmatmul.bf16.gmra.mxu0 %v1134
        %v1210 = vpop.f32.mrf.mxu0
        %v1211 = vadd.f32 0.0, %v1210
        %v1212 = vpop.f32.mrf.mxu0
        %v1213 = vadd.f32 0.0, %v1212
        %1214 = vmatmul.bf16.gmra.mxu0 %v1137
        %v1215 = vpop.f32.mrf.mxu0
        %v1216 = vadd.f32 0.0, %v1215
        %v1217 = vpop.f32.mrf.mxu0
        %v1218 = vadd.f32 0.0, %v1217
        %1219 = vmatmul.bf16.gmra.mxu0 %v1140
        %v1220 = vpop.f32.mrf.mxu0
        %v1221 = vadd.f32 0.0, %v1220
        %v1222 = vpop.f32.mrf.mxu0
        %v1223 = vadd.f32 0.0, %v1222
        %1224 = vmatmul.bf16.gmra.mxu0 %v1143
        %v1225 = vpop.f32.mrf.mxu0
        %v1226 = vadd.f32 0.0, %v1225
        %v1227 = vpop.f32.mrf.mxu0
        %v1228 = vadd.f32 0.0, %v1227
        %1229 = vmatmul.bf16.gmra.mxu0 %v1146
        %v1230 = vpop.f32.mrf.mxu0
        %v1231 = vadd.f32 0.0, %v1230
        %v1232 = vpop.f32.mrf.mxu0
        %v1233 = vadd.f32 0.0, %v1232
        %1234 = vmatmul.bf16.gmra.mxu0 %v1149
        %v1235 = vpop.f32.mrf.mxu0
        %v1236 = vadd.f32 0.0, %v1235
        %v1237 = vpop.f32.mrf.mxu0
        %v1238 = vadd.f32 0.0, %v1237
        %1239 = vdwg.mxu0
        %v1240 = vmax.f32 %v911, %v1161
        %v1241 = vmax.f32 %v913, %v1163
        %v1242 = vmax.f32 %v916, %v1166
        %v1243 = vmax.f32 %v918, %v1168
        %v1244 = vmax.f32 %v921, %v1171
        %v1245 = vmax.f32 %v923, %v1173
        %v1246 = vmax.f32 %v926, %v1176
        %v1247 = vmax.f32 %v928, %v1178
        %v1248 = vmax.f32 %v931, %v1181
        %v1249 = vmax.f32 %v933, %v1183
        %v1250 = vmax.f32 %v936, %v1186
        %v1251 = vmax.f32 %v938, %v1188
        %v1252 = vmax.f32 %v941, %v1191
        %v1253 = vmax.f32 %v943, %v1193
        %v1254 = vmax.f32 %v946, %v1196
        %v1255 = vmax.f32 %v948, %v1198
        %v1256 = vmax.f32 %v951, %v1201
        %v1257 = vmax.f32 %v953, %v1203
        %v1258 = vmax.f32 %v956, %v1206
        %v1259 = vmax.f32 %v958, %v1208
        %v1260 = vmax.f32 %v961, %v1211
        %v1261 = vmax.f32 %v963, %v1213
        %v1262 = vmax.f32 %v966, %v1216
        %v1263 = vmax.f32 %v968, %v1218
        %v1264 = vmax.f32 %v971, %v1221
        %v1265 = vmax.f32 %v973, %v1223
        %v1266 = vmax.f32 %v976, %v1226
        %v1267 = vmax.f32 %v978, %v1228
        %v1268 = vmax.f32 %v981, %v1231
        %v1269 = vmax.f32 %v983, %v1233
        %v1270 = vmax.f32 %v986, %v1236
        %v1271 = vmax.f32 %v988, %v1238
        %s1272 = scalar_lea.vmem %s697, 256 [#allocation2]
        %v1273 = vld [vmem:[%s1272] sm:$0xf]
        %v1274 = vld [vmem:[%s1272 + $0x4] sm:$0xf]
        %v1275 = vld [vmem:[%s1272 + $0x8] sm:$0xf]
        %v1276 = vld [vmem:[%s1272 + $0xc] sm:$0xf]
        %v1277 = vld [vmem:[%s1272 + $0x10] sm:$0xf]
        %v1278 = vld [vmem:[%s1272 + $0x14] sm:$0xf]
        %v1279 = vld [vmem:[%s1272 + $0x18] sm:$0xf]
        %v1280 = vld [vmem:[%s1272 + $0x1c] sm:$0xf]
        %v1281 = vld [vmem:[%s1272 + $0x20] sm:$0xf]
        %v1282 = vld [vmem:[%s1272 + $0x24] sm:$0xf]
        %v1283 = vld [vmem:[%s1272 + $0x28] sm:$0xf]
        %v1284 = vld [vmem:[%s1272 + $0x2c] sm:$0xf]
        %v1285 = vld [vmem:[%s1272 + $0x30] sm:$0xf]
        %v1286 = vld [vmem:[%s1272 + $0x34] sm:$0xf]
        %v1287 = vld [vmem:[%s1272 + $0x38] sm:$0xf]
        %v1288 = vld [vmem:[%s1272 + $0x3c] sm:$0xf]
        %v1289 = vld [vmem:[%s1272 + $0x40] sm:$0xf]
        %v1290 = vld [vmem:[%s1272 + $0x44] sm:$0xf]
        %v1291 = vld [vmem:[%s1272 + $0x48] sm:$0xf]
        %v1292 = vld [vmem:[%s1272 + $0x4c] sm:$0xf]
        %v1293 = vld [vmem:[%s1272 + $0x50] sm:$0xf]
        %v1294 = vld [vmem:[%s1272 + $0x54] sm:$0xf]
        %v1295 = vld [vmem:[%s1272 + $0x58] sm:$0xf]
        %v1296 = vld [vmem:[%s1272 + $0x5c] sm:$0xf]
        %v1297 = vld [vmem:[%s1272 + $0x60] sm:$0xf]
        %v1298 = vld [vmem:[%s1272 + $0x64] sm:$0xf]
        %v1299 = vld [vmem:[%s1272 + $0x68] sm:$0xf]
        %v1300 = vld [vmem:[%s1272 + $0x6c] sm:$0xf]
        %v1301 = vld [vmem:[%s1272 + $0x70] sm:$0xf]
        %v1302 = vld [vmem:[%s1272 + $0x74] sm:$0xf]
        %v1303 = vld [vmem:[%s1272 + $0x78] sm:$0xf]
        %v1304 = vld [vmem:[%s1272 + $0x7c] sm:$0xf]
        %v1337 = vunpack.c.l.b16 %v1273
        %v1338 = vunpack.c.l.b16 %v1274
        %v1339 = vunpack.c.l.b16 %v1275
        %v1340 = vunpack.c.l.b16 %v1276
        %v1341 = vunpack.c.l.b16 %v1277
        %v1342 = vunpack.c.l.b16 %v1278
        %v1343 = vunpack.c.l.b16 %v1279
        %v1344 = vunpack.c.l.b16 %v1280
        %v1345 = vunpack.c.l.b16 %v1281
        %v1346 = vunpack.c.l.b16 %v1282
        %v1347 = vunpack.c.l.b16 %v1283
        %v1348 = vunpack.c.l.b16 %v1284
        %v1349 = vunpack.c.l.b16 %v1285
        %v1350 = vunpack.c.l.b16 %v1286
        %v1351 = vunpack.c.l.b16 %v1287
        %v1352 = vunpack.c.l.b16 %v1288
        %v1353 = vunpack.c.l.b16 %v1289
        %v1354 = vunpack.c.l.b16 %v1290
        %v1355 = vunpack.c.l.b16 %v1291
        %v1356 = vunpack.c.l.b16 %v1292
        %v1357 = vunpack.c.l.b16 %v1293
        %v1358 = vunpack.c.l.b16 %v1294
        %v1359 = vunpack.c.l.b16 %v1295
        %v1360 = vunpack.c.l.b16 %v1296
        %v1361 = vunpack.c.l.b16 %v1297
        %v1362 = vunpack.c.l.b16 %v1298
        %v1363 = vunpack.c.l.b16 %v1299
        %v1364 = vunpack.c.l.b16 %v1300
        %v1365 = vunpack.c.l.b16 %v1301
        %v1366 = vunpack.c.l.b16 %v1302
        %v1367 = vunpack.c.l.b16 %v1303
        %v1368 = vunpack.c.l.b16 %v1304
        %v1369 = vpack.c.b16 %v1338, %v1337
        %v1370 = vpack.c.b16 %v1340, %v1339
        %v1371 = vpack.c.b16 %v1342, %v1341
        %v1372 = vpack.c.b16 %v1344, %v1343
        %v1373 = vpack.c.b16 %v1346, %v1345
        %v1374 = vpack.c.b16 %v1348, %v1347
        %v1375 = vpack.c.b16 %v1350, %v1349
        %v1376 = vpack.c.b16 %v1352, %v1351
        %v1377 = vpack.c.b16 %v1354, %v1353
        %v1378 = vpack.c.b16 %v1356, %v1355
        %v1379 = vpack.c.b16 %v1358, %v1357
        %v1380 = vpack.c.b16 %v1360, %v1359
        %v1381 = vpack.c.b16 %v1362, %v1361
        %v1382 = vpack.c.b16 %v1364, %v1363
        %v1383 = vpack.c.b16 %v1366, %v1365
        %v1384 = vpack.c.b16 %v1368, %v1367
        %v1386 = vsel %vm845, %v1369, 0
        %v1389 = vsel %vm845, %v1370, 0
        %v1392 = vsel %vm845, %v1371, 0
        %v1395 = vsel %vm845, %v1372, 0
        %v1398 = vsel %vm845, %v1373, 0
        %v1401 = vsel %vm845, %v1374, 0
        %v1404 = vsel %vm845, %v1375, 0
        %v1407 = vsel %vm845, %v1376, 0
        %v1410 = vsel %vm845, %v1377, 0
        %v1413 = vsel %vm845, %v1378, 0
        %v1416 = vsel %vm845, %v1379, 0
        %v1419 = vsel %vm845, %v1380, 0
        %v1422 = vsel %vm845, %v1381, 0
        %v1425 = vsel %vm845, %v1382, 0
        %v1428 = vsel %vm845, %v1383, 0
        %v1431 = vsel %vm845, %v1384, 0
        %1433 = vmatpush.bf16.msra.mxu0 0
        %1434 = vmatpush.bf16.msra.mxu0 0
        %1435 = vmatpush.bf16.msra.mxu0 0
        %1436 = vmatpush.bf16.msra.mxu0 0
        %1437 = vmatpush.bf16.msra.mxu0 0
        %1438 = vmatpush.bf16.msra.mxu0 0
        %1439 = vmatpush.bf16.msra.mxu0 0
        %1440 = vmatpush.bf16.msra.mxu0 %v899
        %1441 = vmatmul.bf16.gmra.mxu0 %v1386
        %v1442 = vpop.f32.mrf.mxu0
        %v1443 = vadd.f32 0.0, %v1442
        %v1444 = vpop.f32.mrf.mxu0
        %v1445 = vadd.f32 0.0, %v1444
        %1446 = vmatmul.bf16.gmra.mxu0 %v1389
        %v1447 = vpop.f32.mrf.mxu0
        %v1448 = vadd.f32 0.0, %v1447
        %v1449 = vpop.f32.mrf.mxu0
        %v1450 = vadd.f32 0.0, %v1449
        %1451 = vmatmul.bf16.gmra.mxu0 %v1392
        %v1452 = vpop.f32.mrf.mxu0
        %v1453 = vadd.f32 0.0, %v1452
        %v1454 = vpop.f32.mrf.mxu0
        %v1455 = vadd.f32 0.0, %v1454
        %1456 = vmatmul.bf16.gmra.mxu0 %v1395
        %v1457 = vpop.f32.mrf.mxu0
        %v1458 = vadd.f32 0.0, %v1457
        %v1459 = vpop.f32.mrf.mxu0
        %v1460 = vadd.f32 0.0, %v1459
        %1461 = vmatmul.bf16.gmra.mxu0 %v1398
        %v1462 = vpop.f32.mrf.mxu0
        %v1463 = vadd.f32 0.0, %v1462
        %v1464 = vpop.f32.mrf.mxu0
        %v1465 = vadd.f32 0.0, %v1464
        %1466 = vmatmul.bf16.gmra.mxu0 %v1401
        %v1467 = vpop.f32.mrf.mxu0
        %v1468 = vadd.f32 0.0, %v1467
        %v1469 = vpop.f32.mrf.mxu0
        %v1470 = vadd.f32 0.0, %v1469
        %1471 = vmatmul.bf16.gmra.mxu0 %v1404
        %v1472 = vpop.f32.mrf.mxu0
        %v1473 = vadd.f32 0.0, %v1472
        %v1474 = vpop.f32.mrf.mxu0
        %v1475 = vadd.f32 0.0, %v1474
        %1476 = vmatmul.bf16.gmra.mxu0 %v1407
        %v1477 = vpop.f32.mrf.mxu0
        %v1478 = vadd.f32 0.0, %v1477
        %v1479 = vpop.f32.mrf.mxu0
        %v1480 = vadd.f32 0.0, %v1479
        %1481 = vmatmul.bf16.gmra.mxu0 %v1410
        %v1482 = vpop.f32.mrf.mxu0
        %v1483 = vadd.f32 0.0, %v1482
        %v1484 = vpop.f32.mrf.mxu0
        %v1485 = vadd.f32 0.0, %v1484
        %1486 = vmatmul.bf16.gmra.mxu0 %v1413
        %v1487 = vpop.f32.mrf.mxu0
        %v1488 = vadd.f32 0.0, %v1487
        %v1489 = vpop.f32.mrf.mxu0
        %v1490 = vadd.f32 0.0, %v1489
        %1491 = vmatmul.bf16.gmra.mxu0 %v1416
        %v1492 = vpop.f32.mrf.mxu0
        %v1493 = vadd.f32 0.0, %v1492
        %v1494 = vpop.f32.mrf.mxu0
        %v1495 = vadd.f32 0.0, %v1494
        %1496 = vmatmul.bf16.gmra.mxu0 %v1419
        %v1497 = vpop.f32.mrf.mxu0
        %v1498 = vadd.f32 0.0, %v1497
        %v1499 = vpop.f32.mrf.mxu0
        %v1500 = vadd.f32 0.0, %v1499
        %1501 = vmatmul.bf16.gmra.mxu0 %v1422
        %v1502 = vpop.f32.mrf.mxu0
        %v1503 = vadd.f32 0.0, %v1502
        %v1504 = vpop.f32.mrf.mxu0
        %v1505 = vadd.f32 0.0, %v1504
        %1506 = vmatmul.bf16.gmra.mxu0 %v1425
        %v1507 = vpop.f32.mrf.mxu0
        %v1508 = vadd.f32 0.0, %v1507
        %v1509 = vpop.f32.mrf.mxu0
        %v1510 = vadd.f32 0.0, %v1509
        %1511 = vmatmul.bf16.gmra.mxu0 %v1428
        %v1512 = vpop.f32.mrf.mxu0
        %v1513 = vadd.f32 0.0, %v1512
        %v1514 = vpop.f32.mrf.mxu0
        %v1515 = vadd.f32 0.0, %v1514
        %1516 = vmatmul.bf16.gmra.mxu0 %v1431
        %v1517 = vpop.f32.mrf.mxu0
        %v1518 = vadd.f32 0.0, %v1517
        %v1519 = vpop.f32.mrf.mxu0
        %v1520 = vadd.f32 0.0, %v1519
        %1521 = vdwg.mxu0
        %v1522 = vmax.f32 %v1240, %v1443
        %v1523 = vmax.f32 %v1241, %v1445
        %v1524 = vmax.f32 %v1242, %v1448
        %v1525 = vmax.f32 %v1243, %v1450
        %v1526 = vmax.f32 %v1244, %v1453
        %v1527 = vmax.f32 %v1245, %v1455
        %v1528 = vmax.f32 %v1246, %v1458
        %v1529 = vmax.f32 %v1247, %v1460
        %v1530 = vmax.f32 %v1248, %v1463
        %v1531 = vmax.f32 %v1249, %v1465
        %v1532 = vmax.f32 %v1250, %v1468
        %v1533 = vmax.f32 %v1251, %v1470
        %v1534 = vmax.f32 %v1252, %v1473
        %v1535 = vmax.f32 %v1253, %v1475
        %v1536 = vmax.f32 %v1254, %v1478
        %v1537 = vmax.f32 %v1255, %v1480
        %v1538 = vmax.f32 %v1256, %v1483
        %v1539 = vmax.f32 %v1257, %v1485
        %v1540 = vmax.f32 %v1258, %v1488
        %v1541 = vmax.f32 %v1259, %v1490
        %v1542 = vmax.f32 %v1260, %v1493
        %v1543 = vmax.f32 %v1261, %v1495
        %v1544 = vmax.f32 %v1262, %v1498
        %v1545 = vmax.f32 %v1263, %v1500
        %v1546 = vmax.f32 %v1264, %v1503
        %v1547 = vmax.f32 %v1265, %v1505
        %v1548 = vmax.f32 %v1266, %v1508
        %v1549 = vmax.f32 %v1267, %v1510
        %v1550 = vmax.f32 %v1268, %v1513
        %v1551 = vmax.f32 %v1269, %v1515
        %v1552 = vmax.f32 %v1270, %v1518
        %v1553 = vmax.f32 %v1271, %v1520
        %s1554 = scalar_lea.vmem %s697, 384 [#allocation2]
        %v1555 = vld [vmem:[%s1554] sm:$0xf]
        %v1556 = vld [vmem:[%s1554 + $0x4] sm:$0xf]
        %v1557 = vld [vmem:[%s1554 + $0x8] sm:$0xf]
        %v1558 = vld [vmem:[%s1554 + $0xc] sm:$0xf]
        %v1559 = vld [vmem:[%s1554 + $0x10] sm:$0xf]
        %v1560 = vld [vmem:[%s1554 + $0x14] sm:$0xf]
        %v1561 = vld [vmem:[%s1554 + $0x18] sm:$0xf]
        %v1562 = vld [vmem:[%s1554 + $0x1c] sm:$0xf]
        %v1563 = vld [vmem:[%s1554 + $0x20] sm:$0xf]
        %v1564 = vld [vmem:[%s1554 + $0x24] sm:$0xf]
        %v1565 = vld [vmem:[%s1554 + $0x28] sm:$0xf]
        %v1566 = vld [vmem:[%s1554 + $0x2c] sm:$0xf]
        %v1567 = vld [vmem:[%s1554 + $0x30] sm:$0xf]
        %v1568 = vld [vmem:[%s1554 + $0x34] sm:$0xf]
        %v1569 = vld [vmem:[%s1554 + $0x38] sm:$0xf]
        %v1570 = vld [vmem:[%s1554 + $0x3c] sm:$0xf]
        %v1571 = vld [vmem:[%s1554 + $0x40] sm:$0xf]
        %v1572 = vld [vmem:[%s1554 + $0x44] sm:$0xf]
        %v1573 = vld [vmem:[%s1554 + $0x48] sm:$0xf]
        %v1574 = vld [vmem:[%s1554 + $0x4c] sm:$0xf]
        %v1575 = vld [vmem:[%s1554 + $0x50] sm:$0xf]
        %v1576 = vld [vmem:[%s1554 + $0x54] sm:$0xf]
        %v1577 = vld [vmem:[%s1554 + $0x58] sm:$0xf]
        %v1578 = vld [vmem:[%s1554 + $0x5c] sm:$0xf]
        %v1579 = vld [vmem:[%s1554 + $0x60] sm:$0xf]
        %v1580 = vld [vmem:[%s1554 + $0x64] sm:$0xf]
        %v1581 = vld [vmem:[%s1554 + $0x68] sm:$0xf]
        %v1582 = vld [vmem:[%s1554 + $0x6c] sm:$0xf]
        %v1583 = vld [vmem:[%s1554 + $0x70] sm:$0xf]
        %v1584 = vld [vmem:[%s1554 + $0x74] sm:$0xf]
        %v1585 = vld [vmem:[%s1554 + $0x78] sm:$0xf]
        %v1586 = vld [vmem:[%s1554 + $0x7c] sm:$0xf]
        %v1619 = vunpack.c.l.b16 %v1555
        %v1620 = vunpack.c.l.b16 %v1556
        %v1621 = vunpack.c.l.b16 %v1557
        %v1622 = vunpack.c.l.b16 %v1558
        %v1623 = vunpack.c.l.b16 %v1559
        %v1624 = vunpack.c.l.b16 %v1560
        %v1625 = vunpack.c.l.b16 %v1561
        %v1626 = vunpack.c.l.b16 %v1562
        %v1627 = vunpack.c.l.b16 %v1563
        %v1628 = vunpack.c.l.b16 %v1564
        %v1629 = vunpack.c.l.b16 %v1565
        %v1630 = vunpack.c.l.b16 %v1566
        %v1631 = vunpack.c.l.b16 %v1567
        %v1632 = vunpack.c.l.b16 %v1568
        %v1633 = vunpack.c.l.b16 %v1569
        %v1634 = vunpack.c.l.b16 %v1570
        %v1635 = vunpack.c.l.b16 %v1571
        %v1636 = vunpack.c.l.b16 %v1572
        %v1637 = vunpack.c.l.b16 %v1573
        %v1638 = vunpack.c.l.b16 %v1574
        %v1639 = vunpack.c.l.b16 %v1575
        %v1640 = vunpack.c.l.b16 %v1576
        %v1641 = vunpack.c.l.b16 %v1577
        %v1642 = vunpack.c.l.b16 %v1578
        %v1643 = vunpack.c.l.b16 %v1579
        %v1644 = vunpack.c.l.b16 %v1580
        %v1645 = vunpack.c.l.b16 %v1581
        %v1646 = vunpack.c.l.b16 %v1582
        %v1647 = vunpack.c.l.b16 %v1583
        %v1648 = vunpack.c.l.b16 %v1584
        %v1649 = vunpack.c.l.b16 %v1585
        %v1650 = vunpack.c.l.b16 %v1586
        %v1651 = vpack.c.b16 %v1620, %v1619
        %v1652 = vpack.c.b16 %v1622, %v1621
        %v1653 = vpack.c.b16 %v1624, %v1623
        %v1654 = vpack.c.b16 %v1626, %v1625
        %v1655 = vpack.c.b16 %v1628, %v1627
        %v1656 = vpack.c.b16 %v1630, %v1629
        %v1657 = vpack.c.b16 %v1632, %v1631
        %v1658 = vpack.c.b16 %v1634, %v1633
        %v1659 = vpack.c.b16 %v1636, %v1635
        %v1660 = vpack.c.b16 %v1638, %v1637
        %v1661 = vpack.c.b16 %v1640, %v1639
        %v1662 = vpack.c.b16 %v1642, %v1641
        %v1663 = vpack.c.b16 %v1644, %v1643
        %v1664 = vpack.c.b16 %v1646, %v1645
        %v1665 = vpack.c.b16 %v1648, %v1647
        %v1666 = vpack.c.b16 %v1650, %v1649
        %v1668 = vsel %vm845, %v1651, 0
        %v1671 = vsel %vm845, %v1652, 0
        %v1674 = vsel %vm845, %v1653, 0
        %v1677 = vsel %vm845, %v1654, 0
        %v1680 = vsel %vm845, %v1655, 0
        %v1683 = vsel %vm845, %v1656, 0
        %v1686 = vsel %vm845, %v1657, 0
        %v1689 = vsel %vm845, %v1658, 0
        %v1692 = vsel %vm845, %v1659, 0
        %v1695 = vsel %vm845, %v1660, 0
        %v1698 = vsel %vm845, %v1661, 0
        %v1701 = vsel %vm845, %v1662, 0
        %v1704 = vsel %vm845, %v1663, 0
        %v1707 = vsel %vm845, %v1664, 0
        %v1710 = vsel %vm845, %v1665, 0
        %v1713 = vsel %vm845, %v1666, 0
        %1715 = vmatpush.bf16.msra.mxu0 0
        %1716 = vmatpush.bf16.msra.mxu0 0
        %1717 = vmatpush.bf16.msra.mxu0 0
        %1718 = vmatpush.bf16.msra.mxu0 0
        %1719 = vmatpush.bf16.msra.mxu0 0
        %1720 = vmatpush.bf16.msra.mxu0 0
        %1721 = vmatpush.bf16.msra.mxu0 0
        %1722 = vmatpush.bf16.msra.mxu0 %v899
        %1723 = vmatmul.bf16.gmra.mxu0 %v1668
        %v1724 = vpop.f32.mrf.mxu0
        %v1725 = vadd.f32 0.0, %v1724
        %v1726 = vpop.f32.mrf.mxu0
        %v1727 = vadd.f32 0.0, %v1726
        %1728 = vmatmul.bf16.gmra.mxu0 %v1671
        %v1729 = vpop.f32.mrf.mxu0
        %v1730 = vadd.f32 0.0, %v1729
        %v1731 = vpop.f32.mrf.mxu0
        %v1732 = vadd.f32 0.0, %v1731
        %1733 = vmatmul.bf16.gmra.mxu0 %v1674
        %v1734 = vpop.f32.mrf.mxu0
        %v1735 = vadd.f32 0.0, %v1734
        %v1736 = vpop.f32.mrf.mxu0
        %v1737 = vadd.f32 0.0, %v1736
        %1738 = vmatmul.bf16.gmra.mxu0 %v1677
        %v1739 = vpop.f32.mrf.mxu0
        %v1740 = vadd.f32 0.0, %v1739
        %v1741 = vpop.f32.mrf.mxu0
        %v1742 = vadd.f32 0.0, %v1741
        %1743 = vmatmul.bf16.gmra.mxu0 %v1680
        %v1744 = vpop.f32.mrf.mxu0
        %v1745 = vadd.f32 0.0, %v1744
        %v1746 = vpop.f32.mrf.mxu0
        %v1747 = vadd.f32 0.0, %v1746
        %1748 = vmatmul.bf16.gmra.mxu0 %v1683
        %v1749 = vpop.f32.mrf.mxu0
        %v1750 = vadd.f32 0.0, %v1749
        %v1751 = vpop.f32.mrf.mxu0
        %v1752 = vadd.f32 0.0, %v1751
        %1753 = vmatmul.bf16.gmra.mxu0 %v1686
        %v1754 = vpop.f32.mrf.mxu0
        %v1755 = vadd.f32 0.0, %v1754
        %v1756 = vpop.f32.mrf.mxu0
        %v1757 = vadd.f32 0.0, %v1756
        %1758 = vmatmul.bf16.gmra.mxu0 %v1689
        %v1759 = vpop.f32.mrf.mxu0
        %v1760 = vadd.f32 0.0, %v1759
        %v1761 = vpop.f32.mrf.mxu0
        %v1762 = vadd.f32 0.0, %v1761
        %1763 = vmatmul.bf16.gmra.mxu0 %v1692
        %v1764 = vpop.f32.mrf.mxu0
        %v1765 = vadd.f32 0.0, %v1764
        %v1766 = vpop.f32.mrf.mxu0
        %v1767 = vadd.f32 0.0, %v1766
        %1768 = vmatmul.bf16.gmra.mxu0 %v1695
        %v1769 = vpop.f32.mrf.mxu0
        %v1770 = vadd.f32 0.0, %v1769
        %v1771 = vpop.f32.mrf.mxu0
        %v1772 = vadd.f32 0.0, %v1771
        %1773 = vmatmul.bf16.gmra.mxu0 %v1698
        %v1774 = vpop.f32.mrf.mxu0
        %v1775 = vadd.f32 0.0, %v1774
        %v1776 = vpop.f32.mrf.mxu0
        %v1777 = vadd.f32 0.0, %v1776
        %1778 = vmatmul.bf16.gmra.mxu0 %v1701
        %v1779 = vpop.f32.mrf.mxu0
        %v1780 = vadd.f32 0.0, %v1779
        %v1781 = vpop.f32.mrf.mxu0
        %v1782 = vadd.f32 0.0, %v1781
        %1783 = vmatmul.bf16.gmra.mxu0 %v1704
        %v1784 = vpop.f32.mrf.mxu0
        %v1785 = vadd.f32 0.0, %v1784
        %v1786 = vpop.f32.mrf.mxu0
        %v1787 = vadd.f32 0.0, %v1786
        %1788 = vmatmul.bf16.gmra.mxu0 %v1707
        %v1789 = vpop.f32.mrf.mxu0
        %v1790 = vadd.f32 0.0, %v1789
        %v1791 = vpop.f32.mrf.mxu0
        %v1792 = vadd.f32 0.0, %v1791
        %1793 = vmatmul.bf16.gmra.mxu0 %v1710
        %v1794 = vpop.f32.mrf.mxu0
        %v1795 = vadd.f32 0.0, %v1794
        %v1796 = vpop.f32.mrf.mxu0
        %v1797 = vadd.f32 0.0, %v1796
        %1798 = vmatmul.bf16.gmra.mxu0 %v1713
        %v1799 = vpop.f32.mrf.mxu0
        %v1800 = vadd.f32 0.0, %v1799
        %v1801 = vpop.f32.mrf.mxu0
        %v1802 = vadd.f32 0.0, %v1801
        %1803 = vdwg.mxu0
        %v1804 = vmax.f32 %v1522, %v1725
        %v1805 = vmax.f32 %v1523, %v1727
        %v1806 = vmax.f32 %v1524, %v1730
        %v1807 = vmax.f32 %v1525, %v1732
        %v1808 = vmax.f32 %v1526, %v1735
        %v1809 = vmax.f32 %v1527, %v1737
        %v1810 = vmax.f32 %v1528, %v1740
        %v1811 = vmax.f32 %v1529, %v1742
        %v1812 = vmax.f32 %v1530, %v1745
        %v1813 = vmax.f32 %v1531, %v1747
        %v1814 = vmax.f32 %v1532, %v1750
        %v1815 = vmax.f32 %v1533, %v1752
        %v1816 = vmax.f32 %v1534, %v1755
        %v1817 = vmax.f32 %v1535, %v1757
        %v1818 = vmax.f32 %v1536, %v1760
        %v1819 = vmax.f32 %v1537, %v1762
        %v1820 = vmax.f32 %v1538, %v1765
        %v1821 = vmax.f32 %v1539, %v1767
        %v1822 = vmax.f32 %v1540, %v1770
        %v1823 = vmax.f32 %v1541, %v1772
        %v1824 = vmax.f32 %v1542, %v1775
        %v1825 = vmax.f32 %v1543, %v1777
        %v1826 = vmax.f32 %v1544, %v1780
        %v1827 = vmax.f32 %v1545, %v1782
        %v1828 = vmax.f32 %v1546, %v1785
        %v1829 = vmax.f32 %v1547, %v1787
        %v1830 = vmax.f32 %v1548, %v1790
        %v1831 = vmax.f32 %v1549, %v1792
        %v1832 = vmax.f32 %v1550, %v1795
        %v1833 = vmax.f32 %v1551, %v1797
        %v1834 = vmax.f32 %v1552, %v1800
        %v1835 = vmax.f32 %v1553, %v1802
        %v1836 = vld [vmem:[%s2] sm:$0x1]
        %v1838 = vperm.slane %v1836, 0
        %v1840 = vadd.f32 %v1804, %v1838
        %v1841 = vadd.f32 %v1805, %v1838
        %v1842 = vadd.f32 %v1806, %v1838
        %v1843 = vadd.f32 %v1807, %v1838
        %v1844 = vadd.f32 %v1808, %v1838
        %v1845 = vadd.f32 %v1809, %v1838
        %v1846 = vadd.f32 %v1810, %v1838
        %v1847 = vadd.f32 %v1811, %v1838
        %v1848 = vadd.f32 %v1812, %v1838
        %v1849 = vadd.f32 %v1813, %v1838
        %v1850 = vadd.f32 %v1814, %v1838
        %v1851 = vadd.f32 %v1815, %v1838
        %v1852 = vadd.f32 %v1816, %v1838
        %v1853 = vadd.f32 %v1817, %v1838
        %v1854 = vadd.f32 %v1818, %v1838
        %v1855 = vadd.f32 %v1819, %v1838
        %v1856 = vadd.f32 %v1820, %v1838
        %v1857 = vadd.f32 %v1821, %v1838
        %v1858 = vadd.f32 %v1822, %v1838
        %v1859 = vadd.f32 %v1823, %v1838
        %v1860 = vadd.f32 %v1824, %v1838
        %v1861 = vadd.f32 %v1825, %v1838
        %v1862 = vadd.f32 %v1826, %v1838
        %v1863 = vadd.f32 %v1827, %v1838
        %v1864 = vadd.f32 %v1828, %v1838
        %v1865 = vadd.f32 %v1829, %v1838
        %v1866 = vadd.f32 %v1830, %v1838
        %v1867 = vadd.f32 %v1831, %v1838
        %v1868 = vadd.f32 %v1832, %v1838
        %v1869 = vadd.f32 %v1833, %v1838
        %v1870 = vadd.f32 %v1834, %v1838
        %v1871 = vadd.f32 %v1835, %v1838
        %v1872 = vmax.f32 %v1840, 0.0
        %v1873 = vmax.f32 %v1841, 0.0
        %v1874 = vmax.f32 %v1842, 0.0
        %v1875 = vmax.f32 %v1843, 0.0
        %v1876 = vmax.f32 %v1844, 0.0
        %v1877 = vmax.f32 %v1845, 0.0
        %v1878 = vmax.f32 %v1846, 0.0
        %v1879 = vmax.f32 %v1847, 0.0
        %v1880 = vmax.f32 %v1848, 0.0
        %v1881 = vmax.f32 %v1849, 0.0
        %v1882 = vmax.f32 %v1850, 0.0
        %v1883 = vmax.f32 %v1851, 0.0
        %v1884 = vmax.f32 %v1852, 0.0
        %v1885 = vmax.f32 %v1853, 0.0
        %v1886 = vmax.f32 %v1854, 0.0
        %v1887 = vmax.f32 %v1855, 0.0
        %v1888 = vmax.f32 %v1856, 0.0
        %v1889 = vmax.f32 %v1857, 0.0
        %v1890 = vmax.f32 %v1858, 0.0
        %v1891 = vmax.f32 %v1859, 0.0
        %v1892 = vmax.f32 %v1860, 0.0
        %v1893 = vmax.f32 %v1861, 0.0
        %v1894 = vmax.f32 %v1862, 0.0
        %v1895 = vmax.f32 %v1863, 0.0
        %v1896 = vmax.f32 %v1864, 0.0
        %v1897 = vmax.f32 %v1865, 0.0
        %v1898 = vmax.f32 %v1866, 0.0
        %v1899 = vmax.f32 %v1867, 0.0
        %v1900 = vmax.f32 %v1868, 0.0
        %v1901 = vmax.f32 %v1869, 0.0
        %v1902 = vmax.f32 %v1870, 0.0
        %v1903 = vmax.f32 %v1871, 0.0
        %vm1904 = vcmask 261120
        %1905 = vst.msk [vmem:[%s723] sm:$0xff] %vm1904, %v1872
        %1906 = vst.msk [vmem:[%s723 + $0x8] sm:$0xff] %vm1904, %v1873
        %1907 = vst.msk [vmem:[%s723 + $0x10] sm:$0xff] %vm1904, %v1874
        %1908 = vst.msk [vmem:[%s723 + $0x18] sm:$0xff] %vm1904, %v1875
        %1909 = vst.msk [vmem:[%s723 + $0x20] sm:$0xff] %vm1904, %v1876
        %1910 = vst.msk [vmem:[%s723 + $0x28] sm:$0xff] %vm1904, %v1877
        %1911 = vst.msk [vmem:[%s723 + $0x30] sm:$0xff] %vm1904, %v1878
        %1912 = vst.msk [vmem:[%s723 + $0x38] sm:$0xff] %vm1904, %v1879
        %1913 = vst.msk [vmem:[%s723 + $0x40] sm:$0xff] %vm1904, %v1880
        %1914 = vst.msk [vmem:[%s723 + $0x48] sm:$0xff] %vm1904, %v1881
        %1915 = vst.msk [vmem:[%s723 + $0x50] sm:$0xff] %vm1904, %v1882
        %1916 = vst.msk [vmem:[%s723 + $0x58] sm:$0xff] %vm1904, %v1883
        %1917 = vst.msk [vmem:[%s723 + $0x60] sm:$0xff] %vm1904, %v1884
        %1918 = vst.msk [vmem:[%s723 + $0x68] sm:$0xff] %vm1904, %v1885
        %1919 = vst.msk [vmem:[%s723 + $0x70] sm:$0xff] %vm1904, %v1886
        %1920 = vst.msk [vmem:[%s723 + $0x78] sm:$0xff] %vm1904, %v1887
        %1921 = vst.msk [vmem:[%s723 + $0x80] sm:$0xff] %vm1904, %v1888
        %1922 = vst.msk [vmem:[%s723 + $0x88] sm:$0xff] %vm1904, %v1889
        %1923 = vst.msk [vmem:[%s723 + $0x90] sm:$0xff] %vm1904, %v1890
        %1924 = vst.msk [vmem:[%s723 + $0x98] sm:$0xff] %vm1904, %v1891
        %1925 = vst.msk [vmem:[%s723 + $0xa0] sm:$0xff] %vm1904, %v1892
        %1926 = vst.msk [vmem:[%s723 + $0xa8] sm:$0xff] %vm1904, %v1893
        %1927 = vst.msk [vmem:[%s723 + $0xb0] sm:$0xff] %vm1904, %v1894
        %1928 = vst.msk [vmem:[%s723 + $0xb8] sm:$0xff] %vm1904, %v1895
        %1929 = vst.msk [vmem:[%s723 + $0xc0] sm:$0xff] %vm1904, %v1896
        %1930 = vst.msk [vmem:[%s723 + $0xc8] sm:$0xff] %vm1904, %v1897
        %1931 = vst.msk [vmem:[%s723 + $0xd0] sm:$0xff] %vm1904, %v1898
        %1932 = vst.msk [vmem:[%s723 + $0xd8] sm:$0xff] %vm1904, %v1899
        %1933 = vst.msk [vmem:[%s723 + $0xe0] sm:$0xff] %vm1904, %v1900
        %1934 = vst.msk [vmem:[%s723 + $0xe8] sm:$0xff] %vm1904, %v1901
        %1935 = vst.msk [vmem:[%s723 + $0xf0] sm:$0xff] %vm1904, %v1902
        %1936 = vst.msk [vmem:[%s723 + $0xf8] sm:$0xff] %vm1904, %v1903
        %s1937 = smul.u32 32, %s14
        %p1938 = scmp.lt.s32.totalorder %s1937, 63
        %s1939 = scalar_select %p1938, %s1937, 63
        %s1940 = smul.addr %s1939, 8
        %s1941 = scalar_lea.vmem %s3, %s1940
        // Predicated region
        $region74: #{cnn_forward.3} parent=68 // pred_check
          %p1942 = pneg %p100
        $region75: #{cnn_forward.3} parent=68 // pred_check_branch
          %1944 = sbr.rel (%p1942) target = $region77
        $region76: #{cnn_forward.3} parent=68 // pred_region
          %s1945 = smul.u32 32, %s14
        $region77: #{cnn_forward.3} parent=68 // pred_fallthru
          _
      $region69: #{cnn_forward.3} parent=5 // pred_fallthru
        _
      %p1946 = scmp.le.s32.totalorder 2, %s9
      // Predicated region
      $region78: #{cnn_forward.3} parent=5 // pred_check
        %p1947 = pneg %p1946
      $region79: #{cnn_forward.3} parent=5 // pred_check_branch
        %1949 = sbr.rel (%p1947) target = $region81
      $region80: #{cnn_forward.3} parent=5 // pred_region
        %s1950 = ssub.s32 %s9, 2
        // Predicated region
        $region82: #{cnn_forward.3} parent=80 // pred_check
          %p1951 = pneg %p106
        $region83: #{cnn_forward.3} parent=80 // pred_check_branch
          %1953 = sbr.rel (%p1951) target = $region85
        $region84: #{cnn_forward.3} parent=80 // pred_region
          %s1954 = smul.u32 32, %s15
          %p1955 = scmp.lt.s32.totalorder %s1954, 63
          %s1956 = scalar_select %p1955, %s1954, 63
          %s1957 = smul.addr %s1956, 8
          %s1958 = scalar_lea.vmem %s3, %s1957
        $region85: #{cnn_forward.3} parent=80 // pred_fallthru
          _
      $region81: #{cnn_forward.3} parent=5 // pred_fallthru
        _
    $region6: #{cnn_forward.3} parent=1 // loop_footer
      %s13 = sadd.s32 1, %s9
    $region7: #{cnn_forward.3} parent=1 // loop_footer_branch
      %8 = sbr.rel target = $region3
    $region8: #{cnn_forward.3} parent=1 // loop_exit
      _

// kernel: cnn_forward.4
$region0: #{cnn_forward.4}
  #allocation0 [shape = 'u32[]', space=smem, size = 0x4, offset = 0x4, fixed_abs, tag = 'smem constant byte address 0x4 - core index']
  #allocation1 [shape = 'u32[72,128]{1,0:T(1,128)}', space=vmem, size = 0x9000, scoped, tag = 'internal scratch']
  %s0 = inlined_call_operand.vmem [shape: bf16[4,128,288], index: 0, kind: input, shape index: {}]
  %s1 = inlined_call_operand.vmem [shape: bf16[288,64], index: 1, kind: input, shape index: {}]
  %s2 = inlined_call_operand.vmem [shape: f32[1,64], index: 2, kind: input, shape index: {}]
  %s3 = inlined_call_operand.vmem [shape: f32[128,64], index: 3, kind: output, shape index: {}]
  %s4 = sld [smem:[#allocation0]]
  $region22: #{cnn_forward.4} parent=0
    _
  %s6 = ssub.s32 1, %s4
  %s7 = scalar_select 0, %s6, %s4
  // Predicated region
  $region2: #{cnn_forward.4} parent=0 // pred_check
    _
  $region3: #{cnn_forward.4} parent=0 // pred_check_branch
    %9 = sbr.rel (0) target = $region5
  $region4: #{cnn_forward.4} parent=0 // pred_region
    _
  $region5: #{cnn_forward.4} parent=0 // pred_fallthru
    _
  // Predicated region
  $region6: #{cnn_forward.4} parent=0 // pred_check
    _
  $region7: #{cnn_forward.4} parent=0 // pred_check_branch
    %11 = sbr.rel (0) target = $region9
  $region8: #{cnn_forward.4} parent=0 // pred_region
    _
  $region9: #{cnn_forward.4} parent=0 // pred_fallthru
    _
  // Predicated region
  $region10: #{cnn_forward.4} parent=0 // pred_check
    _
  $region11: #{cnn_forward.4} parent=0 // pred_check_branch
    %13 = sbr.rel (0) target = $region13
  $region12: #{cnn_forward.4} parent=0 // pred_region
    _
  $region13: #{cnn_forward.4} parent=0 // pred_fallthru
    _
  %v15 = vld [vmem:[%s1] sm:$0xf]
  %v16 = vld [vmem:[%s1 + $0x4] sm:$0xf]
  %v17 = vld [vmem:[%s1 + $0x8] sm:$0xf]
  %v18 = vld [vmem:[%s1 + $0xc] sm:$0xf]
  %v19 = vld [vmem:[%s1 + $0x10] sm:$0xf]
  %v20 = vld [vmem:[%s1 + $0x14] sm:$0xf]
  %v21 = vld [vmem:[%s1 + $0x18] sm:$0xf]
  %v22 = vld [vmem:[%s1 + $0x1c] sm:$0xf]
  %v23 = vld [vmem:[%s1 + $0x20] sm:$0xf]
  %v24 = vld [vmem:[%s1 + $0x24] sm:$0xf]
  %v25 = vld [vmem:[%s1 + $0x28] sm:$0xf]
  %v26 = vld [vmem:[%s1 + $0x2c] sm:$0xf]
  %v27 = vld [vmem:[%s1 + $0x30] sm:$0xf]
  %v28 = vld [vmem:[%s1 + $0x34] sm:$0xf]
  %v29 = vld [vmem:[%s1 + $0x38] sm:$0xf]
  %v30 = vld [vmem:[%s1 + $0x3c] sm:$0xf]
  %v31 = vld [vmem:[%s1 + $0x40] sm:$0xf]
  %v32 = vld [vmem:[%s1 + $0x44] sm:$0xf]
  %v33 = vld [vmem:[%s1 + $0x48] sm:$0xf]
  %v34 = vld [vmem:[%s1 + $0x4c] sm:$0xf]
  %v35 = vld [vmem:[%s1 + $0x50] sm:$0xf]
  %v36 = vld [vmem:[%s1 + $0x54] sm:$0xf]
  %v37 = vld [vmem:[%s1 + $0x58] sm:$0xf]
  %v38 = vld [vmem:[%s1 + $0x5c] sm:$0xf]
  %v39 = vld [vmem:[%s1 + $0x60] sm:$0xf]
  %v40 = vld [vmem:[%s1 + $0x64] sm:$0xf]
  %v41 = vld [vmem:[%s1 + $0x68] sm:$0xf]
  %v42 = vld [vmem:[%s1 + $0x6c] sm:$0xf]
  %v43 = vld [vmem:[%s1 + $0x70] sm:$0xf]
  %v44 = vld [vmem:[%s1 + $0x74] sm:$0xf]
  %v45 = vld [vmem:[%s1 + $0x78] sm:$0xf]
  %v46 = vld [vmem:[%s1 + $0x7c] sm:$0xf]
  %v47 = vld [vmem:[%s1 + $0x80] sm:$0xf]
  %v48 = vld [vmem:[%s1 + $0x84] sm:$0xf]
  %v49 = vld [vmem:[%s1 + $0x88] sm:$0xf]
  %v50 = vld [vmem:[%s1 + $0x8c] sm:$0xf]
  %v51 = vld [vmem:[%s0] sm:$0xff]
  %v52 = vld [vmem:[%s0 + $0x8] sm:$0xf]
  %v53 = vld [vmem:[%s0 + $0xc] sm:$0xff]
  %v54 = vld [vmem:[%s0 + $0x14] sm:$0xf]
  %v55 = vld [vmem:[%s0 + $0x18] sm:$0xff]
  %v56 = vld [vmem:[%s0 + $0x20] sm:$0xf]
  %v57 = vld [vmem:[%s0 + $0x24] sm:$0xff]
  %v58 = vld [vmem:[%s0 + $0x2c] sm:$0xf]
  %v59 = vld [vmem:[%s0 + $0x30] sm:$0xff]
  %v60 = vld [vmem:[%s0 + $0x38] sm:$0xf]
  %v61 = vld [vmem:[%s0 + $0x3c] sm:$0xff]
  %v62 = vld [vmem:[%s0 + $0x44] sm:$0xf]
  %v63 = vld [vmem:[%s0 + $0x48] sm:$0xff]
  %v64 = vld [vmem:[%s0 + $0x50] sm:$0xf]
  %v65 = vld [vmem:[%s0 + $0x54] sm:$0xff]
  %v66 = vld [vmem:[%s0 + $0x5c] sm:$0xf]
  %v67 = vld [vmem:[%s0 + $0x60] sm:$0xff]
  %v68 = vld [vmem:[%s0 + $0x68] sm:$0xf]
  %v69 = vld [vmem:[%s0 + $0x6c] sm:$0xff]
  %v70 = vld [vmem:[%s0 + $0x74] sm:$0xf]
  %v71 = vld [vmem:[%s0 + $0x78] sm:$0xff]
  %v72 = vld [vmem:[%s0 + $0x80] sm:$0xf]
  %v73 = vld [vmem:[%s0 + $0x84] sm:$0xff]
  %v74 = vld [vmem:[%s0 + $0x8c] sm:$0xf]
  %v75 = vld [vmem:[%s0 + $0x90] sm:$0xff]
  %v76 = vld [vmem:[%s0 + $0x98] sm:$0xf]
  %v77 = vld [vmem:[%s0 + $0x9c] sm:$0xff]
  %v78 = vld [vmem:[%s0 + $0xa4] sm:$0xf]
  %v79 = vld [vmem:[%s0 + $0xa8] sm:$0xff]
  %v80 = vld [vmem:[%s0 + $0xb0] sm:$0xf]
  %v81 = vld [vmem:[%s0 + $0xb4] sm:$0xff]
  %v82 = vld [vmem:[%s0 + $0xbc] sm:$0xf]
  %v115 = vunpack.c.l.b16 %v51
  %v116 = vunpack.c.h.b16 %v51
  %v117 = vunpack.c.l.b16 %v52
  %v118 = vunpack.c.l.b16 %v53
  %v119 = vunpack.c.h.b16 %v53
  %v120 = vunpack.c.l.b16 %v54
  %v121 = vunpack.c.l.b16 %v55
  %v122 = vunpack.c.h.b16 %v55
  %v123 = vunpack.c.l.b16 %v56
  %v124 = vunpack.c.l.b16 %v57
  %v125 = vunpack.c.h.b16 %v57
  %v126 = vunpack.c.l.b16 %v58
  %v127 = vunpack.c.l.b16 %v59
  %v128 = vunpack.c.h.b16 %v59
  %v129 = vunpack.c.l.b16 %v60
  %v130 = vunpack.c.l.b16 %v61
  %v131 = vunpack.c.h.b16 %v61
  %v132 = vunpack.c.l.b16 %v62
  %v133 = vunpack.c.l.b16 %v63
  %v134 = vunpack.c.h.b16 %v63
  %v135 = vunpack.c.l.b16 %v64
  %v136 = vunpack.c.l.b16 %v65
  %v137 = vunpack.c.h.b16 %v65
  %v138 = vunpack.c.l.b16 %v66
  %v139 = vunpack.c.l.b16 %v67
  %v140 = vunpack.c.h.b16 %v67
  %v141 = vunpack.c.l.b16 %v68
  %v142 = vunpack.c.l.b16 %v69
  %v143 = vunpack.c.h.b16 %v69
  %v144 = vunpack.c.l.b16 %v70
  %v145 = vunpack.c.l.b16 %v71
  %v146 = vunpack.c.h.b16 %v71
  %v147 = vunpack.c.l.b16 %v72
  %v148 = vunpack.c.l.b16 %v73
  %v149 = vunpack.c.h.b16 %v73
  %v150 = vunpack.c.l.b16 %v74
  %v151 = vunpack.c.l.b16 %v75
  %v152 = vunpack.c.h.b16 %v75
  %v153 = vunpack.c.l.b16 %v76
  %v154 = vunpack.c.l.b16 %v77
  %v155 = vunpack.c.h.b16 %v77
  %v156 = vunpack.c.l.b16 %v78
  %v157 = vunpack.c.l.b16 %v79
  %v158 = vunpack.c.h.b16 %v79
  %v159 = vunpack.c.l.b16 %v80
  %v160 = vunpack.c.l.b16 %v81
  %v161 = vunpack.c.h.b16 %v81
  %v162 = vunpack.c.l.b16 %v82
  %v163 = vpack.c.b16 %v118, %v115
  %v164 = vpack.c.b16 %v119, %v116
  %v165 = vpack.c.b16 %v120, %v117
  %v166 = vpack.c.b16 %v124, %v121
  %v167 = vpack.c.b16 %v125, %v122
  %v168 = vpack.c.b16 %v126, %v123
  %v169 = vpack.c.b16 %v130, %v127
  %v170 = vpack.c.b16 %v131, %v128
  %v171 = vpack.c.b16 %v132, %v129
  %v172 = vpack.c.b16 %v136, %v133
  %v173 = vpack.c.b16 %v137, %v134
  %v174 = vpack.c.b16 %v138, %v135
  %v175 = vpack.c.b16 %v142, %v139
  %v176 = vpack.c.b16 %v143, %v140
  %v177 = vpack.c.b16 %v144, %v141
  %v178 = vpack.c.b16 %v148, %v145
  %v179 = vpack.c.b16 %v149, %v146
  %v180 = vpack.c.b16 %v150, %v147
  %v181 = vpack.c.b16 %v154, %v151
  %v182 = vpack.c.b16 %v155, %v152
  %v183 = vpack.c.b16 %v156, %v153
  %v184 = vpack.c.b16 %v160, %v157
  %v185 = vpack.c.b16 %v161, %v158
  %v186 = vpack.c.b16 %v162, %v159
  %v239 = vunpack.c.l.b16 %v15
  %v240 = vunpack.c.l.b16 %v16
  %v241 = vunpack.c.l.b16 %v17
  %v242 = vunpack.c.l.b16 %v18
  %v243 = vunpack.c.l.b16 %v19
  %v244 = vunpack.c.l.b16 %v20
  %v245 = vunpack.c.l.b16 %v21
  %v246 = vunpack.c.l.b16 %v22
  %v247 = vunpack.c.l.b16 %v23
  %v248 = vunpack.c.l.b16 %v24
  %v249 = vunpack.c.l.b16 %v25
  %v250 = vunpack.c.l.b16 %v26
  %v251 = vunpack.c.l.b16 %v27
  %v252 = vunpack.c.l.b16 %v28
  %v253 = vunpack.c.l.b16 %v29
  %v254 = vunpack.c.l.b16 %v30
  %v255 = vunpack.c.l.b16 %v31
  %v256 = vunpack.c.l.b16 %v32
  %v257 = vunpack.c.l.b16 %v33
  %v258 = vunpack.c.l.b16 %v34
  %v259 = vunpack.c.l.b16 %v35
  %v260 = vunpack.c.l.b16 %v36
  %v261 = vunpack.c.l.b16 %v37
  %v262 = vunpack.c.l.b16 %v38
  %v263 = vunpack.c.l.b16 %v39
  %v264 = vunpack.c.l.b16 %v40
  %v265 = vunpack.c.l.b16 %v41
  %v266 = vunpack.c.l.b16 %v42
  %v267 = vunpack.c.l.b16 %v43
  %v268 = vunpack.c.l.b16 %v44
  %v269 = vunpack.c.l.b16 %v45
  %v270 = vunpack.c.l.b16 %v46
  %v271 = vunpack.c.l.b16 %v47
  %v272 = vunpack.c.l.b16 %v48
  %v273 = vunpack.c.l.b16 %v49
  %v274 = vunpack.c.l.b16 %v50
  %v275 = vpack.c.b16 %v240, %v239
  %v276 = vpack.c.b16 %v242, %v241
  %v277 = vpack.c.b16 %v244, %v243
  %v278 = vpack.c.b16 %v246, %v245
  %v279 = vpack.c.b16 %v248, %v247
  %v280 = vpack.c.b16 %v250, %v249
  %v281 = vpack.c.b16 %v252, %v251
  %v282 = vpack.c.b16 %v254, %v253
  %v283 = vpack.c.b16 %v256, %v255
  %v284 = vpack.c.b16 %v258, %v257
  %v285 = vpack.c.b16 %v260, %v259
  %v286 = vpack.c.b16 %v262, %v261
  %v287 = vpack.c.b16 %v264, %v263
  %v288 = vpack.c.b16 %v266, %v265
  %v289 = vpack.c.b16 %v268, %v267
  %v290 = vpack.c.b16 %v270, %v269
  %v291 = vpack.c.b16 %v272, %v271
  %v292 = vpack.c.b16 %v274, %v273
  %vm311 = vcmask 261120
  %v313 = vsel %vm311, %v165, 0
  %v316 = vsel %vm311, %v168, 0
  %v319 = vsel %vm311, %v171, 0
  %v322 = vsel %vm311, %v174, 0
  %v325 = vsel %vm311, %v177, 0
  %v328 = vsel %vm311, %v180, 0
  %v331 = vsel %vm311, %v183, 0
  %v334 = vsel %vm311, %v186, 0
  %336 = vmatpush.bf16.msra.mxu0 %v282
  %337 = vmatpush.bf16.msra.mxu0 %v281
  %338 = vmatpush.bf16.msra.mxu0 %v280
  %339 = vmatpush.bf16.msra.mxu0 %v279
  %340 = vmatpush.bf16.msra.mxu0 %v278
  %341 = vmatpush.bf16.msra.mxu0 %v277
  %342 = vmatpush.bf16.msra.mxu0 %v276
  %343 = vmatpush.bf16.msra.mxu0 %v275
  %344 = vmatmul.bf16.gmra.mxu0 %v163
  %v345 = vpop.f32.mrf.mxu0
  %v346 = vadd.f32 0.0, %v345
  %v347 = vpop.f32.mrf.mxu0
  %v348 = vadd.f32 0.0, %v347
  %349 = vmatmul.bf16.gmra.mxu0 %v166
  %v350 = vpop.f32.mrf.mxu0
  %v351 = vadd.f32 0.0, %v350
  %v352 = vpop.f32.mrf.mxu0
  %v353 = vadd.f32 0.0, %v352
  %354 = vmatmul.bf16.gmra.mxu0 %v169
  %v355 = vpop.f32.mrf.mxu0
  %v356 = vadd.f32 0.0, %v355
  %v357 = vpop.f32.mrf.mxu0
  %v358 = vadd.f32 0.0, %v357
  %359 = vmatmul.bf16.gmra.mxu0 %v172
  %v360 = vpop.f32.mrf.mxu0
  %v361 = vadd.f32 0.0, %v360
  %v362 = vpop.f32.mrf.mxu0
  %v363 = vadd.f32 0.0, %v362
  %364 = vmatmul.bf16.gmra.mxu0 %v175
  %v365 = vpop.f32.mrf.mxu0
  %v366 = vadd.f32 0.0, %v365
  %v367 = vpop.f32.mrf.mxu0
  %v368 = vadd.f32 0.0, %v367
  %369 = vmatmul.bf16.gmra.mxu0 %v178
  %v370 = vpop.f32.mrf.mxu0
  %v371 = vadd.f32 0.0, %v370
  %v372 = vpop.f32.mrf.mxu0
  %v373 = vadd.f32 0.0, %v372
  %374 = vmatmul.bf16.gmra.mxu0 %v181
  %v375 = vpop.f32.mrf.mxu0
  %v376 = vadd.f32 0.0, %v375
  %v377 = vpop.f32.mrf.mxu0
  %v378 = vadd.f32 0.0, %v377
  %379 = vmatmul.bf16.gmra.mxu0 %v184
  %v380 = vpop.f32.mrf.mxu0
  %v381 = vadd.f32 0.0, %v380
  %v382 = vpop.f32.mrf.mxu0
  %v383 = vadd.f32 0.0, %v382
  %384 = vdwg.mxu0
  %385 = vmatpush.bf16.msra.mxu0 %v290
  %386 = vmatpush.bf16.msra.mxu0 %v289
  %387 = vmatpush.bf16.msra.mxu0 %v288
  %388 = vmatpush.bf16.msra.mxu0 %v287
  %389 = vmatpush.bf16.msra.mxu0 %v286
  %390 = vmatpush.bf16.msra.mxu0 %v285
  %391 = vmatpush.bf16.msra.mxu0 %v284
  %392 = vmatpush.bf16.msra.mxu0 %v283
  %393 = vmatmul.bf16.gmra.mxu0 %v164
  %v394 = vpop.f32.mrf.mxu0
  %v395 = vadd.f32 %v346, %v394
  %v396 = vpop.f32.mrf.mxu0
  %v397 = vadd.f32 %v348, %v396
  %398 = vmatmul.bf16.gmra.mxu0 %v167
  %v399 = vpop.f32.mrf.mxu0
  %v400 = vadd.f32 %v351, %v399
  %v401 = vpop.f32.mrf.mxu0
  %v402 = vadd.f32 %v353, %v401
  %403 = vmatmul.bf16.gmra.mxu0 %v170
  %v404 = vpop.f32.mrf.mxu0
  %v405 = vadd.f32 %v356, %v404
  %v406 = vpop.f32.mrf.mxu0
  %v407 = vadd.f32 %v358, %v406
  %408 = vmatmul.bf16.gmra.mxu0 %v173
  %v409 = vpop.f32.mrf.mxu0
  %v410 = vadd.f32 %v361, %v409
  %v411 = vpop.f32.mrf.mxu0
  %v412 = vadd.f32 %v363, %v411
  %413 = vmatmul.bf16.gmra.mxu0 %v176
  %v414 = vpop.f32.mrf.mxu0
  %v415 = vadd.f32 %v366, %v414
  %v416 = vpop.f32.mrf.mxu0
  %v417 = vadd.f32 %v368, %v416
  %418 = vmatmul.bf16.gmra.mxu0 %v179
  %v419 = vpop.f32.mrf.mxu0
  %v420 = vadd.f32 %v371, %v419
  %v421 = vpop.f32.mrf.mxu0
  %v422 = vadd.f32 %v373, %v421
  %423 = vmatmul.bf16.gmra.mxu0 %v182
  %v424 = vpop.f32.mrf.mxu0
  %v425 = vadd.f32 %v376, %v424
  %v426 = vpop.f32.mrf.mxu0
  %v427 = vadd.f32 %v378, %v426
  %428 = vmatmul.bf16.gmra.mxu0 %v185
  %v429 = vpop.f32.mrf.mxu0
  %v430 = vadd.f32 %v381, %v429
  %v431 = vpop.f32.mrf.mxu0
  %v432 = vadd.f32 %v383, %v431
  %433 = vdwg.mxu0
  %434 = vmatpush.bf16.msra.mxu0 0
  %435 = vmatpush.bf16.msra.mxu0 0
  %436 = vmatpush.bf16.msra.mxu0 0
  %437 = vmatpush.bf16.msra.mxu0 0
  %438 = vmatpush.bf16.msra.mxu0 0
  %439 = vmatpush.bf16.msra.mxu0 0
  %440 = vmatpush.bf16.msra.mxu0 %v292
  %441 = vmatpush.bf16.msra.mxu0 %v291
  %442 = vmatmul.bf16.gmra.mxu0 %v313
  %v443 = vpop.f32.mrf.mxu0
  %v444 = vadd.f32 %v395, %v443
  %v445 = vpop.f32.mrf.mxu0
  %v446 = vadd.f32 %v397, %v445
  %447 = vmatmul.bf16.gmra.mxu0 %v316
  %v448 = vpop.f32.mrf.mxu0
  %v449 = vadd.f32 %v400, %v448
  %v450 = vpop.f32.mrf.mxu0
  %v451 = vadd.f32 %v402, %v450
  %452 = vmatmul.bf16.gmra.mxu0 %v319
  %v453 = vpop.f32.mrf.mxu0
  %v454 = vadd.f32 %v405, %v453
  %v455 = vpop.f32.mrf.mxu0
  %v456 = vadd.f32 %v407, %v455
  %457 = vmatmul.bf16.gmra.mxu0 %v322
  %v458 = vpop.f32.mrf.mxu0
  %v459 = vadd.f32 %v410, %v458
  %v460 = vpop.f32.mrf.mxu0
  %v461 = vadd.f32 %v412, %v460
  %462 = vmatmul.bf16.gmra.mxu0 %v325
  %v463 = vpop.f32.mrf.mxu0
  %v464 = vadd.f32 %v415, %v463
  %v465 = vpop.f32.mrf.mxu0
  %v466 = vadd.f32 %v417, %v465
  %467 = vmatmul.bf16.gmra.mxu0 %v328
  %v468 = vpop.f32.mrf.mxu0
  %v469 = vadd.f32 %v420, %v468
  %v470 = vpop.f32.mrf.mxu0
  %v471 = vadd.f32 %v422, %v470
  %472 = vmatmul.bf16.gmra.mxu0 %v331
  %v473 = vpop.f32.mrf.mxu0
  %v474 = vadd.f32 %v425, %v473
  %v475 = vpop.f32.mrf.mxu0
  %v476 = vadd.f32 %v427, %v475
  %477 = vmatmul.bf16.gmra.mxu0 %v334
  %v478 = vpop.f32.mrf.mxu0
  %v479 = vadd.f32 %v430, %v478
  %v480 = vpop.f32.mrf.mxu0
  %v481 = vadd.f32 %v432, %v480
  %482 = vdwg.mxu0
  %s483 = scalar_lea.vmem %s0, 192
  %v484 = vld [vmem:[%s483] sm:$0xff]
  %v485 = vld [vmem:[%s483 + $0x8] sm:$0xf]
  %v486 = vld [vmem:[%s483 + $0xc] sm:$0xff]
  %v487 = vld [vmem:[%s483 + $0x14] sm:$0xf]
  %v488 = vld [vmem:[%s483 + $0x18] sm:$0xff]
  %v489 = vld [vmem:[%s483 + $0x20] sm:$0xf]
  %v490 = vld [vmem:[%s483 + $0x24] sm:$0xff]
  %v491 = vld [vmem:[%s483 + $0x2c] sm:$0xf]
  %v492 = vld [vmem:[%s483 + $0x30] sm:$0xff]
  %v493 = vld [vmem:[%s483 + $0x38] sm:$0xf]
  %v494 = vld [vmem:[%s483 + $0x3c] sm:$0xff]
  %v495 = vld [vmem:[%s483 + $0x44] sm:$0xf]
  %v496 = vld [vmem:[%s483 + $0x48] sm:$0xff]
  %v497 = vld [vmem:[%s483 + $0x50] sm:$0xf]
  %v498 = vld [vmem:[%s483 + $0x54] sm:$0xff]
  %v499 = vld [vmem:[%s483 + $0x5c] sm:$0xf]
  %v500 = vld [vmem:[%s483 + $0x60] sm:$0xff]
  %v501 = vld [vmem:[%s483 + $0x68] sm:$0xf]
  %v502 = vld [vmem:[%s483 + $0x6c] sm:$0xff]
  %v503 = vld [vmem:[%s483 + $0x74] sm:$0xf]
  %v504 = vld [vmem:[%s483 + $0x78] sm:$0xff]
  %v505 = vld [vmem:[%s483 + $0x80] sm:$0xf]
  %v506 = vld [vmem:[%s483 + $0x84] sm:$0xff]
  %v507 = vld [vmem:[%s483 + $0x8c] sm:$0xf]
  %v508 = vld [vmem:[%s483 + $0x90] sm:$0xff]
  %v509 = vld [vmem:[%s483 + $0x98] sm:$0xf]
  %v510 = vld [vmem:[%s483 + $0x9c] sm:$0xff]
  %v511 = vld [vmem:[%s483 + $0xa4] sm:$0xf]
  %v512 = vld [vmem:[%s483 + $0xa8] sm:$0xff]
  %v513 = vld [vmem:[%s483 + $0xb0] sm:$0xf]
  %v514 = vld [vmem:[%s483 + $0xb4] sm:$0xff]
  %v515 = vld [vmem:[%s483 + $0xbc] sm:$0xf]
  %v548 = vunpack.c.l.b16 %v484
  %v549 = vunpack.c.h.b16 %v484
  %v550 = vunpack.c.l.b16 %v485
  %v551 = vunpack.c.l.b16 %v486
  %v552 = vunpack.c.h.b16 %v486
  %v553 = vunpack.c.l.b16 %v487
  %v554 = vunpack.c.l.b16 %v488
  %v555 = vunpack.c.h.b16 %v488
  %v556 = vunpack.c.l.b16 %v489
  %v557 = vunpack.c.l.b16 %v490
  %v558 = vunpack.c.h.b16 %v490
  %v559 = vunpack.c.l.b16 %v491
  %v560 = vunpack.c.l.b16 %v492
  %v561 = vunpack.c.h.b16 %v492
  %v562 = vunpack.c.l.b16 %v493
  %v563 = vunpack.c.l.b16 %v494
  %v564 = vunpack.c.h.b16 %v494
  %v565 = vunpack.c.l.b16 %v495
  %v566 = vunpack.c.l.b16 %v496
  %v567 = vunpack.c.h.b16 %v496
  %v568 = vunpack.c.l.b16 %v497
  %v569 = vunpack.c.l.b16 %v498
  %v570 = vunpack.c.h.b16 %v498
  %v571 = vunpack.c.l.b16 %v499
  %v572 = vunpack.c.l.b16 %v500
  %v573 = vunpack.c.h.b16 %v500
  %v574 = vunpack.c.l.b16 %v501
  %v575 = vunpack.c.l.b16 %v502
  %v576 = vunpack.c.h.b16 %v502
  %v577 = vunpack.c.l.b16 %v503
  %v578 = vunpack.c.l.b16 %v504
  %v579 = vunpack.c.h.b16 %v504
  %v580 = vunpack.c.l.b16 %v505
  %v581 = vunpack.c.l.b16 %v506
  %v582 = vunpack.c.h.b16 %v506
  %v583 = vunpack.c.l.b16 %v507
  %v584 = vunpack.c.l.b16 %v508
  %v585 = vunpack.c.h.b16 %v508
  %v586 = vunpack.c.l.b16 %v509
  %v587 = vunpack.c.l.b16 %v510
  %v588 = vunpack.c.h.b16 %v510
  %v589 = vunpack.c.l.b16 %v511
  %v590 = vunpack.c.l.b16 %v512
  %v591 = vunpack.c.h.b16 %v512
  %v592 = vunpack.c.l.b16 %v513
  %v593 = vunpack.c.l.b16 %v514
  %v594 = vunpack.c.h.b16 %v514
  %v595 = vunpack.c.l.b16 %v515
  %v596 = vpack.c.b16 %v551, %v548
  %v597 = vpack.c.b16 %v552, %v549
  %v598 = vpack.c.b16 %v553, %v550
  %v599 = vpack.c.b16 %v557, %v554
  %v600 = vpack.c.b16 %v558, %v555
  %v601 = vpack.c.b16 %v559, %v556
  %v602 = vpack.c.b16 %v563, %v560
  %v603 = vpack.c.b16 %v564, %v561
  %v604 = vpack.c.b16 %v565, %v562
  %v605 = vpack.c.b16 %v569, %v566
  %v606 = vpack.c.b16 %v570, %v567
  %v607 = vpack.c.b16 %v571, %v568
  %v608 = vpack.c.b16 %v575, %v572
  %v609 = vpack.c.b16 %v576, %v573
  %v610 = vpack.c.b16 %v577, %v574
  %v611 = vpack.c.b16 %v581, %v578
  %v612 = vpack.c.b16 %v582, %v579
  %v613 = vpack.c.b16 %v583, %v580
  %v614 = vpack.c.b16 %v587, %v584
  %v615 = vpack.c.b16 %v588, %v585
  %v616 = vpack.c.b16 %v589, %v586
  %v617 = vpack.c.b16 %v593, %v590
  %v618 = vpack.c.b16 %v594, %v591
  %v619 = vpack.c.b16 %v595, %v592
  %v637 = vsel %vm311, %v598, 0
  %v640 = vsel %vm311, %v601, 0
  %v643 = vsel %vm311, %v604, 0
  %v646 = vsel %vm311, %v607, 0
  %v649 = vsel %vm311, %v610, 0
  %v652 = vsel %vm311, %v613, 0
  %v655 = vsel %vm311, %v616, 0
  %v658 = vsel %vm311, %v619, 0
  %660 = vmatpush.bf16.msra.mxu0 %v282
  %661 = vmatpush.bf16.msra.mxu0 %v281
  %662 = vmatpush.bf16.msra.mxu0 %v280
  %663 = vmatpush.bf16.msra.mxu0 %v279
  %664 = vmatpush.bf16.msra.mxu0 %v278
  %665 = vmatpush.bf16.msra.mxu0 %v277
  %666 = vmatpush.bf16.msra.mxu0 %v276
  %667 = vmatpush.bf16.msra.mxu0 %v275
  %668 = vmatmul.bf16.gmra.mxu0 %v596
  %v669 = vpop.f32.mrf.mxu0
  %v670 = vadd.f32 0.0, %v669
  %v671 = vpop.f32.mrf.mxu0
  %v672 = vadd.f32 0.0, %v671
  %673 = vmatmul.bf16.gmra.mxu0 %v599
  %v674 = vpop.f32.mrf.mxu0
  %v675 = vadd.f32 0.0, %v674
  %v676 = vpop.f32.mrf.mxu0
  %v677 = vadd.f32 0.0, %v676
  %678 = vmatmul.bf16.gmra.mxu0 %v602
  %v679 = vpop.f32.mrf.mxu0
  %v680 = vadd.f32 0.0, %v679
  %v681 = vpop.f32.mrf.mxu0
  %v682 = vadd.f32 0.0, %v681
  %683 = vmatmul.bf16.gmra.mxu0 %v605
  %v684 = vpop.f32.mrf.mxu0
  %v685 = vadd.f32 0.0, %v684
  %v686 = vpop.f32.mrf.mxu0
  %v687 = vadd.f32 0.0, %v686
  %688 = vmatmul.bf16.gmra.mxu0 %v608
  %v689 = vpop.f32.mrf.mxu0
  %v690 = vadd.f32 0.0, %v689
  %v691 = vpop.f32.mrf.mxu0
  %v692 = vadd.f32 0.0, %v691
  %693 = vmatmul.bf16.gmra.mxu0 %v611
  %v694 = vpop.f32.mrf.mxu0
  %v695 = vadd.f32 0.0, %v694
  %v696 = vpop.f32.mrf.mxu0
  %v697 = vadd.f32 0.0, %v696
  %698 = vmatmul.bf16.gmra.mxu0 %v614
  %v699 = vpop.f32.mrf.mxu0
  %v700 = vadd.f32 0.0, %v699
  %v701 = vpop.f32.mrf.mxu0
  %v702 = vadd.f32 0.0, %v701
  %703 = vmatmul.bf16.gmra.mxu0 %v617
  %v704 = vpop.f32.mrf.mxu0
  %v705 = vadd.f32 0.0, %v704
  %v706 = vpop.f32.mrf.mxu0
  %v707 = vadd.f32 0.0, %v706
  %708 = vdwg.mxu0
  %709 = vmatpush.bf16.msra.mxu0 %v290
  %710 = vmatpush.bf16.msra.mxu0 %v289
  %711 = vmatpush.bf16.msra.mxu0 %v288
  %712 = vmatpush.bf16.msra.mxu0 %v287
  %713 = vmatpush.bf16.msra.mxu0 %v286
  %714 = vmatpush.bf16.msra.mxu0 %v285
  %715 = vmatpush.bf16.msra.mxu0 %v284
  %716 = vmatpush.bf16.msra.mxu0 %v283
  %717 = vmatmul.bf16.gmra.mxu0 %v597
  %v718 = vpop.f32.mrf.mxu0
  %v719 = vadd.f32 %v670, %v718
  %v720 = vpop.f32.mrf.mxu0
  %v721 = vadd.f32 %v672, %v720
  %722 = vmatmul.bf16.gmra.mxu0 %v600
  %v723 = vpop.f32.mrf.mxu0
  %v724 = vadd.f32 %v675, %v723
  %v725 = vpop.f32.mrf.mxu0
  %v726 = vadd.f32 %v677, %v725
  %727 = vmatmul.bf16.gmra.mxu0 %v603
  %v728 = vpop.f32.mrf.mxu0
  %v729 = vadd.f32 %v680, %v728
  %v730 = vpop.f32.mrf.mxu0
  %v731 = vadd.f32 %v682, %v730
  %732 = vmatmul.bf16.gmra.mxu0 %v606
  %v733 = vpop.f32.mrf.mxu0
  %v734 = vadd.f32 %v685, %v733
  %v735 = vpop.f32.mrf.mxu0
  %v736 = vadd.f32 %v687, %v735
  %737 = vmatmul.bf16.gmra.mxu0 %v609
  %v738 = vpop.f32.mrf.mxu0
  %v739 = vadd.f32 %v690, %v738
  %v740 = vpop.f32.mrf.mxu0
  %v741 = vadd.f32 %v692, %v740
  %742 = vmatmul.bf16.gmra.mxu0 %v612
  %v743 = vpop.f32.mrf.mxu0
  %v744 = vadd.f32 %v695, %v743
  %v745 = vpop.f32.mrf.mxu0
  %v746 = vadd.f32 %v697, %v745
  %747 = vmatmul.bf16.gmra.mxu0 %v615
  %v748 = vpop.f32.mrf.mxu0
  %v749 = vadd.f32 %v700, %v748
  %v750 = vpop.f32.mrf.mxu0
  %v751 = vadd.f32 %v702, %v750
  %752 = vmatmul.bf16.gmra.mxu0 %v618
  %v753 = vpop.f32.mrf.mxu0
  %v754 = vadd.f32 %v705, %v753
  %v755 = vpop.f32.mrf.mxu0
  %v756 = vadd.f32 %v707, %v755
  %757 = vdwg.mxu0
  %758 = vmatpush.bf16.msra.mxu0 0
  %759 = vmatpush.bf16.msra.mxu0 0
  %760 = vmatpush.bf16.msra.mxu0 0
  %761 = vmatpush.bf16.msra.mxu0 0
  %762 = vmatpush.bf16.msra.mxu0 0
  %763 = vmatpush.bf16.msra.mxu0 0
  %764 = vmatpush.bf16.msra.mxu0 %v292
  %765 = vmatpush.bf16.msra.mxu0 %v291
  %766 = vmatmul.bf16.gmra.mxu0 %v637
  %v767 = vpop.f32.mrf.mxu0
  %v768 = vadd.f32 %v719, %v767
  %v769 = vpop.f32.mrf.mxu0
  %v770 = vadd.f32 %v721, %v769
  %771 = vmatmul.bf16.gmra.mxu0 %v640
  %v772 = vpop.f32.mrf.mxu0
  %v773 = vadd.f32 %v724, %v772
  %v774 = vpop.f32.mrf.mxu0
  %v775 = vadd.f32 %v726, %v774
  %776 = vmatmul.bf16.gmra.mxu0 %v643
  %v777 = vpop.f32.mrf.mxu0
  %v778 = vadd.f32 %v729, %v777
  %v779 = vpop.f32.mrf.mxu0
  %v780 = vadd.f32 %v731, %v779
  %781 = vmatmul.bf16.gmra.mxu0 %v646
  %v782 = vpop.f32.mrf.mxu0
  %v783 = vadd.f32 %v734, %v782
  %v784 = vpop.f32.mrf.mxu0
  %v785 = vadd.f32 %v736, %v784
  %786 = vmatmul.bf16.gmra.mxu0 %v649
  %v787 = vpop.f32.mrf.mxu0
  %v788 = vadd.f32 %v739, %v787
  %v789 = vpop.f32.mrf.mxu0
  %v790 = vadd.f32 %v741, %v789
  %791 = vmatmul.bf16.gmra.mxu0 %v652
  %v792 = vpop.f32.mrf.mxu0
  %v793 = vadd.f32 %v744, %v792
  %v794 = vpop.f32.mrf.mxu0
  %v795 = vadd.f32 %v746, %v794
  %796 = vmatmul.bf16.gmra.mxu0 %v655
  %v797 = vpop.f32.mrf.mxu0
  %v798 = vadd.f32 %v749, %v797
  %v799 = vpop.f32.mrf.mxu0
  %v800 = vadd.f32 %v751, %v799
  %801 = vmatmul.bf16.gmra.mxu0 %v658
  %v802 = vpop.f32.mrf.mxu0
  %v803 = vadd.f32 %v754, %v802
  %v804 = vpop.f32.mrf.mxu0
  %v805 = vadd.f32 %v756, %v804
  %806 = vdwg.mxu0
  %v807 = vmax.f32 %v444, %v768
  %v808 = vmax.f32 %v446, %v770
  %v809 = vmax.f32 %v449, %v773
  %v810 = vmax.f32 %v451, %v775
  %v811 = vmax.f32 %v454, %v778
  %v812 = vmax.f32 %v456, %v780
  %v813 = vmax.f32 %v459, %v783
  %v814 = vmax.f32 %v461, %v785
  %v815 = vmax.f32 %v464, %v788
  %v816 = vmax.f32 %v466, %v790
  %v817 = vmax.f32 %v469, %v793
  %v818 = vmax.f32 %v471, %v795
  %v819 = vmax.f32 %v474, %v798
  %v820 = vmax.f32 %v476, %v800
  %v821 = vmax.f32 %v479, %v803
  %v822 = vmax.f32 %v481, %v805
  %s823 = scalar_lea.vmem %s0, 384
  %v824 = vld [vmem:[%s823] sm:$0xff]
  %v825 = vld [vmem:[%s823 + $0x8] sm:$0xf]
  %v826 = vld [vmem:[%s823 + $0xc] sm:$0xff]
  %v827 = vld [vmem:[%s823 + $0x14] sm:$0xf]
  %v828 = vld [vmem:[%s823 + $0x18] sm:$0xff]
  %v829 = vld [vmem:[%s823 + $0x20] sm:$0xf]
  %v830 = vld [vmem:[%s823 + $0x24] sm:$0xff]
  %v831 = vld [vmem:[%s823 + $0x2c] sm:$0xf]
  %v832 = vld [vmem:[%s823 + $0x30] sm:$0xff]
  %v833 = vld [vmem:[%s823 + $0x38] sm:$0xf]
  %v834 = vld [vmem:[%s823 + $0x3c] sm:$0xff]
  %v835 = vld [vmem:[%s823 + $0x44] sm:$0xf]
  %v836 = vld [vmem:[%s823 + $0x48] sm:$0xff]
  %v837 = vld [vmem:[%s823 + $0x50] sm:$0xf]
  %v838 = vld [vmem:[%s823 + $0x54] sm:$0xff]
  %v839 = vld [vmem:[%s823 + $0x5c] sm:$0xf]
  %v840 = vld [vmem:[%s823 + $0x60] sm:$0xff]
  %v841 = vld [vmem:[%s823 + $0x68] sm:$0xf]
  %v842 = vld [vmem:[%s823 + $0x6c] sm:$0xff]
  %v843 = vld [vmem:[%s823 + $0x74] sm:$0xf]
  %v844 = vld [vmem:[%s823 + $0x78] sm:$0xff]
  %v845 = vld [vmem:[%s823 + $0x80] sm:$0xf]
  %v846 = vld [vmem:[%s823 + $0x84] sm:$0xff]
  %v847 = vld [vmem:[%s823 + $0x8c] sm:$0xf]
  %v848 = vld [vmem:[%s823 + $0x90] sm:$0xff]
  %v849 = vld [vmem:[%s823 + $0x98] sm:$0xf]
  %v850 = vld [vmem:[%s823 + $0x9c] sm:$0xff]
  %v851 = vld [vmem:[%s823 + $0xa4] sm:$0xf]
  %v852 = vld [vmem:[%s823 + $0xa8] sm:$0xff]
  %v853 = vld [vmem:[%s823 + $0xb0] sm:$0xf]
  %v854 = vld [vmem:[%s823 + $0xb4] sm:$0xff]
  %v855 = vld [vmem:[%s823 + $0xbc] sm:$0xf]
  %v888 = vunpack.c.l.b16 %v824
  %v889 = vunpack.c.h.b16 %v824
  %v890 = vunpack.c.l.b16 %v825
  %v891 = vunpack.c.l.b16 %v826
  %v892 = vunpack.c.h.b16 %v826
  %v893 = vunpack.c.l.b16 %v827
  %v894 = vunpack.c.l.b16 %v828
  %v895 = vunpack.c.h.b16 %v828
  %v896 = vunpack.c.l.b16 %v829
  %v897 = vunpack.c.l.b16 %v830
  %v898 = vunpack.c.h.b16 %v830
  %v899 = vunpack.c.l.b16 %v831
  %v900 = vunpack.c.l.b16 %v832
  %v901 = vunpack.c.h.b16 %v832
  %v902 = vunpack.c.l.b16 %v833
  %v903 = vunpack.c.l.b16 %v834
  %v904 = vunpack.c.h.b16 %v834
  %v905 = vunpack.c.l.b16 %v835
  %v906 = vunpack.c.l.b16 %v836
  %v907 = vunpack.c.h.b16 %v836
  %v908 = vunpack.c.l.b16 %v837
  %v909 = vunpack.c.l.b16 %v838
  %v910 = vunpack.c.h.b16 %v838
  %v911 = vunpack.c.l.b16 %v839
  %v912 = vunpack.c.l.b16 %v840
  %v913 = vunpack.c.h.b16 %v840
  %v914 = vunpack.c.l.b16 %v841
  %v915 = vunpack.c.l.b16 %v842
  %v916 = vunpack.c.h.b16 %v842
  %v917 = vunpack.c.l.b16 %v843
  %v918 = vunpack.c.l.b16 %v844
  %v919 = vunpack.c.h.b16 %v844
  %v920 = vunpack.c.l.b16 %v845
  %v921 = vunpack.c.l.b16 %v846
  %v922 = vunpack.c.h.b16 %v846
  %v923 = vunpack.c.l.b16 %v847
  %v924 = vunpack.c.l.b16 %v848
  %v925 = vunpack.c.h.b16 %v848
  %v926 = vunpack.c.l.b16 %v849
  %v927 = vunpack.c.l.b16 %v850
  %v928 = vunpack.c.h.b16 %v850
  %v929 = vunpack.c.l.b16 %v851
  %v930 = vunpack.c.l.b16 %v852
  %v931 = vunpack.c.h.b16 %v852
  %v932 = vunpack.c.l.b16 %v853
  %v933 = vunpack.c.l.b16 %v854
  %v934 = vunpack.c.h.b16 %v854
  %v935 = vunpack.c.l.b16 %v855
  %v936 = vpack.c.b16 %v891, %v888
  %v937 = vpack.c.b16 %v892, %v889
  %v938 = vpack.c.b16 %v893, %v890
  %v939 = vpack.c.b16 %v897, %v894
  %v940 = vpack.c.b16 %v898, %v895
  %v941 = vpack.c.b16 %v899, %v896
  %v942 = vpack.c.b16 %v903, %v900
  %v943 = vpack.c.b16 %v904, %v901
  %v944 = vpack.c.b16 %v905, %v902
  %v945 = vpack.c.b16 %v909, %v906
  %v946 = vpack.c.b16 %v910, %v907
  %v947 = vpack.c.b16 %v911, %v908
  %v948 = vpack.c.b16 %v915, %v912
  %v949 = vpack.c.b16 %v916, %v913
  %v950 = vpack.c.b16 %v917, %v914
  %v951 = vpack.c.b16 %v921, %v918
  %v952 = vpack.c.b16 %v922, %v919
  %v953 = vpack.c.b16 %v923, %v920
  %v954 = vpack.c.b16 %v927, %v924
  %v955 = vpack.c.b16 %v928, %v925
  %v956 = vpack.c.b16 %v929, %v926
  %v957 = vpack.c.b16 %v933, %v930
  %v958 = vpack.c.b16 %v934, %v931
  %v959 = vpack.c.b16 %v935, %v932
  %v977 = vsel %vm311, %v938, 0
  %v980 = vsel %vm311, %v941, 0
  %v983 = vsel %vm311, %v944, 0
  %v986 = vsel %vm311, %v947, 0
  %v989 = vsel %vm311, %v950, 0
  %v992 = vsel %vm311, %v953, 0
  %v995 = vsel %vm311, %v956, 0
  %v998 = vsel %vm311, %v959, 0
  %1000 = vmatpush.bf16.msra.mxu0 %v282
  %1001 = vmatpush.bf16.msra.mxu0 %v281
  %1002 = vmatpush.bf16.msra.mxu0 %v280
  %1003 = vmatpush.bf16.msra.mxu0 %v279
  %1004 = vmatpush.bf16.msra.mxu0 %v278
  %1005 = vmatpush.bf16.msra.mxu0 %v277
  %1006 = vmatpush.bf16.msra.mxu0 %v276
  %1007 = vmatpush.bf16.msra.mxu0 %v275
  %1008 = vmatmul.bf16.gmra.mxu0 %v936
  %v1009 = vpop.f32.mrf.mxu0
  %v1010 = vadd.f32 0.0, %v1009
  %v1011 = vpop.f32.mrf.mxu0
  %v1012 = vadd.f32 0.0, %v1011
  %1013 = vmatmul.bf16.gmra.mxu0 %v939
  %v1014 = vpop.f32.mrf.mxu0
  %v1015 = vadd.f32 0.0, %v1014
  %v1016 = vpop.f32.mrf.mxu0
  %v1017 = vadd.f32 0.0, %v1016
  %1018 = vmatmul.bf16.gmra.mxu0 %v942
  %v1019 = vpop.f32.mrf.mxu0
  %v1020 = vadd.f32 0.0, %v1019
  %v1021 = vpop.f32.mrf.mxu0
  %v1022 = vadd.f32 0.0, %v1021
  %1023 = vmatmul.bf16.gmra.mxu0 %v945
  %v1024 = vpop.f32.mrf.mxu0
  %v1025 = vadd.f32 0.0, %v1024
  %v1026 = vpop.f32.mrf.mxu0
  %v1027 = vadd.f32 0.0, %v1026
  %1028 = vmatmul.bf16.gmra.mxu0 %v948
  %v1029 = vpop.f32.mrf.mxu0
  %v1030 = vadd.f32 0.0, %v1029
  %v1031 = vpop.f32.mrf.mxu0
  %v1032 = vadd.f32 0.0, %v1031
  %1033 = vmatmul.bf16.gmra.mxu0 %v951
  %v1034 = vpop.f32.mrf.mxu0
  %v1035 = vadd.f32 0.0, %v1034
  %v1036 = vpop.f32.mrf.mxu0
  %v1037 = vadd.f32 0.0, %v1036
  %1038 = vmatmul.bf16.gmra.mxu0 %v954
  %v1039 = vpop.f32.mrf.mxu0
  %v1040 = vadd.f32 0.0, %v1039
  %v1041 = vpop.f32.mrf.mxu0
  %v1042 = vadd.f32 0.0, %v1041
  %1043 = vmatmul.bf16.gmra.mxu0 %v957
  %v1044 = vpop.f32.mrf.mxu0
  %v1045 = vadd.f32 0.0, %v1044
  %v1046 = vpop.f32.mrf.mxu0
  %v1047 = vadd.f32 0.0, %v1046
  %1048 = vdwg.mxu0
  %1049 = vmatpush.bf16.msra.mxu0 %v290
  %1050 = vmatpush.bf16.msra.mxu0 %v289
  %1051 = vmatpush.bf16.msra.mxu0 %v288
  %1052 = vmatpush.bf16.msra.mxu0 %v287
  %1053 = vmatpush.bf16.msra.mxu0 %v286
  %1054 = vmatpush.bf16.msra.mxu0 %v285
  %1055 = vmatpush.bf16.msra.mxu0 %v284
  %1056 = vmatpush.bf16.msra.mxu0 %v283
  %1057 = vmatmul.bf16.gmra.mxu0 %v937
  %v1058 = vpop.f32.mrf.mxu0
  %v1059 = vadd.f32 %v1010, %v1058
  %v1060 = vpop.f32.mrf.mxu0
  %v1061 = vadd.f32 %v1012, %v1060
  %1062 = vmatmul.bf16.gmra.mxu0 %v940
  %v1063 = vpop.f32.mrf.mxu0
  %v1064 = vadd.f32 %v1015, %v1063
  %v1065 = vpop.f32.mrf.mxu0
  %v1066 = vadd.f32 %v1017, %v1065
  %1067 = vmatmul.bf16.gmra.mxu0 %v943
  %v1068 = vpop.f32.mrf.mxu0
  %v1069 = vadd.f32 %v1020, %v1068
  %v1070 = vpop.f32.mrf.mxu0
  %v1071 = vadd.f32 %v1022, %v1070
  %1072 = vmatmul.bf16.gmra.mxu0 %v946
  %v1073 = vpop.f32.mrf.mxu0
  %v1074 = vadd.f32 %v1025, %v1073
  %v1075 = vpop.f32.mrf.mxu0
  %v1076 = vadd.f32 %v1027, %v1075
  %1077 = vmatmul.bf16.gmra.mxu0 %v949
  %v1078 = vpop.f32.mrf.mxu0
  %v1079 = vadd.f32 %v1030, %v1078
  %v1080 = vpop.f32.mrf.mxu0
  %v1081 = vadd.f32 %v1032, %v1080
  %1082 = vmatmul.bf16.gmra.mxu0 %v952
  %v1083 = vpop.f32.mrf.mxu0
  %v1084 = vadd.f32 %v1035, %v1083
  %v1085 = vpop.f32.mrf.mxu0
  %v1086 = vadd.f32 %v1037, %v1085
  %1087 = vmatmul.bf16.gmra.mxu0 %v955
  %v1088 = vpop.f32.mrf.mxu0
  %v1089 = vadd.f32 %v1040, %v1088
  %v1090 = vpop.f32.mrf.mxu0
  %v1091 = vadd.f32 %v1042, %v1090
  %1092 = vmatmul.bf16.gmra.mxu0 %v958
  %v1093 = vpop.f32.mrf.mxu0
  %v1094 = vadd.f32 %v1045, %v1093
  %v1095 = vpop.f32.mrf.mxu0
  %v1096 = vadd.f32 %v1047, %v1095
  %1097 = vdwg.mxu0
  %1098 = vmatpush.bf16.msra.mxu0 0
  %1099 = vmatpush.bf16.msra.mxu0 0
  %1100 = vmatpush.bf16.msra.mxu0 0
  %1101 = vmatpush.bf16.msra.mxu0 0
  %1102 = vmatpush.bf16.msra.mxu0 0
  %1103 = vmatpush.bf16.msra.mxu0 0
  %1104 = vmatpush.bf16.msra.mxu0 %v292
  %1105 = vmatpush.bf16.msra.mxu0 %v291
  %1106 = vmatmul.bf16.gmra.mxu0 %v977
  %v1107 = vpop.f32.mrf.mxu0
  %v1108 = vadd.f32 %v1059, %v1107
  %v1109 = vpop.f32.mrf.mxu0
  %v1110 = vadd.f32 %v1061, %v1109
  %1111 = vmatmul.bf16.gmra.mxu0 %v980
  %v1112 = vpop.f32.mrf.mxu0
  %v1113 = vadd.f32 %v1064, %v1112
  %v1114 = vpop.f32.mrf.mxu0
  %v1115 = vadd.f32 %v1066, %v1114
  %1116 = vmatmul.bf16.gmra.mxu0 %v983
  %v1117 = vpop.f32.mrf.mxu0
  %v1118 = vadd.f32 %v1069, %v1117
  %v1119 = vpop.f32.mrf.mxu0
  %v1120 = vadd.f32 %v1071, %v1119
  %1121 = vmatmul.bf16.gmra.mxu0 %v986
  %v1122 = vpop.f32.mrf.mxu0
  %v1123 = vadd.f32 %v1074, %v1122
  %v1124 = vpop.f32.mrf.mxu0
  %v1125 = vadd.f32 %v1076, %v1124
  %1126 = vmatmul.bf16.gmra.mxu0 %v989
  %v1127 = vpop.f32.mrf.mxu0
  %v1128 = vadd.f32 %v1079, %v1127
  %v1129 = vpop.f32.mrf.mxu0
  %v1130 = vadd.f32 %v1081, %v1129
  %1131 = vmatmul.bf16.gmra.mxu0 %v992
  %v1132 = vpop.f32.mrf.mxu0
  %v1133 = vadd.f32 %v1084, %v1132
  %v1134 = vpop.f32.mrf.mxu0
  %v1135 = vadd.f32 %v1086, %v1134
  %1136 = vmatmul.bf16.gmra.mxu0 %v995
  %v1137 = vpop.f32.mrf.mxu0
  %v1138 = vadd.f32 %v1089, %v1137
  %v1139 = vpop.f32.mrf.mxu0
  %v1140 = vadd.f32 %v1091, %v1139
  %1141 = vmatmul.bf16.gmra.mxu0 %v998
  %v1142 = vpop.f32.mrf.mxu0
  %v1143 = vadd.f32 %v1094, %v1142
  %v1144 = vpop.f32.mrf.mxu0
  %v1145 = vadd.f32 %v1096, %v1144
  %1146 = vdwg.mxu0
  %v1147 = vmax.f32 %v807, %v1108
  %v1148 = vmax.f32 %v808, %v1110
  %v1149 = vmax.f32 %v809, %v1113
  %v1150 = vmax.f32 %v810, %v1115
  %v1151 = vmax.f32 %v811, %v1118
  %v1152 = vmax.f32 %v812, %v1120
  %v1153 = vmax.f32 %v813, %v1123
  %v1154 = vmax.f32 %v814, %v1125
  %v1155 = vmax.f32 %v815, %v1128
  %v1156 = vmax.f32 %v816, %v1130
  %v1157 = vmax.f32 %v817, %v1133
  %v1158 = vmax.f32 %v818, %v1135
  %v1159 = vmax.f32 %v819, %v1138
  %v1160 = vmax.f32 %v820, %v1140
  %v1161 = vmax.f32 %v821, %v1143
  %v1162 = vmax.f32 %v822, %v1145
  %s1163 = scalar_lea.vmem %s0, 576
  %v1164 = vld [vmem:[%s1163] sm:$0xff]
  %v1165 = vld [vmem:[%s1163 + $0x8] sm:$0xf]
  %v1166 = vld [vmem:[%s1163 + $0xc] sm:$0xff]
  %v1167 = vld [vmem:[%s1163 + $0x14] sm:$0xf]
  %v1168 = vld [vmem:[%s1163 + $0x18] sm:$0xff]
  %v1169 = vld [vmem:[%s1163 + $0x20] sm:$0xf]
  %v1170 = vld [vmem:[%s1163 + $0x24] sm:$0xff]
  %v1171 = vld [vmem:[%s1163 + $0x2c] sm:$0xf]
  %v1172 = vld [vmem:[%s1163 + $0x30] sm:$0xff]
  %v1173 = vld [vmem:[%s1163 + $0x38] sm:$0xf]
  %v1174 = vld [vmem:[%s1163 + $0x3c] sm:$0xff]
  %v1175 = vld [vmem:[%s1163 + $0x44] sm:$0xf]
  %v1176 = vld [vmem:[%s1163 + $0x48] sm:$0xff]
  %v1177 = vld [vmem:[%s1163 + $0x50] sm:$0xf]
  %v1178 = vld [vmem:[%s1163 + $0x54] sm:$0xff]
  %v1179 = vld [vmem:[%s1163 + $0x5c] sm:$0xf]
  %v1180 = vld [vmem:[%s1163 + $0x60] sm:$0xff]
  %v1181 = vld [vmem:[%s1163 + $0x68] sm:$0xf]
  %v1182 = vld [vmem:[%s1163 + $0x6c] sm:$0xff]
  %v1183 = vld [vmem:[%s1163 + $0x74] sm:$0xf]
  %v1184 = vld [vmem:[%s1163 + $0x78] sm:$0xff]
  %v1185 = vld [vmem:[%s1163 + $0x80] sm:$0xf]
  %v1186 = vld [vmem:[%s1163 + $0x84] sm:$0xff]
  %v1187 = vld [vmem:[%s1163 + $0x8c] sm:$0xf]
  %v1188 = vld [vmem:[%s1163 + $0x90] sm:$0xff]
  %v1189 = vld [vmem:[%s1163 + $0x98] sm:$0xf]
  %v1190 = vld [vmem:[%s1163 + $0x9c] sm:$0xff]
  %v1191 = vld [vmem:[%s1163 + $0xa4] sm:$0xf]
  %v1192 = vld [vmem:[%s1163 + $0xa8] sm:$0xff]
  %v1193 = vld [vmem:[%s1163 + $0xb0] sm:$0xf]
  %v1194 = vld [vmem:[%s1163 + $0xb4] sm:$0xff]
  %v1195 = vld [vmem:[%s1163 + $0xbc] sm:$0xf]
  %v1228 = vunpack.c.l.b16 %v1164
  %v1229 = vunpack.c.h.b16 %v1164
  %v1230 = vunpack.c.l.b16 %v1165
  %v1231 = vunpack.c.l.b16 %v1166
  %v1232 = vunpack.c.h.b16 %v1166
  %v1233 = vunpack.c.l.b16 %v1167
  %v1234 = vunpack.c.l.b16 %v1168
  %v1235 = vunpack.c.h.b16 %v1168
  %v1236 = vunpack.c.l.b16 %v1169
  %v1237 = vunpack.c.l.b16 %v1170
  %v1238 = vunpack.c.h.b16 %v1170
  %v1239 = vunpack.c.l.b16 %v1171
  %v1240 = vunpack.c.l.b16 %v1172
  %v1241 = vunpack.c.h.b16 %v1172
  %v1242 = vunpack.c.l.b16 %v1173
  %v1243 = vunpack.c.l.b16 %v1174
  %v1244 = vunpack.c.h.b16 %v1174
  %v1245 = vunpack.c.l.b16 %v1175
  %v1246 = vunpack.c.l.b16 %v1176
  %v1247 = vunpack.c.h.b16 %v1176
  %v1248 = vunpack.c.l.b16 %v1177
  %v1249 = vunpack.c.l.b16 %v1178
  %v1250 = vunpack.c.h.b16 %v1178
  %v1251 = vunpack.c.l.b16 %v1179
  %v1252 = vunpack.c.l.b16 %v1180
  %v1253 = vunpack.c.h.b16 %v1180
  %v1254 = vunpack.c.l.b16 %v1181
  %v1255 = vunpack.c.l.b16 %v1182
  %v1256 = vunpack.c.h.b16 %v1182
  %v1257 = vunpack.c.l.b16 %v1183
  %v1258 = vunpack.c.l.b16 %v1184
  %v1259 = vunpack.c.h.b16 %v1184
  %v1260 = vunpack.c.l.b16 %v1185
  %v1261 = vunpack.c.l.b16 %v1186
  %v1262 = vunpack.c.h.b16 %v1186
  %v1263 = vunpack.c.l.b16 %v1187
  %v1264 = vunpack.c.l.b16 %v1188
  %v1265 = vunpack.c.h.b16 %v1188
  %v1266 = vunpack.c.l.b16 %v1189
  %v1267 = vunpack.c.l.b16 %v1190
  %v1268 = vunpack.c.h.b16 %v1190
  %v1269 = vunpack.c.l.b16 %v1191
  %v1270 = vunpack.c.l.b16 %v1192
  %v1271 = vunpack.c.h.b16 %v1192
  %v1272 = vunpack.c.l.b16 %v1193
  %v1273 = vunpack.c.l.b16 %v1194
  %v1274 = vunpack.c.h.b16 %v1194
  %v1275 = vunpack.c.l.b16 %v1195
  %v1276 = vpack.c.b16 %v1231, %v1228
  %v1277 = vpack.c.b16 %v1232, %v1229
  %v1278 = vpack.c.b16 %v1233, %v1230
  %v1279 = vpack.c.b16 %v1237, %v1234
  %v1280 = vpack.c.b16 %v1238, %v1235
  %v1281 = vpack.c.b16 %v1239, %v1236
  %v1282 = vpack.c.b16 %v1243, %v1240
  %v1283 = vpack.c.b16 %v1244, %v1241
  %v1284 = vpack.c.b16 %v1245, %v1242
  %v1285 = vpack.c.b16 %v1249, %v1246
  %v1286 = vpack.c.b16 %v1250, %v1247
  %v1287 = vpack.c.b16 %v1251, %v1248
  %v1288 = vpack.c.b16 %v1255, %v1252
  %v1289 = vpack.c.b16 %v1256, %v1253
  %v1290 = vpack.c.b16 %v1257, %v1254
  %v1291 = vpack.c.b16 %v1261, %v1258
  %v1292 = vpack.c.b16 %v1262, %v1259
  %v1293 = vpack.c.b16 %v1263, %v1260
  %v1294 = vpack.c.b16 %v1267, %v1264
  %v1295 = vpack.c.b16 %v1268, %v1265
  %v1296 = vpack.c.b16 %v1269, %v1266
  %v1297 = vpack.c.b16 %v1273, %v1270
  %v1298 = vpack.c.b16 %v1274, %v1271
  %v1299 = vpack.c.b16 %v1275, %v1272
  %v1317 = vsel %vm311, %v1278, 0
  %v1320 = vsel %vm311, %v1281, 0
  %v1323 = vsel %vm311, %v1284, 0
  %v1326 = vsel %vm311, %v1287, 0
  %v1329 = vsel %vm311, %v1290, 0
  %v1332 = vsel %vm311, %v1293, 0
  %v1335 = vsel %vm311, %v1296, 0
  %v1338 = vsel %vm311, %v1299, 0
  %1340 = vmatpush.bf16.msra.mxu0 %v282
  %1341 = vmatpush.bf16.msra.mxu0 %v281
  %1342 = vmatpush.bf16.msra.mxu0 %v280
  %1343 = vmatpush.bf16.msra.mxu0 %v279
  %1344 = vmatpush.bf16.msra.mxu0 %v278
  %1345 = vmatpush.bf16.msra.mxu0 %v277
  %1346 = vmatpush.bf16.msra.mxu0 %v276
  %1347 = vmatpush.bf16.msra.mxu0 %v275
  %1348 = vmatmul.bf16.gmra.mxu0 %v1276
  %v1349 = vpop.f32.mrf.mxu0
  %v1350 = vadd.f32 0.0, %v1349
  %v1351 = vpop.f32.mrf.mxu0
  %v1352 = vadd.f32 0.0, %v1351
  %1353 = vmatmul.bf16.gmra.mxu0 %v1279
  %v1354 = vpop.f32.mrf.mxu0
  %v1355 = vadd.f32 0.0, %v1354
  %v1356 = vpop.f32.mrf.mxu0
  %v1357 = vadd.f32 0.0, %v1356
  %1358 = vmatmul.bf16.gmra.mxu0 %v1282
  %v1359 = vpop.f32.mrf.mxu0
  %v1360 = vadd.f32 0.0, %v1359
  %v1361 = vpop.f32.mrf.mxu0
  %v1362 = vadd.f32 0.0, %v1361
  %1363 = vmatmul.bf16.gmra.mxu0 %v1285
  %v1364 = vpop.f32.mrf.mxu0
  %v1365 = vadd.f32 0.0, %v1364
  %v1366 = vpop.f32.mrf.mxu0
  %v1367 = vadd.f32 0.0, %v1366
  %1368 = vmatmul.bf16.gmra.mxu0 %v1288
  %v1369 = vpop.f32.mrf.mxu0
  %v1370 = vadd.f32 0.0, %v1369
  %v1371 = vpop.f32.mrf.mxu0
  %v1372 = vadd.f32 0.0, %v1371
  %1373 = vmatmul.bf16.gmra.mxu0 %v1291
  %v1374 = vpop.f32.mrf.mxu0
  %v1375 = vadd.f32 0.0, %v1374
  %v1376 = vpop.f32.mrf.mxu0
  %v1377 = vadd.f32 0.0, %v1376
  %1378 = vmatmul.bf16.gmra.mxu0 %v1294
  %v1379 = vpop.f32.mrf.mxu0
  %v1380 = vadd.f32 0.0, %v1379
  %v1381 = vpop.f32.mrf.mxu0
  %v1382 = vadd.f32 0.0, %v1381
  %1383 = vmatmul.bf16.gmra.mxu0 %v1297
  %v1384 = vpop.f32.mrf.mxu0
  %v1385 = vadd.f32 0.0, %v1384
  %v1386 = vpop.f32.mrf.mxu0
  %v1387 = vadd.f32 0.0, %v1386
  %1388 = vdwg.mxu0
  %1389 = vmatpush.bf16.msra.mxu0 %v290
  %1390 = vmatpush.bf16.msra.mxu0 %v289
  %1391 = vmatpush.bf16.msra.mxu0 %v288
  %1392 = vmatpush.bf16.msra.mxu0 %v287
  %1393 = vmatpush.bf16.msra.mxu0 %v286
  %1394 = vmatpush.bf16.msra.mxu0 %v285
  %1395 = vmatpush.bf16.msra.mxu0 %v284
  %1396 = vmatpush.bf16.msra.mxu0 %v283
  %1397 = vmatmul.bf16.gmra.mxu0 %v1277
  %v1398 = vpop.f32.mrf.mxu0
  %v1399 = vadd.f32 %v1350, %v1398
  %v1400 = vpop.f32.mrf.mxu0
  %v1401 = vadd.f32 %v1352, %v1400
  %1402 = vmatmul.bf16.gmra.mxu0 %v1280
  %v1403 = vpop.f32.mrf.mxu0
  %v1404 = vadd.f32 %v1355, %v1403
  %v1405 = vpop.f32.mrf.mxu0
  %v1406 = vadd.f32 %v1357, %v1405
  %1407 = vmatmul.bf16.gmra.mxu0 %v1283
  %v1408 = vpop.f32.mrf.mxu0
  %v1409 = vadd.f32 %v1360, %v1408
  %v1410 = vpop.f32.mrf.mxu0
  %v1411 = vadd.f32 %v1362, %v1410
  %1412 = vmatmul.bf16.gmra.mxu0 %v1286
  %v1413 = vpop.f32.mrf.mxu0
  %v1414 = vadd.f32 %v1365, %v1413
  %v1415 = vpop.f32.mrf.mxu0
  %v1416 = vadd.f32 %v1367, %v1415
  %1417 = vmatmul.bf16.gmra.mxu0 %v1289
  %v1418 = vpop.f32.mrf.mxu0
  %v1419 = vadd.f32 %v1370, %v1418
  %v1420 = vpop.f32.mrf.mxu0
  %v1421 = vadd.f32 %v1372, %v1420
  %1422 = vmatmul.bf16.gmra.mxu0 %v1292
  %v1423 = vpop.f32.mrf.mxu0
  %v1424 = vadd.f32 %v1375, %v1423
  %v1425 = vpop.f32.mrf.mxu0
  %v1426 = vadd.f32 %v1377, %v1425
  %1427 = vmatmul.bf16.gmra.mxu0 %v1295
  %v1428 = vpop.f32.mrf.mxu0
  %v1429 = vadd.f32 %v1380, %v1428
  %v1430 = vpop.f32.mrf.mxu0
  %v1431 = vadd.f32 %v1382, %v1430
  %1432 = vmatmul.bf16.gmra.mxu0 %v1298
  %v1433 = vpop.f32.mrf.mxu0
  %v1434 = vadd.f32 %v1385, %v1433
  %v1435 = vpop.f32.mrf.mxu0
  %v1436 = vadd.f32 %v1387, %v1435
  %1437 = vdwg.mxu0
  %1438 = vmatpush.bf16.msra.mxu0 0
  %1439 = vmatpush.bf16.msra.mxu0 0
  %1440 = vmatpush.bf16.msra.mxu0 0
  %1441 = vmatpush.bf16.msra.mxu0 0
  %1442 = vmatpush.bf16.msra.mxu0 0
  %1443 = vmatpush.bf16.msra.mxu0 0
  %1444 = vmatpush.bf16.msra.mxu0 %v292
  %1445 = vmatpush.bf16.msra.mxu0 %v291
  %1446 = vmatmul.bf16.gmra.mxu0 %v1317
  %v1447 = vpop.f32.mrf.mxu0
  %v1448 = vadd.f32 %v1399, %v1447
  %v1449 = vpop.f32.mrf.mxu0
  %v1450 = vadd.f32 %v1401, %v1449
  %1451 = vmatmul.bf16.gmra.mxu0 %v1320
  %v1452 = vpop.f32.mrf.mxu0
  %v1453 = vadd.f32 %v1404, %v1452
  %v1454 = vpop.f32.mrf.mxu0
  %v1455 = vadd.f32 %v1406, %v1454
  %1456 = vmatmul.bf16.gmra.mxu0 %v1323
  %v1457 = vpop.f32.mrf.mxu0
  %v1458 = vadd.f32 %v1409, %v1457
  %v1459 = vpop.f32.mrf.mxu0
  %v1460 = vadd.f32 %v1411, %v1459
  %1461 = vmatmul.bf16.gmra.mxu0 %v1326
  %v1462 = vpop.f32.mrf.mxu0
  %v1463 = vadd.f32 %v1414, %v1462
  %v1464 = vpop.f32.mrf.mxu0
  %v1465 = vadd.f32 %v1416, %v1464
  %1466 = vmatmul.bf16.gmra.mxu0 %v1329
  %v1467 = vpop.f32.mrf.mxu0
  %v1468 = vadd.f32 %v1419, %v1467
  %v1469 = vpop.f32.mrf.mxu0
  %v1470 = vadd.f32 %v1421, %v1469
  %1471 = vmatmul.bf16.gmra.mxu0 %v1332
  %v1472 = vpop.f32.mrf.mxu0
  %v1473 = vadd.f32 %v1424, %v1472
  %v1474 = vpop.f32.mrf.mxu0
  %v1475 = vadd.f32 %v1426, %v1474
  %1476 = vmatmul.bf16.gmra.mxu0 %v1335
  %v1477 = vpop.f32.mrf.mxu0
  %v1478 = vadd.f32 %v1429, %v1477
  %v1479 = vpop.f32.mrf.mxu0
  %v1480 = vadd.f32 %v1431, %v1479
  %1481 = vmatmul.bf16.gmra.mxu0 %v1338
  %v1482 = vpop.f32.mrf.mxu0
  %v1483 = vadd.f32 %v1434, %v1482
  %v1484 = vpop.f32.mrf.mxu0
  %v1485 = vadd.f32 %v1436, %v1484
  %1486 = vdwg.mxu0
  %v1487 = vmax.f32 %v1147, %v1448
  %v1488 = vmax.f32 %v1148, %v1450
  %v1489 = vmax.f32 %v1149, %v1453
  %v1490 = vmax.f32 %v1150, %v1455
  %v1491 = vmax.f32 %v1151, %v1458
  %v1492 = vmax.f32 %v1152, %v1460
  %v1493 = vmax.f32 %v1153, %v1463
  %v1494 = vmax.f32 %v1154, %v1465
  %v1495 = vmax.f32 %v1155, %v1468
  %v1496 = vmax.f32 %v1156, %v1470
  %v1497 = vmax.f32 %v1157, %v1473
  %v1498 = vmax.f32 %v1158, %v1475
  %v1499 = vmax.f32 %v1159, %v1478
  %v1500 = vmax.f32 %v1160, %v1480
  %v1501 = vmax.f32 %v1161, %v1483
  %v1502 = vmax.f32 %v1162, %v1485
  %v1503 = vld [vmem:[%s2] sm:$0x1]
  %v1505 = vperm.slane %v1503, 0
  %v1507 = vadd.f32 %v1487, %v1505
  %v1508 = vadd.f32 %v1488, %v1505
  %v1509 = vadd.f32 %v1489, %v1505
  %v1510 = vadd.f32 %v1490, %v1505
  %v1511 = vadd.f32 %v1491, %v1505
  %v1512 = vadd.f32 %v1492, %v1505
  %v1513 = vadd.f32 %v1493, %v1505
  %v1514 = vadd.f32 %v1494, %v1505
  %v1515 = vadd.f32 %v1495, %v1505
  %v1516 = vadd.f32 %v1496, %v1505
  %v1517 = vadd.f32 %v1497, %v1505
  %v1518 = vadd.f32 %v1498, %v1505
  %v1519 = vadd.f32 %v1499, %v1505
  %v1520 = vadd.f32 %v1500, %v1505
  %v1521 = vadd.f32 %v1501, %v1505
  %v1522 = vadd.f32 %v1502, %v1505
  %v1523 = vmax.f32 %v1507, 0.0
  %v1524 = vmax.f32 %v1508, 0.0
  %v1525 = vmax.f32 %v1509, 0.0
  %v1526 = vmax.f32 %v1510, 0.0
  %v1527 = vmax.f32 %v1511, 0.0
  %v1528 = vmax.f32 %v1512, 0.0
  %v1529 = vmax.f32 %v1513, 0.0
  %v1530 = vmax.f32 %v1514, 0.0
  %v1531 = vmax.f32 %v1515, 0.0
  %v1532 = vmax.f32 %v1516, 0.0
  %v1533 = vmax.f32 %v1517, 0.0
  %v1534 = vmax.f32 %v1518, 0.0
  %v1535 = vmax.f32 %v1519, 0.0
  %v1536 = vmax.f32 %v1520, 0.0
  %v1537 = vmax.f32 %v1521, 0.0
  %v1538 = vmax.f32 %v1522, 0.0
  %vm1539 = vcmask 523264
  %1540 = vst.msk [vmem:[%s3] sm:$0xff] %vm1539, %v1523
  %1541 = vst.msk [vmem:[%s3 + $0x8] sm:$0xff] %vm1539, %v1524
  %1542 = vst.msk [vmem:[%s3 + $0x10] sm:$0xff] %vm1539, %v1525
  %1543 = vst.msk [vmem:[%s3 + $0x18] sm:$0xff] %vm1539, %v1526
  %1544 = vst.msk [vmem:[%s3 + $0x20] sm:$0xff] %vm1539, %v1527
  %1545 = vst.msk [vmem:[%s3 + $0x28] sm:$0xff] %vm1539, %v1528
  %1546 = vst.msk [vmem:[%s3 + $0x30] sm:$0xff] %vm1539, %v1529
  %1547 = vst.msk [vmem:[%s3 + $0x38] sm:$0xff] %vm1539, %v1530
  %1548 = vst.msk [vmem:[%s3 + $0x40] sm:$0xff] %vm1539, %v1531
  %1549 = vst.msk [vmem:[%s3 + $0x48] sm:$0xff] %vm1539, %v1532
  %1550 = vst.msk [vmem:[%s3 + $0x50] sm:$0xff] %vm1539, %v1533
  %1551 = vst.msk [vmem:[%s3 + $0x58] sm:$0xff] %vm1539, %v1534
  %1552 = vst.msk [vmem:[%s3 + $0x60] sm:$0xff] %vm1539, %v1535
  %1553 = vst.msk [vmem:[%s3 + $0x68] sm:$0xff] %vm1539, %v1536
  %1554 = vst.msk [vmem:[%s3 + $0x70] sm:$0xff] %vm1539, %v1537
  %1555 = vst.msk [vmem:[%s3 + $0x78] sm:$0xff] %vm1539, %v1538
  // Predicated region
  $region14: #{cnn_forward.4} parent=0 // pred_check
    _
  $region15: #{cnn_forward.4} parent=0 // pred_check_branch
    %1557 = sbr.rel (0) target = $region17
  $region16: #{cnn_forward.4} parent=0 // pred_region
    _
  $region17: #{cnn_forward.4} parent=0 // pred_fallthru
    _
  // Predicated region
  $region18: #{cnn_forward.4} parent=0 // pred_check
    _
  $region19: #{cnn_forward.4} parent=0 // pred_check_branch
    %1559 = sbr.rel (0) target = $region21
  $region20: #{cnn_forward.4} parent=0 // pred_region
    _
  $region21: #{cnn_forward.4} parent=0 // pred_fallthru
    _

// kernel: cnn_forward.5
$region0: #{cnn_forward.5}
  #allocation0 [shape = 'u32[]', space=smem, size = 0x4, offset = 0x4, fixed_abs, tag = 'smem constant byte address 0x4 - core index']
  #allocation1 [shape = 'u32[72,128]{1,0:T(1,128)}', space=vmem, size = 0x9000, scoped, tag = 'internal scratch']
  %s0 = inlined_call_operand.vmem [shape: bf16[2,4096], index: 0, kind: input, shape index: {}]
  %s1 = inlined_call_operand.vmem [shape: bf16[4096,256], index: 1, kind: input, shape index: {}]
  %s2 = inlined_call_operand.vmem [shape: f32[1,256], index: 2, kind: input, shape index: {}]
  %s3 = inlined_call_operand.vmem [shape: bf16[256,128], index: 3, kind: input, shape index: {}]
  %s4 = inlined_call_operand.vmem [shape: f32[1,128], index: 4, kind: input, shape index: {}]
  %s5 = inlined_call_operand.vmem [shape: bf16[128,128], index: 5, kind: input, shape index: {}]
  %s6 = inlined_call_operand.vmem [shape: f32[1,128], index: 6, kind: input, shape index: {}]
  %s7 = inlined_call_operand.vmem [shape: f32[2,128], index: 7, kind: output, shape index: {}]
  %s8 = sld [smem:[#allocation0]]
  $region38: #{cnn_forward.5} parent=0
    _
  %s10 = ssub.s32 1, %s8
  %s11 = scalar_select 0, %s10, %s8
  // Predicated region
  $region2: #{cnn_forward.5} parent=0 // pred_check
    _
  $region3: #{cnn_forward.5} parent=0 // pred_check_branch
    %13 = sbr.rel (0) target = $region5
  $region4: #{cnn_forward.5} parent=0 // pred_region
    _
  $region5: #{cnn_forward.5} parent=0 // pred_fallthru
    _
  // Predicated region
  $region6: #{cnn_forward.5} parent=0 // pred_check
    _
  $region7: #{cnn_forward.5} parent=0 // pred_check_branch
    %15 = sbr.rel (0) target = $region9
  $region8: #{cnn_forward.5} parent=0 // pred_region
    _
  $region9: #{cnn_forward.5} parent=0 // pred_fallthru
    _
  // Predicated region
  $region10: #{cnn_forward.5} parent=0 // pred_check
    _
  $region11: #{cnn_forward.5} parent=0 // pred_check_branch
    %17 = sbr.rel (0) target = $region13
  $region12: #{cnn_forward.5} parent=0 // pred_region
    _
  $region13: #{cnn_forward.5} parent=0 // pred_fallthru
    _
  // Predicated region
  $region14: #{cnn_forward.5} parent=0 // pred_check
    _
  $region15: #{cnn_forward.5} parent=0 // pred_check_branch
    %19 = sbr.rel (0) target = $region17
  $region16: #{cnn_forward.5} parent=0 // pred_region
    _
  $region17: #{cnn_forward.5} parent=0 // pred_fallthru
    _
  // Predicated region
  $region18: #{cnn_forward.5} parent=0 // pred_check
    _
  $region19: #{cnn_forward.5} parent=0 // pred_check_branch
    %21 = sbr.rel (0) target = $region21
  $region20: #{cnn_forward.5} parent=0 // pred_region
    _
  $region21: #{cnn_forward.5} parent=0 // pred_fallthru
    _
  // Predicated region
  $region22: #{cnn_forward.5} parent=0 // pred_check
    _
  $region23: #{cnn_forward.5} parent=0 // pred_check_branch
    %23 = sbr.rel (0) target = $region25
  $region24: #{cnn_forward.5} parent=0 // pred_region
    _
  $region25: #{cnn_forward.5} parent=0 // pred_fallthru
    _
  // Predicated region
  $region26: #{cnn_forward.5} parent=0 // pred_check
    _
  $region27: #{cnn_forward.5} parent=0 // pred_check_branch
    %25 = sbr.rel (0) target = $region29
  $region28: #{cnn_forward.5} parent=0 // pred_region
    _
  $region29: #{cnn_forward.5} parent=0 // pred_fallthru
    _
  %v26 = vld [vmem:[%s0] sm:$0xff]
  %v27 = vld [vmem:[%s0 + $0x8] sm:$0xff]
  %v28 = vld [vmem:[%s0 + $0x10] sm:$0xff]
  %v29 = vld [vmem:[%s0 + $0x18] sm:$0xff]
  %v30 = vld [vmem:[%s1] sm:$0xff]
  %v31 = vld [vmem:[%s1 + $0x8] sm:$0xff]
  %v32 = vld [vmem:[%s1 + $0x10] sm:$0xff]
  %v33 = vld [vmem:[%s1 + $0x18] sm:$0xff]
  %v34 = vld [vmem:[%s1 + $0x20] sm:$0xff]
  %v35 = vld [vmem:[%s1 + $0x28] sm:$0xff]
  %v36 = vld [vmem:[%s1 + $0x30] sm:$0xff]
  %v37 = vld [vmem:[%s1 + $0x38] sm:$0xff]
  %v38 = vld [vmem:[%s1 + $0x40] sm:$0xff]
  %v39 = vld [vmem:[%s1 + $0x48] sm:$0xff]
  %v40 = vld [vmem:[%s1 + $0x50] sm:$0xff]
  %v41 = vld [vmem:[%s1 + $0x58] sm:$0xff]
  %v42 = vld [vmem:[%s1 + $0x60] sm:$0xff]
  %v43 = vld [vmem:[%s1 + $0x68] sm:$0xff]
  %v44 = vld [vmem:[%s1 + $0x70] sm:$0xff]
  %v45 = vld [vmem:[%s1 + $0x78] sm:$0xff]
  %v46 = vld [vmem:[%s1 + $0x80] sm:$0xff]
  %v47 = vld [vmem:[%s1 + $0x88] sm:$0xff]
  %v48 = vld [vmem:[%s1 + $0x90] sm:$0xff]
  %v49 = vld [vmem:[%s1 + $0x98] sm:$0xff]
  %v50 = vld [vmem:[%s1 + $0xa0] sm:$0xff]
  %v51 = vld [vmem:[%s1 + $0xa8] sm:$0xff]
  %v52 = vld [vmem:[%s1 + $0xb0] sm:$0xff]
  %v53 = vld [vmem:[%s1 + $0xb8] sm:$0xff]
  %v54 = vld [vmem:[%s1 + $0xc0] sm:$0xff]
  %v55 = vld [vmem:[%s1 + $0xc8] sm:$0xff]
  %v56 = vld [vmem:[%s1 + $0xd0] sm:$0xff]
  %v57 = vld [vmem:[%s1 + $0xd8] sm:$0xff]
  %v58 = vld [vmem:[%s1 + $0xe0] sm:$0xff]
  %v59 = vld [vmem:[%s1 + $0xe8] sm:$0xff]
  %v60 = vld [vmem:[%s1 + $0xf0] sm:$0xff]
  %v61 = vld [vmem:[%s1 + $0xf8] sm:$0xff]
  %v62 = vld [vmem:[%s1 + $0x100] sm:$0xff]
  %v63 = vld [vmem:[%s1 + $0x108] sm:$0xff]
  %v64 = vld [vmem:[%s1 + $0x110] sm:$0xff]
  %v65 = vld [vmem:[%s1 + $0x118] sm:$0xff]
  %v66 = vld [vmem:[%s1 + $0x120] sm:$0xff]
  %v67 = vld [vmem:[%s1 + $0x128] sm:$0xff]
  %v68 = vld [vmem:[%s1 + $0x130] sm:$0xff]
  %v69 = vld [vmem:[%s1 + $0x138] sm:$0xff]
  %v70 = vld [vmem:[%s1 + $0x140] sm:$0xff]
  %v71 = vld [vmem:[%s1 + $0x148] sm:$0xff]
  %v72 = vld [vmem:[%s1 + $0x150] sm:$0xff]
  %v73 = vld [vmem:[%s1 + $0x158] sm:$0xff]
  %v74 = vld [vmem:[%s1 + $0x160] sm:$0xff]
  %v75 = vld [vmem:[%s1 + $0x168] sm:$0xff]
  %v76 = vld [vmem:[%s1 + $0x170] sm:$0xff]
  %v77 = vld [vmem:[%s1 + $0x178] sm:$0xff]
  %v78 = vld [vmem:[%s1 + $0x180] sm:$0xff]
  %v79 = vld [vmem:[%s1 + $0x188] sm:$0xff]
  %v80 = vld [vmem:[%s1 + $0x190] sm:$0xff]
  %v81 = vld [vmem:[%s1 + $0x198] sm:$0xff]
  %v82 = vld [vmem:[%s1 + $0x1a0] sm:$0xff]
  %v83 = vld [vmem:[%s1 + $0x1a8] sm:$0xff]
  %v84 = vld [vmem:[%s1 + $0x1b0] sm:$0xff]
  %v85 = vld [vmem:[%s1 + $0x1b8] sm:$0xff]
  %v86 = vld [vmem:[%s1 + $0x1c0] sm:$0xff]
  %v87 = vld [vmem:[%s1 + $0x1c8] sm:$0xff]
  %v88 = vld [vmem:[%s1 + $0x1d0] sm:$0xff]
  %v89 = vld [vmem:[%s1 + $0x1d8] sm:$0xff]
  %v90 = vld [vmem:[%s1 + $0x1e0] sm:$0xff]
  %v91 = vld [vmem:[%s1 + $0x1e8] sm:$0xff]
  %v92 = vld [vmem:[%s1 + $0x1f0] sm:$0xff]
  %v93 = vld [vmem:[%s1 + $0x1f8] sm:$0xff]
  %v94 = vld [vmem:[%s1 + $0x200] sm:$0xff]
  %v95 = vld [vmem:[%s1 + $0x208] sm:$0xff]
  %v96 = vld [vmem:[%s1 + $0x210] sm:$0xff]
  %v97 = vld [vmem:[%s1 + $0x218] sm:$0xff]
  %v98 = vld [vmem:[%s1 + $0x220] sm:$0xff]
  %v99 = vld [vmem:[%s1 + $0x228] sm:$0xff]
  %v100 = vld [vmem:[%s1 + $0x230] sm:$0xff]
  %v101 = vld [vmem:[%s1 + $0x238] sm:$0xff]
  %v102 = vld [vmem:[%s1 + $0x240] sm:$0xff]
  %v103 = vld [vmem:[%s1 + $0x248] sm:$0xff]
  %v104 = vld [vmem:[%s1 + $0x250] sm:$0xff]
  %v105 = vld [vmem:[%s1 + $0x258] sm:$0xff]
  %v106 = vld [vmem:[%s1 + $0x260] sm:$0xff]
  %v107 = vld [vmem:[%s1 + $0x268] sm:$0xff]
  %v108 = vld [vmem:[%s1 + $0x270] sm:$0xff]
  %v109 = vld [vmem:[%s1 + $0x278] sm:$0xff]
  %v110 = vld [vmem:[%s1 + $0x280] sm:$0xff]
  %v111 = vld [vmem:[%s1 + $0x288] sm:$0xff]
  %v112 = vld [vmem:[%s1 + $0x290] sm:$0xff]
  %v113 = vld [vmem:[%s1 + $0x298] sm:$0xff]
  %v114 = vld [vmem:[%s1 + $0x2a0] sm:$0xff]
  %v115 = vld [vmem:[%s1 + $0x2a8] sm:$0xff]
  %v116 = vld [vmem:[%s1 + $0x2b0] sm:$0xff]
  %v117 = vld [vmem:[%s1 + $0x2b8] sm:$0xff]
  %v118 = vld [vmem:[%s1 + $0x2c0] sm:$0xff]
  %v119 = vld [vmem:[%s1 + $0x2c8] sm:$0xff]
  %v120 = vld [vmem:[%s1 + $0x2d0] sm:$0xff]
  %v121 = vld [vmem:[%s1 + $0x2d8] sm:$0xff]
  %v122 = vld [vmem:[%s1 + $0x2e0] sm:$0xff]
  %v123 = vld [vmem:[%s1 + $0x2e8] sm:$0xff]
  %v124 = vld [vmem:[%s1 + $0x2f0] sm:$0xff]
  %v125 = vld [vmem:[%s1 + $0x2f8] sm:$0xff]
  %v126 = vld [vmem:[%s1 + $0x300] sm:$0xff]
  %v127 = vld [vmem:[%s1 + $0x308] sm:$0xff]
  %v128 = vld [vmem:[%s1 + $0x310] sm:$0xff]
  %v129 = vld [vmem:[%s1 + $0x318] sm:$0xff]
  %v130 = vld [vmem:[%s1 + $0x320] sm:$0xff]
  %v131 = vld [vmem:[%s1 + $0x328] sm:$0xff]
  %v132 = vld [vmem:[%s1 + $0x330] sm:$0xff]
  %v133 = vld [vmem:[%s1 + $0x338] sm:$0xff]
  %v134 = vld [vmem:[%s1 + $0x340] sm:$0xff]
  %v135 = vld [vmem:[%s1 + $0x348] sm:$0xff]
  %v136 = vld [vmem:[%s1 + $0x350] sm:$0xff]
  %v137 = vld [vmem:[%s1 + $0x358] sm:$0xff]
  %v138 = vld [vmem:[%s1 + $0x360] sm:$0xff]
  %v139 = vld [vmem:[%s1 + $0x368] sm:$0xff]
  %v140 = vld [vmem:[%s1 + $0x370] sm:$0xff]
  %v141 = vld [vmem:[%s1 + $0x378] sm:$0xff]
  %v142 = vld [vmem:[%s1 + $0x380] sm:$0xff]
  %v143 = vld [vmem:[%s1 + $0x388] sm:$0xff]
  %v144 = vld [vmem:[%s1 + $0x390] sm:$0xff]
  %v145 = vld [vmem:[%s1 + $0x398] sm:$0xff]
  %v146 = vld [vmem:[%s1 + $0x3a0] sm:$0xff]
  %v147 = vld [vmem:[%s1 + $0x3a8] sm:$0xff]
  %v148 = vld [vmem:[%s1 + $0x3b0] sm:$0xff]
  %v149 = vld [vmem:[%s1 + $0x3b8] sm:$0xff]
  %v150 = vld [vmem:[%s1 + $0x3c0] sm:$0xff]
  %v151 = vld [vmem:[%s1 + $0x3c8] sm:$0xff]
  %v152 = vld [vmem:[%s1 + $0x3d0] sm:$0xff]
  %v153 = vld [vmem:[%s1 + $0x3d8] sm:$0xff]
  %v154 = vld [vmem:[%s1 + $0x3e0] sm:$0xff]
  %v155 = vld [vmem:[%s1 + $0x3e8] sm:$0xff]
  %v156 = vld [vmem:[%s1 + $0x3f0] sm:$0xff]
  %v157 = vld [vmem:[%s1 + $0x3f8] sm:$0xff]
  %v158 = vld [vmem:[%s1 + $0x400] sm:$0xff]
  %v159 = vld [vmem:[%s1 + $0x408] sm:$0xff]
  %v160 = vld [vmem:[%s1 + $0x410] sm:$0xff]
  %v161 = vld [vmem:[%s1 + $0x418] sm:$0xff]
  %v162 = vld [vmem:[%s1 + $0x420] sm:$0xff]
  %v163 = vld [vmem:[%s1 + $0x428] sm:$0xff]
  %v164 = vld [vmem:[%s1 + $0x430] sm:$0xff]
  %v165 = vld [vmem:[%s1 + $0x438] sm:$0xff]
  %v166 = vld [vmem:[%s1 + $0x440] sm:$0xff]
  %v167 = vld [vmem:[%s1 + $0x448] sm:$0xff]
  %v168 = vld [vmem:[%s1 + $0x450] sm:$0xff]
  %v169 = vld [vmem:[%s1 + $0x458] sm:$0xff]
  %v170 = vld [vmem:[%s1 + $0x460] sm:$0xff]
  %v171 = vld [vmem:[%s1 + $0x468] sm:$0xff]
  %v172 = vld [vmem:[%s1 + $0x470] sm:$0xff]
  %v173 = vld [vmem:[%s1 + $0x478] sm:$0xff]
  %v174 = vld [vmem:[%s1 + $0x480] sm:$0xff]
  %v175 = vld [vmem:[%s1 + $0x488] sm:$0xff]
  %v176 = vld [vmem:[%s1 + $0x490] sm:$0xff]
  %v177 = vld [vmem:[%s1 + $0x498] sm:$0xff]
  %v178 = vld [vmem:[%s1 + $0x4a0] sm:$0xff]
  %v179 = vld [vmem:[%s1 + $0x4a8] sm:$0xff]
  %v180 = vld [vmem:[%s1 + $0x4b0] sm:$0xff]
  %v181 = vld [vmem:[%s1 + $0x4b8] sm:$0xff]
  %v182 = vld [vmem:[%s1 + $0x4c0] sm:$0xff]
  %v183 = vld [vmem:[%s1 + $0x4c8] sm:$0xff]
  %v184 = vld [vmem:[%s1 + $0x4d0] sm:$0xff]
  %v185 = vld [vmem:[%s1 + $0x4d8] sm:$0xff]
  %v186 = vld [vmem:[%s1 + $0x4e0] sm:$0xff]
  %v187 = vld [vmem:[%s1 + $0x4e8] sm:$0xff]
  %v188 = vld [vmem:[%s1 + $0x4f0] sm:$0xff]
  %v189 = vld [vmem:[%s1 + $0x4f8] sm:$0xff]
  %v190 = vld [vmem:[%s1 + $0x500] sm:$0xff]
  %v191 = vld [vmem:[%s1 + $0x508] sm:$0xff]
  %v192 = vld [vmem:[%s1 + $0x510] sm:$0xff]
  %v193 = vld [vmem:[%s1 + $0x518] sm:$0xff]
  %v194 = vld [vmem:[%s1 + $0x520] sm:$0xff]
  %v195 = vld [vmem:[%s1 + $0x528] sm:$0xff]
  %v196 = vld [vmem:[%s1 + $0x530] sm:$0xff]
  %v197 = vld [vmem:[%s1 + $0x538] sm:$0xff]
  %v198 = vld [vmem:[%s1 + $0x540] sm:$0xff]
  %v199 = vld [vmem:[%s1 + $0x548] sm:$0xff]
  %v200 = vld [vmem:[%s1 + $0x550] sm:$0xff]
  %v201 = vld [vmem:[%s1 + $0x558] sm:$0xff]
  %v202 = vld [vmem:[%s1 + $0x560] sm:$0xff]
  %v203 = vld [vmem:[%s1 + $0x568] sm:$0xff]
  %v204 = vld [vmem:[%s1 + $0x570] sm:$0xff]
  %v205 = vld [vmem:[%s1 + $0x578] sm:$0xff]
  %v206 = vld [vmem:[%s1 + $0x580] sm:$0xff]
  %v207 = vld [vmem:[%s1 + $0x588] sm:$0xff]
  %v208 = vld [vmem:[%s1 + $0x590] sm:$0xff]
  %v209 = vld [vmem:[%s1 + $0x598] sm:$0xff]
  %v210 = vld [vmem:[%s1 + $0x5a0] sm:$0xff]
  %v211 = vld [vmem:[%s1 + $0x5a8] sm:$0xff]
  %v212 = vld [vmem:[%s1 + $0x5b0] sm:$0xff]
  %v213 = vld [vmem:[%s1 + $0x5b8] sm:$0xff]
  %v214 = vld [vmem:[%s1 + $0x5c0] sm:$0xff]
  %v215 = vld [vmem:[%s1 + $0x5c8] sm:$0xff]
  %v216 = vld [vmem:[%s1 + $0x5d0] sm:$0xff]
  %v217 = vld [vmem:[%s1 + $0x5d8] sm:$0xff]
  %v218 = vld [vmem:[%s1 + $0x5e0] sm:$0xff]
  %v219 = vld [vmem:[%s1 + $0x5e8] sm:$0xff]
  %v220 = vld [vmem:[%s1 + $0x5f0] sm:$0xff]
  %v221 = vld [vmem:[%s1 + $0x5f8] sm:$0xff]
  %v222 = vld [vmem:[%s1 + $0x600] sm:$0xff]
  %v223 = vld [vmem:[%s1 + $0x608] sm:$0xff]
  %v224 = vld [vmem:[%s1 + $0x610] sm:$0xff]
  %v225 = vld [vmem:[%s1 + $0x618] sm:$0xff]
  %v226 = vld [vmem:[%s1 + $0x620] sm:$0xff]
  %v227 = vld [vmem:[%s1 + $0x628] sm:$0xff]
  %v228 = vld [vmem:[%s1 + $0x630] sm:$0xff]
  %v229 = vld [vmem:[%s1 + $0x638] sm:$0xff]
  %v230 = vld [vmem:[%s1 + $0x640] sm:$0xff]
  %v231 = vld [vmem:[%s1 + $0x648] sm:$0xff]
  %v232 = vld [vmem:[%s1 + $0x650] sm:$0xff]
  %v233 = vld [vmem:[%s1 + $0x658] sm:$0xff]
  %v234 = vld [vmem:[%s1 + $0x660] sm:$0xff]
  %v235 = vld [vmem:[%s1 + $0x668] sm:$0xff]
  %v236 = vld [vmem:[%s1 + $0x670] sm:$0xff]
  %v237 = vld [vmem:[%s1 + $0x678] sm:$0xff]
  %v238 = vld [vmem:[%s1 + $0x680] sm:$0xff]
  %v239 = vld [vmem:[%s1 + $0x688] sm:$0xff]
  %v240 = vld [vmem:[%s1 + $0x690] sm:$0xff]
  %v241 = vld [vmem:[%s1 + $0x698] sm:$0xff]
  %v242 = vld [vmem:[%s1 + $0x6a0] sm:$0xff]
  %v243 = vld [vmem:[%s1 + $0x6a8] sm:$0xff]
  %v244 = vld [vmem:[%s1 + $0x6b0] sm:$0xff]
  %v245 = vld [vmem:[%s1 + $0x6b8] sm:$0xff]
  %v246 = vld [vmem:[%s1 + $0x6c0] sm:$0xff]
  %v247 = vld [vmem:[%s1 + $0x6c8] sm:$0xff]
  %v248 = vld [vmem:[%s1 + $0x6d0] sm:$0xff]
  %v249 = vld [vmem:[%s1 + $0x6d8] sm:$0xff]
  %v250 = vld [vmem:[%s1 + $0x6e0] sm:$0xff]
  %v251 = vld [vmem:[%s1 + $0x6e8] sm:$0xff]
  %v252 = vld [vmem:[%s1 + $0x6f0] sm:$0xff]
  %v253 = vld [vmem:[%s1 + $0x6f8] sm:$0xff]
  %v254 = vld [vmem:[%s1 + $0x700] sm:$0xff]
  %v255 = vld [vmem:[%s1 + $0x708] sm:$0xff]
  %v256 = vld [vmem:[%s1 + $0x710] sm:$0xff]
  %v257 = vld [vmem:[%s1 + $0x718] sm:$0xff]
  %v258 = vld [vmem:[%s1 + $0x720] sm:$0xff]
  %v259 = vld [vmem:[%s1 + $0x728] sm:$0xff]
  %v260 = vld [vmem:[%s1 + $0x730] sm:$0xff]
  %v261 = vld [vmem:[%s1 + $0x738] sm:$0xff]
  %v262 = vld [vmem:[%s1 + $0x740] sm:$0xff]
  %v263 = vld [vmem:[%s1 + $0x748] sm:$0xff]
  %v264 = vld [vmem:[%s1 + $0x750] sm:$0xff]
  %v265 = vld [vmem:[%s1 + $0x758] sm:$0xff]
  %v266 = vld [vmem:[%s1 + $0x760] sm:$0xff]
  %v267 = vld [vmem:[%s1 + $0x768] sm:$0xff]
  %v268 = vld [vmem:[%s1 + $0x770] sm:$0xff]
  %v269 = vld [vmem:[%s1 + $0x778] sm:$0xff]
  %v270 = vld [vmem:[%s1 + $0x780] sm:$0xff]
  %v271 = vld [vmem:[%s1 + $0x788] sm:$0xff]
  %v272 = vld [vmem:[%s1 + $0x790] sm:$0xff]
  %v273 = vld [vmem:[%s1 + $0x798] sm:$0xff]
  %v274 = vld [vmem:[%s1 + $0x7a0] sm:$0xff]
  %v275 = vld [vmem:[%s1 + $0x7a8] sm:$0xff]
  %v276 = vld [vmem:[%s1 + $0x7b0] sm:$0xff]
  %v277 = vld [vmem:[%s1 + $0x7b8] sm:$0xff]
  %v278 = vld [vmem:[%s1 + $0x7c0] sm:$0xff]
  %v279 = vld [vmem:[%s1 + $0x7c8] sm:$0xff]
  %v280 = vld [vmem:[%s1 + $0x7d0] sm:$0xff]
  %v281 = vld [vmem:[%s1 + $0x7d8] sm:$0xff]
  %v282 = vld [vmem:[%s1 + $0x7e0] sm:$0xff]
  %v283 = vld [vmem:[%s1 + $0x7e8] sm:$0xff]
  %v284 = vld [vmem:[%s1 + $0x7f0] sm:$0xff]
  %v285 = vld [vmem:[%s1 + $0x7f8] sm:$0xff]
  %v286 = vld [vmem:[%s1 + $0x800] sm:$0xff]
  %v287 = vld [vmem:[%s1 + $0x808] sm:$0xff]
  %v288 = vld [vmem:[%s1 + $0x810] sm:$0xff]
  %v289 = vld [vmem:[%s1 + $0x818] sm:$0xff]
  %v290 = vld [vmem:[%s1 + $0x820] sm:$0xff]
  %v291 = vld [vmem:[%s1 + $0x828] sm:$0xff]
  %v292 = vld [vmem:[%s1 + $0x830] sm:$0xff]
  %v293 = vld [vmem:[%s1 + $0x838] sm:$0xff]
  %v294 = vld [vmem:[%s1 + $0x840] sm:$0xff]
  %v295 = vld [vmem:[%s1 + $0x848] sm:$0xff]
  %v296 = vld [vmem:[%s1 + $0x850] sm:$0xff]
  %v297 = vld [vmem:[%s1 + $0x858] sm:$0xff]
  %v298 = vld [vmem:[%s1 + $0x860] sm:$0xff]
  %v299 = vld [vmem:[%s1 + $0x868] sm:$0xff]
  %v300 = vld [vmem:[%s1 + $0x870] sm:$0xff]
  %v301 = vld [vmem:[%s1 + $0x878] sm:$0xff]
  %v302 = vld [vmem:[%s1 + $0x880] sm:$0xff]
  %v303 = vld [vmem:[%s1 + $0x888] sm:$0xff]
  %v304 = vld [vmem:[%s1 + $0x890] sm:$0xff]
  %v305 = vld [vmem:[%s1 + $0x898] sm:$0xff]
  %v306 = vld [vmem:[%s1 + $0x8a0] sm:$0xff]
  %v307 = vld [vmem:[%s1 + $0x8a8] sm:$0xff]
  %v308 = vld [vmem:[%s1 + $0x8b0] sm:$0xff]
  %v309 = vld [vmem:[%s1 + $0x8b8] sm:$0xff]
  %v310 = vld [vmem:[%s1 + $0x8c0] sm:$0xff]
  %v311 = vld [vmem:[%s1 + $0x8c8] sm:$0xff]
  %v312 = vld [vmem:[%s1 + $0x8d0] sm:$0xff]
  %v313 = vld [vmem:[%s1 + $0x8d8] sm:$0xff]
  %v314 = vld [vmem:[%s1 + $0x8e0] sm:$0xff]
  %v315 = vld [vmem:[%s1 + $0x8e8] sm:$0xff]
  %v316 = vld [vmem:[%s1 + $0x8f0] sm:$0xff]
  %v317 = vld [vmem:[%s1 + $0x8f8] sm:$0xff]
  %v318 = vld [vmem:[%s1 + $0x900] sm:$0xff]
  %v319 = vld [vmem:[%s1 + $0x908] sm:$0xff]
  %v320 = vld [vmem:[%s1 + $0x910] sm:$0xff]
  %v321 = vld [vmem:[%s1 + $0x918] sm:$0xff]
  %v322 = vld [vmem:[%s1 + $0x920] sm:$0xff]
  %v323 = vld [vmem:[%s1 + $0x928] sm:$0xff]
  %v324 = vld [vmem:[%s1 + $0x930] sm:$0xff]
  %v325 = vld [vmem:[%s1 + $0x938] sm:$0xff]
  %v326 = vld [vmem:[%s1 + $0x940] sm:$0xff]
  %v327 = vld [vmem:[%s1 + $0x948] sm:$0xff]
  %v328 = vld [vmem:[%s1 + $0x950] sm:$0xff]
  %v329 = vld [vmem:[%s1 + $0x958] sm:$0xff]
  %v330 = vld [vmem:[%s1 + $0x960] sm:$0xff]
  %v331 = vld [vmem:[%s1 + $0x968] sm:$0xff]
  %v332 = vld [vmem:[%s1 + $0x970] sm:$0xff]
  %v333 = vld [vmem:[%s1 + $0x978] sm:$0xff]
  %v334 = vld [vmem:[%s1 + $0x980] sm:$0xff]
  %v335 = vld [vmem:[%s1 + $0x988] sm:$0xff]
  %v336 = vld [vmem:[%s1 + $0x990] sm:$0xff]
  %v337 = vld [vmem:[%s1 + $0x998] sm:$0xff]
  %v338 = vld [vmem:[%s1 + $0x9a0] sm:$0xff]
  %v339 = vld [vmem:[%s1 + $0x9a8] sm:$0xff]
  %v340 = vld [vmem:[%s1 + $0x9b0] sm:$0xff]
  %v341 = vld [vmem:[%s1 + $0x9b8] sm:$0xff]
  %v342 = vld [vmem:[%s1 + $0x9c0] sm:$0xff]
  %v343 = vld [vmem:[%s1 + $0x9c8] sm:$0xff]
  %v344 = vld [vmem:[%s1 + $0x9d0] sm:$0xff]
  %v345 = vld [vmem:[%s1 + $0x9d8] sm:$0xff]
  %v346 = vld [vmem:[%s1 + $0x9e0] sm:$0xff]
  %v347 = vld [vmem:[%s1 + $0x9e8] sm:$0xff]
  %v348 = vld [vmem:[%s1 + $0x9f0] sm:$0xff]
  %v349 = vld [vmem:[%s1 + $0x9f8] sm:$0xff]
  %v350 = vld [vmem:[%s1 + $0xa00] sm:$0xff]
  %v351 = vld [vmem:[%s1 + $0xa08] sm:$0xff]
  %v352 = vld [vmem:[%s1 + $0xa10] sm:$0xff]
  %v353 = vld [vmem:[%s1 + $0xa18] sm:$0xff]
  %v354 = vld [vmem:[%s1 + $0xa20] sm:$0xff]
  %v355 = vld [vmem:[%s1 + $0xa28] sm:$0xff]
  %v356 = vld [vmem:[%s1 + $0xa30] sm:$0xff]
  %v357 = vld [vmem:[%s1 + $0xa38] sm:$0xff]
  %v358 = vld [vmem:[%s1 + $0xa40] sm:$0xff]
  %v359 = vld [vmem:[%s1 + $0xa48] sm:$0xff]
  %v360 = vld [vmem:[%s1 + $0xa50] sm:$0xff]
  %v361 = vld [vmem:[%s1 + $0xa58] sm:$0xff]
  %v362 = vld [vmem:[%s1 + $0xa60] sm:$0xff]
  %v363 = vld [vmem:[%s1 + $0xa68] sm:$0xff]
  %v364 = vld [vmem:[%s1 + $0xa70] sm:$0xff]
  %v365 = vld [vmem:[%s1 + $0xa78] sm:$0xff]
  %v366 = vld [vmem:[%s1 + $0xa80] sm:$0xff]
  %v367 = vld [vmem:[%s1 + $0xa88] sm:$0xff]
  %v368 = vld [vmem:[%s1 + $0xa90] sm:$0xff]
  %v369 = vld [vmem:[%s1 + $0xa98] sm:$0xff]
  %v370 = vld [vmem:[%s1 + $0xaa0] sm:$0xff]
  %v371 = vld [vmem:[%s1 + $0xaa8] sm:$0xff]
  %v372 = vld [vmem:[%s1 + $0xab0] sm:$0xff]
  %v373 = vld [vmem:[%s1 + $0xab8] sm:$0xff]
  %v374 = vld [vmem:[%s1 + $0xac0] sm:$0xff]
  %v375 = vld [vmem:[%s1 + $0xac8] sm:$0xff]
  %v376 = vld [vmem:[%s1 + $0xad0] sm:$0xff]
  %v377 = vld [vmem:[%s1 + $0xad8] sm:$0xff]
  %v378 = vld [vmem:[%s1 + $0xae0] sm:$0xff]
  %v379 = vld [vmem:[%s1 + $0xae8] sm:$0xff]
  %v380 = vld [vmem:[%s1 + $0xaf0] sm:$0xff]
  %v381 = vld [vmem:[%s1 + $0xaf8] sm:$0xff]
  %v382 = vld [vmem:[%s1 + $0xb00] sm:$0xff]
  %v383 = vld [vmem:[%s1 + $0xb08] sm:$0xff]
  %v384 = vld [vmem:[%s1 + $0xb10] sm:$0xff]
  %v385 = vld [vmem:[%s1 + $0xb18] sm:$0xff]
  %v386 = vld [vmem:[%s1 + $0xb20] sm:$0xff]
  %v387 = vld [vmem:[%s1 + $0xb28] sm:$0xff]
  %v388 = vld [vmem:[%s1 + $0xb30] sm:$0xff]
  %v389 = vld [vmem:[%s1 + $0xb38] sm:$0xff]
  %v390 = vld [vmem:[%s1 + $0xb40] sm:$0xff]
  %v391 = vld [vmem:[%s1 + $0xb48] sm:$0xff]
  %v392 = vld [vmem:[%s1 + $0xb50] sm:$0xff]
  %v393 = vld [vmem:[%s1 + $0xb58] sm:$0xff]
  %v394 = vld [vmem:[%s1 + $0xb60] sm:$0xff]
  %v395 = vld [vmem:[%s1 + $0xb68] sm:$0xff]
  %v396 = vld [vmem:[%s1 + $0xb70] sm:$0xff]
  %v397 = vld [vmem:[%s1 + $0xb78] sm:$0xff]
  %v398 = vld [vmem:[%s1 + $0xb80] sm:$0xff]
  %v399 = vld [vmem:[%s1 + $0xb88] sm:$0xff]
  %v400 = vld [vmem:[%s1 + $0xb90] sm:$0xff]
  %v401 = vld [vmem:[%s1 + $0xb98] sm:$0xff]
  %v402 = vld [vmem:[%s1 + $0xba0] sm:$0xff]
  %v403 = vld [vmem:[%s1 + $0xba8] sm:$0xff]
  %v404 = vld [vmem:[%s1 + $0xbb0] sm:$0xff]
  %v405 = vld [vmem:[%s1 + $0xbb8] sm:$0xff]
  %v406 = vld [vmem:[%s1 + $0xbc0] sm:$0xff]
  %v407 = vld [vmem:[%s1 + $0xbc8] sm:$0xff]
  %v408 = vld [vmem:[%s1 + $0xbd0] sm:$0xff]
  %v409 = vld [vmem:[%s1 + $0xbd8] sm:$0xff]
  %v410 = vld [vmem:[%s1 + $0xbe0] sm:$0xff]
  %v411 = vld [vmem:[%s1 + $0xbe8] sm:$0xff]
  %v412 = vld [vmem:[%s1 + $0xbf0] sm:$0xff]
  %v413 = vld [vmem:[%s1 + $0xbf8] sm:$0xff]
  %v414 = vld [vmem:[%s1 + $0xc00] sm:$0xff]
  %v415 = vld [vmem:[%s1 + $0xc08] sm:$0xff]
  %v416 = vld [vmem:[%s1 + $0xc10] sm:$0xff]
  %v417 = vld [vmem:[%s1 + $0xc18] sm:$0xff]
  %v418 = vld [vmem:[%s1 + $0xc20] sm:$0xff]
  %v419 = vld [vmem:[%s1 + $0xc28] sm:$0xff]
  %v420 = vld [vmem:[%s1 + $0xc30] sm:$0xff]
  %v421 = vld [vmem:[%s1 + $0xc38] sm:$0xff]
  %v422 = vld [vmem:[%s1 + $0xc40] sm:$0xff]
  %v423 = vld [vmem:[%s1 + $0xc48] sm:$0xff]
  %v424 = vld [vmem:[%s1 + $0xc50] sm:$0xff]
  %v425 = vld [vmem:[%s1 + $0xc58] sm:$0xff]
  %v426 = vld [vmem:[%s1 + $0xc60] sm:$0xff]
  %v427 = vld [vmem:[%s1 + $0xc68] sm:$0xff]
  %v428 = vld [vmem:[%s1 + $0xc70] sm:$0xff]
  %v429 = vld [vmem:[%s1 + $0xc78] sm:$0xff]
  %v430 = vld [vmem:[%s1 + $0xc80] sm:$0xff]
  %v431 = vld [vmem:[%s1 + $0xc88] sm:$0xff]
  %v432 = vld [vmem:[%s1 + $0xc90] sm:$0xff]
  %v433 = vld [vmem:[%s1 + $0xc98] sm:$0xff]
  %v434 = vld [vmem:[%s1 + $0xca0] sm:$0xff]
  %v435 = vld [vmem:[%s1 + $0xca8] sm:$0xff]
  %v436 = vld [vmem:[%s1 + $0xcb0] sm:$0xff]
  %v437 = vld [vmem:[%s1 + $0xcb8] sm:$0xff]
  %v438 = vld [vmem:[%s1 + $0xcc0] sm:$0xff]
  %v439 = vld [vmem:[%s1 + $0xcc8] sm:$0xff]
  %v440 = vld [vmem:[%s1 + $0xcd0] sm:$0xff]
  %v441 = vld [vmem:[%s1 + $0xcd8] sm:$0xff]
  %v442 = vld [vmem:[%s1 + $0xce0] sm:$0xff]
  %v443 = vld [vmem:[%s1 + $0xce8] sm:$0xff]
  %v444 = vld [vmem:[%s1 + $0xcf0] sm:$0xff]
  %v445 = vld [vmem:[%s1 + $0xcf8] sm:$0xff]
  %v446 = vld [vmem:[%s1 + $0xd00] sm:$0xff]
  %v447 = vld [vmem:[%s1 + $0xd08] sm:$0xff]
  %v448 = vld [vmem:[%s1 + $0xd10] sm:$0xff]
  %v449 = vld [vmem:[%s1 + $0xd18] sm:$0xff]
  %v450 = vld [vmem:[%s1 + $0xd20] sm:$0xff]
  %v451 = vld [vmem:[%s1 + $0xd28] sm:$0xff]
  %v452 = vld [vmem:[%s1 + $0xd30] sm:$0xff]
  %v453 = vld [vmem:[%s1 + $0xd38] sm:$0xff]
  %v454 = vld [vmem:[%s1 + $0xd40] sm:$0xff]
  %v455 = vld [vmem:[%s1 + $0xd48] sm:$0xff]
  %v456 = vld [vmem:[%s1 + $0xd50] sm:$0xff]
  %v457 = vld [vmem:[%s1 + $0xd58] sm:$0xff]
  %v458 = vld [vmem:[%s1 + $0xd60] sm:$0xff]
  %v459 = vld [vmem:[%s1 + $0xd68] sm:$0xff]
  %v460 = vld [vmem:[%s1 + $0xd70] sm:$0xff]
  %v461 = vld [vmem:[%s1 + $0xd78] sm:$0xff]
  %v462 = vld [vmem:[%s1 + $0xd80] sm:$0xff]
  %v463 = vld [vmem:[%s1 + $0xd88] sm:$0xff]
  %v464 = vld [vmem:[%s1 + $0xd90] sm:$0xff]
  %v465 = vld [vmem:[%s1 + $0xd98] sm:$0xff]
  %v466 = vld [vmem:[%s1 + $0xda0] sm:$0xff]
  %v467 = vld [vmem:[%s1 + $0xda8] sm:$0xff]
  %v468 = vld [vmem:[%s1 + $0xdb0] sm:$0xff]
  %v469 = vld [vmem:[%s1 + $0xdb8] sm:$0xff]
  %v470 = vld [vmem:[%s1 + $0xdc0] sm:$0xff]
  %v471 = vld [vmem:[%s1 + $0xdc8] sm:$0xff]
  %v472 = vld [vmem:[%s1 + $0xdd0] sm:$0xff]
  %v473 = vld [vmem:[%s1 + $0xdd8] sm:$0xff]
  %v474 = vld [vmem:[%s1 + $0xde0] sm:$0xff]
  %v475 = vld [vmem:[%s1 + $0xde8] sm:$0xff]
  %v476 = vld [vmem:[%s1 + $0xdf0] sm:$0xff]
  %v477 = vld [vmem:[%s1 + $0xdf8] sm:$0xff]
  %v478 = vld [vmem:[%s1 + $0xe00] sm:$0xff]
  %v479 = vld [vmem:[%s1 + $0xe08] sm:$0xff]
  %v480 = vld [vmem:[%s1 + $0xe10] sm:$0xff]
  %v481 = vld [vmem:[%s1 + $0xe18] sm:$0xff]
  %v482 = vld [vmem:[%s1 + $0xe20] sm:$0xff]
  %v483 = vld [vmem:[%s1 + $0xe28] sm:$0xff]
  %v484 = vld [vmem:[%s1 + $0xe30] sm:$0xff]
  %v485 = vld [vmem:[%s1 + $0xe38] sm:$0xff]
  %v486 = vld [vmem:[%s1 + $0xe40] sm:$0xff]
  %v487 = vld [vmem:[%s1 + $0xe48] sm:$0xff]
  %v488 = vld [vmem:[%s1 + $0xe50] sm:$0xff]
  %v489 = vld [vmem:[%s1 + $0xe58] sm:$0xff]
  %v490 = vld [vmem:[%s1 + $0xe60] sm:$0xff]
  %v491 = vld [vmem:[%s1 + $0xe68] sm:$0xff]
  %v492 = vld [vmem:[%s1 + $0xe70] sm:$0xff]
  %v493 = vld [vmem:[%s1 + $0xe78] sm:$0xff]
  %v494 = vld [vmem:[%s1 + $0xe80] sm:$0xff]
  %v495 = vld [vmem:[%s1 + $0xe88] sm:$0xff]
  %v496 = vld [vmem:[%s1 + $0xe90] sm:$0xff]
  %v497 = vld [vmem:[%s1 + $0xe98] sm:$0xff]
  %v498 = vld [vmem:[%s1 + $0xea0] sm:$0xff]
  %v499 = vld [vmem:[%s1 + $0xea8] sm:$0xff]
  %v500 = vld [vmem:[%s1 + $0xeb0] sm:$0xff]
  %v501 = vld [vmem:[%s1 + $0xeb8] sm:$0xff]
  %v502 = vld [vmem:[%s1 + $0xec0] sm:$0xff]
  %v503 = vld [vmem:[%s1 + $0xec8] sm:$0xff]
  %v504 = vld [vmem:[%s1 + $0xed0] sm:$0xff]
  %v505 = vld [vmem:[%s1 + $0xed8] sm:$0xff]
  %v506 = vld [vmem:[%s1 + $0xee0] sm:$0xff]
  %v507 = vld [vmem:[%s1 + $0xee8] sm:$0xff]
  %v508 = vld [vmem:[%s1 + $0xef0] sm:$0xff]
  %v509 = vld [vmem:[%s1 + $0xef8] sm:$0xff]
  %v510 = vld [vmem:[%s1 + $0xf00] sm:$0xff]
  %v511 = vld [vmem:[%s1 + $0xf08] sm:$0xff]
  %v512 = vld [vmem:[%s1 + $0xf10] sm:$0xff]
  %v513 = vld [vmem:[%s1 + $0xf18] sm:$0xff]
  %v514 = vld [vmem:[%s1 + $0xf20] sm:$0xff]
  %v515 = vld [vmem:[%s1 + $0xf28] sm:$0xff]
  %v516 = vld [vmem:[%s1 + $0xf30] sm:$0xff]
  %v517 = vld [vmem:[%s1 + $0xf38] sm:$0xff]
  %v518 = vld [vmem:[%s1 + $0xf40] sm:$0xff]
  %v519 = vld [vmem:[%s1 + $0xf48] sm:$0xff]
  %v520 = vld [vmem:[%s1 + $0xf50] sm:$0xff]
  %v521 = vld [vmem:[%s1 + $0xf58] sm:$0xff]
  %v522 = vld [vmem:[%s1 + $0xf60] sm:$0xff]
  %v523 = vld [vmem:[%s1 + $0xf68] sm:$0xff]
  %v524 = vld [vmem:[%s1 + $0xf70] sm:$0xff]
  %v525 = vld [vmem:[%s1 + $0xf78] sm:$0xff]
  %v526 = vld [vmem:[%s1 + $0xf80] sm:$0xff]
  %v527 = vld [vmem:[%s1 + $0xf88] sm:$0xff]
  %v528 = vld [vmem:[%s1 + $0xf90] sm:$0xff]
  %v529 = vld [vmem:[%s1 + $0xf98] sm:$0xff]
  %v530 = vld [vmem:[%s1 + $0xfa0] sm:$0xff]
  %v531 = vld [vmem:[%s1 + $0xfa8] sm:$0xff]
  %v532 = vld [vmem:[%s1 + $0xfb0] sm:$0xff]
  %v533 = vld [vmem:[%s1 + $0xfb8] sm:$0xff]
  %v534 = vld [vmem:[%s1 + $0xfc0] sm:$0xff]
  %v535 = vld [vmem:[%s1 + $0xfc8] sm:$0xff]
  %v536 = vld [vmem:[%s1 + $0xfd0] sm:$0xff]
  %v537 = vld [vmem:[%s1 + $0xfd8] sm:$0xff]
  %v538 = vld [vmem:[%s1 + $0xfe0] sm:$0xff]
  %v539 = vld [vmem:[%s1 + $0xfe8] sm:$0xff]
  %v540 = vld [vmem:[%s1 + $0xff0] sm:$0xff]
  %v541 = vld [vmem:[%s1 + $0xff8] sm:$0xff]
  %v542 = vld [vmem:[%s2] sm:$0x3]
  %v544 = vperm.slane %v542, 0
  %v545 = vperm.slane %v542, 1
  %549 = vst [vmem:[#allocation1] ss:$9 sm:$0xff] %v26
  %v550 = vld [vmem:[#allocation1] sm:$0xff]
  %v551 = vld [vmem:[#allocation1 + $0x9] sm:$0xff]
  %v552 = vld [vmem:[#allocation1 + $0x12] sm:$0xff]
  %v553 = vld [vmem:[#allocation1 + $0x1b] sm:$0xff]
  %v554 = vld [vmem:[#allocation1 + $0x24] sm:$0xff]
  %v555 = vld [vmem:[#allocation1 + $0x2d] sm:$0xff]
  %v556 = vld [vmem:[#allocation1 + $0x36] sm:$0xff]
  %v557 = vld [vmem:[#allocation1 + $0x3f] sm:$0xff]
  %559 = vst [vmem:[#allocation1] ss:$9 sm:$0xff] %v27
  %v560 = vld [vmem:[#allocation1] sm:$0xff]
  %v561 = vld [vmem:[#allocation1 + $0x9] sm:$0xff]
  %v562 = vld [vmem:[#allocation1 + $0x12] sm:$0xff]
  %v563 = vld [vmem:[#allocation1 + $0x1b] sm:$0xff]
  %v564 = vld [vmem:[#allocation1 + $0x24] sm:$0xff]
  %v565 = vld [vmem:[#allocation1 + $0x2d] sm:$0xff]
  %v566 = vld [vmem:[#allocation1 + $0x36] sm:$0xff]
  %v567 = vld [vmem:[#allocation1 + $0x3f] sm:$0xff]
  %569 = vst [vmem:[#allocation1] ss:$9 sm:$0xff] %v28
  %v570 = vld [vmem:[#allocation1] sm:$0xff]
  %v571 = vld [vmem:[#allocation1 + $0x9] sm:$0xff]
  %v572 = vld [vmem:[#allocation1 + $0x12] sm:$0xff]
  %v573 = vld [vmem:[#allocation1 + $0x1b] sm:$0xff]
  %v574 = vld [vmem:[#allocation1 + $0x24] sm:$0xff]
  %v575 = vld [vmem:[#allocation1 + $0x2d] sm:$0xff]
  %v576 = vld [vmem:[#allocation1 + $0x36] sm:$0xff]
  %v577 = vld [vmem:[#allocation1 + $0x3f] sm:$0xff]
  %579 = vst [vmem:[#allocation1] ss:$9 sm:$0xff] %v29
  %v580 = vld [vmem:[#allocation1] sm:$0xff]
  %v581 = vld [vmem:[#allocation1 + $0x9] sm:$0xff]
  %v582 = vld [vmem:[#allocation1 + $0x12] sm:$0xff]
  %v583 = vld [vmem:[#allocation1 + $0x1b] sm:$0xff]
  %v584 = vld [vmem:[#allocation1 + $0x24] sm:$0xff]
  %v585 = vld [vmem:[#allocation1 + $0x2d] sm:$0xff]
  %v586 = vld [vmem:[#allocation1 + $0x36] sm:$0xff]
  %v587 = vld [vmem:[#allocation1 + $0x3f] sm:$0xff]
  %v1132 = vunpack.c.l.b16 %v30
  %v1133 = vunpack.c.h.b16 %v30
  %v1134 = vunpack.c.l.b16 %v31
  %v1135 = vunpack.c.h.b16 %v31
  %v1136 = vunpack.c.l.b16 %v32
  %v1137 = vunpack.c.h.b16 %v32
  %v1138 = vunpack.c.l.b16 %v33
  %v1139 = vunpack.c.h.b16 %v33
  %v1140 = vunpack.c.l.b16 %v34
  %v1141 = vunpack.c.h.b16 %v34
  %v1142 = vunpack.c.l.b16 %v35
  %v1143 = vunpack.c.h.b16 %v35
  %v1144 = vunpack.c.l.b16 %v36
  %v1145 = vunpack.c.h.b16 %v36
  %v1146 = vunpack.c.l.b16 %v37
  %v1147 = vunpack.c.h.b16 %v37
  %v1148 = vunpack.c.l.b16 %v38
  %v1149 = vunpack.c.h.b16 %v38
  %v1150 = vunpack.c.l.b16 %v39
  %v1151 = vunpack.c.h.b16 %v39
  %v1152 = vunpack.c.l.b16 %v40
  %v1153 = vunpack.c.h.b16 %v40
  %v1154 = vunpack.c.l.b16 %v41
  %v1155 = vunpack.c.h.b16 %v41
  %v1156 = vunpack.c.l.b16 %v42
  %v1157 = vunpack.c.h.b16 %v42
  %v1158 = vunpack.c.l.b16 %v43
  %v1159 = vunpack.c.h.b16 %v43
  %v1160 = vunpack.c.l.b16 %v44
  %v1161 = vunpack.c.h.b16 %v44
  %v1162 = vunpack.c.l.b16 %v45
  %v1163 = vunpack.c.h.b16 %v45
  %v1164 = vunpack.c.l.b16 %v46
  %v1165 = vunpack.c.h.b16 %v46
  %v1166 = vunpack.c.l.b16 %v47
  %v1167 = vunpack.c.h.b16 %v47
  %v1168 = vunpack.c.l.b16 %v48
  %v1169 = vunpack.c.h.b16 %v48
  %v1170 = vunpack.c.l.b16 %v49
  %v1171 = vunpack.c.h.b16 %v49
  %v1172 = vunpack.c.l.b16 %v50
  %v1173 = vunpack.c.h.b16 %v50
  %v1174 = vunpack.c.l.b16 %v51
  %v1175 = vunpack.c.h.b16 %v51
  %v1176 = vunpack.c.l.b16 %v52
  %v1177 = vunpack.c.h.b16 %v52
  %v1178 = vunpack.c.l.b16 %v53
  %v1179 = vunpack.c.h.b16 %v53
  %v1180 = vunpack.c.l.b16 %v54
  %v1181 = vunpack.c.h.b16 %v54
  %v1182 = vunpack.c.l.b16 %v55
  %v1183 = vunpack.c.h.b16 %v55
  %v1184 = vunpack.c.l.b16 %v56
  %v1185 = vunpack.c.h.b16 %v56
  %v1186 = vunpack.c.l.b16 %v57
  %v1187 = vunpack.c.h.b16 %v57
  %v1188 = vunpack.c.l.b16 %v58
  %v1189 = vunpack.c.h.b16 %v58
  %v1190 = vunpack.c.l.b16 %v59
  %v1191 = vunpack.c.h.b16 %v59
  %v1192 = vunpack.c.l.b16 %v60
  %v1193 = vunpack.c.h.b16 %v60
  %v1194 = vunpack.c.l.b16 %v61
  %v1195 = vunpack.c.h.b16 %v61
  %v1196 = vunpack.c.l.b16 %v62
  %v1197 = vunpack.c.h.b16 %v62
  %v1198 = vunpack.c.l.b16 %v63
  %v1199 = vunpack.c.h.b16 %v63
  %v1200 = vunpack.c.l.b16 %v64
  %v1201 = vunpack.c.h.b16 %v64
  %v1202 = vunpack.c.l.b16 %v65
  %v1203 = vunpack.c.h.b16 %v65
  %v1204 = vunpack.c.l.b16 %v66
  %v1205 = vunpack.c.h.b16 %v66
  %v1206 = vunpack.c.l.b16 %v67
  %v1207 = vunpack.c.h.b16 %v67
  %v1208 = vunpack.c.l.b16 %v68
  %v1209 = vunpack.c.h.b16 %v68
  %v1210 = vunpack.c.l.b16 %v69
  %v1211 = vunpack.c.h.b16 %v69
  %v1212 = vunpack.c.l.b16 %v70
  %v1213 = vunpack.c.h.b16 %v70
  %v1214 = vunpack.c.l.b16 %v71
  %v1215 = vunpack.c.h.b16 %v71
  %v1216 = vunpack.c.l.b16 %v72
  %v1217 = vunpack.c.h.b16 %v72
  %v1218 = vunpack.c.l.b16 %v73
  %v1219 = vunpack.c.h.b16 %v73
  %v1220 = vunpack.c.l.b16 %v74
  %v1221 = vunpack.c.h.b16 %v74
  %v1222 = vunpack.c.l.b16 %v75
  %v1223 = vunpack.c.h.b16 %v75
  %v1224 = vunpack.c.l.b16 %v76
  %v1225 = vunpack.c.h.b16 %v76
  %v1226 = vunpack.c.l.b16 %v77
  %v1227 = vunpack.c.h.b16 %v77
  %v1228 = vunpack.c.l.b16 %v78
  %v1229 = vunpack.c.h.b16 %v78
  %v1230 = vunpack.c.l.b16 %v79
  %v1231 = vunpack.c.h.b16 %v79
  %v1232 = vunpack.c.l.b16 %v80
  %v1233 = vunpack.c.h.b16 %v80
  %v1234 = vunpack.c.l.b16 %v81
  %v1235 = vunpack.c.h.b16 %v81
  %v1236 = vunpack.c.l.b16 %v82
  %v1237 = vunpack.c.h.b16 %v82
  %v1238 = vunpack.c.l.b16 %v83
  %v1239 = vunpack.c.h.b16 %v83
  %v1240 = vunpack.c.l.b16 %v84
  %v1241 = vunpack.c.h.b16 %v84
  %v1242 = vunpack.c.l.b16 %v85
  %v1243 = vunpack.c.h.b16 %v85
  %v1244 = vunpack.c.l.b16 %v86
  %v1245 = vunpack.c.h.b16 %v86
  %v1246 = vunpack.c.l.b16 %v87
  %v1247 = vunpack.c.h.b16 %v87
  %v1248 = vunpack.c.l.b16 %v88
  %v1249 = vunpack.c.h.b16 %v88
  %v1250 = vunpack.c.l.b16 %v89
  %v1251 = vunpack.c.h.b16 %v89
  %v1252 = vunpack.c.l.b16 %v90
  %v1253 = vunpack.c.h.b16 %v90
  %v1254 = vunpack.c.l.b16 %v91
  %v1255 = vunpack.c.h.b16 %v91
  %v1256 = vunpack.c.l.b16 %v92
  %v1257 = vunpack.c.h.b16 %v92
  %v1258 = vunpack.c.l.b16 %v93
  %v1259 = vunpack.c.h.b16 %v93
  %v1260 = vunpack.c.l.b16 %v94
  %v1261 = vunpack.c.h.b16 %v94
  %v1262 = vunpack.c.l.b16 %v95
  %v1263 = vunpack.c.h.b16 %v95
  %v1264 = vunpack.c.l.b16 %v96
  %v1265 = vunpack.c.h.b16 %v96
  %v1266 = vunpack.c.l.b16 %v97
  %v1267 = vunpack.c.h.b16 %v97
  %v1268 = vunpack.c.l.b16 %v98
  %v1269 = vunpack.c.h.b16 %v98
  %v1270 = vunpack.c.l.b16 %v99
  %v1271 = vunpack.c.h.b16 %v99
  %v1272 = vunpack.c.l.b16 %v100
  %v1273 = vunpack.c.h.b16 %v100
  %v1274 = vunpack.c.l.b16 %v101
  %v1275 = vunpack.c.h.b16 %v101
  %v1276 = vunpack.c.l.b16 %v102
  %v1277 = vunpack.c.h.b16 %v102
  %v1278 = vunpack.c.l.b16 %v103
  %v1279 = vunpack.c.h.b16 %v103
  %v1280 = vunpack.c.l.b16 %v104
  %v1281 = vunpack.c.h.b16 %v104
  %v1282 = vunpack.c.l.b16 %v105
  %v1283 = vunpack.c.h.b16 %v105
  %v1284 = vunpack.c.l.b16 %v106
  %v1285 = vunpack.c.h.b16 %v106
  %v1286 = vunpack.c.l.b16 %v107
  %v1287 = vunpack.c.h.b16 %v107
  %v1288 = vunpack.c.l.b16 %v108
  %v1289 = vunpack.c.h.b16 %v108
  %v1290 = vunpack.c.l.b16 %v109
  %v1291 = vunpack.c.h.b16 %v109
  %v1292 = vunpack.c.l.b16 %v110
  %v1293 = vunpack.c.h.b16 %v110
  %v1294 = vunpack.c.l.b16 %v111
  %v1295 = vunpack.c.h.b16 %v111
  %v1296 = vunpack.c.l.b16 %v112
  %v1297 = vunpack.c.h.b16 %v112
  %v1298 = vunpack.c.l.b16 %v113
  %v1299 = vunpack.c.h.b16 %v113
  %v1300 = vunpack.c.l.b16 %v114
  %v1301 = vunpack.c.h.b16 %v114
  %v1302 = vunpack.c.l.b16 %v115
  %v1303 = vunpack.c.h.b16 %v115
  %v1304 = vunpack.c.l.b16 %v116
  %v1305 = vunpack.c.h.b16 %v116
  %v1306 = vunpack.c.l.b16 %v117
  %v1307 = vunpack.c.h.b16 %v117
  %v1308 = vunpack.c.l.b16 %v118
  %v1309 = vunpack.c.h.b16 %v118
  %v1310 = vunpack.c.l.b16 %v119
  %v1311 = vunpack.c.h.b16 %v119
  %v1312 = vunpack.c.l.b16 %v120
  %v1313 = vunpack.c.h.b16 %v120
  %v1314 = vunpack.c.l.b16 %v121
  %v1315 = vunpack.c.h.b16 %v121
  %v1316 = vunpack.c.l.b16 %v122
  %v1317 = vunpack.c.h.b16 %v122
  %v1318 = vunpack.c.l.b16 %v123
  %v1319 = vunpack.c.h.b16 %v123
  %v1320 = vunpack.c.l.b16 %v124
  %v1321 = vunpack.c.h.b16 %v124
  %v1322 = vunpack.c.l.b16 %v125
  %v1323 = vunpack.c.h.b16 %v125
  %v1324 = vunpack.c.l.b16 %v126
  %v1325 = vunpack.c.h.b16 %v126
  %v1326 = vunpack.c.l.b16 %v127
  %v1327 = vunpack.c.h.b16 %v127
  %v1328 = vunpack.c.l.b16 %v128
  %v1329 = vunpack.c.h.b16 %v128
  %v1330 = vunpack.c.l.b16 %v129
  %v1331 = vunpack.c.h.b16 %v129
  %v1332 = vunpack.c.l.b16 %v130
  %v1333 = vunpack.c.h.b16 %v130
  %v1334 = vunpack.c.l.b16 %v131
  %v1335 = vunpack.c.h.b16 %v131
  %v1336 = vunpack.c.l.b16 %v132
  %v1337 = vunpack.c.h.b16 %v132
  %v1338 = vunpack.c.l.b16 %v133
  %v1339 = vunpack.c.h.b16 %v133
  %v1340 = vunpack.c.l.b16 %v134
  %v1341 = vunpack.c.h.b16 %v134
  %v1342 = vunpack.c.l.b16 %v135
  %v1343 = vunpack.c.h.b16 %v135
  %v1344 = vunpack.c.l.b16 %v136
  %v1345 = vunpack.c.h.b16 %v136
  %v1346 = vunpack.c.l.b16 %v137
  %v1347 = vunpack.c.h.b16 %v137
  %v1348 = vunpack.c.l.b16 %v138
  %v1349 = vunpack.c.h.b16 %v138
  %v1350 = vunpack.c.l.b16 %v139
  %v1351 = vunpack.c.h.b16 %v139
  %v1352 = vunpack.c.l.b16 %v140
  %v1353 = vunpack.c.h.b16 %v140
  %v1354 = vunpack.c.l.b16 %v141
  %v1355 = vunpack.c.h.b16 %v141
  %v1356 = vunpack.c.l.b16 %v142
  %v1357 = vunpack.c.h.b16 %v142
  %v1358 = vunpack.c.l.b16 %v143
  %v1359 = vunpack.c.h.b16 %v143
  %v1360 = vunpack.c.l.b16 %v144
  %v1361 = vunpack.c.h.b16 %v144
  %v1362 = vunpack.c.l.b16 %v145
  %v1363 = vunpack.c.h.b16 %v145
  %v1364 = vunpack.c.l.b16 %v146
  %v1365 = vunpack.c.h.b16 %v146
  %v1366 = vunpack.c.l.b16 %v147
  %v1367 = vunpack.c.h.b16 %v147
  %v1368 = vunpack.c.l.b16 %v148
  %v1369 = vunpack.c.h.b16 %v148
  %v1370 = vunpack.c.l.b16 %v149
  %v1371 = vunpack.c.h.b16 %v149
  %v1372 = vunpack.c.l.b16 %v150
  %v1373 = vunpack.c.h.b16 %v150
  %v1374 = vunpack.c.l.b16 %v151
  %v1375 = vunpack.c.h.b16 %v151
  %v1376 = vunpack.c.l.b16 %v152
  %v1377 = vunpack.c.h.b16 %v152
  %v1378 = vunpack.c.l.b16 %v153
  %v1379 = vunpack.c.h.b16 %v153
  %v1380 = vunpack.c.l.b16 %v154
  %v1381 = vunpack.c.h.b16 %v154
  %v1382 = vunpack.c.l.b16 %v155
  %v1383 = vunpack.c.h.b16 %v155
  %v1384 = vunpack.c.l.b16 %v156
  %v1385 = vunpack.c.h.b16 %v156
  %v1386 = vunpack.c.l.b16 %v157
  %v1387 = vunpack.c.h.b16 %v157
  %v1388 = vunpack.c.l.b16 %v158
  %v1389 = vunpack.c.h.b16 %v158
  %v1390 = vunpack.c.l.b16 %v159
  %v1391 = vunpack.c.h.b16 %v159
  %v1392 = vunpack.c.l.b16 %v160
  %v1393 = vunpack.c.h.b16 %v160
  %v1394 = vunpack.c.l.b16 %v161
  %v1395 = vunpack.c.h.b16 %v161
  %v1396 = vunpack.c.l.b16 %v162
  %v1397 = vunpack.c.h.b16 %v162
  %v1398 = vunpack.c.l.b16 %v163
  %v1399 = vunpack.c.h.b16 %v163
  %v1400 = vunpack.c.l.b16 %v164
  %v1401 = vunpack.c.h.b16 %v164
  %v1402 = vunpack.c.l.b16 %v165
  %v1403 = vunpack.c.h.b16 %v165
  %v1404 = vunpack.c.l.b16 %v166
  %v1405 = vunpack.c.h.b16 %v166
  %v1406 = vunpack.c.l.b16 %v167
  %v1407 = vunpack.c.h.b16 %v167
  %v1408 = vunpack.c.l.b16 %v168
  %v1409 = vunpack.c.h.b16 %v168
  %v1410 = vunpack.c.l.b16 %v169
  %v1411 = vunpack.c.h.b16 %v169
  %v1412 = vunpack.c.l.b16 %v170
  %v1413 = vunpack.c.h.b16 %v170
  %v1414 = vunpack.c.l.b16 %v171
  %v1415 = vunpack.c.h.b16 %v171
  %v1416 = vunpack.c.l.b16 %v172
  %v1417 = vunpack.c.h.b16 %v172
  %v1418 = vunpack.c.l.b16 %v173
  %v1419 = vunpack.c.h.b16 %v173
  %v1420 = vunpack.c.l.b16 %v174
  %v1421 = vunpack.c.h.b16 %v174
  %v1422 = vunpack.c.l.b16 %v175
  %v1423 = vunpack.c.h.b16 %v175
  %v1424 = vunpack.c.l.b16 %v176
  %v1425 = vunpack.c.h.b16 %v176
  %v1426 = vunpack.c.l.b16 %v177
  %v1427 = vunpack.c.h.b16 %v177
  %v1428 = vunpack.c.l.b16 %v178
  %v1429 = vunpack.c.h.b16 %v178
  %v1430 = vunpack.c.l.b16 %v179
  %v1431 = vunpack.c.h.b16 %v179
  %v1432 = vunpack.c.l.b16 %v180
  %v1433 = vunpack.c.h.b16 %v180
  %v1434 = vunpack.c.l.b16 %v181
  %v1435 = vunpack.c.h.b16 %v181
  %v1436 = vunpack.c.l.b16 %v182
  %v1437 = vunpack.c.h.b16 %v182
  %v1438 = vunpack.c.l.b16 %v183
  %v1439 = vunpack.c.h.b16 %v183
  %v1440 = vunpack.c.l.b16 %v184
  %v1441 = vunpack.c.h.b16 %v184
  %v1442 = vunpack.c.l.b16 %v185
  %v1443 = vunpack.c.h.b16 %v185
  %v1444 = vunpack.c.l.b16 %v186
  %v1445 = vunpack.c.h.b16 %v186
  %v1446 = vunpack.c.l.b16 %v187
  %v1447 = vunpack.c.h.b16 %v187
  %v1448 = vunpack.c.l.b16 %v188
  %v1449 = vunpack.c.h.b16 %v188
  %v1450 = vunpack.c.l.b16 %v189
  %v1451 = vunpack.c.h.b16 %v189
  %v1452 = vunpack.c.l.b16 %v190
  %v1453 = vunpack.c.h.b16 %v190
  %v1454 = vunpack.c.l.b16 %v191
  %v1455 = vunpack.c.h.b16 %v191
  %v1456 = vunpack.c.l.b16 %v192
  %v1457 = vunpack.c.h.b16 %v192
  %v1458 = vunpack.c.l.b16 %v193
  %v1459 = vunpack.c.h.b16 %v193
  %v1460 = vunpack.c.l.b16 %v194
  %v1461 = vunpack.c.h.b16 %v194
  %v1462 = vunpack.c.l.b16 %v195
  %v1463 = vunpack.c.h.b16 %v195
  %v1464 = vunpack.c.l.b16 %v196
  %v1465 = vunpack.c.h.b16 %v196
  %v1466 = vunpack.c.l.b16 %v197
  %v1467 = vunpack.c.h.b16 %v197
  %v1468 = vunpack.c.l.b16 %v198
  %v1469 = vunpack.c.h.b16 %v198
  %v1470 = vunpack.c.l.b16 %v199
  %v1471 = vunpack.c.h.b16 %v199
  %v1472 = vunpack.c.l.b16 %v200
  %v1473 = vunpack.c.h.b16 %v200
  %v1474 = vunpack.c.l.b16 %v201
  %v1475 = vunpack.c.h.b16 %v201
  %v1476 = vunpack.c.l.b16 %v202
  %v1477 = vunpack.c.h.b16 %v202
  %v1478 = vunpack.c.l.b16 %v203
  %v1479 = vunpack.c.h.b16 %v203
  %v1480 = vunpack.c.l.b16 %v204
  %v1481 = vunpack.c.h.b16 %v204
  %v1482 = vunpack.c.l.b16 %v205
  %v1483 = vunpack.c.h.b16 %v205
  %v1484 = vunpack.c.l.b16 %v206
  %v1485 = vunpack.c.h.b16 %v206
  %v1486 = vunpack.c.l.b16 %v207
  %v1487 = vunpack.c.h.b16 %v207
  %v1488 = vunpack.c.l.b16 %v208
  %v1489 = vunpack.c.h.b16 %v208
  %v1490 = vunpack.c.l.b16 %v209
  %v1491 = vunpack.c.h.b16 %v209
  %v1492 = vunpack.c.l.b16 %v210
  %v1493 = vunpack.c.h.b16 %v210
  %v1494 = vunpack.c.l.b16 %v211
  %v1495 = vunpack.c.h.b16 %v211
  %v1496 = vunpack.c.l.b16 %v212
  %v1497 = vunpack.c.h.b16 %v212
  %v1498 = vunpack.c.l.b16 %v213
  %v1499 = vunpack.c.h.b16 %v213
  %v1500 = vunpack.c.l.b16 %v214
  %v1501 = vunpack.c.h.b16 %v214
  %v1502 = vunpack.c.l.b16 %v215
  %v1503 = vunpack.c.h.b16 %v215
  %v1504 = vunpack.c.l.b16 %v216
  %v1505 = vunpack.c.h.b16 %v216
  %v1506 = vunpack.c.l.b16 %v217
  %v1507 = vunpack.c.h.b16 %v217
  %v1508 = vunpack.c.l.b16 %v218
  %v1509 = vunpack.c.h.b16 %v218
  %v1510 = vunpack.c.l.b16 %v219
  %v1511 = vunpack.c.h.b16 %v219
  %v1512 = vunpack.c.l.b16 %v220
  %v1513 = vunpack.c.h.b16 %v220
  %v1514 = vunpack.c.l.b16 %v221
  %v1515 = vunpack.c.h.b16 %v221
  %v1516 = vunpack.c.l.b16 %v222
  %v1517 = vunpack.c.h.b16 %v222
  %v1518 = vunpack.c.l.b16 %v223
  %v1519 = vunpack.c.h.b16 %v223
  %v1520 = vunpack.c.l.b16 %v224
  %v1521 = vunpack.c.h.b16 %v224
  %v1522 = vunpack.c.l.b16 %v225
  %v1523 = vunpack.c.h.b16 %v225
  %v1524 = vunpack.c.l.b16 %v226
  %v1525 = vunpack.c.h.b16 %v226
  %v1526 = vunpack.c.l.b16 %v227
  %v1527 = vunpack.c.h.b16 %v227
  %v1528 = vunpack.c.l.b16 %v228
  %v1529 = vunpack.c.h.b16 %v228
  %v1530 = vunpack.c.l.b16 %v229
  %v1531 = vunpack.c.h.b16 %v229
  %v1532 = vunpack.c.l.b16 %v230
  %v1533 = vunpack.c.h.b16 %v230
  %v1534 = vunpack.c.l.b16 %v231
  %v1535 = vunpack.c.h.b16 %v231
  %v1536 = vunpack.c.l.b16 %v232
  %v1537 = vunpack.c.h.b16 %v232
  %v1538 = vunpack.c.l.b16 %v233
  %v1539 = vunpack.c.h.b16 %v233
  %v1540 = vunpack.c.l.b16 %v234
  %v1541 = vunpack.c.h.b16 %v234
  %v1542 = vunpack.c.l.b16 %v235
  %v1543 = vunpack.c.h.b16 %v235
  %v1544 = vunpack.c.l.b16 %v236
  %v1545 = vunpack.c.h.b16 %v236
  %v1546 = vunpack.c.l.b16 %v237
  %v1547 = vunpack.c.h.b16 %v237
  %v1548 = vunpack.c.l.b16 %v238
  %v1549 = vunpack.c.h.b16 %v238
  %v1550 = vunpack.c.l.b16 %v239
  %v1551 = vunpack.c.h.b16 %v239
  %v1552 = vunpack.c.l.b16 %v240
  %v1553 = vunpack.c.h.b16 %v240
  %v1554 = vunpack.c.l.b16 %v241
  %v1555 = vunpack.c.h.b16 %v241
  %v1556 = vunpack.c.l.b16 %v242
  %v1557 = vunpack.c.h.b16 %v242
  %v1558 = vunpack.c.l.b16 %v243
  %v1559 = vunpack.c.h.b16 %v243
  %v1560 = vunpack.c.l.b16 %v244
  %v1561 = vunpack.c.h.b16 %v244
  %v1562 = vunpack.c.l.b16 %v245
  %v1563 = vunpack.c.h.b16 %v245
  %v1564 = vunpack.c.l.b16 %v246
  %v1565 = vunpack.c.h.b16 %v246
  %v1566 = vunpack.c.l.b16 %v247
  %v1567 = vunpack.c.h.b16 %v247
  %v1568 = vunpack.c.l.b16 %v248
  %v1569 = vunpack.c.h.b16 %v248
  %v1570 = vunpack.c.l.b16 %v249
  %v1571 = vunpack.c.h.b16 %v249
  %v1572 = vunpack.c.l.b16 %v250
  %v1573 = vunpack.c.h.b16 %v250
  %v1574 = vunpack.c.l.b16 %v251
  %v1575 = vunpack.c.h.b16 %v251
  %v1576 = vunpack.c.l.b16 %v252
  %v1577 = vunpack.c.h.b16 %v252
  %v1578 = vunpack.c.l.b16 %v253
  %v1579 = vunpack.c.h.b16 %v253
  %v1580 = vunpack.c.l.b16 %v254
  %v1581 = vunpack.c.h.b16 %v254
  %v1582 = vunpack.c.l.b16 %v255
  %v1583 = vunpack.c.h.b16 %v255
  %v1584 = vunpack.c.l.b16 %v256
  %v1585 = vunpack.c.h.b16 %v256
  %v1586 = vunpack.c.l.b16 %v257
  %v1587 = vunpack.c.h.b16 %v257
  %v1588 = vunpack.c.l.b16 %v258
  %v1589 = vunpack.c.h.b16 %v258
  %v1590 = vunpack.c.l.b16 %v259
  %v1591 = vunpack.c.h.b16 %v259
  %v1592 = vunpack.c.l.b16 %v260
  %v1593 = vunpack.c.h.b16 %v260
  %v1594 = vunpack.c.l.b16 %v261
  %v1595 = vunpack.c.h.b16 %v261
  %v1596 = vunpack.c.l.b16 %v262
  %v1597 = vunpack.c.h.b16 %v262
  %v1598 = vunpack.c.l.b16 %v263
  %v1599 = vunpack.c.h.b16 %v263
  %v1600 = vunpack.c.l.b16 %v264
  %v1601 = vunpack.c.h.b16 %v264
  %v1602 = vunpack.c.l.b16 %v265
  %v1603 = vunpack.c.h.b16 %v265
  %v1604 = vunpack.c.l.b16 %v266
  %v1605 = vunpack.c.h.b16 %v266
  %v1606 = vunpack.c.l.b16 %v267
  %v1607 = vunpack.c.h.b16 %v267
  %v1608 = vunpack.c.l.b16 %v268
  %v1609 = vunpack.c.h.b16 %v268
  %v1610 = vunpack.c.l.b16 %v269
  %v1611 = vunpack.c.h.b16 %v269
  %v1612 = vunpack.c.l.b16 %v270
  %v1613 = vunpack.c.h.b16 %v270
  %v1614 = vunpack.c.l.b16 %v271
  %v1615 = vunpack.c.h.b16 %v271
  %v1616 = vunpack.c.l.b16 %v272
  %v1617 = vunpack.c.h.b16 %v272
  %v1618 = vunpack.c.l.b16 %v273
  %v1619 = vunpack.c.h.b16 %v273
  %v1620 = vunpack.c.l.b16 %v274
  %v1621 = vunpack.c.h.b16 %v274
  %v1622 = vunpack.c.l.b16 %v275
  %v1623 = vunpack.c.h.b16 %v275
  %v1624 = vunpack.c.l.b16 %v276
  %v1625 = vunpack.c.h.b16 %v276
  %v1626 = vunpack.c.l.b16 %v277
  %v1627 = vunpack.c.h.b16 %v277
  %v1628 = vunpack.c.l.b16 %v278
  %v1629 = vunpack.c.h.b16 %v278
  %v1630 = vunpack.c.l.b16 %v279
  %v1631 = vunpack.c.h.b16 %v279
  %v1632 = vunpack.c.l.b16 %v280
  %v1633 = vunpack.c.h.b16 %v280
  %v1634 = vunpack.c.l.b16 %v281
  %v1635 = vunpack.c.h.b16 %v281
  %v1636 = vunpack.c.l.b16 %v282
  %v1637 = vunpack.c.h.b16 %v282
  %v1638 = vunpack.c.l.b16 %v283
  %v1639 = vunpack.c.h.b16 %v283
  %v1640 = vunpack.c.l.b16 %v284
  %v1641 = vunpack.c.h.b16 %v284
  %v1642 = vunpack.c.l.b16 %v285
  %v1643 = vunpack.c.h.b16 %v285
  %v1644 = vunpack.c.l.b16 %v286
  %v1645 = vunpack.c.h.b16 %v286
  %v1646 = vunpack.c.l.b16 %v287
  %v1647 = vunpack.c.h.b16 %v287
  %v1648 = vunpack.c.l.b16 %v288
  %v1649 = vunpack.c.h.b16 %v288
  %v1650 = vunpack.c.l.b16 %v289
  %v1651 = vunpack.c.h.b16 %v289
  %v1652 = vunpack.c.l.b16 %v290
  %v1653 = vunpack.c.h.b16 %v290
  %v1654 = vunpack.c.l.b16 %v291
  %v1655 = vunpack.c.h.b16 %v291
  %v1656 = vunpack.c.l.b16 %v292
  %v1657 = vunpack.c.h.b16 %v292
  %v1658 = vunpack.c.l.b16 %v293
  %v1659 = vunpack.c.h.b16 %v293
  %v1660 = vunpack.c.l.b16 %v294
  %v1661 = vunpack.c.h.b16 %v294
  %v1662 = vunpack.c.l.b16 %v295
  %v1663 = vunpack.c.h.b16 %v295
  %v1664 = vunpack.c.l.b16 %v296
  %v1665 = vunpack.c.h.b16 %v296
  %v1666 = vunpack.c.l.b16 %v297
  %v1667 = vunpack.c.h.b16 %v297
  %v1668 = vunpack.c.l.b16 %v298
  %v1669 = vunpack.c.h.b16 %v298
  %v1670 = vunpack.c.l.b16 %v299
  %v1671 = vunpack.c.h.b16 %v299
  %v1672 = vunpack.c.l.b16 %v300
  %v1673 = vunpack.c.h.b16 %v300
  %v1674 = vunpack.c.l.b16 %v301
  %v1675 = vunpack.c.h.b16 %v301
  %v1676 = vunpack.c.l.b16 %v302
  %v1677 = vunpack.c.h.b16 %v302
  %v1678 = vunpack.c.l.b16 %v303
  %v1679 = vunpack.c.h.b16 %v303
  %v1680 = vunpack.c.l.b16 %v304
  %v1681 = vunpack.c.h.b16 %v304
  %v1682 = vunpack.c.l.b16 %v305
  %v1683 = vunpack.c.h.b16 %v305
  %v1684 = vunpack.c.l.b16 %v306
  %v1685 = vunpack.c.h.b16 %v306
  %v1686 = vunpack.c.l.b16 %v307
  %v1687 = vunpack.c.h.b16 %v307
  %v1688 = vunpack.c.l.b16 %v308
  %v1689 = vunpack.c.h.b16 %v308
  %v1690 = vunpack.c.l.b16 %v309
  %v1691 = vunpack.c.h.b16 %v309
  %v1692 = vunpack.c.l.b16 %v310
  %v1693 = vunpack.c.h.b16 %v310
  %v1694 = vunpack.c.l.b16 %v311
  %v1695 = vunpack.c.h.b16 %v311
  %v1696 = vunpack.c.l.b16 %v312
  %v1697 = vunpack.c.h.b16 %v312
  %v1698 = vunpack.c.l.b16 %v313
  %v1699 = vunpack.c.h.b16 %v313
  %v1700 = vunpack.c.l.b16 %v314
  %v1701 = vunpack.c.h.b16 %v314
  %v1702 = vunpack.c.l.b16 %v315
  %v1703 = vunpack.c.h.b16 %v315
  %v1704 = vunpack.c.l.b16 %v316
  %v1705 = vunpack.c.h.b16 %v316
  %v1706 = vunpack.c.l.b16 %v317
  %v1707 = vunpack.c.h.b16 %v317
  %v1708 = vunpack.c.l.b16 %v318
  %v1709 = vunpack.c.h.b16 %v318
  %v1710 = vunpack.c.l.b16 %v319
  %v1711 = vunpack.c.h.b16 %v319
  %v1712 = vunpack.c.l.b16 %v320
  %v1713 = vunpack.c.h.b16 %v320
  %v1714 = vunpack.c.l.b16 %v321
  %v1715 = vunpack.c.h.b16 %v321
  %v1716 = vunpack.c.l.b16 %v322
  %v1717 = vunpack.c.h.b16 %v322
  %v1718 = vunpack.c.l.b16 %v323
  %v1719 = vunpack.c.h.b16 %v323
  %v1720 = vunpack.c.l.b16 %v324
  %v1721 = vunpack.c.h.b16 %v324
  %v1722 = vunpack.c.l.b16 %v325
  %v1723 = vunpack.c.h.b16 %v325
  %v1724 = vunpack.c.l.b16 %v326
  %v1725 = vunpack.c.h.b16 %v326
  %v1726 = vunpack.c.l.b16 %v327
  %v1727 = vunpack.c.h.b16 %v327
  %v1728 = vunpack.c.l.b16 %v328
  %v1729 = vunpack.c.h.b16 %v328
  %v1730 = vunpack.c.l.b16 %v329
  %v1731 = vunpack.c.h.b16 %v329
  %v1732 = vunpack.c.l.b16 %v330
  %v1733 = vunpack.c.h.b16 %v330
  %v1734 = vunpack.c.l.b16 %v331
  %v1735 = vunpack.c.h.b16 %v331
  %v1736 = vunpack.c.l.b16 %v332
  %v1737 = vunpack.c.h.b16 %v332
  %v1738 = vunpack.c.l.b16 %v333
  %v1739 = vunpack.c.h.b16 %v333
  %v1740 = vunpack.c.l.b16 %v334
  %v1741 = vunpack.c.h.b16 %v334
  %v1742 = vunpack.c.l.b16 %v335
  %v1743 = vunpack.c.h.b16 %v335
  %v1744 = vunpack.c.l.b16 %v336
  %v1745 = vunpack.c.h.b16 %v336
  %v1746 = vunpack.c.l.b16 %v337
  %v1747 = vunpack.c.h.b16 %v337
  %v1748 = vunpack.c.l.b16 %v338
  %v1749 = vunpack.c.h.b16 %v338
  %v1750 = vunpack.c.l.b16 %v339
  %v1751 = vunpack.c.h.b16 %v339
  %v1752 = vunpack.c.l.b16 %v340
  %v1753 = vunpack.c.h.b16 %v340
  %v1754 = vunpack.c.l.b16 %v341
  %v1755 = vunpack.c.h.b16 %v341
  %v1756 = vunpack.c.l.b16 %v342
  %v1757 = vunpack.c.h.b16 %v342
  %v1758 = vunpack.c.l.b16 %v343
  %v1759 = vunpack.c.h.b16 %v343
  %v1760 = vunpack.c.l.b16 %v344
  %v1761 = vunpack.c.h.b16 %v344
  %v1762 = vunpack.c.l.b16 %v345
  %v1763 = vunpack.c.h.b16 %v345
  %v1764 = vunpack.c.l.b16 %v346
  %v1765 = vunpack.c.h.b16 %v346
  %v1766 = vunpack.c.l.b16 %v347
  %v1767 = vunpack.c.h.b16 %v347
  %v1768 = vunpack.c.l.b16 %v348
  %v1769 = vunpack.c.h.b16 %v348
  %v1770 = vunpack.c.l.b16 %v349
  %v1771 = vunpack.c.h.b16 %v349
  %v1772 = vunpack.c.l.b16 %v350
  %v1773 = vunpack.c.h.b16 %v350
  %v1774 = vunpack.c.l.b16 %v351
  %v1775 = vunpack.c.h.b16 %v351
  %v1776 = vunpack.c.l.b16 %v352
  %v1777 = vunpack.c.h.b16 %v352
  %v1778 = vunpack.c.l.b16 %v353
  %v1779 = vunpack.c.h.b16 %v353
  %v1780 = vunpack.c.l.b16 %v354
  %v1781 = vunpack.c.h.b16 %v354
  %v1782 = vunpack.c.l.b16 %v355
  %v1783 = vunpack.c.h.b16 %v355
  %v1784 = vunpack.c.l.b16 %v356
  %v1785 = vunpack.c.h.b16 %v356
  %v1786 = vunpack.c.l.b16 %v357
  %v1787 = vunpack.c.h.b16 %v357
  %v1788 = vunpack.c.l.b16 %v358
  %v1789 = vunpack.c.h.b16 %v358
  %v1790 = vunpack.c.l.b16 %v359
  %v1791 = vunpack.c.h.b16 %v359
  %v1792 = vunpack.c.l.b16 %v360
  %v1793 = vunpack.c.h.b16 %v360
  %v1794 = vunpack.c.l.b16 %v361
  %v1795 = vunpack.c.h.b16 %v361
  %v1796 = vunpack.c.l.b16 %v362
  %v1797 = vunpack.c.h.b16 %v362
  %v1798 = vunpack.c.l.b16 %v363
  %v1799 = vunpack.c.h.b16 %v363
  %v1800 = vunpack.c.l.b16 %v364
  %v1801 = vunpack.c.h.b16 %v364
  %v1802 = vunpack.c.l.b16 %v365
  %v1803 = vunpack.c.h.b16 %v365
  %v1804 = vunpack.c.l.b16 %v366
  %v1805 = vunpack.c.h.b16 %v366
  %v1806 = vunpack.c.l.b16 %v367
  %v1807 = vunpack.c.h.b16 %v367
  %v1808 = vunpack.c.l.b16 %v368
  %v1809 = vunpack.c.h.b16 %v368
  %v1810 = vunpack.c.l.b16 %v369
  %v1811 = vunpack.c.h.b16 %v369
  %v1812 = vunpack.c.l.b16 %v370
  %v1813 = vunpack.c.h.b16 %v370
  %v1814 = vunpack.c.l.b16 %v371
  %v1815 = vunpack.c.h.b16 %v371
  %v1816 = vunpack.c.l.b16 %v372
  %v1817 = vunpack.c.h.b16 %v372
  %v1818 = vunpack.c.l.b16 %v373
  %v1819 = vunpack.c.h.b16 %v373
  %v1820 = vunpack.c.l.b16 %v374
  %v1821 = vunpack.c.h.b16 %v374
  %v1822 = vunpack.c.l.b16 %v375
  %v1823 = vunpack.c.h.b16 %v375
  %v1824 = vunpack.c.l.b16 %v376
  %v1825 = vunpack.c.h.b16 %v376
  %v1826 = vunpack.c.l.b16 %v377
  %v1827 = vunpack.c.h.b16 %v377
  %v1828 = vunpack.c.l.b16 %v378
  %v1829 = vunpack.c.h.b16 %v378
  %v1830 = vunpack.c.l.b16 %v379
  %v1831 = vunpack.c.h.b16 %v379
  %v1832 = vunpack.c.l.b16 %v380
  %v1833 = vunpack.c.h.b16 %v380
  %v1834 = vunpack.c.l.b16 %v381
  %v1835 = vunpack.c.h.b16 %v381
  %v1836 = vunpack.c.l.b16 %v382
  %v1837 = vunpack.c.h.b16 %v382
  %v1838 = vunpack.c.l.b16 %v383
  %v1839 = vunpack.c.h.b16 %v383
  %v1840 = vunpack.c.l.b16 %v384
  %v1841 = vunpack.c.h.b16 %v384
  %v1842 = vunpack.c.l.b16 %v385
  %v1843 = vunpack.c.h.b16 %v385
  %v1844 = vunpack.c.l.b16 %v386
  %v1845 = vunpack.c.h.b16 %v386
  %v1846 = vunpack.c.l.b16 %v387
  %v1847 = vunpack.c.h.b16 %v387
  %v1848 = vunpack.c.l.b16 %v388
  %v1849 = vunpack.c.h.b16 %v388
  %v1850 = vunpack.c.l.b16 %v389
  %v1851 = vunpack.c.h.b16 %v389
  %v1852 = vunpack.c.l.b16 %v390
  %v1853 = vunpack.c.h.b16 %v390
  %v1854 = vunpack.c.l.b16 %v391
  %v1855 = vunpack.c.h.b16 %v391
  %v1856 = vunpack.c.l.b16 %v392
  %v1857 = vunpack.c.h.b16 %v392
  %v1858 = vunpack.c.l.b16 %v393
  %v1859 = vunpack.c.h.b16 %v393
  %v1860 = vunpack.c.l.b16 %v394
  %v1861 = vunpack.c.h.b16 %v394
  %v1862 = vunpack.c.l.b16 %v395
  %v1863 = vunpack.c.h.b16 %v395
  %v1864 = vunpack.c.l.b16 %v396
  %v1865 = vunpack.c.h.b16 %v396
  %v1866 = vunpack.c.l.b16 %v397
  %v1867 = vunpack.c.h.b16 %v397
  %v1868 = vunpack.c.l.b16 %v398
  %v1869 = vunpack.c.h.b16 %v398
  %v1870 = vunpack.c.l.b16 %v399
  %v1871 = vunpack.c.h.b16 %v399
  %v1872 = vunpack.c.l.b16 %v400
  %v1873 = vunpack.c.h.b16 %v400
  %v1874 = vunpack.c.l.b16 %v401
  %v1875 = vunpack.c.h.b16 %v401
  %v1876 = vunpack.c.l.b16 %v402
  %v1877 = vunpack.c.h.b16 %v402
  %v1878 = vunpack.c.l.b16 %v403
  %v1879 = vunpack.c.h.b16 %v403
  %v1880 = vunpack.c.l.b16 %v404
  %v1881 = vunpack.c.h.b16 %v404
  %v1882 = vunpack.c.l.b16 %v405
  %v1883 = vunpack.c.h.b16 %v405
  %v1884 = vunpack.c.l.b16 %v406
  %v1885 = vunpack.c.h.b16 %v406
  %v1886 = vunpack.c.l.b16 %v407
  %v1887 = vunpack.c.h.b16 %v407
  %v1888 = vunpack.c.l.b16 %v408
  %v1889 = vunpack.c.h.b16 %v408
  %v1890 = vunpack.c.l.b16 %v409
  %v1891 = vunpack.c.h.b16 %v409
  %v1892 = vunpack.c.l.b16 %v410
  %v1893 = vunpack.c.h.b16 %v410
  %v1894 = vunpack.c.l.b16 %v411
  %v1895 = vunpack.c.h.b16 %v411
  %v1896 = vunpack.c.l.b16 %v412
  %v1897 = vunpack.c.h.b16 %v412
  %v1898 = vunpack.c.l.b16 %v413
  %v1899 = vunpack.c.h.b16 %v413
  %v1900 = vunpack.c.l.b16 %v414
  %v1901 = vunpack.c.h.b16 %v414
  %v1902 = vunpack.c.l.b16 %v415
  %v1903 = vunpack.c.h.b16 %v415
  %v1904 = vunpack.c.l.b16 %v416
  %v1905 = vunpack.c.h.b16 %v416
  %v1906 = vunpack.c.l.b16 %v417
  %v1907 = vunpack.c.h.b16 %v417
  %v1908 = vunpack.c.l.b16 %v418
  %v1909 = vunpack.c.h.b16 %v418
  %v1910 = vunpack.c.l.b16 %v419
  %v1911 = vunpack.c.h.b16 %v419
  %v1912 = vunpack.c.l.b16 %v420
  %v1913 = vunpack.c.h.b16 %v420
  %v1914 = vunpack.c.l.b16 %v421
  %v1915 = vunpack.c.h.b16 %v421
  %v1916 = vunpack.c.l.b16 %v422
  %v1917 = vunpack.c.h.b16 %v422
  %v1918 = vunpack.c.l.b16 %v423
  %v1919 = vunpack.c.h.b16 %v423
  %v1920 = vunpack.c.l.b16 %v424
  %v1921 = vunpack.c.h.b16 %v424
  %v1922 = vunpack.c.l.b16 %v425
  %v1923 = vunpack.c.h.b16 %v425
  %v1924 = vunpack.c.l.b16 %v426
  %v1925 = vunpack.c.h.b16 %v426
  %v1926 = vunpack.c.l.b16 %v427
  %v1927 = vunpack.c.h.b16 %v427
  %v1928 = vunpack.c.l.b16 %v428
  %v1929 = vunpack.c.h.b16 %v428
  %v1930 = vunpack.c.l.b16 %v429
  %v1931 = vunpack.c.h.b16 %v429
  %v1932 = vunpack.c.l.b16 %v430
  %v1933 = vunpack.c.h.b16 %v430
  %v1934 = vunpack.c.l.b16 %v431
  %v1935 = vunpack.c.h.b16 %v431
  %v1936 = vunpack.c.l.b16 %v432
  %v1937 = vunpack.c.h.b16 %v432
  %v1938 = vunpack.c.l.b16 %v433
  %v1939 = vunpack.c.h.b16 %v433
  %v1940 = vunpack.c.l.b16 %v434
  %v1941 = vunpack.c.h.b16 %v434
  %v1942 = vunpack.c.l.b16 %v435
  %v1943 = vunpack.c.h.b16 %v435
  %v1944 = vunpack.c.l.b16 %v436
  %v1945 = vunpack.c.h.b16 %v436
  %v1946 = vunpack.c.l.b16 %v437
  %v1947 = vunpack.c.h.b16 %v437
  %v1948 = vunpack.c.l.b16 %v438
  %v1949 = vunpack.c.h.b16 %v438
  %v1950 = vunpack.c.l.b16 %v439
  %v1951 = vunpack.c.h.b16 %v439
  %v1952 = vunpack.c.l.b16 %v440
  %v1953 = vunpack.c.h.b16 %v440
  %v1954 = vunpack.c.l.b16 %v441
  %v1955 = vunpack.c.h.b16 %v441
  %v1956 = vunpack.c.l.b16 %v442
  %v1957 = vunpack.c.h.b16 %v442
  %v1958 = vunpack.c.l.b16 %v443
  %v1959 = vunpack.c.h.b16 %v443
  %v1960 = vunpack.c.l.b16 %v444
  %v1961 = vunpack.c.h.b16 %v444
  %v1962 = vunpack.c.l.b16 %v445
  %v1963 = vunpack.c.h.b16 %v445
  %v1964 = vunpack.c.l.b16 %v446
  %v1965 = vunpack.c.h.b16 %v446
  %v1966 = vunpack.c.l.b16 %v447
  %v1967 = vunpack.c.h.b16 %v447
  %v1968 = vunpack.c.l.b16 %v448
  %v1969 = vunpack.c.h.b16 %v448
  %v1970 = vunpack.c.l.b16 %v449
  %v1971 = vunpack.c.h.b16 %v449
  %v1972 = vunpack.c.l.b16 %v450
  %v1973 = vunpack.c.h.b16 %v450
  %v1974 = vunpack.c.l.b16 %v451
  %v1975 = vunpack.c.h.b16 %v451
  %v1976 = vunpack.c.l.b16 %v452
  %v1977 = vunpack.c.h.b16 %v452
  %v1978 = vunpack.c.l.b16 %v453
  %v1979 = vunpack.c.h.b16 %v453
  %v1980 = vunpack.c.l.b16 %v454
  %v1981 = vunpack.c.h.b16 %v454
  %v1982 = vunpack.c.l.b16 %v455
  %v1983 = vunpack.c.h.b16 %v455
  %v1984 = vunpack.c.l.b16 %v456
  %v1985 = vunpack.c.h.b16 %v456
  %v1986 = vunpack.c.l.b16 %v457
  %v1987 = vunpack.c.h.b16 %v457
  %v1988 = vunpack.c.l.b16 %v458
  %v1989 = vunpack.c.h.b16 %v458
  %v1990 = vunpack.c.l.b16 %v459
  %v1991 = vunpack.c.h.b16 %v459
  %v1992 = vunpack.c.l.b16 %v460
  %v1993 = vunpack.c.h.b16 %v460
  %v1994 = vunpack.c.l.b16 %v461
  %v1995 = vunpack.c.h.b16 %v461
  %v1996 = vunpack.c.l.b16 %v462
  %v1997 = vunpack.c.h.b16 %v462
  %v1998 = vunpack.c.l.b16 %v463
  %v1999 = vunpack.c.h.b16 %v463
  %v2000 = vunpack.c.l.b16 %v464
  %v2001 = vunpack.c.h.b16 %v464
  %v2002 = vunpack.c.l.b16 %v465
  %v2003 = vunpack.c.h.b16 %v465
  %v2004 = vunpack.c.l.b16 %v466
  %v2005 = vunpack.c.h.b16 %v466
  %v2006 = vunpack.c.l.b16 %v467
  %v2007 = vunpack.c.h.b16 %v467
  %v2008 = vunpack.c.l.b16 %v468
  %v2009 = vunpack.c.h.b16 %v468
  %v2010 = vunpack.c.l.b16 %v469
  %v2011 = vunpack.c.h.b16 %v469
  %v2012 = vunpack.c.l.b16 %v470
  %v2013 = vunpack.c.h.b16 %v470
  %v2014 = vunpack.c.l.b16 %v471
  %v2015 = vunpack.c.h.b16 %v471
  %v2016 = vunpack.c.l.b16 %v472
  %v2017 = vunpack.c.h.b16 %v472
  %v2018 = vunpack.c.l.b16 %v473
  %v2019 = vunpack.c.h.b16 %v473
  %v2020 = vunpack.c.l.b16 %v474
  %v2021 = vunpack.c.h.b16 %v474
  %v2022 = vunpack.c.l.b16 %v475
  %v2023 = vunpack.c.h.b16 %v475
  %v2024 = vunpack.c.l.b16 %v476
  %v2025 = vunpack.c.h.b16 %v476
  %v2026 = vunpack.c.l.b16 %v477
  %v2027 = vunpack.c.h.b16 %v477
  %v2028 = vunpack.c.l.b16 %v478
  %v2029 = vunpack.c.h.b16 %v478
  %v2030 = vunpack.c.l.b16 %v479
  %v2031 = vunpack.c.h.b16 %v479
  %v2032 = vunpack.c.l.b16 %v480
  %v2033 = vunpack.c.h.b16 %v480
  %v2034 = vunpack.c.l.b16 %v481
  %v2035 = vunpack.c.h.b16 %v481
  %v2036 = vunpack.c.l.b16 %v482
  %v2037 = vunpack.c.h.b16 %v482
  %v2038 = vunpack.c.l.b16 %v483
  %v2039 = vunpack.c.h.b16 %v483
  %v2040 = vunpack.c.l.b16 %v484
  %v2041 = vunpack.c.h.b16 %v484
  %v2042 = vunpack.c.l.b16 %v485
  %v2043 = vunpack.c.h.b16 %v485
  %v2044 = vunpack.c.l.b16 %v486
  %v2045 = vunpack.c.h.b16 %v486
  %v2046 = vunpack.c.l.b16 %v487
  %v2047 = vunpack.c.h.b16 %v487
  %v2048 = vunpack.c.l.b16 %v488
  %v2049 = vunpack.c.h.b16 %v488
  %v2050 = vunpack.c.l.b16 %v489
  %v2051 = vunpack.c.h.b16 %v489
  %v2052 = vunpack.c.l.b16 %v490
  %v2053 = vunpack.c.h.b16 %v490
  %v2054 = vunpack.c.l.b16 %v491
  %v2055 = vunpack.c.h.b16 %v491
  %v2056 = vunpack.c.l.b16 %v492
  %v2057 = vunpack.c.h.b16 %v492
  %v2058 = vunpack.c.l.b16 %v493
  %v2059 = vunpack.c.h.b16 %v493
  %v2060 = vunpack.c.l.b16 %v494
  %v2061 = vunpack.c.h.b16 %v494
  %v2062 = vunpack.c.l.b16 %v495
  %v2063 = vunpack.c.h.b16 %v495
  %v2064 = vunpack.c.l.b16 %v496
  %v2065 = vunpack.c.h.b16 %v496
  %v2066 = vunpack.c.l.b16 %v497
  %v2067 = vunpack.c.h.b16 %v497
  %v2068 = vunpack.c.l.b16 %v498
  %v2069 = vunpack.c.h.b16 %v498
  %v2070 = vunpack.c.l.b16 %v499
  %v2071 = vunpack.c.h.b16 %v499
  %v2072 = vunpack.c.l.b16 %v500
  %v2073 = vunpack.c.h.b16 %v500
  %v2074 = vunpack.c.l.b16 %v501
  %v2075 = vunpack.c.h.b16 %v501
  %v2076 = vunpack.c.l.b16 %v502
  %v2077 = vunpack.c.h.b16 %v502
  %v2078 = vunpack.c.l.b16 %v503
  %v2079 = vunpack.c.h.b16 %v503
  %v2080 = vunpack.c.l.b16 %v504
  %v2081 = vunpack.c.h.b16 %v504
  %v2082 = vunpack.c.l.b16 %v505
  %v2083 = vunpack.c.h.b16 %v505
  %v2084 = vunpack.c.l.b16 %v506
  %v2085 = vunpack.c.h.b16 %v506
  %v2086 = vunpack.c.l.b16 %v507
  %v2087 = vunpack.c.h.b16 %v507
  %v2088 = vunpack.c.l.b16 %v508
  %v2089 = vunpack.c.h.b16 %v508
  %v2090 = vunpack.c.l.b16 %v509
  %v2091 = vunpack.c.h.b16 %v509
  %v2092 = vunpack.c.l.b16 %v510
  %v2093 = vunpack.c.h.b16 %v510
  %v2094 = vunpack.c.l.b16 %v511
  %v2095 = vunpack.c.h.b16 %v511
  %v2096 = vunpack.c.l.b16 %v512
  %v2097 = vunpack.c.h.b16 %v512
  %v2098 = vunpack.c.l.b16 %v513
  %v2099 = vunpack.c.h.b16 %v513
  %v2100 = vunpack.c.l.b16 %v514
  %v2101 = vunpack.c.h.b16 %v514
  %v2102 = vunpack.c.l.b16 %v515
  %v2103 = vunpack.c.h.b16 %v515
  %v2104 = vunpack.c.l.b16 %v516
  %v2105 = vunpack.c.h.b16 %v516
  %v2106 = vunpack.c.l.b16 %v517
  %v2107 = vunpack.c.h.b16 %v517
  %v2108 = vunpack.c.l.b16 %v518
  %v2109 = vunpack.c.h.b16 %v518
  %v2110 = vunpack.c.l.b16 %v519
  %v2111 = vunpack.c.h.b16 %v519
  %v2112 = vunpack.c.l.b16 %v520
  %v2113 = vunpack.c.h.b16 %v520
  %v2114 = vunpack.c.l.b16 %v521
  %v2115 = vunpack.c.h.b16 %v521
  %v2116 = vunpack.c.l.b16 %v522
  %v2117 = vunpack.c.h.b16 %v522
  %v2118 = vunpack.c.l.b16 %v523
  %v2119 = vunpack.c.h.b16 %v523
  %v2120 = vunpack.c.l.b16 %v524
  %v2121 = vunpack.c.h.b16 %v524
  %v2122 = vunpack.c.l.b16 %v525
  %v2123 = vunpack.c.h.b16 %v525
  %v2124 = vunpack.c.l.b16 %v526
  %v2125 = vunpack.c.h.b16 %v526
  %v2126 = vunpack.c.l.b16 %v527
  %v2127 = vunpack.c.h.b16 %v527
  %v2128 = vunpack.c.l.b16 %v528
  %v2129 = vunpack.c.h.b16 %v528
  %v2130 = vunpack.c.l.b16 %v529
  %v2131 = vunpack.c.h.b16 %v529
  %v2132 = vunpack.c.l.b16 %v530
  %v2133 = vunpack.c.h.b16 %v530
  %v2134 = vunpack.c.l.b16 %v531
  %v2135 = vunpack.c.h.b16 %v531
  %v2136 = vunpack.c.l.b16 %v532
  %v2137 = vunpack.c.h.b16 %v532
  %v2138 = vunpack.c.l.b16 %v533
  %v2139 = vunpack.c.h.b16 %v533
  %v2140 = vunpack.c.l.b16 %v534
  %v2141 = vunpack.c.h.b16 %v534
  %v2142 = vunpack.c.l.b16 %v535
  %v2143 = vunpack.c.h.b16 %v535
  %v2144 = vunpack.c.l.b16 %v536
  %v2145 = vunpack.c.h.b16 %v536
  %v2146 = vunpack.c.l.b16 %v537
  %v2147 = vunpack.c.h.b16 %v537
  %v2148 = vunpack.c.l.b16 %v538
  %v2149 = vunpack.c.h.b16 %v538
  %v2150 = vunpack.c.l.b16 %v539
  %v2151 = vunpack.c.h.b16 %v539
  %v2152 = vunpack.c.l.b16 %v540
  %v2153 = vunpack.c.h.b16 %v540
  %v2154 = vunpack.c.l.b16 %v541
  %v2155 = vunpack.c.h.b16 %v541
  %v2156 = vpack.c.b16 %v1134, %v1132
  %v2157 = vpack.c.b16 %v1135, %v1133
  %v2158 = vpack.c.b16 %v1138, %v1136
  %v2159 = vpack.c.b16 %v1139, %v1137
  %v2160 = vpack.c.b16 %v1142, %v1140
  %v2161 = vpack.c.b16 %v1143, %v1141
  %v2162 = vpack.c.b16 %v1146, %v1144
  %v2163 = vpack.c.b16 %v1147, %v1145
  %v2164 = vpack.c.b16 %v1150, %v1148
  %v2165 = vpack.c.b16 %v1151, %v1149
  %v2166 = vpack.c.b16 %v1154, %v1152
  %v2167 = vpack.c.b16 %v1155, %v1153
  %v2168 = vpack.c.b16 %v1158, %v1156
  %v2169 = vpack.c.b16 %v1159, %v1157
  %v2170 = vpack.c.b16 %v1162, %v1160
  %v2171 = vpack.c.b16 %v1163, %v1161
  %v2172 = vpack.c.b16 %v1166, %v1164
  %v2173 = vpack.c.b16 %v1167, %v1165
  %v2174 = vpack.c.b16 %v1170, %v1168
  %v2175 = vpack.c.b16 %v1171, %v1169
  %v2176 = vpack.c.b16 %v1174, %v1172
  %v2177 = vpack.c.b16 %v1175, %v1173
  %v2178 = vpack.c.b16 %v1178, %v1176
  %v2179 = vpack.c.b16 %v1179, %v1177
  %v2180 = vpack.c.b16 %v1182, %v1180
  %v2181 = vpack.c.b16 %v1183, %v1181
  %v2182 = vpack.c.b16 %v1186, %v1184
  %v2183 = vpack.c.b16 %v1187, %v1185
  %v2184 = vpack.c.b16 %v1190, %v1188
  %v2185 = vpack.c.b16 %v1191, %v1189
  %v2186 = vpack.c.b16 %v1194, %v1192
  %v2187 = vpack.c.b16 %v1195, %v1193
  %v2188 = vpack.c.b16 %v1198, %v1196
  %v2189 = vpack.c.b16 %v1199, %v1197
  %v2190 = vpack.c.b16 %v1202, %v1200
  %v2191 = vpack.c.b16 %v1203, %v1201
  %v2192 = vpack.c.b16 %v1206, %v1204
  %v2193 = vpack.c.b16 %v1207, %v1205
  %v2194 = vpack.c.b16 %v1210, %v1208
  %v2195 = vpack.c.b16 %v1211, %v1209
  %v2196 = vpack.c.b16 %v1214, %v1212
  %v2197 = vpack.c.b16 %v1215, %v1213
  %v2198 = vpack.c.b16 %v1218, %v1216
  %v2199 = vpack.c.b16 %v1219, %v1217
  %v2200 = vpack.c.b16 %v1222, %v1220
  %v2201 = vpack.c.b16 %v1223, %v1221
  %v2202 = vpack.c.b16 %v1226, %v1224
  %v2203 = vpack.c.b16 %v1227, %v1225
  %v2204 = vpack.c.b16 %v1230, %v1228
  %v2205 = vpack.c.b16 %v1231, %v1229
  %v2206 = vpack.c.b16 %v1234, %v1232
  %v2207 = vpack.c.b16 %v1235, %v1233
  %v2208 = vpack.c.b16 %v1238, %v1236
  %v2209 = vpack.c.b16 %v1239, %v1237
  %v2210 = vpack.c.b16 %v1242, %v1240
  %v2211 = vpack.c.b16 %v1243, %v1241
  %v2212 = vpack.c.b16 %v1246, %v1244
  %v2213 = vpack.c.b16 %v1247, %v1245
  %v2214 = vpack.c.b16 %v1250, %v1248
  %v2215 = vpack.c.b16 %v1251, %v1249
  %v2216 = vpack.c.b16 %v1254, %v1252
  %v2217 = vpack.c.b16 %v1255, %v1253
  %v2218 = vpack.c.b16 %v1258, %v1256
  %v2219 = vpack.c.b16 %v1259, %v1257
  %v2220 = vpack.c.b16 %v1262, %v1260
  %v2221 = vpack.c.b16 %v1263, %v1261
  %v2222 = vpack.c.b16 %v1266, %v1264
  %v2223 = vpack.c.b16 %v1267, %v1265
  %v2224 = vpack.c.b16 %v1270, %v1268
  %v2225 = vpack.c.b16 %v1271, %v1269
  %v2226 = vpack.c.b16 %v1274, %v1272
  %v2227 = vpack.c.b16 %v1275, %v1273
  %v2228 = vpack.c.b16 %v1278, %v1276
  %v2229 = vpack.c.b16 %v1279, %v1277
  %v2230 = vpack.c.b16 %v1282, %v1280
  %v2231 = vpack.c.b16 %v1283, %v1281
  %v2232 = vpack.c.b16 %v1286, %v1284
  %v2233 = vpack.c.b16 %v1287, %v1285
  %v2234 = vpack.c.b16 %v1290, %v1288
  %v2235 = vpack.c.b16 %v1291, %v1289
  %v2236 = vpack.c.b16 %v1294, %v1292
  %v2237 = vpack.c.b16 %v1295, %v1293
  %v2238 = vpack.c.b16 %v1298, %v1296
  %v2239 = vpack.c.b16 %v1299, %v1297
  %v2240 = vpack.c.b16 %v1302, %v1300
  %v2241 = vpack.c.b16 %v1303, %v1301
  %v2242 = vpack.c.b16 %v1306, %v1304
  %v2243 = vpack.c.b16 %v1307, %v1305
  %v2244 = vpack.c.b16 %v1310, %v1308
  %v2245 = vpack.c.b16 %v1311, %v1309
  %v2246 = vpack.c.b16 %v1314, %v1312
  %v2247 = vpack.c.b16 %v1315, %v1313
  %v2248 = vpack.c.b16 %v1318, %v1316
  %v2249 = vpack.c.b16 %v1319, %v1317
  %v2250 = vpack.c.b16 %v1322, %v1320
  %v2251 = vpack.c.b16 %v1323, %v1321
  %v2252 = vpack.c.b16 %v1326, %v1324
  %v2253 = vpack.c.b16 %v1327, %v1325
  %v2254 = vpack.c.b16 %v1330, %v1328
  %v2255 = vpack.c.b16 %v1331, %v1329
  %v2256 = vpack.c.b16 %v1334, %v1332
  %v2257 = vpack.c.b16 %v1335, %v1333
  %v2258 = vpack.c.b16 %v1338, %v1336
  %v2259 = vpack.c.b16 %v1339, %v1337
  %v2260 = vpack.c.b16 %v1342, %v1340
  %v2261 = vpack.c.b16 %v1343, %v1341
  %v2262 = vpack.c.b16 %v1346, %v1344
  %v2263 = vpack.c.b16 %v1347, %v1345
  %v2264 = vpack.c.b16 %v1350, %v1348
  %v2265 = vpack.c.b16 %v1351, %v1349
  %v2266 = vpack.c.b16 %v1354, %v1352
  %v2267 = vpack.c.b16 %v1355, %v1353
  %v2268 = vpack.c.b16 %v1358, %v1356
  %v2269 = vpack.c.b16 %v1359, %v1357
  %v2270 = vpack.c.b16 %v1362, %v1360
  %v2271 = vpack.c.b16 %v1363, %v1361
  %v2272 = vpack.c.b16 %v1366, %v1364
  %v2273 = vpack.c.b16 %v1367, %v1365
  %v2274 = vpack.c.b16 %v1370, %v1368
  %v2275 = vpack.c.b16 %v1371, %v1369
  %v2276 = vpack.c.b16 %v1374, %v1372
  %v2277 = vpack.c.b16 %v1375, %v1373
  %v2278 = vpack.c.b16 %v1378, %v1376
  %v2279 = vpack.c.b16 %v1379, %v1377
  %v2280 = vpack.c.b16 %v1382, %v1380
  %v2281 = vpack.c.b16 %v1383, %v1381
  %v2282 = vpack.c.b16 %v1386, %v1384
  %v2283 = vpack.c.b16 %v1387, %v1385
  %v2284 = vpack.c.b16 %v1390, %v1388
  %v2285 = vpack.c.b16 %v1391, %v1389
  %v2286 = vpack.c.b16 %v1394, %v1392
  %v2287 = vpack.c.b16 %v1395, %v1393
  %v2288 = vpack.c.b16 %v1398, %v1396
  %v2289 = vpack.c.b16 %v1399, %v1397
  %v2290 = vpack.c.b16 %v1402, %v1400
  %v2291 = vpack.c.b16 %v1403, %v1401
  %v2292 = vpack.c.b16 %v1406, %v1404
  %v2293 = vpack.c.b16 %v1407, %v1405
  %v2294 = vpack.c.b16 %v1410, %v1408
  %v2295 = vpack.c.b16 %v1411, %v1409
  %v2296 = vpack.c.b16 %v1414, %v1412
  %v2297 = vpack.c.b16 %v1415, %v1413
  %v2298 = vpack.c.b16 %v1418, %v1416
  %v2299 = vpack.c.b16 %v1419, %v1417
  %v2300 = vpack.c.b16 %v1422, %v1420
  %v2301 = vpack.c.b16 %v1423, %v1421
  %v2302 = vpack.c.b16 %v1426, %v1424
  %v2303 = vpack.c.b16 %v1427, %v1425
  %v2304 = vpack.c.b16 %v1430, %v1428
  %v2305 = vpack.c.b16 %v1431, %v1429
  %v2306 = vpack.c.b16 %v1434, %v1432
  %v2307 = vpack.c.b16 %v1435, %v1433
  %v2308 = vpack.c.b16 %v1438, %v1436
  %v2309 = vpack.c.b16 %v1439, %v1437
  %v2310 = vpack.c.b16 %v1442, %v1440
  %v2311 = vpack.c.b16 %v1443, %v1441
  %v2312 = vpack.c.b16 %v1446, %v1444
  %v2313 = vpack.c.b16 %v1447, %v1445
  %v2314 = vpack.c.b16 %v1450, %v1448
  %v2315 = vpack.c.b16 %v1451, %v1449
  %v2316 = vpack.c.b16 %v1454, %v1452
  %v2317 = vpack.c.b16 %v1455, %v1453
  %v2318 = vpack.c.b16 %v1458, %v1456
  %v2319 = vpack.c.b16 %v1459, %v1457
  %v2320 = vpack.c.b16 %v1462, %v1460
  %v2321 = vpack.c.b16 %v1463, %v1461
  %v2322 = vpack.c.b16 %v1466, %v1464
  %v2323 = vpack.c.b16 %v1467, %v1465
  %v2324 = vpack.c.b16 %v1470, %v1468
  %v2325 = vpack.c.b16 %v1471, %v1469
  %v2326 = vpack.c.b16 %v1474, %v1472
  %v2327 = vpack.c.b16 %v1475, %v1473
  %v2328 = vpack.c.b16 %v1478, %v1476
  %v2329 = vpack.c.b16 %v1479, %v1477
  %v2330 = vpack.c.b16 %v1482, %v1480
  %v2331 = vpack.c.b16 %v1483, %v1481
  %v2332 = vpack.c.b16 %v1486, %v1484
  %v2333 = vpack.c.b16 %v1487, %v1485
  %v2334 = vpack.c.b16 %v1490, %v1488
  %v2335 = vpack.c.b16 %v1491, %v1489
  %v2336 = vpack.c.b16 %v1494, %v1492
  %v2337 = vpack.c.b16 %v1495, %v1493
  %v2338 = vpack.c.b16 %v1498, %v1496
  %v2339 = vpack.c.b16 %v1499, %v1497
  %v2340 = vpack.c.b16 %v1502, %v1500
  %v2341 = vpack.c.b16 %v1503, %v1501
  %v2342 = vpack.c.b16 %v1506, %v1504
  %v2343 = vpack.c.b16 %v1507, %v1505
  %v2344 = vpack.c.b16 %v1510, %v1508
  %v2345 = vpack.c.b16 %v1511, %v1509
  %v2346 = vpack.c.b16 %v1514, %v1512
  %v2347 = vpack.c.b16 %v1515, %v1513
  %v2348 = vpack.c.b16 %v1518, %v1516
  %v2349 = vpack.c.b16 %v1519, %v1517
  %v2350 = vpack.c.b16 %v1522, %v1520
  %v2351 = vpack.c.b16 %v1523, %v1521
  %v2352 = vpack.c.b16 %v1526, %v1524
  %v2353 = vpack.c.b16 %v1527, %v1525
  %v2354 = vpack.c.b16 %v1530, %v1528
  %v2355 = vpack.c.b16 %v1531, %v1529
  %v2356 = vpack.c.b16 %v1534, %v1532
  %v2357 = vpack.c.b16 %v1535, %v1533
  %v2358 = vpack.c.b16 %v1538, %v1536
  %v2359 = vpack.c.b16 %v1539, %v1537
  %v2360 = vpack.c.b16 %v1542, %v1540
  %v2361 = vpack.c.b16 %v1543, %v1541
  %v2362 = vpack.c.b16 %v1546, %v1544
  %v2363 = vpack.c.b16 %v1547, %v1545
  %v2364 = vpack.c.b16 %v1550, %v1548
  %v2365 = vpack.c.b16 %v1551, %v1549
  %v2366 = vpack.c.b16 %v1554, %v1552
  %v2367 = vpack.c.b16 %v1555, %v1553
  %v2368 = vpack.c.b16 %v1558, %v1556
  %v2369 = vpack.c.b16 %v1559, %v1557
  %v2370 = vpack.c.b16 %v1562, %v1560
  %v2371 = vpack.c.b16 %v1563, %v1561
  %v2372 = vpack.c.b16 %v1566, %v1564
  %v2373 = vpack.c.b16 %v1567, %v1565
  %v2374 = vpack.c.b16 %v1570, %v1568
  %v2375 = vpack.c.b16 %v1571, %v1569
  %v2376 = vpack.c.b16 %v1574, %v1572
  %v2377 = vpack.c.b16 %v1575, %v1573
  %v2378 = vpack.c.b16 %v1578, %v1576
  %v2379 = vpack.c.b16 %v1579, %v1577
  %v2380 = vpack.c.b16 %v1582, %v1580
  %v2381 = vpack.c.b16 %v1583, %v1581
  %v2382 = vpack.c.b16 %v1586, %v1584
  %v2383 = vpack.c.b16 %v1587, %v1585
  %v2384 = vpack.c.b16 %v1590, %v1588
  %v2385 = vpack.c.b16 %v1591, %v1589
  %v2386 = vpack.c.b16 %v1594, %v1592
  %v2387 = vpack.c.b16 %v1595, %v1593
  %v2388 = vpack.c.b16 %v1598, %v1596
  %v2389 = vpack.c.b16 %v1599, %v1597
  %v2390 = vpack.c.b16 %v1602, %v1600
  %v2391 = vpack.c.b16 %v1603, %v1601
  %v2392 = vpack.c.b16 %v1606, %v1604
  %v2393 = vpack.c.b16 %v1607, %v1605
  %v2394 = vpack.c.b16 %v1610, %v1608
  %v2395 = vpack.c.b16 %v1611, %v1609
  %v2396 = vpack.c.b16 %v1614, %v1612
  %v2397 = vpack.c.b16 %v1615, %v1613
  %v2398 = vpack.c.b16 %v1618, %v1616
  %v2399 = vpack.c.b16 %v1619, %v1617
  %v2400 = vpack.c.b16 %v1622, %v1620
  %v2401 = vpack.c.b16 %v1623, %v1621
  %v2402 = vpack.c.b16 %v1626, %v1624
  %v2403 = vpack.c.b16 %v1627, %v1625
  %v2404 = vpack.c.b16 %v1630, %v1628
  %v2405 = vpack.c.b16 %v1631, %v1629
  %v2406 = vpack.c.b16 %v1634, %v1632
  %v2407 = vpack.c.b16 %v1635, %v1633
  %v2408 = vpack.c.b16 %v1638, %v1636
  %v2409 = vpack.c.b16 %v1639, %v1637
  %v2410 = vpack.c.b16 %v1642, %v1640
  %v2411 = vpack.c.b16 %v1643, %v1641
  %v2412 = vpack.c.b16 %v1646, %v1644
  %v2413 = vpack.c.b16 %v1647, %v1645
  %v2414 = vpack.c.b16 %v1650, %v1648
  %v2415 = vpack.c.b16 %v1651, %v1649
  %v2416 = vpack.c.b16 %v1654, %v1652
  %v2417 = vpack.c.b16 %v1655, %v1653
  %v2418 = vpack.c.b16 %v1658, %v1656
  %v2419 = vpack.c.b16 %v1659, %v1657
  %v2420 = vpack.c.b16 %v1662, %v1660
  %v2421 = vpack.c.b16 %v1663, %v1661
  %v2422 = vpack.c.b16 %v1666, %v1664
  %v2423 = vpack.c.b16 %v1667, %v1665
  %v2424 = vpack.c.b16 %v1670, %v1668
  %v2425 = vpack.c.b16 %v1671, %v1669
  %v2426 = vpack.c.b16 %v1674, %v1672
  %v2427 = vpack.c.b16 %v1675, %v1673
  %v2428 = vpack.c.b16 %v1678, %v1676
  %v2429 = vpack.c.b16 %v1679, %v1677
  %v2430 = vpack.c.b16 %v1682, %v1680
  %v2431 = vpack.c.b16 %v1683, %v1681
  %v2432 = vpack.c.b16 %v1686, %v1684
  %v2433 = vpack.c.b16 %v1687, %v1685
  %v2434 = vpack.c.b16 %v1690, %v1688
  %v2435 = vpack.c.b16 %v1691, %v1689
  %v2436 = vpack.c.b16 %v1694, %v1692
  %v2437 = vpack.c.b16 %v1695, %v1693
  %v2438 = vpack.c.b16 %v1698, %v1696
  %v2439 = vpack.c.b16 %v1699, %v1697
  %v2440 = vpack.c.b16 %v1702, %v1700
  %v2441 = vpack.c.b16 %v1703, %v1701
  %v2442 = vpack.c.b16 %v1706, %v1704
  %v2443 = vpack.c.b16 %v1707, %v1705
  %v2444 = vpack.c.b16 %v1710, %v1708
  %v2445 = vpack.c.b16 %v1711, %v1709
  %v2446 = vpack.c.b16 %v1714, %v1712
  %v2447 = vpack.c.b16 %v1715, %v1713
  %v2448 = vpack.c.b16 %v1718, %v1716
  %v2449 = vpack.c.b16 %v1719, %v1717
  %v2450 = vpack.c.b16 %v1722, %v1720
  %v2451 = vpack.c.b16 %v1723, %v1721
  %v2452 = vpack.c.b16 %v1726, %v1724
  %v2453 = vpack.c.b16 %v1727, %v1725
  %v2454 = vpack.c.b16 %v1730, %v1728
  %v2455 = vpack.c.b16 %v1731, %v1729
  %v2456 = vpack.c.b16 %v1734, %v1732
  %v2457 = vpack.c.b16 %v1735, %v1733
  %v2458 = vpack.c.b16 %v1738, %v1736
  %v2459 = vpack.c.b16 %v1739, %v1737
  %v2460 = vpack.c.b16 %v1742, %v1740
  %v2461 = vpack.c.b16 %v1743, %v1741
  %v2462 = vpack.c.b16 %v1746, %v1744
  %v2463 = vpack.c.b16 %v1747, %v1745
  %v2464 = vpack.c.b16 %v1750, %v1748
  %v2465 = vpack.c.b16 %v1751, %v1749
  %v2466 = vpack.c.b16 %v1754, %v1752
  %v2467 = vpack.c.b16 %v1755, %v1753
  %v2468 = vpack.c.b16 %v1758, %v1756
  %v2469 = vpack.c.b16 %v1759, %v1757
  %v2470 = vpack.c.b16 %v1762, %v1760
  %v2471 = vpack.c.b16 %v1763, %v1761
  %v2472 = vpack.c.b16 %v1766, %v1764
  %v2473 = vpack.c.b16 %v1767, %v1765
  %v2474 = vpack.c.b16 %v1770, %v1768
  %v2475 = vpack.c.b16 %v1771, %v1769
  %v2476 = vpack.c.b16 %v1774, %v1772
  %v2477 = vpack.c.b16 %v1775, %v1773
  %v2478 = vpack.c.b16 %v1778, %v1776
  %v2479 = vpack.c.b16 %v1779, %v1777
  %v2480 = vpack.c.b16 %v1782, %v1780
  %v2481 = vpack.c.b16 %v1783, %v1781
  %v2482 = vpack.c.b16 %v1786, %v1784
  %v2483 = vpack.c.b16 %v1787, %v1785
  %v2484 = vpack.c.b16 %v1790, %v1788
  %v2485 = vpack.c.b16 %v1791, %v1789
  %v2486 = vpack.c.b16 %v1794, %v1792
  %v2487 = vpack.c.b16 %v1795, %v1793
  %v2488 = vpack.c.b16 %v1798, %v1796
  %v2489 = vpack.c.b16 %v1799, %v1797
  %v2490 = vpack.c.b16 %v1802, %v1800
  %v2491 = vpack.c.b16 %v1803, %v1801
  %v2492 = vpack.c.b16 %v1806, %v1804
  %v2493 = vpack.c.b16 %v1807, %v1805
  %v2494 = vpack.c.b16 %v1810, %v1808
  %v2495 = vpack.c.b16 %v1811, %v1809
  %v2496 = vpack.c.b16 %v1814, %v1812
  %v2497 = vpack.c.b16 %v1815, %v1813
  %v2498 = vpack.c.b16 %v1818, %v1816
  %v2499 = vpack.c.b16 %v1819, %v1817
  %v2500 = vpack.c.b16 %v1822, %v1820
  %v2501 = vpack.c.b16 %v1823, %v1821
  %v2502 = vpack.c.b16 %v1826, %v1824
  %v2503 = vpack.c.b16 %v1827, %v1825
  %v2504 = vpack.c.b16 %v1830, %v1828
  %v2505 = vpack.c.b16 %v1831, %v1829
  %v2506 = vpack.c.b16 %v1834, %v1832
  %v2507 = vpack.c.b16 %v1835, %v1833
  %v2508 = vpack.c.b16 %v1838, %v1836
  %v2509 = vpack.c.b16 %v1839, %v1837
  %v2510 = vpack.c.b16 %v1842, %v1840
  %v2511 = vpack.c.b16 %v1843, %v1841
  %v2512 = vpack.c.b16 %v1846, %v1844
  %v2513 = vpack.c.b16 %v1847, %v1845
  %v2514 = vpack.c.b16 %v1850, %v1848
  %v2515 = vpack.c.b16 %v1851, %v1849
  %v2516 = vpack.c.b16 %v1854, %v1852
  %v2517 = vpack.c.b16 %v1855, %v1853
  %v2518 = vpack.c.b16 %v1858, %v1856
  %v2519 = vpack.c.b16 %v1859, %v1857
  %v2520 = vpack.c.b16 %v1862, %v1860
  %v2521 = vpack.c.b16 %v1863, %v1861
  %v2522 = vpack.c.b16 %v1866, %v1864
  %v2523 = vpack.c.b16 %v1867, %v1865
  %v2524 = vpack.c.b16 %v1870, %v1868
  %v2525 = vpack.c.b16 %v1871, %v1869
  %v2526 = vpack.c.b16 %v1874, %v1872
  %v2527 = vpack.c.b16 %v1875, %v1873
  %v2528 = vpack.c.b16 %v1878, %v1876
  %v2529 = vpack.c.b16 %v1879, %v1877
  %v2530 = vpack.c.b16 %v1882, %v1880
  %v2531 = vpack.c.b16 %v1883, %v1881
  %v2532 = vpack.c.b16 %v1886, %v1884
  %v2533 = vpack.c.b16 %v1887, %v1885
  %v2534 = vpack.c.b16 %v1890, %v1888
  %v2535 = vpack.c.b16 %v1891, %v1889
  %v2536 = vpack.c.b16 %v1894, %v1892
  %v2537 = vpack.c.b16 %v1895, %v1893
  %v2538 = vpack.c.b16 %v1898, %v1896
  %v2539 = vpack.c.b16 %v1899, %v1897
  %v2540 = vpack.c.b16 %v1902, %v1900
  %v2541 = vpack.c.b16 %v1903, %v1901
  %v2542 = vpack.c.b16 %v1906, %v1904
  %v2543 = vpack.c.b16 %v1907, %v1905
  %v2544 = vpack.c.b16 %v1910, %v1908
  %v2545 = vpack.c.b16 %v1911, %v1909
  %v2546 = vpack.c.b16 %v1914, %v1912
  %v2547 = vpack.c.b16 %v1915, %v1913
  %v2548 = vpack.c.b16 %v1918, %v1916
  %v2549 = vpack.c.b16 %v1919, %v1917
  %v2550 = vpack.c.b16 %v1922, %v1920
  %v2551 = vpack.c.b16 %v1923, %v1921
  %v2552 = vpack.c.b16 %v1926, %v1924
  %v2553 = vpack.c.b16 %v1927, %v1925
  %v2554 = vpack.c.b16 %v1930, %v1928
  %v2555 = vpack.c.b16 %v1931, %v1929
  %v2556 = vpack.c.b16 %v1934, %v1932
  %v2557 = vpack.c.b16 %v1935, %v1933
  %v2558 = vpack.c.b16 %v1938, %v1936
  %v2559 = vpack.c.b16 %v1939, %v1937
  %v2560 = vpack.c.b16 %v1942, %v1940
  %v2561 = vpack.c.b16 %v1943, %v1941
  %v2562 = vpack.c.b16 %v1946, %v1944
  %v2563 = vpack.c.b16 %v1947, %v1945
  %v2564 = vpack.c.b16 %v1950, %v1948
  %v2565 = vpack.c.b16 %v1951, %v1949
  %v2566 = vpack.c.b16 %v1954, %v1952
  %v2567 = vpack.c.b16 %v1955, %v1953
  %v2568 = vpack.c.b16 %v1958, %v1956
  %v2569 = vpack.c.b16 %v1959, %v1957
  %v2570 = vpack.c.b16 %v1962, %v1960
  %v2571 = vpack.c.b16 %v1963, %v1961
  %v2572 = vpack.c.b16 %v1966, %v1964
  %v2573 = vpack.c.b16 %v1967, %v1965
  %v2574 = vpack.c.b16 %v1970, %v1968
  %v2575 = vpack.c.b16 %v1971, %v1969
  %v2576 = vpack.c.b16 %v1974, %v1972
  %v2577 = vpack.c.b16 %v1975, %v1973
  %v2578 = vpack.c.b16 %v1978, %v1976
  %v2579 = vpack.c.b16 %v1979, %v1977
  %v2580 = vpack.c.b16 %v1982, %v1980
  %v2581 = vpack.c.b16 %v1983, %v1981
  %v2582 = vpack.c.b16 %v1986, %v1984
  %v2583 = vpack.c.b16 %v1987, %v1985
  %v2584 = vpack.c.b16 %v1990, %v1988
  %v2585 = vpack.c.b16 %v1991, %v1989
  %v2586 = vpack.c.b16 %v1994, %v1992
  %v2587 = vpack.c.b16 %v1995, %v1993
  %v2588 = vpack.c.b16 %v1998, %v1996
  %v2589 = vpack.c.b16 %v1999, %v1997
  %v2590 = vpack.c.b16 %v2002, %v2000
  %v2591 = vpack.c.b16 %v2003, %v2001
  %v2592 = vpack.c.b16 %v2006, %v2004
  %v2593 = vpack.c.b16 %v2007, %v2005
  %v2594 = vpack.c.b16 %v2010, %v2008
  %v2595 = vpack.c.b16 %v2011, %v2009
  %v2596 = vpack.c.b16 %v2014, %v2012
  %v2597 = vpack.c.b16 %v2015, %v2013
  %v2598 = vpack.c.b16 %v2018, %v2016
  %v2599 = vpack.c.b16 %v2019, %v2017
  %v2600 = vpack.c.b16 %v2022, %v2020
  %v2601 = vpack.c.b16 %v2023, %v2021
  %v2602 = vpack.c.b16 %v2026, %v2024
  %v2603 = vpack.c.b16 %v2027, %v2025
  %v2604 = vpack.c.b16 %v2030, %v2028
  %v2605 = vpack.c.b16 %v2031, %v2029
  %v2606 = vpack.c.b16 %v2034, %v2032
  %v2607 = vpack.c.b16 %v2035, %v2033
  %v2608 = vpack.c.b16 %v2038, %v2036
  %v2609 = vpack.c.b16 %v2039, %v2037
  %v2610 = vpack.c.b16 %v2042, %v2040
  %v2611 = vpack.c.b16 %v2043, %v2041
  %v2612 = vpack.c.b16 %v2046, %v2044
  %v2613 = vpack.c.b16 %v2047, %v2045
  %v2614 = vpack.c.b16 %v2050, %v2048
  %v2615 = vpack.c.b16 %v2051, %v2049
  %v2616 = vpack.c.b16 %v2054, %v2052
  %v2617 = vpack.c.b16 %v2055, %v2053
  %v2618 = vpack.c.b16 %v2058, %v2056
  %v2619 = vpack.c.b16 %v2059, %v2057
  %v2620 = vpack.c.b16 %v2062, %v2060
  %v2621 = vpack.c.b16 %v2063, %v2061
  %v2622 = vpack.c.b16 %v2066, %v2064
  %v2623 = vpack.c.b16 %v2067, %v2065
  %v2624 = vpack.c.b16 %v2070, %v2068
  %v2625 = vpack.c.b16 %v2071, %v2069
  %v2626 = vpack.c.b16 %v2074, %v2072
  %v2627 = vpack.c.b16 %v2075, %v2073
  %v2628 = vpack.c.b16 %v2078, %v2076
  %v2629 = vpack.c.b16 %v2079, %v2077
  %v2630 = vpack.c.b16 %v2082, %v2080
  %v2631 = vpack.c.b16 %v2083, %v2081
  %v2632 = vpack.c.b16 %v2086, %v2084
  %v2633 = vpack.c.b16 %v2087, %v2085
  %v2634 = vpack.c.b16 %v2090, %v2088
  %v2635 = vpack.c.b16 %v2091, %v2089
  %v2636 = vpack.c.b16 %v2094, %v2092
  %v2637 = vpack.c.b16 %v2095, %v2093
  %v2638 = vpack.c.b16 %v2098, %v2096
  %v2639 = vpack.c.b16 %v2099, %v2097
  %v2640 = vpack.c.b16 %v2102, %v2100
  %v2641 = vpack.c.b16 %v2103, %v2101
  %v2642 = vpack.c.b16 %v2106, %v2104
  %v2643 = vpack.c.b16 %v2107, %v2105
  %v2644 = vpack.c.b16 %v2110, %v2108
  %v2645 = vpack.c.b16 %v2111, %v2109
  %v2646 = vpack.c.b16 %v2114, %v2112
  %v2647 = vpack.c.b16 %v2115, %v2113
  %v2648 = vpack.c.b16 %v2118, %v2116
  %v2649 = vpack.c.b16 %v2119, %v2117
  %v2650 = vpack.c.b16 %v2122, %v2120
  %v2651 = vpack.c.b16 %v2123, %v2121
  %v2652 = vpack.c.b16 %v2126, %v2124
  %v2653 = vpack.c.b16 %v2127, %v2125
  %v2654 = vpack.c.b16 %v2130, %v2128
  %v2655 = vpack.c.b16 %v2131, %v2129
  %v2656 = vpack.c.b16 %v2134, %v2132
  %v2657 = vpack.c.b16 %v2135, %v2133
  %v2658 = vpack.c.b16 %v2138, %v2136
  %v2659 = vpack.c.b16 %v2139, %v2137
  %v2660 = vpack.c.b16 %v2142, %v2140
  %v2661 = vpack.c.b16 %v2143, %v2141
  %v2662 = vpack.c.b16 %v2146, %v2144
  %v2663 = vpack.c.b16 %v2147, %v2145
  %v2664 = vpack.c.b16 %v2150, %v2148
  %v2665 = vpack.c.b16 %v2151, %v2149
  %v2666 = vpack.c.b16 %v2154, %v2152
  %v2667 = vpack.c.b16 %v2155, %v2153
  %3180 = vmatpush.bf16.msra.mxu0 %v2170
  %3181 = vmatpush.bf16.msra.mxu0 %v2168
  %3182 = vmatpush.bf16.msra.mxu0 %v2166
  %3183 = vmatpush.bf16.msra.mxu0 %v2164
  %3184 = vmatpush.bf16.msra.mxu0 %v2162
  %3185 = vmatpush.bf16.msra.mxu0 %v2160
  %3186 = vmatpush.bf16.msra.mxu0 %v2158
  %3187 = vmatpush.bf16.msra.mxu0 %v2156
  %3188 = vmatmul.bf16.gmra.mxu0 %v550
  %v3189 = vpop.f32.mrf.mxu0
  %v3190 = vadd.f32 %v544, %v3189
  %v3191 = vpop.f32.mrf.mxu0
  %3192 = vdwg.mxu0
  %3193 = vmatpush.bf16.msra.mxu0 %v2186
  %3194 = vmatpush.bf16.msra.mxu0 %v2184
  %3195 = vmatpush.bf16.msra.mxu0 %v2182
  %3196 = vmatpush.bf16.msra.mxu0 %v2180
  %3197 = vmatpush.bf16.msra.mxu0 %v2178
  %3198 = vmatpush.bf16.msra.mxu0 %v2176
  %3199 = vmatpush.bf16.msra.mxu0 %v2174
  %3200 = vmatpush.bf16.msra.mxu0 %v2172
  %3201 = vmatmul.bf16.gmra.mxu0 %v551
  %v3202 = vpop.f32.mrf.mxu0
  %v3203 = vadd.f32 %v3190, %v3202
  %v3204 = vpop.f32.mrf.mxu0
  %3205 = vdwg.mxu0
  %3206 = vmatpush.bf16.msra.mxu0 %v2202
  %3207 = vmatpush.bf16.msra.mxu0 %v2200
  %3208 = vmatpush.bf16.msra.mxu0 %v2198
  %3209 = vmatpush.bf16.msra.mxu0 %v2196
  %3210 = vmatpush.bf16.msra.mxu0 %v2194
  %3211 = vmatpush.bf16.msra.mxu0 %v2192
  %3212 = vmatpush.bf16.msra.mxu0 %v2190
  %3213 = vmatpush.bf16.msra.mxu0 %v2188
  %3214 = vmatmul.bf16.gmra.mxu0 %v552
  %v3215 = vpop.f32.mrf.mxu0
  %v3216 = vadd.f32 %v3203, %v3215
  %v3217 = vpop.f32.mrf.mxu0
  %3218 = vdwg.mxu0
  %3219 = vmatpush.bf16.msra.mxu0 %v2218
  %3220 = vmatpush.bf16.msra.mxu0 %v2216
  %3221 = vmatpush.bf16.msra.mxu0 %v2214
  %3222 = vmatpush.bf16.msra.mxu0 %v2212
  %3223 = vmatpush.bf16.msra.mxu0 %v2210
  %3224 = vmatpush.bf16.msra.mxu0 %v2208
  %3225 = vmatpush.bf16.msra.mxu0 %v2206
  %3226 = vmatpush.bf16.msra.mxu0 %v2204
  %3227 = vmatmul.bf16.gmra.mxu0 %v553
  %v3228 = vpop.f32.mrf.mxu0
  %v3229 = vadd.f32 %v3216, %v3228
  %v3230 = vpop.f32.mrf.mxu0
  %3231 = vdwg.mxu0
  %3232 = vmatpush.bf16.msra.mxu0 %v2234
  %3233 = vmatpush.bf16.msra.mxu0 %v2232
  %3234 = vmatpush.bf16.msra.mxu0 %v2230
  %3235 = vmatpush.bf16.msra.mxu0 %v2228
  %3236 = vmatpush.bf16.msra.mxu0 %v2226
  %3237 = vmatpush.bf16.msra.mxu0 %v2224
  %3238 = vmatpush.bf16.msra.mxu0 %v2222
  %3239 = vmatpush.bf16.msra.mxu0 %v2220
  %3240 = vmatmul.bf16.gmra.mxu0 %v554
  %v3241 = vpop.f32.mrf.mxu0
  %v3242 = vadd.f32 %v3229, %v3241
  %v3243 = vpop.f32.mrf.mxu0
  %3244 = vdwg.mxu0
  %3245 = vmatpush.bf16.msra.mxu0 %v2250
  %3246 = vmatpush.bf16.msra.mxu0 %v2248
  %3247 = vmatpush.bf16.msra.mxu0 %v2246
  %3248 = vmatpush.bf16.msra.mxu0 %v2244
  %3249 = vmatpush.bf16.msra.mxu0 %v2242
  %3250 = vmatpush.bf16.msra.mxu0 %v2240
  %3251 = vmatpush.bf16.msra.mxu0 %v2238
  %3252 = vmatpush.bf16.msra.mxu0 %v2236
  %3253 = vmatmul.bf16.gmra.mxu0 %v555
  %v3254 = vpop.f32.mrf.mxu0
  %v3255 = vadd.f32 %v3242, %v3254
  %v3256 = vpop.f32.mrf.mxu0
  %3257 = vdwg.mxu0
  %3258 = vmatpush.bf16.msra.mxu0 %v2266
  %3259 = vmatpush.bf16.msra.mxu0 %v2264
  %3260 = vmatpush.bf16.msra.mxu0 %v2262
  %3261 = vmatpush.bf16.msra.mxu0 %v2260
  %3262 = vmatpush.bf16.msra.mxu0 %v2258
  %3263 = vmatpush.bf16.msra.mxu0 %v2256
  %3264 = vmatpush.bf16.msra.mxu0 %v2254
  %3265 = vmatpush.bf16.msra.mxu0 %v2252
  %3266 = vmatmul.bf16.gmra.mxu0 %v556
  %v3267 = vpop.f32.mrf.mxu0
  %v3268 = vadd.f32 %v3255, %v3267
  %v3269 = vpop.f32.mrf.mxu0
  %3270 = vdwg.mxu0
  %3271 = vmatpush.bf16.msra.mxu0 %v2282
  %3272 = vmatpush.bf16.msra.mxu0 %v2280
  %3273 = vmatpush.bf16.msra.mxu0 %v2278
  %3274 = vmatpush.bf16.msra.mxu0 %v2276
  %3275 = vmatpush.bf16.msra.mxu0 %v2274
  %3276 = vmatpush.bf16.msra.mxu0 %v2272
  %3277 = vmatpush.bf16.msra.mxu0 %v2270
  %3278 = vmatpush.bf16.msra.mxu0 %v2268
  %3279 = vmatmul.bf16.gmra.mxu0 %v557
  %v3280 = vpop.f32.mrf.mxu0
  %v3281 = vadd.f32 %v3268, %v3280
  %v3282 = vpop.f32.mrf.mxu0
  %3283 = vdwg.mxu0
  %3284 = vmatpush.bf16.msra.mxu0 %v2298
  %3285 = vmatpush.bf16.msra.mxu0 %v2296
  %3286 = vmatpush.bf16.msra.mxu0 %v2294
  %3287 = vmatpush.bf16.msra.mxu0 %v2292
  %3288 = vmatpush.bf16.msra.mxu0 %v2290
  %3289 = vmatpush.bf16.msra.mxu0 %v2288
  %3290 = vmatpush.bf16.msra.mxu0 %v2286
  %3291 = vmatpush.bf16.msra.mxu0 %v2284
  %3292 = vmatmul.bf16.gmra.mxu0 %v560
  %v3293 = vpop.f32.mrf.mxu0
  %v3294 = vadd.f32 %v3281, %v3293
  %v3295 = vpop.f32.mrf.mxu0
  %3296 = vdwg.mxu0
  %3297 = vmatpush.bf16.msra.mxu0 %v2314
  %3298 = vmatpush.bf16.msra.mxu0 %v2312
  %3299 = vmatpush.bf16.msra.mxu0 %v2310
  %3300 = vmatpush.bf16.msra.mxu0 %v2308
  %3301 = vmatpush.bf16.msra.mxu0 %v2306
  %3302 = vmatpush.bf16.msra.mxu0 %v2304
  %3303 = vmatpush.bf16.msra.mxu0 %v2302
  %3304 = vmatpush.bf16.msra.mxu0 %v2300
  %3305 = vmatmul.bf16.gmra.mxu0 %v561
  %v3306 = vpop.f32.mrf.mxu0
  %v3307 = vadd.f32 %v3294, %v3306
  %v3308 = vpop.f32.mrf.mxu0
  %3309 = vdwg.mxu0
  %3310 = vmatpush.bf16.msra.mxu0 %v2330
  %3311 = vmatpush.bf16.msra.mxu0 %v2328
  %3312 = vmatpush.bf16.msra.mxu0 %v2326
  %3313 = vmatpush.bf16.msra.mxu0 %v2324
  %3314 = vmatpush.bf16.msra.mxu0 %v2322
  %3315 = vmatpush.bf16.msra.mxu0 %v2320
  %3316 = vmatpush.bf16.msra.mxu0 %v2318
  %3317 = vmatpush.bf16.msra.mxu0 %v2316
  %3318 = vmatmul.bf16.gmra.mxu0 %v562
  %v3319 = vpop.f32.mrf.mxu0
  %v3320 = vadd.f32 %v3307, %v3319
  %v3321 = vpop.f32.mrf.mxu0
  %3322 = vdwg.mxu0
  %3323 = vmatpush.bf16.msra.mxu0 %v2346
  %3324 = vmatpush.bf16.msra.mxu0 %v2344
  %3325 = vmatpush.bf16.msra.mxu0 %v2342
  %3326 = vmatpush.bf16.msra.mxu0 %v2340
  %3327 = vmatpush.bf16.msra.mxu0 %v2338
  %3328 = vmatpush.bf16.msra.mxu0 %v2336
  %3329 = vmatpush.bf16.msra.mxu0 %v2334
  %3330 = vmatpush.bf16.msra.mxu0 %v2332
  %3331 = vmatmul.bf16.gmra.mxu0 %v563
  %v3332 = vpop.f32.mrf.mxu0
  %v3333 = vadd.f32 %v3320, %v3332
  %v3334 = vpop.f32.mrf.mxu0
  %3335 = vdwg.mxu0
  %3336 = vmatpush.bf16.msra.mxu0 %v2362
  %3337 = vmatpush.bf16.msra.mxu0 %v2360
  %3338 = vmatpush.bf16.msra.mxu0 %v2358
  %3339 = vmatpush.bf16.msra.mxu0 %v2356
  %3340 = vmatpush.bf16.msra.mxu0 %v2354
  %3341 = vmatpush.bf16.msra.mxu0 %v2352
  %3342 = vmatpush.bf16.msra.mxu0 %v2350
  %3343 = vmatpush.bf16.msra.mxu0 %v2348
  %3344 = vmatmul.bf16.gmra.mxu0 %v564
  %v3345 = vpop.f32.mrf.mxu0
  %v3346 = vadd.f32 %v3333, %v3345
  %v3347 = vpop.f32.mrf.mxu0
  %3348 = vdwg.mxu0
  %3349 = vmatpush.bf16.msra.mxu0 %v2378
  %3350 = vmatpush.bf16.msra.mxu0 %v2376
  %3351 = vmatpush.bf16.msra.mxu0 %v2374
  %3352 = vmatpush.bf16.msra.mxu0 %v2372
  %3353 = vmatpush.bf16.msra.mxu0 %v2370
  %3354 = vmatpush.bf16.msra.mxu0 %v2368
  %3355 = vmatpush.bf16.msra.mxu0 %v2366
  %3356 = vmatpush.bf16.msra.mxu0 %v2364
  %3357 = vmatmul.bf16.gmra.mxu0 %v565
  %v3358 = vpop.f32.mrf.mxu0
  %v3359 = vadd.f32 %v3346, %v3358
  %v3360 = vpop.f32.mrf.mxu0
  %3361 = vdwg.mxu0
  %3362 = vmatpush.bf16.msra.mxu0 %v2394
  %3363 = vmatpush.bf16.msra.mxu0 %v2392
  %3364 = vmatpush.bf16.msra.mxu0 %v2390
  %3365 = vmatpush.bf16.msra.mxu0 %v2388
  %3366 = vmatpush.bf16.msra.mxu0 %v2386
  %3367 = vmatpush.bf16.msra.mxu0 %v2384
  %3368 = vmatpush.bf16.msra.mxu0 %v2382
  %3369 = vmatpush.bf16.msra.mxu0 %v2380
  %3370 = vmatmul.bf16.gmra.mxu0 %v566
  %v3371 = vpop.f32.mrf.mxu0
  %v3372 = vadd.f32 %v3359, %v3371
  %v3373 = vpop.f32.mrf.mxu0
  %3374 = vdwg.mxu0
  %3375 = vmatpush.bf16.msra.mxu0 %v2410
  %3376 = vmatpush.bf16.msra.mxu0 %v2408
  %3377 = vmatpush.bf16.msra.mxu0 %v2406
  %3378 = vmatpush.bf16.msra.mxu0 %v2404
  %3379 = vmatpush.bf16.msra.mxu0 %v2402
  %3380 = vmatpush.bf16.msra.mxu0 %v2400
  %3381 = vmatpush.bf16.msra.mxu0 %v2398
  %3382 = vmatpush.bf16.msra.mxu0 %v2396
  %3383 = vmatmul.bf16.gmra.mxu0 %v567
  %v3384 = vpop.f32.mrf.mxu0
  %v3385 = vadd.f32 %v3372, %v3384
  %v3386 = vpop.f32.mrf.mxu0
  %3387 = vdwg.mxu0
  %3388 = vmatpush.bf16.msra.mxu0 %v2426
  %3389 = vmatpush.bf16.msra.mxu0 %v2424
  %3390 = vmatpush.bf16.msra.mxu0 %v2422
  %3391 = vmatpush.bf16.msra.mxu0 %v2420
  %3392 = vmatpush.bf16.msra.mxu0 %v2418
  %3393 = vmatpush.bf16.msra.mxu0 %v2416
  %3394 = vmatpush.bf16.msra.mxu0 %v2414
  %3395 = vmatpush.bf16.msra.mxu0 %v2412
  %3396 = vmatmul.bf16.gmra.mxu0 %v570
  %v3397 = vpop.f32.mrf.mxu0
  %v3398 = vadd.f32 %v3385, %v3397
  %v3399 = vpop.f32.mrf.mxu0
  %3400 = vdwg.mxu0
  %3401 = vmatpush.bf16.msra.mxu0 %v2442
  %3402 = vmatpush.bf16.msra.mxu0 %v2440
  %3403 = vmatpush.bf16.msra.mxu0 %v2438
  %3404 = vmatpush.bf16.msra.mxu0 %v2436
  %3405 = vmatpush.bf16.msra.mxu0 %v2434
  %3406 = vmatpush.bf16.msra.mxu0 %v2432
  %3407 = vmatpush.bf16.msra.mxu0 %v2430
  %3408 = vmatpush.bf16.msra.mxu0 %v2428
  %3409 = vmatmul.bf16.gmra.mxu0 %v571
  %v3410 = vpop.f32.mrf.mxu0
  %v3411 = vadd.f32 %v3398, %v3410
  %v3412 = vpop.f32.mrf.mxu0
  %3413 = vdwg.mxu0
  %3414 = vmatpush.bf16.msra.mxu0 %v2458
  %3415 = vmatpush.bf16.msra.mxu0 %v2456
  %3416 = vmatpush.bf16.msra.mxu0 %v2454
  %3417 = vmatpush.bf16.msra.mxu0 %v2452
  %3418 = vmatpush.bf16.msra.mxu0 %v2450
  %3419 = vmatpush.bf16.msra.mxu0 %v2448
  %3420 = vmatpush.bf16.msra.mxu0 %v2446
  %3421 = vmatpush.bf16.msra.mxu0 %v2444
  %3422 = vmatmul.bf16.gmra.mxu0 %v572
  %v3423 = vpop.f32.mrf.mxu0
  %v3424 = vadd.f32 %v3411, %v3423
  %v3425 = vpop.f32.mrf.mxu0
  %3426 = vdwg.mxu0
  %3427 = vmatpush.bf16.msra.mxu0 %v2474
  %3428 = vmatpush.bf16.msra.mxu0 %v2472
  %3429 = vmatpush.bf16.msra.mxu0 %v2470
  %3430 = vmatpush.bf16.msra.mxu0 %v2468
  %3431 = vmatpush.bf16.msra.mxu0 %v2466
  %3432 = vmatpush.bf16.msra.mxu0 %v2464
  %3433 = vmatpush.bf16.msra.mxu0 %v2462
  %3434 = vmatpush.bf16.msra.mxu0 %v2460
  %3435 = vmatmul.bf16.gmra.mxu0 %v573
  %v3436 = vpop.f32.mrf.mxu0
  %v3437 = vadd.f32 %v3424, %v3436
  %v3438 = vpop.f32.mrf.mxu0
  %3439 = vdwg.mxu0
  %3440 = vmatpush.bf16.msra.mxu0 %v2490
  %3441 = vmatpush.bf16.msra.mxu0 %v2488
  %3442 = vmatpush.bf16.msra.mxu0 %v2486
  %3443 = vmatpush.bf16.msra.mxu0 %v2484
  %3444 = vmatpush.bf16.msra.mxu0 %v2482
  %3445 = vmatpush.bf16.msra.mxu0 %v2480
  %3446 = vmatpush.bf16.msra.mxu0 %v2478
  %3447 = vmatpush.bf16.msra.mxu0 %v2476
  %3448 = vmatmul.bf16.gmra.mxu0 %v574
  %v3449 = vpop.f32.mrf.mxu0
  %v3450 = vadd.f32 %v3437, %v3449
  %v3451 = vpop.f32.mrf.mxu0
  %3452 = vdwg.mxu0
  %3453 = vmatpush.bf16.msra.mxu0 %v2506
  %3454 = vmatpush.bf16.msra.mxu0 %v2504
  %3455 = vmatpush.bf16.msra.mxu0 %v2502
  %3456 = vmatpush.bf16.msra.mxu0 %v2500
  %3457 = vmatpush.bf16.msra.mxu0 %v2498
  %3458 = vmatpush.bf16.msra.mxu0 %v2496
  %3459 = vmatpush.bf16.msra.mxu0 %v2494
  %3460 = vmatpush.bf16.msra.mxu0 %v2492
  %3461 = vmatmul.bf16.gmra.mxu0 %v575
  %v3462 = vpop.f32.mrf.mxu0
  %v3463 = vadd.f32 %v3450, %v3462
  %v3464 = vpop.f32.mrf.mxu0
  %3465 = vdwg.mxu0
  %3466 = vmatpush.bf16.msra.mxu0 %v2522
  %3467 = vmatpush.bf16.msra.mxu0 %v2520
  %3468 = vmatpush.bf16.msra.mxu0 %v2518
  %3469 = vmatpush.bf16.msra.mxu0 %v2516
  %3470 = vmatpush.bf16.msra.mxu0 %v2514
  %3471 = vmatpush.bf16.msra.mxu0 %v2512
  %3472 = vmatpush.bf16.msra.mxu0 %v2510
  %3473 = vmatpush.bf16.msra.mxu0 %v2508
  %3474 = vmatmul.bf16.gmra.mxu0 %v576
  %v3475 = vpop.f32.mrf.mxu0
  %v3476 = vadd.f32 %v3463, %v3475
  %v3477 = vpop.f32.mrf.mxu0
  %3478 = vdwg.mxu0
  %3479 = vmatpush.bf16.msra.mxu0 %v2538
  %3480 = vmatpush.bf16.msra.mxu0 %v2536
  %3481 = vmatpush.bf16.msra.mxu0 %v2534
  %3482 = vmatpush.bf16.msra.mxu0 %v2532
  %3483 = vmatpush.bf16.msra.mxu0 %v2530
  %3484 = vmatpush.bf16.msra.mxu0 %v2528
  %3485 = vmatpush.bf16.msra.mxu0 %v2526
  %3486 = vmatpush.bf16.msra.mxu0 %v2524
  %3487 = vmatmul.bf16.gmra.mxu0 %v577
  %v3488 = vpop.f32.mrf.mxu0
  %v3489 = vadd.f32 %v3476, %v3488
  %v3490 = vpop.f32.mrf.mxu0
  %3491 = vdwg.mxu0
  %3492 = vmatpush.bf16.msra.mxu0 %v2554
  %3493 = vmatpush.bf16.msra.mxu0 %v2552
  %3494 = vmatpush.bf16.msra.mxu0 %v2550
  %3495 = vmatpush.bf16.msra.mxu0 %v2548
  %3496 = vmatpush.bf16.msra.mxu0 %v2546
  %3497 = vmatpush.bf16.msra.mxu0 %v2544
  %3498 = vmatpush.bf16.msra.mxu0 %v2542
  %3499 = vmatpush.bf16.msra.mxu0 %v2540
  %3500 = vmatmul.bf16.gmra.mxu0 %v580
  %v3501 = vpop.f32.mrf.mxu0
  %v3502 = vadd.f32 %v3489, %v3501
  %v3503 = vpop.f32.mrf.mxu0
  %3504 = vdwg.mxu0
  %3505 = vmatpush.bf16.msra.mxu0 %v2570
  %3506 = vmatpush.bf16.msra.mxu0 %v2568
  %3507 = vmatpush.bf16.msra.mxu0 %v2566
  %3508 = vmatpush.bf16.msra.mxu0 %v2564
  %3509 = vmatpush.bf16.msra.mxu0 %v2562
  %3510 = vmatpush.bf16.msra.mxu0 %v2560
  %3511 = vmatpush.bf16.msra.mxu0 %v2558
  %3512 = vmatpush.bf16.msra.mxu0 %v2556
  %3513 = vmatmul.bf16.gmra.mxu0 %v581
  %v3514 = vpop.f32.mrf.mxu0
  %v3515 = vadd.f32 %v3502, %v3514
  %v3516 = vpop.f32.mrf.mxu0
  %3517 = vdwg.mxu0
  %3518 = vmatpush.bf16.msra.mxu0 %v2586
  %3519 = vmatpush.bf16.msra.mxu0 %v2584
  %3520 = vmatpush.bf16.msra.mxu0 %v2582
  %3521 = vmatpush.bf16.msra.mxu0 %v2580
  %3522 = vmatpush.bf16.msra.mxu0 %v2578
  %3523 = vmatpush.bf16.msra.mxu0 %v2576
  %3524 = vmatpush.bf16.msra.mxu0 %v2574
  %3525 = vmatpush.bf16.msra.mxu0 %v2572
  %3526 = vmatmul.bf16.gmra.mxu0 %v582
  %v3527 = vpop.f32.mrf.mxu0
  %v3528 = vadd.f32 %v3515, %v3527
  %v3529 = vpop.f32.mrf.mxu0
  %3530 = vdwg.mxu0
  %3531 = vmatpush.bf16.msra.mxu0 %v2602
  %3532 = vmatpush.bf16.msra.mxu0 %v2600
  %3533 = vmatpush.bf16.msra.mxu0 %v2598
  %3534 = vmatpush.bf16.msra.mxu0 %v2596
  %3535 = vmatpush.bf16.msra.mxu0 %v2594
  %3536 = vmatpush.bf16.msra.mxu0 %v2592
  %3537 = vmatpush.bf16.msra.mxu0 %v2590
  %3538 = vmatpush.bf16.msra.mxu0 %v2588
  %3539 = vmatmul.bf16.gmra.mxu0 %v583
  %v3540 = vpop.f32.mrf.mxu0
  %v3541 = vadd.f32 %v3528, %v3540
  %v3542 = vpop.f32.mrf.mxu0
  %3543 = vdwg.mxu0
  %3544 = vmatpush.bf16.msra.mxu0 %v2618
  %3545 = vmatpush.bf16.msra.mxu0 %v2616
  %3546 = vmatpush.bf16.msra.mxu0 %v2614
  %3547 = vmatpush.bf16.msra.mxu0 %v2612
  %3548 = vmatpush.bf16.msra.mxu0 %v2610
  %3549 = vmatpush.bf16.msra.mxu0 %v2608
  %3550 = vmatpush.bf16.msra.mxu0 %v2606
  %3551 = vmatpush.bf16.msra.mxu0 %v2604
  %3552 = vmatmul.bf16.gmra.mxu0 %v584
  %v3553 = vpop.f32.mrf.mxu0
  %v3554 = vadd.f32 %v3541, %v3553
  %v3555 = vpop.f32.mrf.mxu0
  %3556 = vdwg.mxu0
  %3557 = vmatpush.bf16.msra.mxu0 %v2634
  %3558 = vmatpush.bf16.msra.mxu0 %v2632
  %3559 = vmatpush.bf16.msra.mxu0 %v2630
  %3560 = vmatpush.bf16.msra.mxu0 %v2628
  %3561 = vmatpush.bf16.msra.mxu0 %v2626
  %3562 = vmatpush.bf16.msra.mxu0 %v2624
  %3563 = vmatpush.bf16.msra.mxu0 %v2622
  %3564 = vmatpush.bf16.msra.mxu0 %v2620
  %3565 = vmatmul.bf16.gmra.mxu0 %v585
  %v3566 = vpop.f32.mrf.mxu0
  %v3567 = vadd.f32 %v3554, %v3566
  %v3568 = vpop.f32.mrf.mxu0
  %3569 = vdwg.mxu0
  %3570 = vmatpush.bf16.msra.mxu0 %v2650
  %3571 = vmatpush.bf16.msra.mxu0 %v2648
  %3572 = vmatpush.bf16.msra.mxu0 %v2646
  %3573 = vmatpush.bf16.msra.mxu0 %v2644
  %3574 = vmatpush.bf16.msra.mxu0 %v2642
  %3575 = vmatpush.bf16.msra.mxu0 %v2640
  %3576 = vmatpush.bf16.msra.mxu0 %v2638
  %3577 = vmatpush.bf16.msra.mxu0 %v2636
  %3578 = vmatmul.bf16.gmra.mxu0 %v586
  %v3579 = vpop.f32.mrf.mxu0
  %v3580 = vadd.f32 %v3567, %v3579
  %v3581 = vpop.f32.mrf.mxu0
  %3582 = vdwg.mxu0
  %3583 = vmatpush.bf16.msra.mxu0 %v2666
  %3584 = vmatpush.bf16.msra.mxu0 %v2664
  %3585 = vmatpush.bf16.msra.mxu0 %v2662
  %3586 = vmatpush.bf16.msra.mxu0 %v2660
  %3587 = vmatpush.bf16.msra.mxu0 %v2658
  %3588 = vmatpush.bf16.msra.mxu0 %v2656
  %3589 = vmatpush.bf16.msra.mxu0 %v2654
  %3590 = vmatpush.bf16.msra.mxu0 %v2652
  %3591 = vmatmul.bf16.gmra.mxu0 %v587
  %v3592 = vpop.f32.mrf.mxu0
  %v3593 = vadd.f32 %v3580, %v3592
  %v3594 = vpop.f32.mrf.mxu0
  %3595 = vdwg.mxu0
  %3596 = vmatpush.bf16.msra.mxu0 %v2171
  %3597 = vmatpush.bf16.msra.mxu0 %v2169
  %3598 = vmatpush.bf16.msra.mxu0 %v2167
  %3599 = vmatpush.bf16.msra.mxu0 %v2165
  %3600 = vmatpush.bf16.msra.mxu0 %v2163
  %3601 = vmatpush.bf16.msra.mxu0 %v2161
  %3602 = vmatpush.bf16.msra.mxu0 %v2159
  %3603 = vmatpush.bf16.msra.mxu0 %v2157
  %3604 = vmatmul.bf16.gmra.mxu0 %v550
  %v3605 = vpop.f32.mrf.mxu0
  %v3606 = vadd.f32 %v545, %v3605
  %v3607 = vpop.f32.mrf.mxu0
  %3608 = vdwg.mxu0
  %3609 = vmatpush.bf16.msra.mxu0 %v2187
  %3610 = vmatpush.bf16.msra.mxu0 %v2185
  %3611 = vmatpush.bf16.msra.mxu0 %v2183
  %3612 = vmatpush.bf16.msra.mxu0 %v2181
  %3613 = vmatpush.bf16.msra.mxu0 %v2179
  %3614 = vmatpush.bf16.msra.mxu0 %v2177
  %3615 = vmatpush.bf16.msra.mxu0 %v2175
  %3616 = vmatpush.bf16.msra.mxu0 %v2173
  %3617 = vmatmul.bf16.gmra.mxu0 %v551
  %v3618 = vpop.f32.mrf.mxu0
  %v3619 = vadd.f32 %v3606, %v3618
  %v3620 = vpop.f32.mrf.mxu0
  %3621 = vdwg.mxu0
  %3622 = vmatpush.bf16.msra.mxu0 %v2203
  %3623 = vmatpush.bf16.msra.mxu0 %v2201
  %3624 = vmatpush.bf16.msra.mxu0 %v2199
  %3625 = vmatpush.bf16.msra.mxu0 %v2197
  %3626 = vmatpush.bf16.msra.mxu0 %v2195
  %3627 = vmatpush.bf16.msra.mxu0 %v2193
  %3628 = vmatpush.bf16.msra.mxu0 %v2191
  %3629 = vmatpush.bf16.msra.mxu0 %v2189
  %3630 = vmatmul.bf16.gmra.mxu0 %v552
  %v3631 = vpop.f32.mrf.mxu0
  %v3632 = vadd.f32 %v3619, %v3631
  %v3633 = vpop.f32.mrf.mxu0
  %3634 = vdwg.mxu0
  %3635 = vmatpush.bf16.msra.mxu0 %v2219
  %3636 = vmatpush.bf16.msra.mxu0 %v2217
  %3637 = vmatpush.bf16.msra.mxu0 %v2215
  %3638 = vmatpush.bf16.msra.mxu0 %v2213
  %3639 = vmatpush.bf16.msra.mxu0 %v2211
  %3640 = vmatpush.bf16.msra.mxu0 %v2209
  %3641 = vmatpush.bf16.msra.mxu0 %v2207
  %3642 = vmatpush.bf16.msra.mxu0 %v2205
  %3643 = vmatmul.bf16.gmra.mxu0 %v553
  %v3644 = vpop.f32.mrf.mxu0
  %v3645 = vadd.f32 %v3632, %v3644
  %v3646 = vpop.f32.mrf.mxu0
  %3647 = vdwg.mxu0
  %3648 = vmatpush.bf16.msra.mxu0 %v2235
  %3649 = vmatpush.bf16.msra.mxu0 %v2233
  %3650 = vmatpush.bf16.msra.mxu0 %v2231
  %3651 = vmatpush.bf16.msra.mxu0 %v2229
  %3652 = vmatpush.bf16.msra.mxu0 %v2227
  %3653 = vmatpush.bf16.msra.mxu0 %v2225
  %3654 = vmatpush.bf16.msra.mxu0 %v2223
  %3655 = vmatpush.bf16.msra.mxu0 %v2221
  %3656 = vmatmul.bf16.gmra.mxu0 %v554
  %v3657 = vpop.f32.mrf.mxu0
  %v3658 = vadd.f32 %v3645, %v3657
  %v3659 = vpop.f32.mrf.mxu0
  %3660 = vdwg.mxu0
  %3661 = vmatpush.bf16.msra.mxu0 %v2251
  %3662 = vmatpush.bf16.msra.mxu0 %v2249
  %3663 = vmatpush.bf16.msra.mxu0 %v2247
  %3664 = vmatpush.bf16.msra.mxu0 %v2245
  %3665 = vmatpush.bf16.msra.mxu0 %v2243
  %3666 = vmatpush.bf16.msra.mxu0 %v2241
  %3667 = vmatpush.bf16.msra.mxu0 %v2239
  %3668 = vmatpush.bf16.msra.mxu0 %v2237
  %3669 = vmatmul.bf16.gmra.mxu0 %v555
  %v3670 = vpop.f32.mrf.mxu0
  %v3671 = vadd.f32 %v3658, %v3670
  %v3672 = vpop.f32.mrf.mxu0
  %3673 = vdwg.mxu0
  %3674 = vmatpush.bf16.msra.mxu0 %v2267
  %3675 = vmatpush.bf16.msra.mxu0 %v2265
  %3676 = vmatpush.bf16.msra.mxu0 %v2263
  %3677 = vmatpush.bf16.msra.mxu0 %v2261
  %3678 = vmatpush.bf16.msra.mxu0 %v2259
  %3679 = vmatpush.bf16.msra.mxu0 %v2257
  %3680 = vmatpush.bf16.msra.mxu0 %v2255
  %3681 = vmatpush.bf16.msra.mxu0 %v2253
  %3682 = vmatmul.bf16.gmra.mxu0 %v556
  %v3683 = vpop.f32.mrf.mxu0
  %v3684 = vadd.f32 %v3671, %v3683
  %v3685 = vpop.f32.mrf.mxu0
  %3686 = vdwg.mxu0
  %3687 = vmatpush.bf16.msra.mxu0 %v2283
  %3688 = vmatpush.bf16.msra.mxu0 %v2281
  %3689 = vmatpush.bf16.msra.mxu0 %v2279
  %3690 = vmatpush.bf16.msra.mxu0 %v2277
  %3691 = vmatpush.bf16.msra.mxu0 %v2275
  %3692 = vmatpush.bf16.msra.mxu0 %v2273
  %3693 = vmatpush.bf16.msra.mxu0 %v2271
  %3694 = vmatpush.bf16.msra.mxu0 %v2269
  %3695 = vmatmul.bf16.gmra.mxu0 %v557
  %v3696 = vpop.f32.mrf.mxu0
  %v3697 = vadd.f32 %v3684, %v3696
  %v3698 = vpop.f32.mrf.mxu0
  %3699 = vdwg.mxu0
  %3700 = vmatpush.bf16.msra.mxu0 %v2299
  %3701 = vmatpush.bf16.msra.mxu0 %v2297
  %3702 = vmatpush.bf16.msra.mxu0 %v2295
  %3703 = vmatpush.bf16.msra.mxu0 %v2293
  %3704 = vmatpush.bf16.msra.mxu0 %v2291
  %3705 = vmatpush.bf16.msra.mxu0 %v2289
  %3706 = vmatpush.bf16.msra.mxu0 %v2287
  %3707 = vmatpush.bf16.msra.mxu0 %v2285
  %3708 = vmatmul.bf16.gmra.mxu0 %v560
  %v3709 = vpop.f32.mrf.mxu0
  %v3710 = vadd.f32 %v3697, %v3709
  %v3711 = vpop.f32.mrf.mxu0
  %3712 = vdwg.mxu0
  %3713 = vmatpush.bf16.msra.mxu0 %v2315
  %3714 = vmatpush.bf16.msra.mxu0 %v2313
  %3715 = vmatpush.bf16.msra.mxu0 %v2311
  %3716 = vmatpush.bf16.msra.mxu0 %v2309
  %3717 = vmatpush.bf16.msra.mxu0 %v2307
  %3718 = vmatpush.bf16.msra.mxu0 %v2305
  %3719 = vmatpush.bf16.msra.mxu0 %v2303
  %3720 = vmatpush.bf16.msra.mxu0 %v2301
  %3721 = vmatmul.bf16.gmra.mxu0 %v561
  %v3722 = vpop.f32.mrf.mxu0
  %v3723 = vadd.f32 %v3710, %v3722
  %v3724 = vpop.f32.mrf.mxu0
  %3725 = vdwg.mxu0
  %3726 = vmatpush.bf16.msra.mxu0 %v2331
  %3727 = vmatpush.bf16.msra.mxu0 %v2329
  %3728 = vmatpush.bf16.msra.mxu0 %v2327
  %3729 = vmatpush.bf16.msra.mxu0 %v2325
  %3730 = vmatpush.bf16.msra.mxu0 %v2323
  %3731 = vmatpush.bf16.msra.mxu0 %v2321
  %3732 = vmatpush.bf16.msra.mxu0 %v2319
  %3733 = vmatpush.bf16.msra.mxu0 %v2317
  %3734 = vmatmul.bf16.gmra.mxu0 %v562
  %v3735 = vpop.f32.mrf.mxu0
  %v3736 = vadd.f32 %v3723, %v3735
  %v3737 = vpop.f32.mrf.mxu0
  %3738 = vdwg.mxu0
  %3739 = vmatpush.bf16.msra.mxu0 %v2347
  %3740 = vmatpush.bf16.msra.mxu0 %v2345
  %3741 = vmatpush.bf16.msra.mxu0 %v2343
  %3742 = vmatpush.bf16.msra.mxu0 %v2341
  %3743 = vmatpush.bf16.msra.mxu0 %v2339
  %3744 = vmatpush.bf16.msra.mxu0 %v2337
  %3745 = vmatpush.bf16.msra.mxu0 %v2335
  %3746 = vmatpush.bf16.msra.mxu0 %v2333
  %3747 = vmatmul.bf16.gmra.mxu0 %v563
  %v3748 = vpop.f32.mrf.mxu0
  %v3749 = vadd.f32 %v3736, %v3748
  %v3750 = vpop.f32.mrf.mxu0
  %3751 = vdwg.mxu0
  %3752 = vmatpush.bf16.msra.mxu0 %v2363
  %3753 = vmatpush.bf16.msra.mxu0 %v2361
  %3754 = vmatpush.bf16.msra.mxu0 %v2359
  %3755 = vmatpush.bf16.msra.mxu0 %v2357
  %3756 = vmatpush.bf16.msra.mxu0 %v2355
  %3757 = vmatpush.bf16.msra.mxu0 %v2353
  %3758 = vmatpush.bf16.msra.mxu0 %v2351
  %3759 = vmatpush.bf16.msra.mxu0 %v2349
  %3760 = vmatmul.bf16.gmra.mxu0 %v564
  %v3761 = vpop.f32.mrf.mxu0
  %v3762 = vadd.f32 %v3749, %v3761
  %v3763 = vpop.f32.mrf.mxu0
  %3764 = vdwg.mxu0
  %3765 = vmatpush.bf16.msra.mxu0 %v2379
  %3766 = vmatpush.bf16.msra.mxu0 %v2377
  %3767 = vmatpush.bf16.msra.mxu0 %v2375
  %3768 = vmatpush.bf16.msra.mxu0 %v2373
  %3769 = vmatpush.bf16.msra.mxu0 %v2371
  %3770 = vmatpush.bf16.msra.mxu0 %v2369
  %3771 = vmatpush.bf16.msra.mxu0 %v2367
  %3772 = vmatpush.bf16.msra.mxu0 %v2365
  %3773 = vmatmul.bf16.gmra.mxu0 %v565
  %v3774 = vpop.f32.mrf.mxu0
  %v3775 = vadd.f32 %v3762, %v3774
  %v3776 = vpop.f32.mrf.mxu0
  %3777 = vdwg.mxu0
  %3778 = vmatpush.bf16.msra.mxu0 %v2395
  %3779 = vmatpush.bf16.msra.mxu0 %v2393
  %3780 = vmatpush.bf16.msra.mxu0 %v2391
  %3781 = vmatpush.bf16.msra.mxu0 %v2389
  %3782 = vmatpush.bf16.msra.mxu0 %v2387
  %3783 = vmatpush.bf16.msra.mxu0 %v2385
  %3784 = vmatpush.bf16.msra.mxu0 %v2383
  %3785 = vmatpush.bf16.msra.mxu0 %v2381
  %3786 = vmatmul.bf16.gmra.mxu0 %v566
  %v3787 = vpop.f32.mrf.mxu0
  %v3788 = vadd.f32 %v3775, %v3787
  %v3789 = vpop.f32.mrf.mxu0
  %3790 = vdwg.mxu0
  %3791 = vmatpush.bf16.msra.mxu0 %v2411
  %3792 = vmatpush.bf16.msra.mxu0 %v2409
  %3793 = vmatpush.bf16.msra.mxu0 %v2407
  %3794 = vmatpush.bf16.msra.mxu0 %v2405
  %3795 = vmatpush.bf16.msra.mxu0 %v2403
  %3796 = vmatpush.bf16.msra.mxu0 %v2401
  %3797 = vmatpush.bf16.msra.mxu0 %v2399
  %3798 = vmatpush.bf16.msra.mxu0 %v2397
  %3799 = vmatmul.bf16.gmra.mxu0 %v567
  %v3800 = vpop.f32.mrf.mxu0
  %v3801 = vadd.f32 %v3788, %v3800
  %v3802 = vpop.f32.mrf.mxu0
  %3803 = vdwg.mxu0
  %3804 = vmatpush.bf16.msra.mxu0 %v2427
  %3805 = vmatpush.bf16.msra.mxu0 %v2425
  %3806 = vmatpush.bf16.msra.mxu0 %v2423
  %3807 = vmatpush.bf16.msra.mxu0 %v2421
  %3808 = vmatpush.bf16.msra.mxu0 %v2419
  %3809 = vmatpush.bf16.msra.mxu0 %v2417
  %3810 = vmatpush.bf16.msra.mxu0 %v2415
  %3811 = vmatpush.bf16.msra.mxu0 %v2413
  %3812 = vmatmul.bf16.gmra.mxu0 %v570
  %v3813 = vpop.f32.mrf.mxu0
  %v3814 = vadd.f32 %v3801, %v3813
  %v3815 = vpop.f32.mrf.mxu0
  %3816 = vdwg.mxu0
  %3817 = vmatpush.bf16.msra.mxu0 %v2443
  %3818 = vmatpush.bf16.msra.mxu0 %v2441
  %3819 = vmatpush.bf16.msra.mxu0 %v2439
  %3820 = vmatpush.bf16.msra.mxu0 %v2437
  %3821 = vmatpush.bf16.msra.mxu0 %v2435
  %3822 = vmatpush.bf16.msra.mxu0 %v2433
  %3823 = vmatpush.bf16.msra.mxu0 %v2431
  %3824 = vmatpush.bf16.msra.mxu0 %v2429
  %3825 = vmatmul.bf16.gmra.mxu0 %v571
  %v3826 = vpop.f32.mrf.mxu0
  %v3827 = vadd.f32 %v3814, %v3826
  %v3828 = vpop.f32.mrf.mxu0
  %3829 = vdwg.mxu0
  %3830 = vmatpush.bf16.msra.mxu0 %v2459
  %3831 = vmatpush.bf16.msra.mxu0 %v2457
  %3832 = vmatpush.bf16.msra.mxu0 %v2455
  %3833 = vmatpush.bf16.msra.mxu0 %v2453
  %3834 = vmatpush.bf16.msra.mxu0 %v2451
  %3835 = vmatpush.bf16.msra.mxu0 %v2449
  %3836 = vmatpush.bf16.msra.mxu0 %v2447
  %3837 = vmatpush.bf16.msra.mxu0 %v2445
  %3838 = vmatmul.bf16.gmra.mxu0 %v572
  %v3839 = vpop.f32.mrf.mxu0
  %v3840 = vadd.f32 %v3827, %v3839
  %v3841 = vpop.f32.mrf.mxu0
  %3842 = vdwg.mxu0
  %3843 = vmatpush.bf16.msra.mxu0 %v2475
  %3844 = vmatpush.bf16.msra.mxu0 %v2473
  %3845 = vmatpush.bf16.msra.mxu0 %v2471
  %3846 = vmatpush.bf16.msra.mxu0 %v2469
  %3847 = vmatpush.bf16.msra.mxu0 %v2467
  %3848 = vmatpush.bf16.msra.mxu0 %v2465
  %3849 = vmatpush.bf16.msra.mxu0 %v2463
  %3850 = vmatpush.bf16.msra.mxu0 %v2461
  %3851 = vmatmul.bf16.gmra.mxu0 %v573
  %v3852 = vpop.f32.mrf.mxu0
  %v3853 = vadd.f32 %v3840, %v3852
  %v3854 = vpop.f32.mrf.mxu0
  %3855 = vdwg.mxu0
  %3856 = vmatpush.bf16.msra.mxu0 %v2491
  %3857 = vmatpush.bf16.msra.mxu0 %v2489
  %3858 = vmatpush.bf16.msra.mxu0 %v2487
  %3859 = vmatpush.bf16.msra.mxu0 %v2485
  %3860 = vmatpush.bf16.msra.mxu0 %v2483
  %3861 = vmatpush.bf16.msra.mxu0 %v2481
  %3862 = vmatpush.bf16.msra.mxu0 %v2479
  %3863 = vmatpush.bf16.msra.mxu0 %v2477
  %3864 = vmatmul.bf16.gmra.mxu0 %v574
  %v3865 = vpop.f32.mrf.mxu0
  %v3866 = vadd.f32 %v3853, %v3865
  %v3867 = vpop.f32.mrf.mxu0
  %3868 = vdwg.mxu0
  %3869 = vmatpush.bf16.msra.mxu0 %v2507
  %3870 = vmatpush.bf16.msra.mxu0 %v2505
  %3871 = vmatpush.bf16.msra.mxu0 %v2503
  %3872 = vmatpush.bf16.msra.mxu0 %v2501
  %3873 = vmatpush.bf16.msra.mxu0 %v2499
  %3874 = vmatpush.bf16.msra.mxu0 %v2497
  %3875 = vmatpush.bf16.msra.mxu0 %v2495
  %3876 = vmatpush.bf16.msra.mxu0 %v2493
  %3877 = vmatmul.bf16.gmra.mxu0 %v575
  %v3878 = vpop.f32.mrf.mxu0
  %v3879 = vadd.f32 %v3866, %v3878
  %v3880 = vpop.f32.mrf.mxu0
  %3881 = vdwg.mxu0
  %3882 = vmatpush.bf16.msra.mxu0 %v2523
  %3883 = vmatpush.bf16.msra.mxu0 %v2521
  %3884 = vmatpush.bf16.msra.mxu0 %v2519
  %3885 = vmatpush.bf16.msra.mxu0 %v2517
  %3886 = vmatpush.bf16.msra.mxu0 %v2515
  %3887 = vmatpush.bf16.msra.mxu0 %v2513
  %3888 = vmatpush.bf16.msra.mxu0 %v2511
  %3889 = vmatpush.bf16.msra.mxu0 %v2509
  %3890 = vmatmul.bf16.gmra.mxu0 %v576
  %v3891 = vpop.f32.mrf.mxu0
  %v3892 = vadd.f32 %v3879, %v3891
  %v3893 = vpop.f32.mrf.mxu0
  %3894 = vdwg.mxu0
  %3895 = vmatpush.bf16.msra.mxu0 %v2539
  %3896 = vmatpush.bf16.msra.mxu0 %v2537
  %3897 = vmatpush.bf16.msra.mxu0 %v2535
  %3898 = vmatpush.bf16.msra.mxu0 %v2533
  %3899 = vmatpush.bf16.msra.mxu0 %v2531
  %3900 = vmatpush.bf16.msra.mxu0 %v2529
  %3901 = vmatpush.bf16.msra.mxu0 %v2527
  %3902 = vmatpush.bf16.msra.mxu0 %v2525
  %3903 = vmatmul.bf16.gmra.mxu0 %v577
  %v3904 = vpop.f32.mrf.mxu0
  %v3905 = vadd.f32 %v3892, %v3904
  %v3906 = vpop.f32.mrf.mxu0
  %3907 = vdwg.mxu0
  %3908 = vmatpush.bf16.msra.mxu0 %v2555
  %3909 = vmatpush.bf16.msra.mxu0 %v2553
  %3910 = vmatpush.bf16.msra.mxu0 %v2551
  %3911 = vmatpush.bf16.msra.mxu0 %v2549
  %3912 = vmatpush.bf16.msra.mxu0 %v2547
  %3913 = vmatpush.bf16.msra.mxu0 %v2545
  %3914 = vmatpush.bf16.msra.mxu0 %v2543
  %3915 = vmatpush.bf16.msra.mxu0 %v2541
  %3916 = vmatmul.bf16.gmra.mxu0 %v580
  %v3917 = vpop.f32.mrf.mxu0
  %v3918 = vadd.f32 %v3905, %v3917
  %v3919 = vpop.f32.mrf.mxu0
  %3920 = vdwg.mxu0
  %3921 = vmatpush.bf16.msra.mxu0 %v2571
  %3922 = vmatpush.bf16.msra.mxu0 %v2569
  %3923 = vmatpush.bf16.msra.mxu0 %v2567
  %3924 = vmatpush.bf16.msra.mxu0 %v2565
  %3925 = vmatpush.bf16.msra.mxu0 %v2563
  %3926 = vmatpush.bf16.msra.mxu0 %v2561
  %3927 = vmatpush.bf16.msra.mxu0 %v2559
  %3928 = vmatpush.bf16.msra.mxu0 %v2557
  %3929 = vmatmul.bf16.gmra.mxu0 %v581
  %v3930 = vpop.f32.mrf.mxu0
  %v3931 = vadd.f32 %v3918, %v3930
  %v3932 = vpop.f32.mrf.mxu0
  %3933 = vdwg.mxu0
  %3934 = vmatpush.bf16.msra.mxu0 %v2587
  %3935 = vmatpush.bf16.msra.mxu0 %v2585
  %3936 = vmatpush.bf16.msra.mxu0 %v2583
  %3937 = vmatpush.bf16.msra.mxu0 %v2581
  %3938 = vmatpush.bf16.msra.mxu0 %v2579
  %3939 = vmatpush.bf16.msra.mxu0 %v2577
  %3940 = vmatpush.bf16.msra.mxu0 %v2575
  %3941 = vmatpush.bf16.msra.mxu0 %v2573
  %3942 = vmatmul.bf16.gmra.mxu0 %v582
  %v3943 = vpop.f32.mrf.mxu0
  %v3944 = vadd.f32 %v3931, %v3943
  %v3945 = vpop.f32.mrf.mxu0
  %3946 = vdwg.mxu0
  %3947 = vmatpush.bf16.msra.mxu0 %v2603
  %3948 = vmatpush.bf16.msra.mxu0 %v2601
  %3949 = vmatpush.bf16.msra.mxu0 %v2599
  %3950 = vmatpush.bf16.msra.mxu0 %v2597
  %3951 = vmatpush.bf16.msra.mxu0 %v2595
  %3952 = vmatpush.bf16.msra.mxu0 %v2593
  %3953 = vmatpush.bf16.msra.mxu0 %v2591
  %3954 = vmatpush.bf16.msra.mxu0 %v2589
  %3955 = vmatmul.bf16.gmra.mxu0 %v583
  %v3956 = vpop.f32.mrf.mxu0
  %v3957 = vadd.f32 %v3944, %v3956
  %v3958 = vpop.f32.mrf.mxu0
  %3959 = vdwg.mxu0
  %3960 = vmatpush.bf16.msra.mxu0 %v2619
  %3961 = vmatpush.bf16.msra.mxu0 %v2617
  %3962 = vmatpush.bf16.msra.mxu0 %v2615
  %3963 = vmatpush.bf16.msra.mxu0 %v2613
  %3964 = vmatpush.bf16.msra.mxu0 %v2611
  %3965 = vmatpush.bf16.msra.mxu0 %v2609
  %3966 = vmatpush.bf16.msra.mxu0 %v2607
  %3967 = vmatpush.bf16.msra.mxu0 %v2605
  %3968 = vmatmul.bf16.gmra.mxu0 %v584
  %v3969 = vpop.f32.mrf.mxu0
  %v3970 = vadd.f32 %v3957, %v3969
  %v3971 = vpop.f32.mrf.mxu0
  %3972 = vdwg.mxu0
  %3973 = vmatpush.bf16.msra.mxu0 %v2635
  %3974 = vmatpush.bf16.msra.mxu0 %v2633
  %3975 = vmatpush.bf16.msra.mxu0 %v2631
  %3976 = vmatpush.bf16.msra.mxu0 %v2629
  %3977 = vmatpush.bf16.msra.mxu0 %v2627
  %3978 = vmatpush.bf16.msra.mxu0 %v2625
  %3979 = vmatpush.bf16.msra.mxu0 %v2623
  %3980 = vmatpush.bf16.msra.mxu0 %v2621
  %3981 = vmatmul.bf16.gmra.mxu0 %v585
  %v3982 = vpop.f32.mrf.mxu0
  %v3983 = vadd.f32 %v3970, %v3982
  %v3984 = vpop.f32.mrf.mxu0
  %3985 = vdwg.mxu0
  %3986 = vmatpush.bf16.msra.mxu0 %v2651
  %3987 = vmatpush.bf16.msra.mxu0 %v2649
  %3988 = vmatpush.bf16.msra.mxu0 %v2647
  %3989 = vmatpush.bf16.msra.mxu0 %v2645
  %3990 = vmatpush.bf16.msra.mxu0 %v2643
  %3991 = vmatpush.bf16.msra.mxu0 %v2641
  %3992 = vmatpush.bf16.msra.mxu0 %v2639
  %3993 = vmatpush.bf16.msra.mxu0 %v2637
  %3994 = vmatmul.bf16.gmra.mxu0 %v586
  %v3995 = vpop.f32.mrf.mxu0
  %v3996 = vadd.f32 %v3983, %v3995
  %v3997 = vpop.f32.mrf.mxu0
  %3998 = vdwg.mxu0
  %3999 = vmatpush.bf16.msra.mxu0 %v2667
  %4000 = vmatpush.bf16.msra.mxu0 %v2665
  %4001 = vmatpush.bf16.msra.mxu0 %v2663
  %4002 = vmatpush.bf16.msra.mxu0 %v2661
  %4003 = vmatpush.bf16.msra.mxu0 %v2659
  %4004 = vmatpush.bf16.msra.mxu0 %v2657
  %4005 = vmatpush.bf16.msra.mxu0 %v2655
  %4006 = vmatpush.bf16.msra.mxu0 %v2653
  %4007 = vmatmul.bf16.gmra.mxu0 %v587
  %v4008 = vpop.f32.mrf.mxu0
  %v4009 = vadd.f32 %v3996, %v4008
  %v4010 = vpop.f32.mrf.mxu0
  %4011 = vdwg.mxu0
  %v4012 = vmax.f32 %v3593, 0.0
  %v4013 = vmax.f32 %v4009, 0.0
  %v4014 = vpack.c.bf16 %v4012, %v4012
  %v4015 = vpack.c.bf16 %v4013, %v4013
  %v4016 = vld [vmem:[%s3] sm:$0xf]
  %v4017 = vld [vmem:[%s3 + $0x4] sm:$0xf]
  %v4018 = vld [vmem:[%s3 + $0x8] sm:$0xf]
  %v4019 = vld [vmem:[%s3 + $0xc] sm:$0xf]
  %v4020 = vld [vmem:[%s3 + $0x10] sm:$0xf]
  %v4021 = vld [vmem:[%s3 + $0x14] sm:$0xf]
  %v4022 = vld [vmem:[%s3 + $0x18] sm:$0xf]
  %v4023 = vld [vmem:[%s3 + $0x1c] sm:$0xf]
  %v4024 = vld [vmem:[%s3 + $0x20] sm:$0xf]
  %v4025 = vld [vmem:[%s3 + $0x24] sm:$0xf]
  %v4026 = vld [vmem:[%s3 + $0x28] sm:$0xf]
  %v4027 = vld [vmem:[%s3 + $0x2c] sm:$0xf]
  %v4028 = vld [vmem:[%s3 + $0x30] sm:$0xf]
  %v4029 = vld [vmem:[%s3 + $0x34] sm:$0xf]
  %v4030 = vld [vmem:[%s3 + $0x38] sm:$0xf]
  %v4031 = vld [vmem:[%s3 + $0x3c] sm:$0xf]
  %v4032 = vld [vmem:[%s3 + $0x40] sm:$0xf]
  %v4033 = vld [vmem:[%s3 + $0x44] sm:$0xf]
  %v4034 = vld [vmem:[%s3 + $0x48] sm:$0xf]
  %v4035 = vld [vmem:[%s3 + $0x4c] sm:$0xf]
  %v4036 = vld [vmem:[%s3 + $0x50] sm:$0xf]
  %v4037 = vld [vmem:[%s3 + $0x54] sm:$0xf]
  %v4038 = vld [vmem:[%s3 + $0x58] sm:$0xf]
  %v4039 = vld [vmem:[%s3 + $0x5c] sm:$0xf]
  %v4040 = vld [vmem:[%s3 + $0x60] sm:$0xf]
  %v4041 = vld [vmem:[%s3 + $0x64] sm:$0xf]
  %v4042 = vld [vmem:[%s3 + $0x68] sm:$0xf]
  %v4043 = vld [vmem:[%s3 + $0x6c] sm:$0xf]
  %v4044 = vld [vmem:[%s3 + $0x70] sm:$0xf]
  %v4045 = vld [vmem:[%s3 + $0x74] sm:$0xf]
  %v4046 = vld [vmem:[%s3 + $0x78] sm:$0xf]
  %v4047 = vld [vmem:[%s3 + $0x7c] sm:$0xf]
  %v4048 = vld [vmem:[%s4] sm:$0x1]
  %v4050 = vperm.slane %v4048, 0
  %v4084 = vunpack.c.l.b16 %v4016
  %v4085 = vunpack.c.l.b16 %v4017
  %v4086 = vunpack.c.l.b16 %v4018
  %v4087 = vunpack.c.l.b16 %v4019
  %v4088 = vunpack.c.l.b16 %v4020
  %v4089 = vunpack.c.l.b16 %v4021
  %v4090 = vunpack.c.l.b16 %v4022
  %v4091 = vunpack.c.l.b16 %v4023
  %v4092 = vunpack.c.l.b16 %v4024
  %v4093 = vunpack.c.l.b16 %v4025
  %v4094 = vunpack.c.l.b16 %v4026
  %v4095 = vunpack.c.l.b16 %v4027
  %v4096 = vunpack.c.l.b16 %v4028
  %v4097 = vunpack.c.l.b16 %v4029
  %v4098 = vunpack.c.l.b16 %v4030
  %v4099 = vunpack.c.l.b16 %v4031
  %v4100 = vunpack.c.l.b16 %v4032
  %v4101 = vunpack.c.l.b16 %v4033
  %v4102 = vunpack.c.l.b16 %v4034
  %v4103 = vunpack.c.l.b16 %v4035
  %v4104 = vunpack.c.l.b16 %v4036
  %v4105 = vunpack.c.l.b16 %v4037
  %v4106 = vunpack.c.l.b16 %v4038
  %v4107 = vunpack.c.l.b16 %v4039
  %v4108 = vunpack.c.l.b16 %v4040
  %v4109 = vunpack.c.l.b16 %v4041
  %v4110 = vunpack.c.l.b16 %v4042
  %v4111 = vunpack.c.l.b16 %v4043
  %v4112 = vunpack.c.l.b16 %v4044
  %v4113 = vunpack.c.l.b16 %v4045
  %v4114 = vunpack.c.l.b16 %v4046
  %v4115 = vunpack.c.l.b16 %v4047
  %v4116 = vpack.c.b16 %v4085, %v4084
  %v4117 = vpack.c.b16 %v4087, %v4086
  %v4118 = vpack.c.b16 %v4089, %v4088
  %v4119 = vpack.c.b16 %v4091, %v4090
  %v4120 = vpack.c.b16 %v4093, %v4092
  %v4121 = vpack.c.b16 %v4095, %v4094
  %v4122 = vpack.c.b16 %v4097, %v4096
  %v4123 = vpack.c.b16 %v4099, %v4098
  %v4124 = vpack.c.b16 %v4101, %v4100
  %v4125 = vpack.c.b16 %v4103, %v4102
  %v4126 = vpack.c.b16 %v4105, %v4104
  %v4127 = vpack.c.b16 %v4107, %v4106
  %v4128 = vpack.c.b16 %v4109, %v4108
  %v4129 = vpack.c.b16 %v4111, %v4110
  %v4130 = vpack.c.b16 %v4113, %v4112
  %v4131 = vpack.c.b16 %v4115, %v4114
  %4148 = vmatpush.bf16.msra.mxu0 %v4123
  %4149 = vmatpush.bf16.msra.mxu0 %v4122
  %4150 = vmatpush.bf16.msra.mxu0 %v4121
  %4151 = vmatpush.bf16.msra.mxu0 %v4120
  %4152 = vmatpush.bf16.msra.mxu0 %v4119
  %4153 = vmatpush.bf16.msra.mxu0 %v4118
  %4154 = vmatpush.bf16.msra.mxu0 %v4117
  %4155 = vmatpush.bf16.msra.mxu0 %v4116
  %4156 = vmatmul.bf16.gmra.mxu0 %v4014
  %v4157 = vpop.f32.mrf.mxu0
  %v4158 = vadd.f32 %v4050, %v4157
  %v4159 = vpop.f32.mrf.mxu0
  %4160 = vdwg.mxu0
  %4161 = vmatpush.bf16.msra.mxu0 %v4131
  %4162 = vmatpush.bf16.msra.mxu0 %v4130
  %4163 = vmatpush.bf16.msra.mxu0 %v4129
  %4164 = vmatpush.bf16.msra.mxu0 %v4128
  %4165 = vmatpush.bf16.msra.mxu0 %v4127
  %4166 = vmatpush.bf16.msra.mxu0 %v4126
  %4167 = vmatpush.bf16.msra.mxu0 %v4125
  %4168 = vmatpush.bf16.msra.mxu0 %v4124
  %4169 = vmatmul.bf16.gmra.mxu0 %v4015
  %v4170 = vpop.f32.mrf.mxu0
  %v4171 = vadd.f32 %v4158, %v4170
  %v4172 = vpop.f32.mrf.mxu0
  %4173 = vdwg.mxu0
  %v4174 = vmax.f32 %v4171, 0.0
  %v4175 = vpack.c.bf16 %v4174, %v4174
  %v4176 = vld [vmem:[%s5] sm:$0xf]
  %v4177 = vld [vmem:[%s5 + $0x4] sm:$0xf]
  %v4178 = vld [vmem:[%s5 + $0x8] sm:$0xf]
  %v4179 = vld [vmem:[%s5 + $0xc] sm:$0xf]
  %v4180 = vld [vmem:[%s5 + $0x10] sm:$0xf]
  %v4181 = vld [vmem:[%s5 + $0x14] sm:$0xf]
  %v4182 = vld [vmem:[%s5 + $0x18] sm:$0xf]
  %v4183 = vld [vmem:[%s5 + $0x1c] sm:$0xf]
  %v4184 = vld [vmem:[%s5 + $0x20] sm:$0xf]
  %v4185 = vld [vmem:[%s5 + $0x24] sm:$0xf]
  %v4186 = vld [vmem:[%s5 + $0x28] sm:$0xf]
  %v4187 = vld [vmem:[%s5 + $0x2c] sm:$0xf]
  %v4188 = vld [vmem:[%s5 + $0x30] sm:$0xf]
  %v4189 = vld [vmem:[%s5 + $0x34] sm:$0xf]
  %v4190 = vld [vmem:[%s5 + $0x38] sm:$0xf]
  %v4191 = vld [vmem:[%s5 + $0x3c] sm:$0xf]
  %v4192 = vld [vmem:[%s6] sm:$0x1]
  %v4194 = vperm.slane %v4192, 0
  %v4212 = vunpack.c.l.b16 %v4176
  %v4213 = vunpack.c.l.b16 %v4177
  %v4214 = vunpack.c.l.b16 %v4178
  %v4215 = vunpack.c.l.b16 %v4179
  %v4216 = vunpack.c.l.b16 %v4180
  %v4217 = vunpack.c.l.b16 %v4181
  %v4218 = vunpack.c.l.b16 %v4182
  %v4219 = vunpack.c.l.b16 %v4183
  %v4220 = vunpack.c.l.b16 %v4184
  %v4221 = vunpack.c.l.b16 %v4185
  %v4222 = vunpack.c.l.b16 %v4186
  %v4223 = vunpack.c.l.b16 %v4187
  %v4224 = vunpack.c.l.b16 %v4188
  %v4225 = vunpack.c.l.b16 %v4189
  %v4226 = vunpack.c.l.b16 %v4190
  %v4227 = vunpack.c.l.b16 %v4191
  %v4228 = vpack.c.b16 %v4213, %v4212
  %v4229 = vpack.c.b16 %v4215, %v4214
  %v4230 = vpack.c.b16 %v4217, %v4216
  %v4231 = vpack.c.b16 %v4219, %v4218
  %v4232 = vpack.c.b16 %v4221, %v4220
  %v4233 = vpack.c.b16 %v4223, %v4222
  %v4234 = vpack.c.b16 %v4225, %v4224
  %v4235 = vpack.c.b16 %v4227, %v4226
  %4244 = vmatpush.bf16.msra.mxu0 %v4235
  %4245 = vmatpush.bf16.msra.mxu0 %v4234
  %4246 = vmatpush.bf16.msra.mxu0 %v4233
  %4247 = vmatpush.bf16.msra.mxu0 %v4232
  %4248 = vmatpush.bf16.msra.mxu0 %v4231
  %4249 = vmatpush.bf16.msra.mxu0 %v4230
  %4250 = vmatpush.bf16.msra.mxu0 %v4229
  %4251 = vmatpush.bf16.msra.mxu0 %v4228
  %4252 = vmatmul.bf16.gmra.mxu0 %v4175
  %v4253 = vpop.f32.mrf.mxu0
  %v4254 = vadd.f32 %v4194, %v4253
  %v4255 = vpop.f32.mrf.mxu0
  %4256 = vdwg.mxu0
  %4257 = vst [vmem:[%s7] sm:$0x3] %v4254
  // Predicated region
  $region30: #{cnn_forward.5} parent=0 // pred_check
    _
  $region31: #{cnn_forward.5} parent=0 // pred_check_branch
    %4259 = sbr.rel (0) target = $region33
  $region32: #{cnn_forward.5} parent=0 // pred_region
    _
  $region33: #{cnn_forward.5} parent=0 // pred_fallthru
    _
  // Predicated region
  $region34: #{cnn_forward.5} parent=0 // pred_check
    _
  $region35: #{cnn_forward.5} parent=0 // pred_check_branch
    %4261 = sbr.rel (0) target = $region37
  $region36: #{cnn_forward.5} parent=0 // pred_region
    _
  $region37: #{cnn_forward.5} parent=0 // pred_fallthru
    _

</llo_original>
